<compile_context>
chip_gen: v6e
topology: v6e:2x2x1
jax: 0.10.0
libtpu: 0.0.40
codegen_flags: <defaults>
</compile_context>

<pallas_src>
import functools

import jax
import jax.numpy as jnp
from jax import lax
from jax.experimental import pallas as pl
from jax.experimental.pallas import tpu as pltpu

EPS = 1e-5  # PyTorch BatchNorm1d default eps

# Packed small-parameter layout: one (15, 1024) f32 array.
#   rows 0..8  : biases b1(64) b2(128) b3(1024) bf1(512) bf2(256) bf3(9)
#                c1(64) c2(128) c3(1024), zero-padded to 1024 lanes
#   rows 9..11 : STN  conv1 weight rows (3, 64)
#   rows 12..14: main conv1 weight rows (3, 64)
_PACK_ROWS, _PACK_COLS = 15, 1024

_SINGLE_BUFFER_WEIGHTS = True  # set False if the installed Pallas rejects Buffered(1)


# ---------------------------------------------------------------- kernel ----

def _pointnet_fused_kernel(chunk_pts,          # static python int (bound via partial)
                           x_ref,              # (Bt, 3, N) f32, channel-major
                           pack_ref,           # (15, 1024) f32 packed small params
                           w2_ref, w3_ref,     # STN convs 64->128->1024 (bf16)
                           wf1_ref, wf2_ref, wf3_ref,   # STN FC head (bf16)
                           m2_ref, m3_ref,     # main convs 64->128->1024 (bf16)
                           gfeat_ref, trans_ref):
    Bt, C, N = x_ref.shape
    R = chunk_pts
    f32 = jnp.float32

    pk = pack_ref[...]                       # (15, 1024) f32
    b1 = pk[0, :64]; b2 = pk[1, :128]; b3 = pk[2, :]
    bf1 = pk[3, :512]; bf2 = pk[4, :256]; bf3 = pk[5, :9]
    c1 = pk[6, :64]; c2 = pk[7, :128]; c3 = pk[8, :]
    w1r = [pk[9 + k, :64] for k in range(C)]      # STN conv1 rows (K=3, VPU)
    m1r = [pk[12 + k, :64] for k in range(C)]     # main conv1 rows (K=3, VPU)

    w2 = w2_ref[...]; w3 = w3_ref[...]
    wf1 = wf1_ref[...]; wf2 = wf2_ref[...]; wf3 = wf3_ref[...]
    m2 = m2_ref[...]; m3 = m3_ref[...]

    def point_chunk(c0):
        # lane-dense (Bt, 3, R) slice of the native-layout block, transposed to
        # (Bt, R, 3) so the broadcast MLP produces (rows, features) MXU operands
        return jnp.transpose(x_ref[:, :, c0:c0 + R], (0, 2, 1))

    # ------------- STN3d per-point MLP, chunked over points, max folded -----
    g = jnp.full((Bt, 1024), -jnp.inf, dtype=f32)
    for c0 in range(0, N, R):
        xc = point_chunk(c0)                                       # (Bt, R, 3) f32
        h = b1                                                     # (64,) broadcast
        for k in range(C):                                         # K=3 on the VPU
            h = h + xc[:, :, k:k + 1] * w1r[k]
        h = jnp.maximum(h, 0.0).reshape(Bt * R, 64)                # layout-preserving
        h = jnp.maximum(
            jnp.dot(h.astype(w2.dtype), w2, preferred_element_type=f32) + b2, 0.0)
        h = jnp.dot(h.astype(w3.dtype), w3, preferred_element_type=f32) + b3
        g = jnp.maximum(g, jnp.max(h.reshape(Bt, R, 1024), axis=1))
    g = jnp.maximum(g, 0.0)        # relu(bn3(conv3)) then max == max then relu

    # ------------- STN FC head: 1024 -> 512 -> 256 -> 9 ---------------------
    f = jnp.maximum(
        jnp.dot(g.astype(wf1.dtype), wf1, preferred_element_type=f32) + bf1, 0.0)
    f = jnp.maximum(
        jnp.dot(f.astype(wf2.dtype), wf2, preferred_element_type=f32) + bf2, 0.0)
    t9 = jnp.dot(f.astype(wf3.dtype), wf3, preferred_element_type=f32) + bf3   # (Bt, 9)

    # trans = t9 + I; build the flattened identity with a *staged* iota (no
    # captured array constant).
    lane = lax.broadcasted_iota(jnp.int32, (1, 9), 1)
    eye9 = jnp.where(lane % 4 == 0, 1.0, 0.0).astype(f32)          # 1 at 0,4,8
    trans_ref[...] = (t9 + eye9)[:, None, :]                       # (Bt, 1, 9)

    # ------------- main path: bmm(x, trans) folded into conv1 ---------------
    # (x @ (I + T)) @ m1 == x @ ((I + T) @ m1); the K=3 contraction stays on
    # the VPU. tm1[j][b, o] = m1[j, o] + sum_i t9[b, 3j+i] * m1[i, o]
    tm1 = []
    for j in range(C):
        row = m1r[j]                                               # identity part
        for i in range(C):
            row = row + t9[:, 3 * j + i:3 * j + i + 1] * m1r[i]    # (Bt, 64)
        tm1.append(row[:, None, :])                                # (Bt, 1, 64)

    gm = jnp.full((Bt, 1024), -jnp.inf, dtype=f32)
    for c0 in range(0, N, R):
        xc = point_chunk(c0)                                       # (Bt, R, 3)
        h = c1
        for j in range(C):
            h = h + xc[:, :, j:j + 1] * tm1[j]
        h = jnp.maximum(h, 0.0).reshape(Bt * R, 64)
        h = jnp.maximum(
            jnp.dot(h.astype(m2.dtype), m2, preferred_element_type=f32) + c2, 0.0)
        h = jnp.dot(h.astype(m3.dtype), m3, preferred_element_type=f32) + c3  # bn3, no relu
        gm = jnp.maximum(gm, jnp.max(h.reshape(Bt, R, 1024), axis=1))

    gfeat_ref[...] = gm[:, None, :]                                # (Bt, 1, 1024)


# --------------------------------------------------------------- wrapper ----

def _pick_bt(B, N, target_rows=2048):
    """Largest divisor Bt of B with Bt*N <= ~target_rows MXU rows per step,
    keeping >= 2 grid steps when B > 1 so both v7x TensorCores get work."""
    best = 1
    for d in range(1, B + 1):
        if B % d:
            continue
        if d * N > max(target_rows, N):
            continue
        if B > 1 and B // d < 2:
            continue
        best = d
    return best


def _pick_chunk(N, Bt, target_rows=1024):
    """Largest divisor R of N with Bt*R <= target_rows, bounding the per-chunk
    (Bt*R, 1024) intermediate so the full (Bt*N, 1024) slab never exists."""
    cap = max(target_rows // max(Bt, 1), 1)
    best = 1
    for d in range(1, N + 1):
        if N % d == 0 and d <= cap:
            best = d
    return best


def _estimate_vmem_bytes(Bt, N, R, weights):
    """Rough VMEM footprint so vmem_limit_bytes is derived, not a flat guess."""
    x_block = Bt * 8 * N * 4 * 2                       # (Bt, 3->8, N) f32, double buffered
    w_bytes = 2 * sum(int(w.size) * w.dtype.itemsize for w in weights)  # worst case 2x
    outs = (Bt * 1024 * 4 + Bt * 128 * 4) * 2          # gfeat + trans (9 -> 128 lanes)
    # per-chunk intermediates: f32 rows of 1024/128/64 plus their bf16 copies
    interm = Bt * R * (1024 + 128 + 128 + 64) * 4 + Bt * R * (512 + 64 + 64) * 2
    misc = Bt * 1024 * 4 * 4 + (1 << 20)               # running maxes, xc, slack
    return x_block + w_bytes + outs + interm + misc


def _invariant_spec(shape):
    """Full-array spec for a grid-invariant weight; single-buffered if supported."""
    nd = len(shape)
    idx = lambda b, _nd=nd: (0,) * _nd
    if _SINGLE_BUFFER_WEIGHTS:
        try:
            return pl.BlockSpec(tuple(shape), idx, pipeline_mode=pl.Buffered(1))
        except Exception:
            pass
    return pl.BlockSpec(tuple(shape), idx)


def _pack_small(stn_args, main_args):
    """Pack the 18 small params into one f32 array; cast big weights to bf16."""
    (w1, b1, w2, b2, w3, b3, wf1, bf1, wf2, bf2, wf3, bf3) = stn_args
    (m1, c1, m2, c2, m3, c3) = main_args
    pack = jnp.zeros((_PACK_ROWS, _PACK_COLS), jnp.float32)
    for r, v in enumerate([b1, b2, b3, bf1, bf2, bf3, c1, c2, c3]):
        v = v.reshape(-1)
        pack = pack.at[r, :v.shape[0]].set(v)
    for k in range(3):
        pack = pack.at[9 + k, :64].set(w1[k])
        pack = pack.at[12 + k, :64].set(m1[k])
    big = tuple(a.astype(jnp.bfloat16) for a in (w2, w3, wf1, wf2, wf3, m2, m3))
    return pack, big


def pointnetfeat_forward(x_bcn, stn_args, main_args):
    """x_bcn: (B, C, N) float32 (native PyTorch layout), C == 3.
    Returns (global_feat (B, 1024), trans (B, 3, 3))."""
    x = x_bcn.astype(jnp.float32)
    B, C, N = x.shape
    assert C == 3, "PointNetGPD STN produces a 3x3 transform; input_chann must be 3"

    Bt = _pick_bt(B, N)
    R = _pick_chunk(N, Bt)
    pack, big = _pack_small(stn_args, main_args)
    weights = (pack,) + big

    est = _estimate_vmem_bytes(Bt, N, R, weights)
    # 2x margin over the estimate; >= 32 MiB (covers v5e's 16 MiB scoped default),
    # capped at 96 MiB (fits v5e/v6e 128 MiB; stays << 64 MiB on v7x for sane Bt).
    vmem_limit = int(min(max(2 * est, 32 << 20), 96 << 20))

    gfeat, trans9 = pl.pallas_call(
        functools.partial(_pointnet_fused_kernel, R),
        out_shape=(jax.ShapeDtypeStruct((B, 1, 1024), jnp.float32),
                   jax.ShapeDtypeStruct((B, 1, 9), jnp.float32)),
        grid_spec=pltpu.PrefetchScalarGridSpec(
            num_scalar_prefetch=0,
            grid=(B // Bt,),
            in_specs=[pl.BlockSpec((Bt, C, N), lambda b: (b, 0, 0))]
                     + [_invariant_spec(w.shape) for w in weights],
            out_specs=[pl.BlockSpec((Bt, 1, 1024), lambda b: (b, 0, 0)),
                       pl.BlockSpec((Bt, 1, 9), lambda b: (b, 0, 0))],
        ),
        compiler_params=pltpu.CompilerParams(
            dimension_semantics=("parallel",),     # independent batch blocks (v7x: 2 TCs)
            vmem_limit_bytes=vmem_limit),
    )(x, *weights)

    return gfeat.reshape(B, 1024), trans9.reshape(B, 3, 3)


# ------------------------------------------------------------- parameters ---

def _linear_init(key, cin, cout, scale=0.1):
    kw, kb = jax.random.split(key)
    w = scale * jax.random.normal(kw, (cin, cout), jnp.float32)   # == torch W.T (kernel=1)
    b = scale * jax.random.normal(kb, (cout,), jnp.float32)
    return w, b


def _bn_init(key, c):
    k1, k2, k3, k4 = jax.random.split(key, 4)
    gamma = 1.0 + 0.1 * jax.random.normal(k1, (c,), jnp.float32)
    beta = 0.1 * jax.random.normal(k2, (c,), jnp.float32)
    mean = 0.1 * jax.random.normal(k3, (c,), jnp.float32)
    var = 1.0 + 0.1 * jax.random.uniform(k4, (c,), jnp.float32)
    return gamma, beta, mean, var


def _fold_bn(w, b, bn):
    """Fold eval-mode BatchNorm1d into the preceding linear: y = (xW+b)*s + t."""
    gamma, beta, mean, var = bn
    scale = gamma / jnp.sqrt(var + EPS)
    wf = w * scale[None, :]
    bf = (b - mean) * scale + beta
    return wf, bf.reshape(1, -1)


def make_params(key, input_chann=3):
    keys = jax.random.split(key, 20)
    # ---- STN3d ----
    stn_layers = []
    dims = [(input_chann, 64), (64, 128), (128, 1024), (1024, 512), (512, 256)]
    for i, (ci, co) in enumerate(dims):
        w, b = _linear_init(keys[i], ci, co)
        bn = _bn_init(keys[5 + i], co)
        stn_layers.extend(_fold_bn(w, b, bn))
    wf3, bf3 = _linear_init(keys[10], 256, 9)             # fc3: no BN
    stn_layers.extend([wf3, bf3.reshape(1, -1)])
    # ---- main feature convs ----
    main_layers = []
    dims2 = [(input_chann, 64), (64, 128), (128, 1024)]
    for i, (ci, co) in enumerate(dims2):
        w, b = _linear_init(keys[11 + i], ci, co)
        bn = _bn_init(keys[14 + i], co)
        main_layers.extend(_fold_bn(w, b, bn))
    return tuple(stn_layers), tuple(main_layers)


# -------------------------------------------------------- pure-JAX reference

def _ref_forward(x_bcn, stn_args, main_args):
    x = jnp.transpose(x_bcn, (0, 2, 1)).astype(jnp.float32)           # (B, N, C)
    B = x.shape[0]
    w1, b1, w2, b2, w3, b3, wf1, bf1, wf2, bf2, wf3, bf3 = stn_args
    h = jax.nn.relu(x @ w1 + b1)
    h = jax.nn.relu(h @ w2 + b2)
    h = jax.nn.relu(h @ w3 + b3)
    g = jnp.max(h, axis=1)
    f = jax.nn.relu(g @ wf1 + bf1)
    f = jax.nn.relu(f @ wf2 + bf2)
    f = f @ wf3 + bf3
    trans = f.reshape(B, 3, 3) + jnp.eye(3, dtype=jnp.float32)
    m1, c1, m2, c2, m3, c3 = main_args
    xt = jnp.einsum("bnc,bcd->bnd", x, trans)
    h = jax.nn.relu(xt @ m1 + c1)
    h = jax.nn.relu(h @ m2 + c2)
    h = h @ m3 + c3
    return jnp.max(h, axis=1), trans


# ------------------------------------------------------------------- main ---

if __name__ == "__main__":
    key = jax.random.PRNGKey(0)
    k_x, k_p = jax.random.split(key)

    B, C, N = 4, 3, 256                     # PyTorch input layout: (B, C, N)
    x = jax.random.normal(k_x, (B, C, N), jnp.float32)
    stn_args, main_args = make_params(k_p, input_chann=C)

    gfeat, trans = jax.block_until_ready(
        pointnetfeat_forward(x, stn_args, main_args))

    ref_gfeat, ref_trans = _ref_forward(x, stn_args, main_args)
    assert gfeat.shape == (B, 1024) and trans.shape == (B, 3, 3)
    # Loose tolerance: the kernel rounds MXU operands to bf16 (f32 accumulation)
    # while the reference is pure f32.
    assert jnp.allclose(trans, ref_trans, rtol=5e-2, atol=5e-2)
    assert jnp.allclose(gfeat, ref_gfeat, rtol=5e-2, atol=5e-2)

    print("KERNEL_OK")
</pallas_src>

<mosaic_0001>
module attributes {stable_mosaic.version = 11 : i64} {
  func.func @_pointnet_fused_kernel(%arg0: i32, %arg1: memref<2x3x256xf32, #tpu.memory_space<vmem>>, %arg2: memref<15x1024xf32, #tpu.memory_space<vmem>>, %arg3: memref<64x128xbf16, #tpu.memory_space<vmem>>, %arg4: memref<128x1024xbf16, #tpu.memory_space<vmem>>, %arg5: memref<1024x512xbf16, #tpu.memory_space<vmem>>, %arg6: memref<512x256xbf16, #tpu.memory_space<vmem>>, %arg7: memref<256x9xbf16, #tpu.memory_space<vmem>>, %arg8: memref<64x128xbf16, #tpu.memory_space<vmem>>, %arg9: memref<128x1024xbf16, #tpu.memory_space<vmem>>, %arg10: memref<2x1x1024xf32, #tpu.memory_space<vmem>>, %arg11: memref<2x1x9xf32, #tpu.memory_space<vmem>>) attributes {dimension_semantics = [#tpu.dimension_semantics<parallel>], iteration_bounds = array<i64: 2>, scalar_prefetch = 0 : i64, scratch_operands = 0 : i64, tpu.core_type = #tpu.core_type<tc>, window_params = [{transform_indices = @transform_0, window_bounds = array<i64: 2, 3, 256>}, {pipeline_mode = #tpu.pipeline_mode<synchronous>, transform_indices = @transform_1, window_bounds = array<i64: 15, 1024>}, {pipeline_mode = #tpu.pipeline_mode<synchronous>, transform_indices = @transform_2, window_bounds = array<i64: 64, 128>}, {pipeline_mode = #tpu.pipeline_mode<synchronous>, transform_indices = @transform_3, window_bounds = array<i64: 128, 1024>}, {pipeline_mode = #tpu.pipeline_mode<synchronous>, transform_indices = @transform_4, window_bounds = array<i64: 1024, 512>}, {pipeline_mode = #tpu.pipeline_mode<synchronous>, transform_indices = @transform_5, window_bounds = array<i64: 512, 256>}, {pipeline_mode = #tpu.pipeline_mode<synchronous>, transform_indices = @transform_6, window_bounds = array<i64: 256, 9>}, {pipeline_mode = #tpu.pipeline_mode<synchronous>, transform_indices = @transform_7, window_bounds = array<i64: 64, 128>}, {pipeline_mode = #tpu.pipeline_mode<synchronous>, transform_indices = @transform_8, window_bounds = array<i64: 128, 1024>}, {transform_indices = @transform_9, window_bounds = array<i64: 2, 1, 1024>}, {transform_indices = @transform_10, window_bounds = array<i64: 2, 1, 9>}]} {
    %c0 = arith.constant 0 : index
    %c0_0 = arith.constant 0 : index
    %0 = vector.load %arg2[%c0, %c0_0] : memref<15x1024xf32, #tpu.memory_space<vmem>>, vector<15x1024xf32>
    %1 = vector.extract_strided_slice %0 {offsets = [0, 0], sizes = [1, 64], strides = [1, 1]} : vector<15x1024xf32> to vector<1x64xf32>
    %2 = vector.shape_cast %1 : vector<1x64xf32> to vector<64xf32>
    %3 = vector.extract_strided_slice %0 {offsets = [1, 0], sizes = [1, 128], strides = [1, 1]} : vector<15x1024xf32> to vector<1x128xf32>
    %4 = vector.shape_cast %3 : vector<1x128xf32> to vector<128xf32>
    %5 = vector.extract_strided_slice %0 {offsets = [2, 0], sizes = [1, 1024], strides = [1, 1]} : vector<15x1024xf32> to vector<1x1024xf32>
    %6 = vector.shape_cast %5 : vector<1x1024xf32> to vector<1024xf32>
    %7 = vector.extract_strided_slice %0 {offsets = [3, 0], sizes = [1, 512], strides = [1, 1]} : vector<15x1024xf32> to vector<1x512xf32>
    %8 = vector.shape_cast %7 : vector<1x512xf32> to vector<512xf32>
    %9 = vector.extract_strided_slice %0 {offsets = [4, 0], sizes = [1, 256], strides = [1, 1]} : vector<15x1024xf32> to vector<1x256xf32>
    %10 = vector.shape_cast %9 : vector<1x256xf32> to vector<256xf32>
    %11 = vector.extract_strided_slice %0 {offsets = [5, 0], sizes = [1, 9], strides = [1, 1]} : vector<15x1024xf32> to vector<1x9xf32>
    %12 = vector.shape_cast %11 : vector<1x9xf32> to vector<9xf32>
    %13 = vector.extract_strided_slice %0 {offsets = [6, 0], sizes = [1, 64], strides = [1, 1]} : vector<15x1024xf32> to vector<1x64xf32>
    %14 = vector.shape_cast %13 : vector<1x64xf32> to vector<64xf32>
    %15 = vector.extract_strided_slice %0 {offsets = [7, 0], sizes = [1, 128], strides = [1, 1]} : vector<15x1024xf32> to vector<1x128xf32>
    %16 = vector.shape_cast %15 : vector<1x128xf32> to vector<128xf32>
    %17 = vector.extract_strided_slice %0 {offsets = [8, 0], sizes = [1, 1024], strides = [1, 1]} : vector<15x1024xf32> to vector<1x1024xf32>
    %18 = vector.shape_cast %17 : vector<1x1024xf32> to vector<1024xf32>
    %19 = vector.extract_strided_slice %0 {offsets = [9, 0], sizes = [1, 64], strides = [1, 1]} : vector<15x1024xf32> to vector<1x64xf32>
    %20 = vector.shape_cast %19 : vector<1x64xf32> to vector<64xf32>
    %21 = vector.extract_strided_slice %0 {offsets = [10, 0], sizes = [1, 64], strides = [1, 1]} : vector<15x1024xf32> to vector<1x64xf32>
    %22 = vector.shape_cast %21 : vector<1x64xf32> to vector<64xf32>
    %23 = vector.extract_strided_slice %0 {offsets = [11, 0], sizes = [1, 64], strides = [1, 1]} : vector<15x1024xf32> to vector<1x64xf32>
    %24 = vector.shape_cast %23 : vector<1x64xf32> to vector<64xf32>
    %25 = vector.extract_strided_slice %0 {offsets = [12, 0], sizes = [1, 64], strides = [1, 1]} : vector<15x1024xf32> to vector<1x64xf32>
    %26 = vector.shape_cast %25 : vector<1x64xf32> to vector<64xf32>
    %27 = vector.extract_strided_slice %0 {offsets = [13, 0], sizes = [1, 64], strides = [1, 1]} : vector<15x1024xf32> to vector<1x64xf32>
    %28 = vector.shape_cast %27 : vector<1x64xf32> to vector<64xf32>
    %29 = vector.extract_strided_slice %0 {offsets = [14, 0], sizes = [1, 64], strides = [1, 1]} : vector<15x1024xf32> to vector<1x64xf32>
    %30 = vector.shape_cast %29 : vector<1x64xf32> to vector<64xf32>
    %c0_1 = arith.constant 0 : index
    %c0_2 = arith.constant 0 : index
    %31 = vector.load %arg3[%c0_1, %c0_2] : memref<64x128xbf16, #tpu.memory_space<vmem>>, vector<64x128xbf16>
    %c0_3 = arith.constant 0 : index
    %c0_4 = arith.constant 0 : index
    %32 = vector.load %arg4[%c0_3, %c0_4] : memref<128x1024xbf16, #tpu.memory_space<vmem>>, vector<128x1024xbf16>
    %c0_5 = arith.constant 0 : index
    %c0_6 = arith.constant 0 : index
    %33 = vector.load %arg5[%c0_5, %c0_6] : memref<1024x512xbf16, #tpu.memory_space<vmem>>, vector<1024x512xbf16>
    %c0_7 = arith.constant 0 : index
    %c0_8 = arith.constant 0 : index
    %34 = vector.load %arg6[%c0_7, %c0_8] : memref<512x256xbf16, #tpu.memory_space<vmem>>, vector<512x256xbf16>
    %c0_9 = arith.constant 0 : index
    %c0_10 = arith.constant 0 : index
    %35 = vector.load %arg7[%c0_9, %c0_10] : memref<256x9xbf16, #tpu.memory_space<vmem>>, vector<256x9xbf16>
    %c0_11 = arith.constant 0 : index
    %c0_12 = arith.constant 0 : index
    %36 = vector.load %arg8[%c0_11, %c0_12] : memref<64x128xbf16, #tpu.memory_space<vmem>>, vector<64x128xbf16>
    %c0_13 = arith.constant 0 : index
    %c0_14 = arith.constant 0 : index
    %37 = vector.load %arg9[%c0_13, %c0_14] : memref<128x1024xbf16, #tpu.memory_space<vmem>>, vector<128x1024xbf16>
    %cst = arith.constant 0xFF800000 : f32
    %38 = vector.broadcast %cst : f32 to vector<2x1024xf32>
    %c0_15 = arith.constant 0 : index
    %c0_16 = arith.constant 0 : index
    %c0_17 = arith.constant 0 : index
    %39 = vector.load %arg1[%c0_15, %c0_16, %c0_17] : memref<2x3x256xf32, #tpu.memory_space<vmem>>, vector<2x3x256xf32>
    %40 = tpu.transpose %39, [0, 2, 1] : vector<2x3x256xf32> -> vector<2x256x3xf32>
    %41 = vector.extract_strided_slice %40 {offsets = [0, 0, 0], sizes = [2, 256, 1], strides = [1, 1, 1]} : vector<2x256x3xf32> to vector<2x256x1xf32>
    %42 = vector.shape_cast %20 : vector<64xf32> to vector<1x1x64xf32>
    %43 = vector.broadcast %41 : vector<2x256x1xf32> to vector<2x256x64xf32>
    %44 = vector.broadcast %42 : vector<1x1x64xf32> to vector<2x256x64xf32>
    %45 = arith.mulf %43, %44 : vector<2x256x64xf32>
    %46 = vector.shape_cast %2 : vector<64xf32> to vector<1x1x64xf32>
    %47 = vector.broadcast %46 : vector<1x1x64xf32> to vector<2x256x64xf32>
    %48 = arith.addf %47, %45 : vector<2x256x64xf32>
    %49 = vector.extract_strided_slice %40 {offsets = [0, 0, 1], sizes = [2, 256, 1], strides = [1, 1, 1]} : vector<2x256x3xf32> to vector<2x256x1xf32>
    %50 = vector.shape_cast %22 : vector<64xf32> to vector<1x1x64xf32>
    %51 = vector.broadcast %49 : vector<2x256x1xf32> to vector<2x256x64xf32>
    %52 = vector.broadcast %50 : vector<1x1x64xf32> to vector<2x256x64xf32>
    %53 = arith.mulf %51, %52 : vector<2x256x64xf32>
    %54 = arith.addf %48, %53 : vector<2x256x64xf32>
    %55 = vector.extract_strided_slice %40 {offsets = [0, 0, 2], sizes = [2, 256, 1], strides = [1, 1, 1]} : vector<2x256x3xf32> to vector<2x256x1xf32>
    %56 = vector.shape_cast %24 : vector<64xf32> to vector<1x1x64xf32>
    %57 = vector.broadcast %55 : vector<2x256x1xf32> to vector<2x256x64xf32>
    %58 = vector.broadcast %56 : vector<1x1x64xf32> to vector<2x256x64xf32>
    %59 = arith.mulf %57, %58 : vector<2x256x64xf32>
    %60 = arith.addf %54, %59 : vector<2x256x64xf32>
    %cst_18 = arith.constant 0.000000e+00 : f32
    %61 = vector.broadcast %cst_18 : f32 to vector<2x256x64xf32>
    %62 = arith.maximumf %60, %61 : vector<2x256x64xf32>
    %63 = vector.shape_cast %62 : vector<2x256x64xf32> to vector<512x64xf32>
    %64 = arith.truncf %63 : vector<512x64xf32> to vector<512x64xbf16>
    %cst_19 = arith.constant dense<0.000000e+00> : vector<512x128xf32>
    %65 = tpu.matmul %64, %31, %cst_19 {dimension_numbers = #tpu.dot_dimension_numbers<[1], [0], [0], [1], [0, 0, 1, 1], [], []>} : vector<512x64xbf16>, vector<64x128xbf16>, vector<512x128xf32> -> vector<512x128xf32>
    %66 = vector.shape_cast %4 : vector<128xf32> to vector<1x128xf32>
    %67 = vector.broadcast %66 : vector<1x128xf32> to vector<512x128xf32>
    %68 = arith.addf %65, %67 : vector<512x128xf32>
    %cst_20 = arith.constant 0.000000e+00 : f32
    %69 = vector.broadcast %cst_20 : f32 to vector<512x128xf32>
    %70 = arith.maximumf %68, %69 : vector<512x128xf32>
    %71 = arith.truncf %70 : vector<512x128xf32> to vector<512x128xbf16>
    %cst_21 = arith.constant dense<0.000000e+00> : vector<512x1024xf32>
    %72 = tpu.matmul %71, %32, %cst_21 {dimension_numbers = #tpu.dot_dimension_numbers<[1], [0], [0], [1], [0, 0, 1, 1], [], []>} : vector<512x128xbf16>, vector<128x1024xbf16>, vector<512x1024xf32> -> vector<512x1024xf32>
    %73 = vector.shape_cast %6 : vector<1024xf32> to vector<1x1024xf32>
    %74 = vector.broadcast %73 : vector<1x1024xf32> to vector<512x1024xf32>
    %75 = arith.addf %72, %74 : vector<512x1024xf32>
    %76 = vector.shape_cast %75 : vector<512x1024xf32> to vector<2x256x1024xf32>
    %cst_22 = arith.constant dense<0xFF800000> : vector<2x1024xf32>
    %77 = vector.multi_reduction <maximumf>, %76, %cst_22 [1] : vector<2x256x1024xf32> to vector<2x1024xf32>
    %78 = arith.maximumf %38, %77 : vector<2x1024xf32>
    %cst_23 = arith.constant 0.000000e+00 : f32
    %79 = vector.broadcast %cst_23 : f32 to vector<2x1024xf32>
    %80 = arith.maximumf %78, %79 : vector<2x1024xf32>
    %81 = arith.truncf %80 : vector<2x1024xf32> to vector<2x1024xbf16>
    %cst_24 = arith.constant dense<0.000000e+00> : vector<2x512xf32>
    %82 = tpu.matmul %81, %33, %cst_24 {dimension_numbers = #tpu.dot_dimension_numbers<[1], [0], [0], [1], [0, 0, 1, 1], [], []>} : vector<2x1024xbf16>, vector<1024x512xbf16>, vector<2x512xf32> -> vector<2x512xf32>
    %83 = vector.shape_cast %8 : vector<512xf32> to vector<1x512xf32>
    %84 = vector.broadcast %83 : vector<1x512xf32> to vector<2x512xf32>
    %85 = arith.addf %82, %84 : vector<2x512xf32>
    %cst_25 = arith.constant 0.000000e+00 : f32
    %86 = vector.broadcast %cst_25 : f32 to vector<2x512xf32>
    %87 = arith.maximumf %85, %86 : vector<2x512xf32>
    %88 = arith.truncf %87 : vector<2x512xf32> to vector<2x512xbf16>
    %cst_26 = arith.constant dense<0.000000e+00> : vector<2x256xf32>
    %89 = tpu.matmul %88, %34, %cst_26 {dimension_numbers = #tpu.dot_dimension_numbers<[1], [0], [0], [1], [0, 0, 1, 1], [], []>} : vector<2x512xbf16>, vector<512x256xbf16>, vector<2x256xf32> -> vector<2x256xf32>
    %90 = vector.shape_cast %10 : vector<256xf32> to vector<1x256xf32>
    %91 = vector.broadcast %90 : vector<1x256xf32> to vector<2x256xf32>
    %92 = arith.addf %89, %91 : vector<2x256xf32>
    %cst_27 = arith.constant 0.000000e+00 : f32
    %93 = vector.broadcast %cst_27 : f32 to vector<2x256xf32>
    %94 = arith.maximumf %92, %93 : vector<2x256xf32>
    %95 = arith.truncf %94 : vector<2x256xf32> to vector<2x256xbf16>
    %cst_28 = arith.constant dense<0.000000e+00> : vector<2x9xf32>
    %96 = tpu.matmul %95, %35, %cst_28 {dimension_numbers = #tpu.dot_dimension_numbers<[1], [0], [0], [1], [0, 0, 1, 1], [], []>} : vector<2x256xbf16>, vector<256x9xbf16>, vector<2x9xf32> -> vector<2x9xf32>
    %97 = vector.shape_cast %12 : vector<9xf32> to vector<1x9xf32>
    %98 = vector.broadcast %97 : vector<1x9xf32> to vector<2x9xf32>
    %99 = arith.addf %96, %98 : vector<2x9xf32>
    %100 = tpu.iota {dimensions = array<i32: 1>} : vector<1x9xi32>
    %c4_i32 = arith.constant 4 : i32
    %c0_i32 = arith.constant 0 : i32
    %101 = arith.cmpi eq, %c4_i32, %c0_i32 : i32
    %c1_i32 = arith.constant 1 : i32
    %102 = arith.select %101, %c1_i32, %c4_i32 : i32
    %103 = vector.broadcast %102 : i32 to vector<1x9xi32>
    %104 = arith.remsi %100, %103 : vector<1x9xi32>
    %c0_i32_29 = arith.constant 0 : i32
    %105 = vector.broadcast %c0_i32_29 : i32 to vector<1x9xi32>
    %106 = arith.cmpi ne, %104, %105 : vector<1x9xi32>
    %c0_i32_30 = arith.constant 0 : i32
    %107 = vector.broadcast %c0_i32_30 : i32 to vector<1x9xi32>
    %108 = arith.cmpi slt, %104, %107 : vector<1x9xi32>
    %c0_i32_31 = arith.constant 0 : i32
    %109 = arith.cmpi slt, %102, %c0_i32_31 : i32
    %110 = vector.broadcast %109 : i1 to vector<1x9xi1>
    %111 = vector.broadcast %110 : vector<1x9xi1> to vector<1x9xi1>
    %112 = arith.xori %108, %111 : vector<1x9xi1>
    %113 = arith.andi %112, %106 : vector<1x9xi1>
    %114 = vector.broadcast %102 : i32 to vector<1x9xi32>
    %115 = arith.addi %104, %114 : vector<1x9xi32>
    %116 = arith.select %113, %115, %104 : vector<1x9xi1>, vector<1x9xi32>
    %c0_i32_32 = arith.constant 0 : i32
    %117 = vector.broadcast %c0_i32_32 : i32 to vector<1x9xi32>
    %118 = arith.cmpi eq, %116, %117 : vector<1x9xi32>
    %cst_33 = arith.constant 1.000000e+00 : f32
    %cst_34 = arith.constant 0.000000e+00 : f32
    %119 = vector.broadcast %cst_33 : f32 to vector<1x9xf32>
    %120 = vector.broadcast %cst_34 : f32 to vector<1x9xf32>
    %121 = arith.select %118, %119, %120 : vector<1x9xi1>, vector<1x9xf32>
    %122 = vector.broadcast %121 : vector<1x9xf32> to vector<2x9xf32>
    %123 = arith.addf %99, %122 : vector<2x9xf32>
    %124 = vector.shape_cast %123 : vector<2x9xf32> to vector<2x1x9xf32>
    %c0_35 = arith.constant 0 : index
    %c0_36 = arith.constant 0 : index
    %c0_37 = arith.constant 0 : index
    %125 = vector.load %arg11[%c0_35, %c0_36, %c0_37] : memref<2x1x9xf32, #tpu.memory_space<vmem>>, vector<2x1x9xf32>
    tpu.vector_store %arg11[%c0_35, %c0_36, %c0_37], %124 {strides = array<i32>} : memref<2x1x9xf32, #tpu.memory_space<vmem>>, vector<2x1x9xf32>,
    %126 = vector.extract_strided_slice %99 {offsets = [0, 0], sizes = [2, 1], strides = [1, 1]} : vector<2x9xf32> to vector<2x1xf32>
    %127 = vector.shape_cast %26 : vector<64xf32> to vector<1x64xf32>
    %128 = vector.broadcast %126 : vector<2x1xf32> to vector<2x64xf32>
    %129 = vector.broadcast %127 : vector<1x64xf32> to vector<2x64xf32>
    %130 = arith.mulf %128, %129 : vector<2x64xf32>
    %131 = vector.shape_cast %26 : vector<64xf32> to vector<1x64xf32>
    %132 = vector.broadcast %131 : vector<1x64xf32> to vector<2x64xf32>
    %133 = arith.addf %132, %130 : vector<2x64xf32>
    %134 = vector.extract_strided_slice %99 {offsets = [0, 1], sizes = [2, 1], strides = [1, 1]} : vector<2x9xf32> to vector<2x1xf32>
    %135 = vector.shape_cast %28 : vector<64xf32> to vector<1x64xf32>
    %136 = vector.broadcast %134 : vector<2x1xf32> to vector<2x64xf32>
    %137 = vector.broadcast %135 : vector<1x64xf32> to vector<2x64xf32>
    %138 = arith.mulf %136, %137 : vector<2x64xf32>
    %139 = arith.addf %133, %138 : vector<2x64xf32>
    %140 = vector.extract_strided_slice %99 {offsets = [0, 2], sizes = [2, 1], strides = [1, 1]} : vector<2x9xf32> to vector<2x1xf32>
    %141 = vector.shape_cast %30 : vector<64xf32> to vector<1x64xf32>
    %142 = vector.broadcast %140 : vector<2x1xf32> to vector<2x64xf32>
    %143 = vector.broadcast %141 : vector<1x64xf32> to vector<2x64xf32>
    %144 = arith.mulf %142, %143 : vector<2x64xf32>
    %145 = arith.addf %139, %144 : vector<2x64xf32>
    %146 = vector.shape_cast %145 : vector<2x64xf32> to vector<2x1x64xf32>
    %147 = vector.extract_strided_slice %99 {offsets = [0, 3], sizes = [2, 1], strides = [1, 1]} : vector<2x9xf32> to vector<2x1xf32>
    %148 = vector.shape_cast %26 : vector<64xf32> to vector<1x64xf32>
    %149 = vector.broadcast %147 : vector<2x1xf32> to vector<2x64xf32>
    %150 = vector.broadcast %148 : vector<1x64xf32> to vector<2x64xf32>
    %151 = arith.mulf %149, %150 : vector<2x64xf32>
    %152 = vector.shape_cast %28 : vector<64xf32> to vector<1x64xf32>
    %153 = vector.broadcast %152 : vector<1x64xf32> to vector<2x64xf32>
    %154 = arith.addf %153, %151 : vector<2x64xf32>
    %155 = vector.extract_strided_slice %99 {offsets = [0, 4], sizes = [2, 1], strides = [1, 1]} : vector<2x9xf32> to vector<2x1xf32>
    %156 = vector.shape_cast %28 : vector<64xf32> to vector<1x64xf32>
    %157 = vector.broadcast %155 : vector<2x1xf32> to vector<2x64xf32>
    %158 = vector.broadcast %156 : vector<1x64xf32> to vector<2x64xf32>
    %159 = arith.mulf %157, %158 : vector<2x64xf32>
    %160 = arith.addf %154, %159 : vector<2x64xf32>
    %161 = vector.extract_strided_slice %99 {offsets = [0, 5], sizes = [2, 1], strides = [1, 1]} : vector<2x9xf32> to vector<2x1xf32>
    %162 = vector.shape_cast %30 : vector<64xf32> to vector<1x64xf32>
    %163 = vector.broadcast %161 : vector<2x1xf32> to vector<2x64xf32>
    %164 = vector.broadcast %162 : vector<1x64xf32> to vector<2x64xf32>
    %165 = arith.mulf %163, %164 : vector<2x64xf32>
    %166 = arith.addf %160, %165 : vector<2x64xf32>
    %167 = vector.shape_cast %166 : vector<2x64xf32> to vector<2x1x64xf32>
    %168 = vector.extract_strided_slice %99 {offsets = [0, 6], sizes = [2, 1], strides = [1, 1]} : vector<2x9xf32> to vector<2x1xf32>
    %169 = vector.shape_cast %26 : vector<64xf32> to vector<1x64xf32>
    %170 = vector.broadcast %168 : vector<2x1xf32> to vector<2x64xf32>
    %171 = vector.broadcast %169 : vector<1x64xf32> to vector<2x64xf32>
    %172 = arith.mulf %170, %171 : vector<2x64xf32>
    %173 = vector.shape_cast %30 : vector<64xf32> to vector<1x64xf32>
    %174 = vector.broadcast %173 : vector<1x64xf32> to vector<2x64xf32>
    %175 = arith.addf %174, %172 : vector<2x64xf32>
    %176 = vector.extract_strided_slice %99 {offsets = [0, 7], sizes = [2, 1], strides = [1, 1]} : vector<2x9xf32> to vector<2x1xf32>
    %177 = vector.shape_cast %28 : vector<64xf32> to vector<1x64xf32>
    %178 = vector.broadcast %176 : vector<2x1xf32> to vector<2x64xf32>
    %179 = vector.broadcast %177 : vector<1x64xf32> to vector<2x64xf32>
    %180 = arith.mulf %178, %179 : vector<2x64xf32>
    %181 = arith.addf %175, %180 : vector<2x64xf32>
    %182 = vector.extract_strided_slice %99 {offsets = [0, 8], sizes = [2, 1], strides = [1, 1]} : vector<2x9xf32> to vector<2x1xf32>
    %183 = vector.shape_cast %30 : vector<64xf32> to vector<1x64xf32>
    %184 = vector.broadcast %182 : vector<2x1xf32> to vector<2x64xf32>
    %185 = vector.broadcast %183 : vector<1x64xf32> to vector<2x64xf32>
    %186 = arith.mulf %184, %185 : vector<2x64xf32>
    %187 = arith.addf %181, %186 : vector<2x64xf32>
    %188 = vector.shape_cast %187 : vector<2x64xf32> to vector<2x1x64xf32>
    %cst_38 = arith.constant 0xFF800000 : f32
    %189 = vector.broadcast %cst_38 : f32 to vector<2x1024xf32>
    %c0_39 = arith.constant 0 : index
    %c0_40 = arith.constant 0 : index
    %c0_41 = arith.constant 0 : index
    %190 = vector.load %arg1[%c0_39, %c0_40, %c0_41] : memref<2x3x256xf32, #tpu.memory_space<vmem>>, vector<2x3x256xf32>
    %191 = tpu.transpose %190, [0, 2, 1] : vector<2x3x256xf32> -> vector<2x256x3xf32>
    %192 = vector.extract_strided_slice %191 {offsets = [0, 0, 0], sizes = [2, 256, 1], strides = [1, 1, 1]} : vector<2x256x3xf32> to vector<2x256x1xf32>
    %193 = vector.broadcast %192 : vector<2x256x1xf32> to vector<2x256x64xf32>
    %194 = vector.broadcast %146 : vector<2x1x64xf32> to vector<2x256x64xf32>
    %195 = arith.mulf %193, %194 : vector<2x256x64xf32>
    %196 = vector.shape_cast %14 : vector<64xf32> to vector<1x1x64xf32>
    %197 = vector.broadcast %196 : vector<1x1x64xf32> to vector<2x256x64xf32>
    %198 = arith.addf %197, %195 : vector<2x256x64xf32>
    %199 = vector.extract_strided_slice %191 {offsets = [0, 0, 1], sizes = [2, 256, 1], strides = [1, 1, 1]} : vector<2x256x3xf32> to vector<2x256x1xf32>
    %200 = vector.broadcast %199 : vector<2x256x1xf32> to vector<2x256x64xf32>
    %201 = vector.broadcast %167 : vector<2x1x64xf32> to vector<2x256x64xf32>
    %202 = arith.mulf %200, %201 : vector<2x256x64xf32>
    %203 = arith.addf %198, %202 : vector<2x256x64xf32>
    %204 = vector.extract_strided_slice %191 {offsets = [0, 0, 2], sizes = [2, 256, 1], strides = [1, 1, 1]} : vector<2x256x3xf32> to vector<2x256x1xf32>
    %205 = vector.broadcast %204 : vector<2x256x1xf32> to vector<2x256x64xf32>
    %206 = vector.broadcast %188 : vector<2x1x64xf32> to vector<2x256x64xf32>
    %207 = arith.mulf %205, %206 : vector<2x256x64xf32>
    %208 = arith.addf %203, %207 : vector<2x256x64xf32>
    %cst_42 = arith.constant 0.000000e+00 : f32
    %209 = vector.broadcast %cst_42 : f32 to vector<2x256x64xf32>
    %210 = arith.maximumf %208, %209 : vector<2x256x64xf32>
    %211 = vector.shape_cast %210 : vector<2x256x64xf32> to vector<512x64xf32>
    %212 = arith.truncf %211 : vector<512x64xf32> to vector<512x64xbf16>
    %cst_43 = arith.constant dense<0.000000e+00> : vector<512x128xf32>
    %213 = tpu.matmul %212, %36, %cst_43 {dimension_numbers = #tpu.dot_dimension_numbers<[1], [0], [0], [1], [0, 0, 1, 1], [], []>} : vector<512x64xbf16>, vector<64x128xbf16>, vector<512x128xf32> -> vector<512x128xf32>
    %214 = vector.shape_cast %16 : vector<128xf32> to vector<1x128xf32>
    %215 = vector.broadcast %214 : vector<1x128xf32> to vector<512x128xf32>
    %216 = arith.addf %213, %215 : vector<512x128xf32>
    %cst_44 = arith.constant 0.000000e+00 : f32
    %217 = vector.broadcast %cst_44 : f32 to vector<512x128xf32>
    %218 = arith.maximumf %216, %217 : vector<512x128xf32>
    %219 = arith.truncf %218 : vector<512x128xf32> to vector<512x128xbf16>
    %cst_45 = arith.constant dense<0.000000e+00> : vector<512x1024xf32>
    %220 = tpu.matmul %219, %37, %cst_45 {dimension_numbers = #tpu.dot_dimension_numbers<[1], [0], [0], [1], [0, 0, 1, 1], [], []>} : vector<512x128xbf16>, vector<128x1024xbf16>, vector<512x1024xf32> -> vector<512x1024xf32>
    %221 = vector.shape_cast %18 : vector<1024xf32> to vector<1x1024xf32>
    %222 = vector.broadcast %221 : vector<1x1024xf32> to vector<512x1024xf32>
    %223 = arith.addf %220, %222 : vector<512x1024xf32>
    %224 = vector.shape_cast %223 : vector<512x1024xf32> to vector<2x256x1024xf32>
    %cst_46 = arith.constant dense<0xFF800000> : vector<2x1024xf32>
    %225 = vector.multi_reduction <maximumf>, %224, %cst_46 [1] : vector<2x256x1024xf32> to vector<2x1024xf32>
    %226 = arith.maximumf %189, %225 : vector<2x1024xf32>
    %227 = vector.shape_cast %226 : vector<2x1024xf32> to vector<2x1x1024xf32>
    %c0_47 = arith.constant 0 : index
    %c0_48 = arith.constant 0 : index
    %c0_49 = arith.constant 0 : index
    %228 = vector.load %arg10[%c0_47, %c0_48, %c0_49] : memref<2x1x1024xf32, #tpu.memory_space<vmem>>, vector<2x1x1024xf32>
    tpu.vector_store %arg10[%c0_47, %c0_48, %c0_49], %227 {strides = array<i32>} : memref<2x1x1024xf32, #tpu.memory_space<vmem>>, vector<2x1x1024xf32>,
    return
  }
  func.func @transform_0(%arg0: i32) -> (i32, i32, i32) {
    %c0_i32 = arith.constant 0 : i32
    %c0_i32_0 = arith.constant 0 : i32
    %c0_i32_1 = arith.constant 0 : i32
    return %arg0, %c0_i32, %c0_i32_0 : i32, i32, i32
  }
  func.func @transform_1(%arg0: i32) -> (i32, i32) {
    %c0_i32 = arith.constant 0 : i32
    %c0_i32_0 = arith.constant 0 : i32
    %c0_i32_1 = arith.constant 0 : i32
    return %c0_i32, %c0_i32_0 : i32, i32
  }
  func.func @transform_2(%arg0: i32) -> (i32, i32) {
    %c0_i32 = arith.constant 0 : i32
    %c0_i32_0 = arith.constant 0 : i32
    %c0_i32_1 = arith.constant 0 : i32
    return %c0_i32, %c0_i32_0 : i32, i32
  }
  func.func @transform_3(%arg0: i32) -> (i32, i32) {
    %c0_i32 = arith.constant 0 : i32
    %c0_i32_0 = arith.constant 0 : i32
    %c0_i32_1 = arith.constant 0 : i32
    return %c0_i32, %c0_i32_0 : i32, i32
  }
  func.func @transform_4(%arg0: i32) -> (i32, i32) {
    %c0_i32 = arith.constant 0 : i32
    %c0_i32_0 = arith.constant 0 : i32
    %c0_i32_1 = arith.constant 0 : i32
    return %c0_i32, %c0_i32_0 : i32, i32
  }
  func.func @transform_5(%arg0: i32) -> (i32, i32) {
    %c0_i32 = arith.constant 0 : i32
    %c0_i32_0 = arith.constant 0 : i32
    %c0_i32_1 = arith.constant 0 : i32
    return %c0_i32, %c0_i32_0 : i32, i32
  }
  func.func @transform_6(%arg0: i32) -> (i32, i32) {
    %c0_i32 = arith.constant 0 : i32
    %c0_i32_0 = arith.constant 0 : i32
    %c0_i32_1 = arith.constant 0 : i32
    return %c0_i32, %c0_i32_0 : i32, i32
  }
  func.func @transform_7(%arg0: i32) -> (i32, i32) {
    %c0_i32 = arith.constant 0 : i32
    %c0_i32_0 = arith.constant 0 : i32
    %c0_i32_1 = arith.constant 0 : i32
    return %c0_i32, %c0_i32_0 : i32, i32
  }
  func.func @transform_8(%arg0: i32) -> (i32, i32) {
    %c0_i32 = arith.constant 0 : i32
    %c0_i32_0 = arith.constant 0 : i32
    %c0_i32_1 = arith.constant 0 : i32
    return %c0_i32, %c0_i32_0 : i32, i32
  }
  func.func @transform_9(%arg0: i32) -> (i32, i32, i32) {
    %c0_i32 = arith.constant 0 : i32
    %c0_i32_0 = arith.constant 0 : i32
    %c0_i32_1 = arith.constant 0 : i32
    return %arg0, %c0_i32, %c0_i32_0 : i32, i32, i32
  }
  func.func @transform_10(%arg0: i32) -> (i32, i32, i32) {
    %c0_i32 = arith.constant 0 : i32
    %c0_i32_0 = arith.constant 0 : i32
    %c0_i32_1 = arith.constant 0 : i32
    return %arg0, %c0_i32, %c0_i32_0 : i32, i32, i32
  }
}

</mosaic_0001>

<llo_original>
// kernel: tpu_custom_call.1
$region0: #{tpu_custom_call.1}
  #allocation0 [shape = 'u32[]', space=smem, size = 0x4, offset = 0x4, fixed_abs, tag = 'smem constant byte address 0x4 - core index']
  #allocation1 [shape = 'u32[144,128]{1,0:T(1,128)}', space=vmem, size = 0x12000, scoped, tag = 'internal scratch']
  %s0 = inlined_call_operand.vmem [shape: f32[4,3,256], index: 0, kind: input, shape index: {}]
  %s1 = inlined_call_operand.vmem [shape: f32[15,1024], index: 1, kind: input, shape index: {}]
  %s2 = inlined_call_operand.vmem [shape: bf16[64,128], index: 2, kind: input, shape index: {}]
  %s3 = inlined_call_operand.hbm [shape: bf16[128,1024], index: 3, kind: input, shape index: {}]
  %s4 = inlined_call_operand.hbm [shape: bf16[1024,512], index: 4, kind: input, shape index: {}]
  %s5 = inlined_call_operand.hbm [shape: bf16[512,256], index: 5, kind: input, shape index: {}]
  %s6 = inlined_call_operand.vmem [shape: bf16[256,9], index: 6, kind: input, shape index: {}]
  %s7 = inlined_call_operand.vmem [shape: bf16[64,128], index: 7, kind: input, shape index: {}]
  %s8 = inlined_call_operand.hbm [shape: bf16[128,1024], index: 8, kind: input, shape index: {}]
  %s9 = inlined_call_operand.hbm [shape: f32[4,1,1024], index: 9, kind: output, shape index: {0}]
  %s10 = inlined_call_operand.hbm [shape: f32[4,1,9], index: 10, kind: output, shape index: {1}]
  %11 = xla_tuple %s9, %s10
  %s12 = sld [smem:[#allocation0]]
  $region93: #{tpu_custom_call.1} parent=0
    _
  %s14 = ssub.s32 1, %s12
  %s15 = scalar_select 0, %s14, %s12
  $region1: #{tpu_custom_call.1} parent=0
    #allocation2 [shape = 'u8[262144]{0}', space=vmem, size = 0x40000, scoped, tag = 'input window, operand 3, single buffered']
    #allocation3 [shape = 's32[2]{0}', space=sflag, size = 0x8, scoped, tag = 'scoped memory for tpu_custom_call.1']
    #allocation4 [shape = 's32[2]{0}', space=sflag, size = 0x8, scoped, tag = 'scoped memory for tpu_custom_call.1']
    #allocation5 [shape = 'u8[1048576]{0}', space=vmem, size = 0x100000, scoped, tag = 'input window, operand 4, single buffered']
    #allocation6 [shape = 's32[1]{0}', space=sflag, size = 0x4, scoped, tag = 'scoped memory for tpu_custom_call.1']
    #allocation7 [shape = 'u8[262144]{0}', space=vmem, size = 0x40000, scoped, tag = 'input window, operand 5, single buffered']
    #allocation8 [shape = 'u8[262144]{0}', space=vmem, size = 0x40000, scoped, tag = 'input window, operand 8, single buffered']
    #allocation9 [shape = 's32[1]{0}', space=sflag, size = 0x4, scoped, tag = 'scoped memory for tpu_custom_call.1']
    #allocation10 [shape = 'u8[16384]{0}', space=vmem, size = 0x4000, scoped, tag = 'output window, operand 0']
    #allocation11 [shape = 'u8[2048]{0}', space=vmem, size = 0x800, scoped, tag = 'output window, operand 1']
    #allocation12 [shape = 's32[2]{0}', space=sflag, size = 0x8, scoped, tag = 'scoped memory for tpu_custom_call.1']
    %16 = vsyncpa [#allocation3], 0
    %17 = vsyncpa [#allocation6], 0
    %18 = vsyncpa [#allocation9], 0
    %19 = vsyncpa [#allocation4], 0
    %s20 = scalar_lea.sflag [#allocation4], 1
    %21 = vsyncpa %s20, 0
    %22 = vsyncpa [#allocation12], 0
    %s23 = scalar_lea.sflag [#allocation12], 1
    %24 = vsyncpa %s23, 0
    loop: start=0, step=1, limit=4
    $region2: #{tpu_custom_call.1} parent=1 // loop_pre_header
      _
    $region3: #{tpu_custom_call.1} parent=1 // loop_header
      %s26 = sphi 0, %s30
      %p27 = scmp.ge.s32.totalorder %s26, 4
      %s36 = sphi 0, %s38
      %s39 = sphi 0, %s36
      %s40 = sphi 0, %s39
      %s56 = sphi 0, %s40
      %s60 = sphi 0, %s60
      %s62 = sphi 0, %s60
      %s63 = sphi 0, %s62
      %s77 = sphi 0, %s63
      %s81 = sphi 0, %s81
      %s83 = sphi 0, %s81
      %s84 = sphi 0, %s83
      %s98 = sphi 0, %s84
      %s102 = sphi 0, %s102
      %s104 = sphi 0, %s102
      %s105 = sphi 0, %s104
      %s119 = sphi 0, %s105
      %s123 = sphi 0, %s123
      %s125 = sphi 0, %s123
      %s126 = sphi 0, %s125
      %s140 = sphi 0, %s126
      %s144 = sphi 0, %s144
      %s146 = sphi 0, %s144
      %s147 = sphi 0, %s146
      %s161 = sphi 0, %s147
      %s165 = sphi 0, %s165
      %s167 = sphi 0, %s165
      %s168 = sphi 0, %s167
      %s182 = sphi 0, %s168
      %s186 = sphi 0, %s186
      %s188 = sphi 0, %s186
      %s189 = sphi 0, %s188
      %s203 = sphi 0, %s189
      %s207 = sphi 0, %s207
      %s209 = sphi 0, %s207
      %s210 = sphi 0, %s209
      %s224 = sphi 0, %s210
      %s230 = sphi 0, %s232
      %s233 = sphi 0, %s230
      %s234 = sphi 0, %s233
      %s250 = sphi 0, %s234
      %s256 = sphi 0, %s258
      %s259 = sphi 0, %s256
      %s260 = sphi 0, %s259
      %s276 = sphi 0, %s260
    $region4: #{tpu_custom_call.1} parent=1 // loop_header_branch
      %29 = sbr.rel (%p27) target = $region8
    $region5: #{tpu_custom_call.1} parent=1 // loop_body
      %s31 = ssub.s32 %s26, 1
      %s32 = ssub.s32 %s26, 2
      %s33 = sadd.s32 %s26, 1
      %s34 = ssub.s32 %s26, %s33
      %p35 = scmp.eq.s32.totalorder %s34, 0
      %s37 = sadd.s32 %s36, 1
      %s38 = scalar_select %p35, %s36, %s37
      %p41 = pneg %p35
      %p42 = scmp.eq.s32.totalorder %s26, 1
      %p43 = por %p41, %p42
      %p44 = scmp.ne.s32.totalorder %s36, %s39
      %p45 = scmp.eq.s32.totalorder %s26, 0
      %p46 = por %p44, %p45
      %p47 = scmp.ne.s32.totalorder %s36, %s39
      %p48 = scmp.eq.s32.totalorder %s31, 1
      %p49 = por %p47, %p48
      %p50 = scmp.ne.s32.totalorder %s39, %s40
      %p51 = scmp.eq.s32.totalorder %s31, 0
      %p52 = por %p50, %p51
      %p53 = scmp.ne.s32.totalorder %s39, %s40
      %p54 = scmp.eq.s32.totalorder %s32, 1
      %p55 = por %p53, %p54
      %p57 = scmp.ne.s32.totalorder %s40, %s56
      %p58 = scmp.eq.s32.totalorder %s32, 0
      %p59 = por %p57, %p58
      %s61 = sadd.s32 %s60, 1
      %p64 = scmp.eq.s32.totalorder %s26, 1
      %p65 = scmp.ne.s32.totalorder %s60, %s62
      %p66 = scmp.eq.s32.totalorder %s26, 0
      %p67 = por %p65, %p66
      %p68 = scmp.ne.s32.totalorder %s60, %s62
      %p69 = scmp.eq.s32.totalorder %s31, 1
      %p70 = por %p68, %p69
      %p71 = scmp.ne.s32.totalorder %s62, %s63
      %p72 = scmp.eq.s32.totalorder %s31, 0
      %p73 = por %p71, %p72
      %p74 = scmp.ne.s32.totalorder %s62, %s63
      %p75 = scmp.eq.s32.totalorder %s32, 1
      %p76 = por %p74, %p75
      %p78 = scmp.ne.s32.totalorder %s63, %s77
      %p79 = scmp.eq.s32.totalorder %s32, 0
      %p80 = por %p78, %p79
      %s82 = sadd.s32 %s81, 1
      %p85 = scmp.eq.s32.totalorder %s26, 1
      %p86 = scmp.ne.s32.totalorder %s81, %s83
      %p87 = scmp.eq.s32.totalorder %s26, 0
      %p88 = por %p86, %p87
      %p89 = scmp.ne.s32.totalorder %s81, %s83
      %p90 = scmp.eq.s32.totalorder %s31, 1
      %p91 = por %p89, %p90
      %p92 = scmp.ne.s32.totalorder %s83, %s84
      %p93 = scmp.eq.s32.totalorder %s31, 0
      %p94 = por %p92, %p93
      %p95 = scmp.ne.s32.totalorder %s83, %s84
      %p96 = scmp.eq.s32.totalorder %s32, 1
      %p97 = por %p95, %p96
      %p99 = scmp.ne.s32.totalorder %s84, %s98
      %p100 = scmp.eq.s32.totalorder %s32, 0
      %p101 = por %p99, %p100
      %s103 = sadd.s32 %s102, 1
      %p106 = scmp.eq.s32.totalorder %s26, 1
      %p107 = scmp.ne.s32.totalorder %s102, %s104
      %p108 = scmp.eq.s32.totalorder %s26, 0
      %p109 = por %p107, %p108
      %p110 = scmp.ne.s32.totalorder %s102, %s104
      %p111 = scmp.eq.s32.totalorder %s31, 1
      %p112 = por %p110, %p111
      %p113 = scmp.ne.s32.totalorder %s104, %s105
      %p114 = scmp.eq.s32.totalorder %s31, 0
      %p115 = por %p113, %p114
      %p116 = scmp.ne.s32.totalorder %s104, %s105
      %p117 = scmp.eq.s32.totalorder %s32, 1
      %p118 = por %p116, %p117
      %p120 = scmp.ne.s32.totalorder %s105, %s119
      %p121 = scmp.eq.s32.totalorder %s32, 0
      %p122 = por %p120, %p121
      %s124 = sadd.s32 %s123, 1
      %p127 = scmp.eq.s32.totalorder %s26, 1
      %p128 = scmp.ne.s32.totalorder %s123, %s125
      %p129 = scmp.eq.s32.totalorder %s26, 0
      %p130 = por %p128, %p129
      %p131 = scmp.ne.s32.totalorder %s123, %s125
      %p132 = scmp.eq.s32.totalorder %s31, 1
      %p133 = por %p131, %p132
      %p134 = scmp.ne.s32.totalorder %s125, %s126
      %p135 = scmp.eq.s32.totalorder %s31, 0
      %p136 = por %p134, %p135
      %p137 = scmp.ne.s32.totalorder %s125, %s126
      %p138 = scmp.eq.s32.totalorder %s32, 1
      %p139 = por %p137, %p138
      %p141 = scmp.ne.s32.totalorder %s126, %s140
      %p142 = scmp.eq.s32.totalorder %s32, 0
      %p143 = por %p141, %p142
      %s145 = sadd.s32 %s144, 1
      %p148 = scmp.eq.s32.totalorder %s26, 1
      %p149 = scmp.ne.s32.totalorder %s144, %s146
      %p150 = scmp.eq.s32.totalorder %s26, 0
      %p151 = por %p149, %p150
      %p152 = scmp.ne.s32.totalorder %s144, %s146
      %p153 = scmp.eq.s32.totalorder %s31, 1
      %p154 = por %p152, %p153
      %p155 = scmp.ne.s32.totalorder %s146, %s147
      %p156 = scmp.eq.s32.totalorder %s31, 0
      %p157 = por %p155, %p156
      %p158 = scmp.ne.s32.totalorder %s146, %s147
      %p159 = scmp.eq.s32.totalorder %s32, 1
      %p160 = por %p158, %p159
      %p162 = scmp.ne.s32.totalorder %s147, %s161
      %p163 = scmp.eq.s32.totalorder %s32, 0
      %p164 = por %p162, %p163
      %s166 = sadd.s32 %s165, 1
      %p169 = scmp.eq.s32.totalorder %s26, 1
      %p170 = scmp.ne.s32.totalorder %s165, %s167
      %p171 = scmp.eq.s32.totalorder %s26, 0
      %p172 = por %p170, %p171
      %p173 = scmp.ne.s32.totalorder %s165, %s167
      %p174 = scmp.eq.s32.totalorder %s31, 1
      %p175 = por %p173, %p174
      %p176 = scmp.ne.s32.totalorder %s167, %s168
      %p177 = scmp.eq.s32.totalorder %s31, 0
      %p178 = por %p176, %p177
      %p179 = scmp.ne.s32.totalorder %s167, %s168
      %p180 = scmp.eq.s32.totalorder %s32, 1
      %p181 = por %p179, %p180
      %p183 = scmp.ne.s32.totalorder %s168, %s182
      %p184 = scmp.eq.s32.totalorder %s32, 0
      %p185 = por %p183, %p184
      %s187 = sadd.s32 %s186, 1
      %p190 = scmp.eq.s32.totalorder %s26, 1
      %p191 = scmp.ne.s32.totalorder %s186, %s188
      %p192 = scmp.eq.s32.totalorder %s26, 0
      %p193 = por %p191, %p192
      %p194 = scmp.ne.s32.totalorder %s186, %s188
      %p195 = scmp.eq.s32.totalorder %s31, 1
      %p196 = por %p194, %p195
      %p197 = scmp.ne.s32.totalorder %s188, %s189
      %p198 = scmp.eq.s32.totalorder %s31, 0
      %p199 = por %p197, %p198
      %p200 = scmp.ne.s32.totalorder %s188, %s189
      %p201 = scmp.eq.s32.totalorder %s32, 1
      %p202 = por %p200, %p201
      %p204 = scmp.ne.s32.totalorder %s189, %s203
      %p205 = scmp.eq.s32.totalorder %s32, 0
      %p206 = por %p204, %p205
      %s208 = sadd.s32 %s207, 1
      %p211 = scmp.eq.s32.totalorder %s26, 1
      %p212 = scmp.ne.s32.totalorder %s207, %s209
      %p213 = scmp.eq.s32.totalorder %s26, 0
      %p214 = por %p212, %p213
      %p215 = scmp.ne.s32.totalorder %s207, %s209
      %p216 = scmp.eq.s32.totalorder %s31, 1
      %p217 = por %p215, %p216
      %p218 = scmp.ne.s32.totalorder %s209, %s210
      %p219 = scmp.eq.s32.totalorder %s31, 0
      %p220 = por %p218, %p219
      %p221 = scmp.ne.s32.totalorder %s209, %s210
      %p222 = scmp.eq.s32.totalorder %s32, 1
      %p223 = por %p221, %p222
      %p225 = scmp.ne.s32.totalorder %s210, %s224
      %p226 = scmp.eq.s32.totalorder %s32, 0
      %p227 = por %p225, %p226
      %s228 = ssub.s32 %s26, %s33
      %p229 = scmp.eq.s32.totalorder %s228, 0
      %s231 = sadd.s32 %s230, 1
      %s232 = scalar_select %p229, %s230, %s231
      %p235 = pneg %p229
      %p236 = scmp.eq.s32.totalorder %s26, 1
      %p237 = por %p235, %p236
      %p238 = scmp.ne.s32.totalorder %s230, %s233
      %p239 = scmp.eq.s32.totalorder %s26, 0
      %p240 = por %p238, %p239
      %p241 = scmp.ne.s32.totalorder %s230, %s233
      %p242 = scmp.eq.s32.totalorder %s31, 1
      %p243 = por %p241, %p242
      %p244 = scmp.ne.s32.totalorder %s233, %s234
      %p245 = scmp.eq.s32.totalorder %s31, 0
      %p246 = por %p244, %p245
      %p247 = scmp.ne.s32.totalorder %s233, %s234
      %p248 = scmp.eq.s32.totalorder %s32, 1
      %p249 = por %p247, %p248
      %p251 = scmp.ne.s32.totalorder %s234, %s250
      %p252 = scmp.eq.s32.totalorder %s32, 0
      %p253 = por %p251, %p252
      %s254 = ssub.s32 %s26, %s33
      %p255 = scmp.eq.s32.totalorder %s254, 0
      %s257 = sadd.s32 %s256, 1
      %s258 = scalar_select %p255, %s256, %s257
      %p261 = pneg %p255
      %p262 = scmp.eq.s32.totalorder %s26, 1
      %p263 = por %p261, %p262
      %p264 = scmp.ne.s32.totalorder %s256, %s259
      %p265 = scmp.eq.s32.totalorder %s26, 0
      %p266 = por %p264, %p265
      %p267 = scmp.ne.s32.totalorder %s256, %s259
      %p268 = scmp.eq.s32.totalorder %s31, 1
      %p269 = por %p267, %p268
      %p270 = scmp.ne.s32.totalorder %s259, %s260
      %p271 = scmp.eq.s32.totalorder %s31, 0
      %p272 = por %p270, %p271
      %p273 = scmp.ne.s32.totalorder %s259, %s260
      %p274 = scmp.eq.s32.totalorder %s32, 1
      %p275 = por %p273, %p274
      %p277 = scmp.ne.s32.totalorder %s260, %s276
      %p278 = scmp.eq.s32.totalorder %s32, 0
      %p279 = por %p277, %p278
      %p280 = scmp.le.s32.totalorder 1, %s26
      %p281 = scmp.lt.s32.totalorder %s26, 3
      %p282 = pnand %p280, %p281
      %p283 = pneg %p282
      // Predicated region
      $region9: #{tpu_custom_call.1} parent=5 // pred_check
        _
      $region10: #{tpu_custom_call.1} parent=5 // pred_check_branch
        %285 = sbr.rel (%p282) target = $region12
      $region11: #{tpu_custom_call.1} parent=5 // pred_region
        %s286 = ssub.s32 %s26, 1
        // Predicated region
        $region13: #{tpu_custom_call.1} parent=11 // pred_check
          %p287 = pneg %p73
        $region14: #{tpu_custom_call.1} parent=11 // pred_check_branch
          %289 = sbr.rel (%p287) target = $region16
        $region15: #{tpu_custom_call.1} parent=11 // pred_region
          _
        $region16: #{tpu_custom_call.1} parent=11 // pred_fallthru
          _
        // Predicated region
        $region17: #{tpu_custom_call.1} parent=11 // pred_check
          %p290 = pneg %p94
        $region18: #{tpu_custom_call.1} parent=11 // pred_check_branch
          %292 = sbr.rel (%p290) target = $region20
        $region19: #{tpu_custom_call.1} parent=11 // pred_region
          _
        $region20: #{tpu_custom_call.1} parent=11 // pred_fallthru
          _
        // Predicated region
        $region21: #{tpu_custom_call.1} parent=11 // pred_check
          %p293 = pneg %p115
        $region22: #{tpu_custom_call.1} parent=11 // pred_check_branch
          %295 = sbr.rel (%p293) target = $region24
        $region23: #{tpu_custom_call.1} parent=11 // pred_region
          %s297 = ssub.s32 8192, 8192
          %298 = vsyncadd [#allocation3], %s297
          %s299 = sshll.u32 [#allocation2], 4
          %s300 = int_to_ptr.vmem [resolvable:$true] %s299
          %305 = dma.hbm_to_vmem [thread:$0]  %s3, 8192, %s300, [#allocation3], 512, 512, 32
        $region24: #{tpu_custom_call.1} parent=11 // pred_fallthru
          _
        // Predicated region
        $region25: #{tpu_custom_call.1} parent=11 // pred_check
          %p306 = pneg %p136
        $region26: #{tpu_custom_call.1} parent=11 // pred_check_branch
          %308 = sbr.rel (%p306) target = $region28
        $region27: #{tpu_custom_call.1} parent=11 // pred_region
          %s310 = ssub.s32 32768, 32768
          %311 = vsyncadd [#allocation6], %s310
          %s312 = sshll.u32 [#allocation5], 4
          %s313 = int_to_ptr.vmem [resolvable:$true] %s312
          %318 = dma.hbm_to_vmem [thread:$0]  %s4, 32768, %s313, [#allocation6], 256, 256, 16
        $region28: #{tpu_custom_call.1} parent=11 // pred_fallthru
          _
        // Predicated region
        $region29: #{tpu_custom_call.1} parent=11 // pred_check
          %p319 = pneg %p157
        $region30: #{tpu_custom_call.1} parent=11 // pred_check_branch
          %321 = sbr.rel (%p319) target = $region32
        $region31: #{tpu_custom_call.1} parent=11 // pred_region
          %s323 = ssub.s32 8192, 8192
          %324 = vsyncadd [#allocation6], %s323
          %s325 = sshll.u32 [#allocation7], 4
          %s326 = int_to_ptr.vmem [resolvable:$true] %s325
          %331 = dma.hbm_to_vmem [thread:$0]  %s5, 8192, %s326, [#allocation6], 128, 128, 8
        $region32: #{tpu_custom_call.1} parent=11 // pred_fallthru
          _
        // Predicated region
        $region33: #{tpu_custom_call.1} parent=11 // pred_check
          %p332 = pneg %p178
        $region34: #{tpu_custom_call.1} parent=11 // pred_check_branch
          %334 = sbr.rel (%p332) target = $region36
        $region35: #{tpu_custom_call.1} parent=11 // pred_region
          _
        $region36: #{tpu_custom_call.1} parent=11 // pred_fallthru
          _
        // Predicated region
        $region37: #{tpu_custom_call.1} parent=11 // pred_check
          %p335 = pneg %p199
        $region38: #{tpu_custom_call.1} parent=11 // pred_check_branch
          %337 = sbr.rel (%p335) target = $region40
        $region39: #{tpu_custom_call.1} parent=11 // pred_region
          _
        $region40: #{tpu_custom_call.1} parent=11 // pred_fallthru
          _
        // Predicated region
        $region41: #{tpu_custom_call.1} parent=11 // pred_check
          %p338 = pneg %p220
        $region42: #{tpu_custom_call.1} parent=11 // pred_check_branch
          %340 = sbr.rel (%p338) target = $region44
        $region43: #{tpu_custom_call.1} parent=11 // pred_region
          %s342 = ssub.s32 8192, 8192
          %343 = vsyncadd [#allocation9], %s342
          %s344 = sshll.u32 [#allocation8], 4
          %s345 = int_to_ptr.vmem [resolvable:$true] %s344
          %350 = dma.hbm_to_vmem [thread:$0]  %s8, 8192, %s345, [#allocation9], 512, 512, 32
        $region44: #{tpu_custom_call.1} parent=11 // pred_fallthru
          _
      $region12: #{tpu_custom_call.1} parent=5 // pred_fallthru
        _
      %p351 = scmp.lt.s32.totalorder %s26, 2
      // Predicated region
      $region45: #{tpu_custom_call.1} parent=5 // pred_check
        %p352 = pneg %p351
      $region46: #{tpu_custom_call.1} parent=5 // pred_check_branch
        %354 = sbr.rel (%p352) target = $region48
      $region47: #{tpu_custom_call.1} parent=5 // pred_region
        // Predicated region
        $region49: #{tpu_custom_call.1} parent=47 // pred_check
          %p355 = pneg %p46
        $region50: #{tpu_custom_call.1} parent=47 // pred_check_branch
          %357 = sbr.rel (%p355) target = $region52
        $region51: #{tpu_custom_call.1} parent=47 // pred_region
          %s358 = smul.u32 2, %s26
          %p359 = scmp.lt.s32.totalorder %s358, 3
          %s360 = scalar_select %p359, %s358, 3
          %s361 = smul.addr %s360, 2
          %s362 = smul.addr %s361, 4
          %s363 = scalar_lea.vmem %s0, %s362
          %s364 = smul.u32 2, %s26
        $region52: #{tpu_custom_call.1} parent=47 // pred_fallthru
          _
      $region48: #{tpu_custom_call.1} parent=5 // pred_fallthru
        _
      %p365 = scmp.le.s32.totalorder 1, %s26
      %p366 = scmp.lt.s32.totalorder %s26, 3
      %p367 = pnand %p365, %p366
      %p368 = pneg %p367
      // Predicated region
      $region53: #{tpu_custom_call.1} parent=5 // pred_check
        _
      $region54: #{tpu_custom_call.1} parent=5 // pred_check_branch
        %370 = sbr.rel (%p367) target = $region56
      $region55: #{tpu_custom_call.1} parent=5 // pred_region
        %s371 = ssub.s32 %s26, 1
        // Predicated region
        $region57: #{tpu_custom_call.1} parent=55 // pred_check
          %p372 = pneg %p115
        $region58: #{tpu_custom_call.1} parent=55 // pred_check_branch
          %374 = sbr.rel (%p372) target = $region60
        $region59: #{tpu_custom_call.1} parent=55 // pred_region
          %375 = dma.done [#allocation3], 8192
        $region60: #{tpu_custom_call.1} parent=55 // pred_fallthru
          _
        // Predicated region
        $region61: #{tpu_custom_call.1} parent=55 // pred_check
          %p376 = pneg %p136
        $region62: #{tpu_custom_call.1} parent=55 // pred_check_branch
          %378 = sbr.rel (%p376) target = $region64
        $region63: #{tpu_custom_call.1} parent=55 // pred_region
          %379 = dma.done [#allocation6], 32768
        $region64: #{tpu_custom_call.1} parent=55 // pred_fallthru
          _
        // Predicated region
        $region65: #{tpu_custom_call.1} parent=55 // pred_check
          %p380 = pneg %p157
        $region66: #{tpu_custom_call.1} parent=55 // pred_check_branch
          %382 = sbr.rel (%p380) target = $region68
        $region67: #{tpu_custom_call.1} parent=55 // pred_region
          %383 = dma.done [#allocation6], 8192
        $region68: #{tpu_custom_call.1} parent=55 // pred_fallthru
          _
        // Predicated region
        $region69: #{tpu_custom_call.1} parent=55 // pred_check
          %p384 = pneg %p220
        $region70: #{tpu_custom_call.1} parent=55 // pred_check_branch
          %386 = sbr.rel (%p384) target = $region72
        $region71: #{tpu_custom_call.1} parent=55 // pred_region
          %387 = dma.done [#allocation9], 8192
        $region72: #{tpu_custom_call.1} parent=55 // pred_fallthru
          _
        %s388 = smul.u32 2, %s31
        %p389 = scmp.lt.s32.totalorder %s388, 3
        %s390 = scalar_select %p389, %s388, 3
        %s391 = smul.addr %s390, 2
        %s392 = smul.addr %s391, 4
        %s393 = scalar_lea.vmem %s0, %s392
        %p394 = pneg %p52
        %p395 = pneg %p49
        %p396 = pneg %p73
        %p397 = pneg %p70
        %p398 = pneg %p94
        %p399 = pneg %p91
        %p400 = pneg %p115
        %p401 = pneg %p112
        %p402 = pneg %p136
        %p403 = pneg %p133
        %p404 = pneg %p157
        %p405 = pneg %p154
        %p406 = pneg %p178
        %p407 = pneg %p175
        %p408 = pneg %p199
        %p409 = pneg %p196
        %p410 = pneg %p220
        %p411 = pneg %p217
        %p412 = pneg %p246
        %p413 = pneg %p243
        %s414 = sand.u32 %s233, 1
        %s415 = scalar_lea.sflag [#allocation4], %s414
        %s416 = sand.u32 %s233, 1
        %s417 = smul.addr %s416, 16
        %s418 = scalar_lea.vmem [#allocation10], %s417
        %p419 = pneg %p272
        %p420 = pneg %p269
        %s421 = sand.u32 %s259, 1
        %s422 = scalar_lea.sflag [#allocation12], %s421
        %s423 = sand.u32 %s259, 1
        %s424 = smul.addr %s423, 2
        %s425 = scalar_lea.vmem [#allocation11], %s424
        %s426 = smul.u32 2, %s31
        %p427 = scmp.lt.s32.totalorder %s426, 3
        %s428 = scalar_select %p427, %s426, 3
        %s429 = smul.addr %s428, 2
        %s430 = smul.addr %s429, 4
        %s431 = scalar_lea.vmem %s0, %s430
        %s432 = smul.u32 2, %s31
        %s433 = smul.u32 2, %s31
        %s434 = smul.u32 2, %s31
        %v436 = vld [vmem:[%s1] sm:$0xff]
        %v437 = vld [vmem:[%s1 + $0x8] sm:$0xff]
        %v438 = vld [vmem:[%s1 + $0x10] sm:$0xff]
        %v439 = vld [vmem:[%s1 + $0x18] sm:$0xff]
        %v440 = vld [vmem:[%s1 + $0x20] sm:$0xff]
        %v441 = vld [vmem:[%s1 + $0x28] sm:$0xff]
        %v442 = vld [vmem:[%s1 + $0x30] sm:$0xff]
        %v443 = vld [vmem:[%s1 + $0x38] sm:$0xff]
        %v444 = vld [vmem:[%s1 + $0x40] sm:$0x7f]
        %v445 = vld [vmem:[%s1 + $0x48] sm:$0x7f]
        %v446 = vld [vmem:[%s1 + $0x50] sm:$0x7f]
        %v447 = vld [vmem:[%s1 + $0x58] sm:$0x7f]
        %v448 = vld [vmem:[%s1 + $0x60] sm:$0x7f]
        %v449 = vld [vmem:[%s1 + $0x68] sm:$0x7f]
        %v450 = vld [vmem:[%s1 + $0x70] sm:$0x7f]
        %v451 = vld [vmem:[%s1 + $0x78] sm:$0x7f]
        %v452 = vld [vmem:[%s2] sm:$0xf]
        %v453 = vld [vmem:[%s2 + $0x4] sm:$0xf]
        %v454 = vld [vmem:[%s2 + $0x8] sm:$0xf]
        %v455 = vld [vmem:[%s2 + $0xc] sm:$0xf]
        %v456 = vld [vmem:[%s2 + $0x10] sm:$0xf]
        %v457 = vld [vmem:[%s2 + $0x14] sm:$0xf]
        %v458 = vld [vmem:[%s2 + $0x18] sm:$0xf]
        %v459 = vld [vmem:[%s2 + $0x1c] sm:$0xf]
        %v460 = vld [vmem:[#allocation2] sm:$0xff]
        %v461 = vld [vmem:[#allocation2 + $0x8] sm:$0xff]
        %v462 = vld [vmem:[#allocation2 + $0x10] sm:$0xff]
        %v463 = vld [vmem:[#allocation2 + $0x18] sm:$0xff]
        %v464 = vld [vmem:[#allocation2 + $0x20] sm:$0xff]
        %v465 = vld [vmem:[#allocation2 + $0x28] sm:$0xff]
        %v466 = vld [vmem:[#allocation2 + $0x30] sm:$0xff]
        %v467 = vld [vmem:[#allocation2 + $0x38] sm:$0xff]
        %v468 = vld [vmem:[#allocation2 + $0x40] sm:$0xff]
        %v469 = vld [vmem:[#allocation2 + $0x48] sm:$0xff]
        %v470 = vld [vmem:[#allocation2 + $0x50] sm:$0xff]
        %v471 = vld [vmem:[#allocation2 + $0x58] sm:$0xff]
        %v472 = vld [vmem:[#allocation2 + $0x60] sm:$0xff]
        %v473 = vld [vmem:[#allocation2 + $0x68] sm:$0xff]
        %v474 = vld [vmem:[#allocation2 + $0x70] sm:$0xff]
        %v475 = vld [vmem:[#allocation2 + $0x78] sm:$0xff]
        %v476 = vld [vmem:[#allocation2 + $0x80] sm:$0xff]
        %v477 = vld [vmem:[#allocation2 + $0x88] sm:$0xff]
        %v478 = vld [vmem:[#allocation2 + $0x90] sm:$0xff]
        %v479 = vld [vmem:[#allocation2 + $0x98] sm:$0xff]
        %v480 = vld [vmem:[#allocation2 + $0xa0] sm:$0xff]
        %v481 = vld [vmem:[#allocation2 + $0xa8] sm:$0xff]
        %v482 = vld [vmem:[#allocation2 + $0xb0] sm:$0xff]
        %v483 = vld [vmem:[#allocation2 + $0xb8] sm:$0xff]
        %v484 = vld [vmem:[#allocation2 + $0xc0] sm:$0xff]
        %v485 = vld [vmem:[#allocation2 + $0xc8] sm:$0xff]
        %v486 = vld [vmem:[#allocation2 + $0xd0] sm:$0xff]
        %v487 = vld [vmem:[#allocation2 + $0xd8] sm:$0xff]
        %v488 = vld [vmem:[#allocation2 + $0xe0] sm:$0xff]
        %v489 = vld [vmem:[#allocation2 + $0xe8] sm:$0xff]
        %v490 = vld [vmem:[#allocation2 + $0xf0] sm:$0xff]
        %v491 = vld [vmem:[#allocation2 + $0xf8] sm:$0xff]
        %v492 = vld [vmem:[#allocation2 + $0x100] sm:$0xff]
        %v493 = vld [vmem:[#allocation2 + $0x108] sm:$0xff]
        %v494 = vld [vmem:[#allocation2 + $0x110] sm:$0xff]
        %v495 = vld [vmem:[#allocation2 + $0x118] sm:$0xff]
        %v496 = vld [vmem:[#allocation2 + $0x120] sm:$0xff]
        %v497 = vld [vmem:[#allocation2 + $0x128] sm:$0xff]
        %v498 = vld [vmem:[#allocation2 + $0x130] sm:$0xff]
        %v499 = vld [vmem:[#allocation2 + $0x138] sm:$0xff]
        %v500 = vld [vmem:[#allocation2 + $0x140] sm:$0xff]
        %v501 = vld [vmem:[#allocation2 + $0x148] sm:$0xff]
        %v502 = vld [vmem:[#allocation2 + $0x150] sm:$0xff]
        %v503 = vld [vmem:[#allocation2 + $0x158] sm:$0xff]
        %v504 = vld [vmem:[#allocation2 + $0x160] sm:$0xff]
        %v505 = vld [vmem:[#allocation2 + $0x168] sm:$0xff]
        %v506 = vld [vmem:[#allocation2 + $0x170] sm:$0xff]
        %v507 = vld [vmem:[#allocation2 + $0x178] sm:$0xff]
        %v508 = vld [vmem:[#allocation2 + $0x180] sm:$0xff]
        %v509 = vld [vmem:[#allocation2 + $0x188] sm:$0xff]
        %v510 = vld [vmem:[#allocation2 + $0x190] sm:$0xff]
        %v511 = vld [vmem:[#allocation2 + $0x198] sm:$0xff]
        %v512 = vld [vmem:[#allocation2 + $0x1a0] sm:$0xff]
        %v513 = vld [vmem:[#allocation2 + $0x1a8] sm:$0xff]
        %v514 = vld [vmem:[#allocation2 + $0x1b0] sm:$0xff]
        %v515 = vld [vmem:[#allocation2 + $0x1b8] sm:$0xff]
        %v516 = vld [vmem:[#allocation2 + $0x1c0] sm:$0xff]
        %v517 = vld [vmem:[#allocation2 + $0x1c8] sm:$0xff]
        %v518 = vld [vmem:[#allocation2 + $0x1d0] sm:$0xff]
        %v519 = vld [vmem:[#allocation2 + $0x1d8] sm:$0xff]
        %v520 = vld [vmem:[#allocation2 + $0x1e0] sm:$0xff]
        %v521 = vld [vmem:[#allocation2 + $0x1e8] sm:$0xff]
        %v522 = vld [vmem:[#allocation2 + $0x1f0] sm:$0xff]
        %v523 = vld [vmem:[#allocation2 + $0x1f8] sm:$0xff]
        %v524 = vld [vmem:[#allocation5] sm:$0xff]
        %v525 = vld [vmem:[#allocation5 + $0x8] sm:$0xff]
        %v526 = vld [vmem:[#allocation5 + $0x10] sm:$0xff]
        %v527 = vld [vmem:[#allocation5 + $0x18] sm:$0xff]
        %v528 = vld [vmem:[#allocation5 + $0x20] sm:$0xff]
        %v529 = vld [vmem:[#allocation5 + $0x28] sm:$0xff]
        %v530 = vld [vmem:[#allocation5 + $0x30] sm:$0xff]
        %v531 = vld [vmem:[#allocation5 + $0x38] sm:$0xff]
        %v532 = vld [vmem:[#allocation5 + $0x40] sm:$0xff]
        %v533 = vld [vmem:[#allocation5 + $0x48] sm:$0xff]
        %v534 = vld [vmem:[#allocation5 + $0x50] sm:$0xff]
        %v535 = vld [vmem:[#allocation5 + $0x58] sm:$0xff]
        %v536 = vld [vmem:[#allocation5 + $0x60] sm:$0xff]
        %v537 = vld [vmem:[#allocation5 + $0x68] sm:$0xff]
        %v538 = vld [vmem:[#allocation5 + $0x70] sm:$0xff]
        %v539 = vld [vmem:[#allocation5 + $0x78] sm:$0xff]
        %v540 = vld [vmem:[#allocation5 + $0x80] sm:$0xff]
        %v541 = vld [vmem:[#allocation5 + $0x88] sm:$0xff]
        %v542 = vld [vmem:[#allocation5 + $0x90] sm:$0xff]
        %v543 = vld [vmem:[#allocation5 + $0x98] sm:$0xff]
        %v544 = vld [vmem:[#allocation5 + $0xa0] sm:$0xff]
        %v545 = vld [vmem:[#allocation5 + $0xa8] sm:$0xff]
        %v546 = vld [vmem:[#allocation5 + $0xb0] sm:$0xff]
        %v547 = vld [vmem:[#allocation5 + $0xb8] sm:$0xff]
        %v548 = vld [vmem:[#allocation5 + $0xc0] sm:$0xff]
        %v549 = vld [vmem:[#allocation5 + $0xc8] sm:$0xff]
        %v550 = vld [vmem:[#allocation5 + $0xd0] sm:$0xff]
        %v551 = vld [vmem:[#allocation5 + $0xd8] sm:$0xff]
        %v552 = vld [vmem:[#allocation5 + $0xe0] sm:$0xff]
        %v553 = vld [vmem:[#allocation5 + $0xe8] sm:$0xff]
        %v554 = vld [vmem:[#allocation5 + $0xf0] sm:$0xff]
        %v555 = vld [vmem:[#allocation5 + $0xf8] sm:$0xff]
        %v556 = vld [vmem:[#allocation5 + $0x100] sm:$0xff]
        %v557 = vld [vmem:[#allocation5 + $0x108] sm:$0xff]
        %v558 = vld [vmem:[#allocation5 + $0x110] sm:$0xff]
        %v559 = vld [vmem:[#allocation5 + $0x118] sm:$0xff]
        %v560 = vld [vmem:[#allocation5 + $0x120] sm:$0xff]
        %v561 = vld [vmem:[#allocation5 + $0x128] sm:$0xff]
        %v562 = vld [vmem:[#allocation5 + $0x130] sm:$0xff]
        %v563 = vld [vmem:[#allocation5 + $0x138] sm:$0xff]
        %v564 = vld [vmem:[#allocation5 + $0x140] sm:$0xff]
        %v565 = vld [vmem:[#allocation5 + $0x148] sm:$0xff]
        %v566 = vld [vmem:[#allocation5 + $0x150] sm:$0xff]
        %v567 = vld [vmem:[#allocation5 + $0x158] sm:$0xff]
        %v568 = vld [vmem:[#allocation5 + $0x160] sm:$0xff]
        %v569 = vld [vmem:[#allocation5 + $0x168] sm:$0xff]
        %v570 = vld [vmem:[#allocation5 + $0x170] sm:$0xff]
        %v571 = vld [vmem:[#allocation5 + $0x178] sm:$0xff]
        %v572 = vld [vmem:[#allocation5 + $0x180] sm:$0xff]
        %v573 = vld [vmem:[#allocation5 + $0x188] sm:$0xff]
        %v574 = vld [vmem:[#allocation5 + $0x190] sm:$0xff]
        %v575 = vld [vmem:[#allocation5 + $0x198] sm:$0xff]
        %v576 = vld [vmem:[#allocation5 + $0x1a0] sm:$0xff]
        %v577 = vld [vmem:[#allocation5 + $0x1a8] sm:$0xff]
        %v578 = vld [vmem:[#allocation5 + $0x1b0] sm:$0xff]
        %v579 = vld [vmem:[#allocation5 + $0x1b8] sm:$0xff]
        %v580 = vld [vmem:[#allocation5 + $0x1c0] sm:$0xff]
        %v581 = vld [vmem:[#allocation5 + $0x1c8] sm:$0xff]
        %v582 = vld [vmem:[#allocation5 + $0x1d0] sm:$0xff]
        %v583 = vld [vmem:[#allocation5 + $0x1d8] sm:$0xff]
        %v584 = vld [vmem:[#allocation5 + $0x1e0] sm:$0xff]
        %v585 = vld [vmem:[#allocation5 + $0x1e8] sm:$0xff]
        %v586 = vld [vmem:[#allocation5 + $0x1f0] sm:$0xff]
        %v587 = vld [vmem:[#allocation5 + $0x1f8] sm:$0xff]
        %v588 = vld [vmem:[#allocation5 + $0x200] sm:$0xff]
        %v589 = vld [vmem:[#allocation5 + $0x208] sm:$0xff]
        %v590 = vld [vmem:[#allocation5 + $0x210] sm:$0xff]
        %v591 = vld [vmem:[#allocation5 + $0x218] sm:$0xff]
        %v592 = vld [vmem:[#allocation5 + $0x220] sm:$0xff]
        %v593 = vld [vmem:[#allocation5 + $0x228] sm:$0xff]
        %v594 = vld [vmem:[#allocation5 + $0x230] sm:$0xff]
        %v595 = vld [vmem:[#allocation5 + $0x238] sm:$0xff]
        %v596 = vld [vmem:[#allocation5 + $0x240] sm:$0xff]
        %v597 = vld [vmem:[#allocation5 + $0x248] sm:$0xff]
        %v598 = vld [vmem:[#allocation5 + $0x250] sm:$0xff]
        %v599 = vld [vmem:[#allocation5 + $0x258] sm:$0xff]
        %v600 = vld [vmem:[#allocation5 + $0x260] sm:$0xff]
        %v601 = vld [vmem:[#allocation5 + $0x268] sm:$0xff]
        %v602 = vld [vmem:[#allocation5 + $0x270] sm:$0xff]
        %v603 = vld [vmem:[#allocation5 + $0x278] sm:$0xff]
        %v604 = vld [vmem:[#allocation5 + $0x280] sm:$0xff]
        %v605 = vld [vmem:[#allocation5 + $0x288] sm:$0xff]
        %v606 = vld [vmem:[#allocation5 + $0x290] sm:$0xff]
        %v607 = vld [vmem:[#allocation5 + $0x298] sm:$0xff]
        %v608 = vld [vmem:[#allocation5 + $0x2a0] sm:$0xff]
        %v609 = vld [vmem:[#allocation5 + $0x2a8] sm:$0xff]
        %v610 = vld [vmem:[#allocation5 + $0x2b0] sm:$0xff]
        %v611 = vld [vmem:[#allocation5 + $0x2b8] sm:$0xff]
        %v612 = vld [vmem:[#allocation5 + $0x2c0] sm:$0xff]
        %v613 = vld [vmem:[#allocation5 + $0x2c8] sm:$0xff]
        %v614 = vld [vmem:[#allocation5 + $0x2d0] sm:$0xff]
        %v615 = vld [vmem:[#allocation5 + $0x2d8] sm:$0xff]
        %v616 = vld [vmem:[#allocation5 + $0x2e0] sm:$0xff]
        %v617 = vld [vmem:[#allocation5 + $0x2e8] sm:$0xff]
        %v618 = vld [vmem:[#allocation5 + $0x2f0] sm:$0xff]
        %v619 = vld [vmem:[#allocation5 + $0x2f8] sm:$0xff]
        %v620 = vld [vmem:[#allocation5 + $0x300] sm:$0xff]
        %v621 = vld [vmem:[#allocation5 + $0x308] sm:$0xff]
        %v622 = vld [vmem:[#allocation5 + $0x310] sm:$0xff]
        %v623 = vld [vmem:[#allocation5 + $0x318] sm:$0xff]
        %v624 = vld [vmem:[#allocation5 + $0x320] sm:$0xff]
        %v625 = vld [vmem:[#allocation5 + $0x328] sm:$0xff]
        %v626 = vld [vmem:[#allocation5 + $0x330] sm:$0xff]
        %v627 = vld [vmem:[#allocation5 + $0x338] sm:$0xff]
        %v628 = vld [vmem:[#allocation5 + $0x340] sm:$0xff]
        %v629 = vld [vmem:[#allocation5 + $0x348] sm:$0xff]
        %v630 = vld [vmem:[#allocation5 + $0x350] sm:$0xff]
        %v631 = vld [vmem:[#allocation5 + $0x358] sm:$0xff]
        %v632 = vld [vmem:[#allocation5 + $0x360] sm:$0xff]
        %v633 = vld [vmem:[#allocation5 + $0x368] sm:$0xff]
        %v634 = vld [vmem:[#allocation5 + $0x370] sm:$0xff]
        %v635 = vld [vmem:[#allocation5 + $0x378] sm:$0xff]
        %v636 = vld [vmem:[#allocation5 + $0x380] sm:$0xff]
        %v637 = vld [vmem:[#allocation5 + $0x388] sm:$0xff]
        %v638 = vld [vmem:[#allocation5 + $0x390] sm:$0xff]
        %v639 = vld [vmem:[#allocation5 + $0x398] sm:$0xff]
        %v640 = vld [vmem:[#allocation5 + $0x3a0] sm:$0xff]
        %v641 = vld [vmem:[#allocation5 + $0x3a8] sm:$0xff]
        %v642 = vld [vmem:[#allocation5 + $0x3b0] sm:$0xff]
        %v643 = vld [vmem:[#allocation5 + $0x3b8] sm:$0xff]
        %v644 = vld [vmem:[#allocation5 + $0x3c0] sm:$0xff]
        %v645 = vld [vmem:[#allocation5 + $0x3c8] sm:$0xff]
        %v646 = vld [vmem:[#allocation5 + $0x3d0] sm:$0xff]
        %v647 = vld [vmem:[#allocation5 + $0x3d8] sm:$0xff]
        %v648 = vld [vmem:[#allocation5 + $0x3e0] sm:$0xff]
        %v649 = vld [vmem:[#allocation5 + $0x3e8] sm:$0xff]
        %v650 = vld [vmem:[#allocation5 + $0x3f0] sm:$0xff]
        %v651 = vld [vmem:[#allocation5 + $0x3f8] sm:$0xff]
        %v652 = vld [vmem:[#allocation5 + $0x400] sm:$0xff]
        %v653 = vld [vmem:[#allocation5 + $0x408] sm:$0xff]
        %v654 = vld [vmem:[#allocation5 + $0x410] sm:$0xff]
        %v655 = vld [vmem:[#allocation5 + $0x418] sm:$0xff]
        %v656 = vld [vmem:[#allocation5 + $0x420] sm:$0xff]
        %v657 = vld [vmem:[#allocation5 + $0x428] sm:$0xff]
        %v658 = vld [vmem:[#allocation5 + $0x430] sm:$0xff]
        %v659 = vld [vmem:[#allocation5 + $0x438] sm:$0xff]
        %v660 = vld [vmem:[#allocation5 + $0x440] sm:$0xff]
        %v661 = vld [vmem:[#allocation5 + $0x448] sm:$0xff]
        %v662 = vld [vmem:[#allocation5 + $0x450] sm:$0xff]
        %v663 = vld [vmem:[#allocation5 + $0x458] sm:$0xff]
        %v664 = vld [vmem:[#allocation5 + $0x460] sm:$0xff]
        %v665 = vld [vmem:[#allocation5 + $0x468] sm:$0xff]
        %v666 = vld [vmem:[#allocation5 + $0x470] sm:$0xff]
        %v667 = vld [vmem:[#allocation5 + $0x478] sm:$0xff]
        %v668 = vld [vmem:[#allocation5 + $0x480] sm:$0xff]
        %v669 = vld [vmem:[#allocation5 + $0x488] sm:$0xff]
        %v670 = vld [vmem:[#allocation5 + $0x490] sm:$0xff]
        %v671 = vld [vmem:[#allocation5 + $0x498] sm:$0xff]
        %v672 = vld [vmem:[#allocation5 + $0x4a0] sm:$0xff]
        %v673 = vld [vmem:[#allocation5 + $0x4a8] sm:$0xff]
        %v674 = vld [vmem:[#allocation5 + $0x4b0] sm:$0xff]
        %v675 = vld [vmem:[#allocation5 + $0x4b8] sm:$0xff]
        %v676 = vld [vmem:[#allocation5 + $0x4c0] sm:$0xff]
        %v677 = vld [vmem:[#allocation5 + $0x4c8] sm:$0xff]
        %v678 = vld [vmem:[#allocation5 + $0x4d0] sm:$0xff]
        %v679 = vld [vmem:[#allocation5 + $0x4d8] sm:$0xff]
        %v680 = vld [vmem:[#allocation5 + $0x4e0] sm:$0xff]
        %v681 = vld [vmem:[#allocation5 + $0x4e8] sm:$0xff]
        %v682 = vld [vmem:[#allocation5 + $0x4f0] sm:$0xff]
        %v683 = vld [vmem:[#allocation5 + $0x4f8] sm:$0xff]
        %v684 = vld [vmem:[#allocation5 + $0x500] sm:$0xff]
        %v685 = vld [vmem:[#allocation5 + $0x508] sm:$0xff]
        %v686 = vld [vmem:[#allocation5 + $0x510] sm:$0xff]
        %v687 = vld [vmem:[#allocation5 + $0x518] sm:$0xff]
        %v688 = vld [vmem:[#allocation5 + $0x520] sm:$0xff]
        %v689 = vld [vmem:[#allocation5 + $0x528] sm:$0xff]
        %v690 = vld [vmem:[#allocation5 + $0x530] sm:$0xff]
        %v691 = vld [vmem:[#allocation5 + $0x538] sm:$0xff]
        %v692 = vld [vmem:[#allocation5 + $0x540] sm:$0xff]
        %v693 = vld [vmem:[#allocation5 + $0x548] sm:$0xff]
        %v694 = vld [vmem:[#allocation5 + $0x550] sm:$0xff]
        %v695 = vld [vmem:[#allocation5 + $0x558] sm:$0xff]
        %v696 = vld [vmem:[#allocation5 + $0x560] sm:$0xff]
        %v697 = vld [vmem:[#allocation5 + $0x568] sm:$0xff]
        %v698 = vld [vmem:[#allocation5 + $0x570] sm:$0xff]
        %v699 = vld [vmem:[#allocation5 + $0x578] sm:$0xff]
        %v700 = vld [vmem:[#allocation5 + $0x580] sm:$0xff]
        %v701 = vld [vmem:[#allocation5 + $0x588] sm:$0xff]
        %v702 = vld [vmem:[#allocation5 + $0x590] sm:$0xff]
        %v703 = vld [vmem:[#allocation5 + $0x598] sm:$0xff]
        %v704 = vld [vmem:[#allocation5 + $0x5a0] sm:$0xff]
        %v705 = vld [vmem:[#allocation5 + $0x5a8] sm:$0xff]
        %v706 = vld [vmem:[#allocation5 + $0x5b0] sm:$0xff]
        %v707 = vld [vmem:[#allocation5 + $0x5b8] sm:$0xff]
        %v708 = vld [vmem:[#allocation5 + $0x5c0] sm:$0xff]
        %v709 = vld [vmem:[#allocation5 + $0x5c8] sm:$0xff]
        %v710 = vld [vmem:[#allocation5 + $0x5d0] sm:$0xff]
        %v711 = vld [vmem:[#allocation5 + $0x5d8] sm:$0xff]
        %v712 = vld [vmem:[#allocation5 + $0x5e0] sm:$0xff]
        %v713 = vld [vmem:[#allocation5 + $0x5e8] sm:$0xff]
        %v714 = vld [vmem:[#allocation5 + $0x5f0] sm:$0xff]
        %v715 = vld [vmem:[#allocation5 + $0x5f8] sm:$0xff]
        %v716 = vld [vmem:[#allocation5 + $0x600] sm:$0xff]
        %v717 = vld [vmem:[#allocation5 + $0x608] sm:$0xff]
        %v718 = vld [vmem:[#allocation5 + $0x610] sm:$0xff]
        %v719 = vld [vmem:[#allocation5 + $0x618] sm:$0xff]
        %v720 = vld [vmem:[#allocation5 + $0x620] sm:$0xff]
        %v721 = vld [vmem:[#allocation5 + $0x628] sm:$0xff]
        %v722 = vld [vmem:[#allocation5 + $0x630] sm:$0xff]
        %v723 = vld [vmem:[#allocation5 + $0x638] sm:$0xff]
        %v724 = vld [vmem:[#allocation5 + $0x640] sm:$0xff]
        %v725 = vld [vmem:[#allocation5 + $0x648] sm:$0xff]
        %v726 = vld [vmem:[#allocation5 + $0x650] sm:$0xff]
        %v727 = vld [vmem:[#allocation5 + $0x658] sm:$0xff]
        %v728 = vld [vmem:[#allocation5 + $0x660] sm:$0xff]
        %v729 = vld [vmem:[#allocation5 + $0x668] sm:$0xff]
        %v730 = vld [vmem:[#allocation5 + $0x670] sm:$0xff]
        %v731 = vld [vmem:[#allocation5 + $0x678] sm:$0xff]
        %v732 = vld [vmem:[#allocation5 + $0x680] sm:$0xff]
        %v733 = vld [vmem:[#allocation5 + $0x688] sm:$0xff]
        %v734 = vld [vmem:[#allocation5 + $0x690] sm:$0xff]
        %v735 = vld [vmem:[#allocation5 + $0x698] sm:$0xff]
        %v736 = vld [vmem:[#allocation5 + $0x6a0] sm:$0xff]
        %v737 = vld [vmem:[#allocation5 + $0x6a8] sm:$0xff]
        %v738 = vld [vmem:[#allocation5 + $0x6b0] sm:$0xff]
        %v739 = vld [vmem:[#allocation5 + $0x6b8] sm:$0xff]
        %v740 = vld [vmem:[#allocation5 + $0x6c0] sm:$0xff]
        %v741 = vld [vmem:[#allocation5 + $0x6c8] sm:$0xff]
        %v742 = vld [vmem:[#allocation5 + $0x6d0] sm:$0xff]
        %v743 = vld [vmem:[#allocation5 + $0x6d8] sm:$0xff]
        %v744 = vld [vmem:[#allocation5 + $0x6e0] sm:$0xff]
        %v745 = vld [vmem:[#allocation5 + $0x6e8] sm:$0xff]
        %v746 = vld [vmem:[#allocation5 + $0x6f0] sm:$0xff]
        %v747 = vld [vmem:[#allocation5 + $0x6f8] sm:$0xff]
        %v748 = vld [vmem:[#allocation5 + $0x700] sm:$0xff]
        %v749 = vld [vmem:[#allocation5 + $0x708] sm:$0xff]
        %v750 = vld [vmem:[#allocation5 + $0x710] sm:$0xff]
        %v751 = vld [vmem:[#allocation5 + $0x718] sm:$0xff]
        %v752 = vld [vmem:[#allocation5 + $0x720] sm:$0xff]
        %v753 = vld [vmem:[#allocation5 + $0x728] sm:$0xff]
        %v754 = vld [vmem:[#allocation5 + $0x730] sm:$0xff]
        %v755 = vld [vmem:[#allocation5 + $0x738] sm:$0xff]
        %v756 = vld [vmem:[#allocation5 + $0x740] sm:$0xff]
        %v757 = vld [vmem:[#allocation5 + $0x748] sm:$0xff]
        %v758 = vld [vmem:[#allocation5 + $0x750] sm:$0xff]
        %v759 = vld [vmem:[#allocation5 + $0x758] sm:$0xff]
        %v760 = vld [vmem:[#allocation5 + $0x760] sm:$0xff]
        %v761 = vld [vmem:[#allocation5 + $0x768] sm:$0xff]
        %v762 = vld [vmem:[#allocation5 + $0x770] sm:$0xff]
        %v763 = vld [vmem:[#allocation5 + $0x778] sm:$0xff]
        %v764 = vld [vmem:[#allocation5 + $0x780] sm:$0xff]
        %v765 = vld [vmem:[#allocation5 + $0x788] sm:$0xff]
        %v766 = vld [vmem:[#allocation5 + $0x790] sm:$0xff]
        %v767 = vld [vmem:[#allocation5 + $0x798] sm:$0xff]
        %v768 = vld [vmem:[#allocation5 + $0x7a0] sm:$0xff]
        %v769 = vld [vmem:[#allocation5 + $0x7a8] sm:$0xff]
        %v770 = vld [vmem:[#allocation5 + $0x7b0] sm:$0xff]
        %v771 = vld [vmem:[#allocation5 + $0x7b8] sm:$0xff]
        %v772 = vld [vmem:[#allocation5 + $0x7c0] sm:$0xff]
        %v773 = vld [vmem:[#allocation5 + $0x7c8] sm:$0xff]
        %v774 = vld [vmem:[#allocation5 + $0x7d0] sm:$0xff]
        %v775 = vld [vmem:[#allocation5 + $0x7d8] sm:$0xff]
        %v776 = vld [vmem:[#allocation5 + $0x7e0] sm:$0xff]
        %v777 = vld [vmem:[#allocation5 + $0x7e8] sm:$0xff]
        %v778 = vld [vmem:[#allocation5 + $0x7f0] sm:$0xff]
        %v779 = vld [vmem:[#allocation5 + $0x7f8] sm:$0xff]
        %v780 = vld [vmem:[#allocation7] sm:$0xff]
        %v781 = vld [vmem:[#allocation7 + $0x8] sm:$0xff]
        %v782 = vld [vmem:[#allocation7 + $0x10] sm:$0xff]
        %v783 = vld [vmem:[#allocation7 + $0x18] sm:$0xff]
        %v784 = vld [vmem:[#allocation7 + $0x20] sm:$0xff]
        %v785 = vld [vmem:[#allocation7 + $0x28] sm:$0xff]
        %v786 = vld [vmem:[#allocation7 + $0x30] sm:$0xff]
        %v787 = vld [vmem:[#allocation7 + $0x38] sm:$0xff]
        %v788 = vld [vmem:[#allocation7 + $0x40] sm:$0xff]
        %v789 = vld [vmem:[#allocation7 + $0x48] sm:$0xff]
        %v790 = vld [vmem:[#allocation7 + $0x50] sm:$0xff]
        %v791 = vld [vmem:[#allocation7 + $0x58] sm:$0xff]
        %v792 = vld [vmem:[#allocation7 + $0x60] sm:$0xff]
        %v793 = vld [vmem:[#allocation7 + $0x68] sm:$0xff]
        %v794 = vld [vmem:[#allocation7 + $0x70] sm:$0xff]
        %v795 = vld [vmem:[#allocation7 + $0x78] sm:$0xff]
        %v796 = vld [vmem:[#allocation7 + $0x80] sm:$0xff]
        %v797 = vld [vmem:[#allocation7 + $0x88] sm:$0xff]
        %v798 = vld [vmem:[#allocation7 + $0x90] sm:$0xff]
        %v799 = vld [vmem:[#allocation7 + $0x98] sm:$0xff]
        %v800 = vld [vmem:[#allocation7 + $0xa0] sm:$0xff]
        %v801 = vld [vmem:[#allocation7 + $0xa8] sm:$0xff]
        %v802 = vld [vmem:[#allocation7 + $0xb0] sm:$0xff]
        %v803 = vld [vmem:[#allocation7 + $0xb8] sm:$0xff]
        %v804 = vld [vmem:[#allocation7 + $0xc0] sm:$0xff]
        %v805 = vld [vmem:[#allocation7 + $0xc8] sm:$0xff]
        %v806 = vld [vmem:[#allocation7 + $0xd0] sm:$0xff]
        %v807 = vld [vmem:[#allocation7 + $0xd8] sm:$0xff]
        %v808 = vld [vmem:[#allocation7 + $0xe0] sm:$0xff]
        %v809 = vld [vmem:[#allocation7 + $0xe8] sm:$0xff]
        %v810 = vld [vmem:[#allocation7 + $0xf0] sm:$0xff]
        %v811 = vld [vmem:[#allocation7 + $0xf8] sm:$0xff]
        %v812 = vld [vmem:[#allocation7 + $0x100] sm:$0xff]
        %v813 = vld [vmem:[#allocation7 + $0x108] sm:$0xff]
        %v814 = vld [vmem:[#allocation7 + $0x110] sm:$0xff]
        %v815 = vld [vmem:[#allocation7 + $0x118] sm:$0xff]
        %v816 = vld [vmem:[#allocation7 + $0x120] sm:$0xff]
        %v817 = vld [vmem:[#allocation7 + $0x128] sm:$0xff]
        %v818 = vld [vmem:[#allocation7 + $0x130] sm:$0xff]
        %v819 = vld [vmem:[#allocation7 + $0x138] sm:$0xff]
        %v820 = vld [vmem:[#allocation7 + $0x140] sm:$0xff]
        %v821 = vld [vmem:[#allocation7 + $0x148] sm:$0xff]
        %v822 = vld [vmem:[#allocation7 + $0x150] sm:$0xff]
        %v823 = vld [vmem:[#allocation7 + $0x158] sm:$0xff]
        %v824 = vld [vmem:[#allocation7 + $0x160] sm:$0xff]
        %v825 = vld [vmem:[#allocation7 + $0x168] sm:$0xff]
        %v826 = vld [vmem:[#allocation7 + $0x170] sm:$0xff]
        %v827 = vld [vmem:[#allocation7 + $0x178] sm:$0xff]
        %v828 = vld [vmem:[#allocation7 + $0x180] sm:$0xff]
        %v829 = vld [vmem:[#allocation7 + $0x188] sm:$0xff]
        %v830 = vld [vmem:[#allocation7 + $0x190] sm:$0xff]
        %v831 = vld [vmem:[#allocation7 + $0x198] sm:$0xff]
        %v832 = vld [vmem:[#allocation7 + $0x1a0] sm:$0xff]
        %v833 = vld [vmem:[#allocation7 + $0x1a8] sm:$0xff]
        %v834 = vld [vmem:[#allocation7 + $0x1b0] sm:$0xff]
        %v835 = vld [vmem:[#allocation7 + $0x1b8] sm:$0xff]
        %v836 = vld [vmem:[#allocation7 + $0x1c0] sm:$0xff]
        %v837 = vld [vmem:[#allocation7 + $0x1c8] sm:$0xff]
        %v838 = vld [vmem:[#allocation7 + $0x1d0] sm:$0xff]
        %v839 = vld [vmem:[#allocation7 + $0x1d8] sm:$0xff]
        %v840 = vld [vmem:[#allocation7 + $0x1e0] sm:$0xff]
        %v841 = vld [vmem:[#allocation7 + $0x1e8] sm:$0xff]
        %v842 = vld [vmem:[#allocation7 + $0x1f0] sm:$0xff]
        %v843 = vld [vmem:[#allocation7 + $0x1f8] sm:$0xff]
        %v844 = vld [vmem:[%s6] sm:$0xf]
        %v845 = vld [vmem:[%s6 + $0x4] sm:$0xf]
        %v846 = vld [vmem:[%s6 + $0x8] sm:$0xf]
        %v847 = vld [vmem:[%s6 + $0xc] sm:$0xf]
        %v848 = vld [vmem:[%s6 + $0x10] sm:$0xf]
        %v849 = vld [vmem:[%s6 + $0x14] sm:$0xf]
        %v850 = vld [vmem:[%s6 + $0x18] sm:$0xf]
        %v851 = vld [vmem:[%s6 + $0x1c] sm:$0xf]
        %v852 = vld [vmem:[%s6 + $0x20] sm:$0xf]
        %v853 = vld [vmem:[%s6 + $0x24] sm:$0xf]
        %v854 = vld [vmem:[%s6 + $0x28] sm:$0xf]
        %v855 = vld [vmem:[%s6 + $0x2c] sm:$0xf]
        %v856 = vld [vmem:[%s6 + $0x30] sm:$0xf]
        %v857 = vld [vmem:[%s6 + $0x34] sm:$0xf]
        %v858 = vld [vmem:[%s6 + $0x38] sm:$0xf]
        %v859 = vld [vmem:[%s6 + $0x3c] sm:$0xf]
        %v860 = vld [vmem:[%s6 + $0x40] sm:$0xf]
        %v861 = vld [vmem:[%s6 + $0x44] sm:$0xf]
        %v862 = vld [vmem:[%s6 + $0x48] sm:$0xf]
        %v863 = vld [vmem:[%s6 + $0x4c] sm:$0xf]
        %v864 = vld [vmem:[%s6 + $0x50] sm:$0xf]
        %v865 = vld [vmem:[%s6 + $0x54] sm:$0xf]
        %v866 = vld [vmem:[%s6 + $0x58] sm:$0xf]
        %v867 = vld [vmem:[%s6 + $0x5c] sm:$0xf]
        %v868 = vld [vmem:[%s6 + $0x60] sm:$0xf]
        %v869 = vld [vmem:[%s6 + $0x64] sm:$0xf]
        %v870 = vld [vmem:[%s6 + $0x68] sm:$0xf]
        %v871 = vld [vmem:[%s6 + $0x6c] sm:$0xf]
        %v872 = vld [vmem:[%s6 + $0x70] sm:$0xf]
        %v873 = vld [vmem:[%s6 + $0x74] sm:$0xf]
        %v874 = vld [vmem:[%s6 + $0x78] sm:$0xf]
        %v875 = vld [vmem:[%s6 + $0x7c] sm:$0xf]
        %v876 = vld [vmem:[%s7] sm:$0xf]
        %v877 = vld [vmem:[%s7 + $0x4] sm:$0xf]
        %v878 = vld [vmem:[%s7 + $0x8] sm:$0xf]
        %v879 = vld [vmem:[%s7 + $0xc] sm:$0xf]
        %v880 = vld [vmem:[%s7 + $0x10] sm:$0xf]
        %v881 = vld [vmem:[%s7 + $0x14] sm:$0xf]
        %v882 = vld [vmem:[%s7 + $0x18] sm:$0xf]
        %v883 = vld [vmem:[%s7 + $0x1c] sm:$0xf]
        %v884 = vld [vmem:[#allocation8] sm:$0xff]
        %v885 = vld [vmem:[#allocation8 + $0x8] sm:$0xff]
        %v886 = vld [vmem:[#allocation8 + $0x10] sm:$0xff]
        %v887 = vld [vmem:[#allocation8 + $0x18] sm:$0xff]
        %v888 = vld [vmem:[#allocation8 + $0x20] sm:$0xff]
        %v889 = vld [vmem:[#allocation8 + $0x28] sm:$0xff]
        %v890 = vld [vmem:[#allocation8 + $0x30] sm:$0xff]
        %v891 = vld [vmem:[#allocation8 + $0x38] sm:$0xff]
        %v892 = vld [vmem:[#allocation8 + $0x40] sm:$0xff]
        %v893 = vld [vmem:[#allocation8 + $0x48] sm:$0xff]
        %v894 = vld [vmem:[#allocation8 + $0x50] sm:$0xff]
        %v895 = vld [vmem:[#allocation8 + $0x58] sm:$0xff]
        %v896 = vld [vmem:[#allocation8 + $0x60] sm:$0xff]
        %v897 = vld [vmem:[#allocation8 + $0x68] sm:$0xff]
        %v898 = vld [vmem:[#allocation8 + $0x70] sm:$0xff]
        %v899 = vld [vmem:[#allocation8 + $0x78] sm:$0xff]
        %v900 = vld [vmem:[#allocation8 + $0x80] sm:$0xff]
        %v901 = vld [vmem:[#allocation8 + $0x88] sm:$0xff]
        %v902 = vld [vmem:[#allocation8 + $0x90] sm:$0xff]
        %v903 = vld [vmem:[#allocation8 + $0x98] sm:$0xff]
        %v904 = vld [vmem:[#allocation8 + $0xa0] sm:$0xff]
        %v905 = vld [vmem:[#allocation8 + $0xa8] sm:$0xff]
        %v906 = vld [vmem:[#allocation8 + $0xb0] sm:$0xff]
        %v907 = vld [vmem:[#allocation8 + $0xb8] sm:$0xff]
        %v908 = vld [vmem:[#allocation8 + $0xc0] sm:$0xff]
        %v909 = vld [vmem:[#allocation8 + $0xc8] sm:$0xff]
        %v910 = vld [vmem:[#allocation8 + $0xd0] sm:$0xff]
        %v911 = vld [vmem:[#allocation8 + $0xd8] sm:$0xff]
        %v912 = vld [vmem:[#allocation8 + $0xe0] sm:$0xff]
        %v913 = vld [vmem:[#allocation8 + $0xe8] sm:$0xff]
        %v914 = vld [vmem:[#allocation8 + $0xf0] sm:$0xff]
        %v915 = vld [vmem:[#allocation8 + $0xf8] sm:$0xff]
        %v916 = vld [vmem:[#allocation8 + $0x100] sm:$0xff]
        %v917 = vld [vmem:[#allocation8 + $0x108] sm:$0xff]
        %v918 = vld [vmem:[#allocation8 + $0x110] sm:$0xff]
        %v919 = vld [vmem:[#allocation8 + $0x118] sm:$0xff]
        %v920 = vld [vmem:[#allocation8 + $0x120] sm:$0xff]
        %v921 = vld [vmem:[#allocation8 + $0x128] sm:$0xff]
        %v922 = vld [vmem:[#allocation8 + $0x130] sm:$0xff]
        %v923 = vld [vmem:[#allocation8 + $0x138] sm:$0xff]
        %v924 = vld [vmem:[#allocation8 + $0x140] sm:$0xff]
        %v925 = vld [vmem:[#allocation8 + $0x148] sm:$0xff]
        %v926 = vld [vmem:[#allocation8 + $0x150] sm:$0xff]
        %v927 = vld [vmem:[#allocation8 + $0x158] sm:$0xff]
        %v928 = vld [vmem:[#allocation8 + $0x160] sm:$0xff]
        %v929 = vld [vmem:[#allocation8 + $0x168] sm:$0xff]
        %v930 = vld [vmem:[#allocation8 + $0x170] sm:$0xff]
        %v931 = vld [vmem:[#allocation8 + $0x178] sm:$0xff]
        %v932 = vld [vmem:[#allocation8 + $0x180] sm:$0xff]
        %v933 = vld [vmem:[#allocation8 + $0x188] sm:$0xff]
        %v934 = vld [vmem:[#allocation8 + $0x190] sm:$0xff]
        %v935 = vld [vmem:[#allocation8 + $0x198] sm:$0xff]
        %v936 = vld [vmem:[#allocation8 + $0x1a0] sm:$0xff]
        %v937 = vld [vmem:[#allocation8 + $0x1a8] sm:$0xff]
        %v938 = vld [vmem:[#allocation8 + $0x1b0] sm:$0xff]
        %v939 = vld [vmem:[#allocation8 + $0x1b8] sm:$0xff]
        %v940 = vld [vmem:[#allocation8 + $0x1c0] sm:$0xff]
        %v941 = vld [vmem:[#allocation8 + $0x1c8] sm:$0xff]
        %v942 = vld [vmem:[#allocation8 + $0x1d0] sm:$0xff]
        %v943 = vld [vmem:[#allocation8 + $0x1d8] sm:$0xff]
        %v944 = vld [vmem:[#allocation8 + $0x1e0] sm:$0xff]
        %v945 = vld [vmem:[#allocation8 + $0x1e8] sm:$0xff]
        %v946 = vld [vmem:[#allocation8 + $0x1f0] sm:$0xff]
        %v947 = vld [vmem:[#allocation8 + $0x1f8] sm:$0xff]
        %v948 = vld [vmem:[%s431] sm:$0x77]
        %v949 = vld [vmem:[%s431 + $0x8] sm:$0x77]
        %v952 = vcombine.high %v948, %v948
        %v953 = vcombine.high %v949, %v949
        %956 = vxpose.xlu0.b32.start [1/16] %v948, 128
        %957 = vxpose.xlu0.b32.cont [2/16] 0.0, 128
        %958 = vxpose.xlu0.b32.cont [3/16] 0.0, 128
        %959 = vxpose.xlu0.b32.cont [4/16] 0.0, 128
        %960 = vxpose.xlu0.b32.cont [5/16] 0.0, 128
        %961 = vxpose.xlu0.b32.cont [6/16] 0.0, 128
        %962 = vxpose.xlu0.b32.cont [7/16] 0.0, 128
        %963 = vxpose.xlu0.b32.cont [8/16] 0.0, 128
        %964 = vxpose.xlu0.b32.cont [9/16] 0.0, 128
        %965 = vxpose.xlu0.b32.cont [10/16] 0.0, 128
        %966 = vxpose.xlu0.b32.cont [11/16] 0.0, 128
        %967 = vxpose.xlu0.b32.cont [12/16] 0.0, 128
        %968 = vxpose.xlu0.b32.cont [13/16] 0.0, 128
        %969 = vxpose.xlu0.b32.cont [14/16] 0.0, 128
        %970 = vxpose.xlu0.b32.cont [15/16] 0.0, 128
        %971 = vxpose.xlu0.b32.end [16/16] 0.0, 128
        %v972 = vpop.trf.xlu0
        %v973 = vpop.trf.xlu0
        %v974 = vpop.trf.xlu0
        %v975 = vpop.trf.xlu0
        %v976 = vpop.trf.xlu0
        %v977 = vpop.trf.xlu0
        %v978 = vpop.trf.xlu0
        %v979 = vpop.trf.xlu0
        %v980 = vpop.trf.xlu0
        %v981 = vpop.trf.xlu0
        %v982 = vpop.trf.xlu0
        %v983 = vpop.trf.xlu0
        %v984 = vpop.trf.xlu0
        %v985 = vpop.trf.xlu0
        %v986 = vpop.trf.xlu0
        %v987 = vpop.trf.xlu0
        %988 = vxpose.xlu0.b32.start [1/16] %v952, 128
        %989 = vxpose.xlu0.b32.cont [2/16] 0.0, 128
        %990 = vxpose.xlu0.b32.cont [3/16] 0.0, 128
        %991 = vxpose.xlu0.b32.cont [4/16] 0.0, 128
        %992 = vxpose.xlu0.b32.cont [5/16] 0.0, 128
        %993 = vxpose.xlu0.b32.cont [6/16] 0.0, 128
        %994 = vxpose.xlu0.b32.cont [7/16] 0.0, 128
        %995 = vxpose.xlu0.b32.cont [8/16] 0.0, 128
        %996 = vxpose.xlu0.b32.cont [9/16] 0.0, 128
        %997 = vxpose.xlu0.b32.cont [10/16] 0.0, 128
        %998 = vxpose.xlu0.b32.cont [11/16] 0.0, 128
        %999 = vxpose.xlu0.b32.cont [12/16] 0.0, 128
        %1000 = vxpose.xlu0.b32.cont [13/16] 0.0, 128
        %1001 = vxpose.xlu0.b32.cont [14/16] 0.0, 128
        %1002 = vxpose.xlu0.b32.cont [15/16] 0.0, 128
        %1003 = vxpose.xlu0.b32.end [16/16] 0.0, 128
        %v1004 = vpop.trf.xlu0
        %v1005 = vpop.trf.xlu0
        %v1006 = vpop.trf.xlu0
        %v1007 = vpop.trf.xlu0
        %v1008 = vpop.trf.xlu0
        %v1009 = vpop.trf.xlu0
        %v1010 = vpop.trf.xlu0
        %v1011 = vpop.trf.xlu0
        %v1012 = vpop.trf.xlu0
        %v1013 = vpop.trf.xlu0
        %v1014 = vpop.trf.xlu0
        %v1015 = vpop.trf.xlu0
        %v1016 = vpop.trf.xlu0
        %v1017 = vpop.trf.xlu0
        %v1018 = vpop.trf.xlu0
        %v1019 = vpop.trf.xlu0
        %1020 = vxpose.xlu0.b32.start [1/16] %v949, 128
        %1021 = vxpose.xlu0.b32.cont [2/16] 0.0, 128
        %1022 = vxpose.xlu0.b32.cont [3/16] 0.0, 128
        %1023 = vxpose.xlu0.b32.cont [4/16] 0.0, 128
        %1024 = vxpose.xlu0.b32.cont [5/16] 0.0, 128
        %1025 = vxpose.xlu0.b32.cont [6/16] 0.0, 128
        %1026 = vxpose.xlu0.b32.cont [7/16] 0.0, 128
        %1027 = vxpose.xlu0.b32.cont [8/16] 0.0, 128
        %1028 = vxpose.xlu0.b32.cont [9/16] 0.0, 128
        %1029 = vxpose.xlu0.b32.cont [10/16] 0.0, 128
        %1030 = vxpose.xlu0.b32.cont [11/16] 0.0, 128
        %1031 = vxpose.xlu0.b32.cont [12/16] 0.0, 128
        %1032 = vxpose.xlu0.b32.cont [13/16] 0.0, 128
        %1033 = vxpose.xlu0.b32.cont [14/16] 0.0, 128
        %1034 = vxpose.xlu0.b32.cont [15/16] 0.0, 128
        %1035 = vxpose.xlu0.b32.end [16/16] 0.0, 128
        %v1036 = vpop.trf.xlu0
        %v1037 = vpop.trf.xlu0
        %v1038 = vpop.trf.xlu0
        %v1039 = vpop.trf.xlu0
        %v1040 = vpop.trf.xlu0
        %v1041 = vpop.trf.xlu0
        %v1042 = vpop.trf.xlu0
        %v1043 = vpop.trf.xlu0
        %v1044 = vpop.trf.xlu0
        %v1045 = vpop.trf.xlu0
        %v1046 = vpop.trf.xlu0
        %v1047 = vpop.trf.xlu0
        %v1048 = vpop.trf.xlu0
        %v1049 = vpop.trf.xlu0
        %v1050 = vpop.trf.xlu0
        %v1051 = vpop.trf.xlu0
        %1052 = vxpose.xlu0.b32.start [1/16] %v953, 128
        %1053 = vxpose.xlu0.b32.cont [2/16] 0.0, 128
        %1054 = vxpose.xlu0.b32.cont [3/16] 0.0, 128
        %1055 = vxpose.xlu0.b32.cont [4/16] 0.0, 128
        %1056 = vxpose.xlu0.b32.cont [5/16] 0.0, 128
        %1057 = vxpose.xlu0.b32.cont [6/16] 0.0, 128
        %1058 = vxpose.xlu0.b32.cont [7/16] 0.0, 128
        %1059 = vxpose.xlu0.b32.cont [8/16] 0.0, 128
        %1060 = vxpose.xlu0.b32.cont [9/16] 0.0, 128
        %1061 = vxpose.xlu0.b32.cont [10/16] 0.0, 128
        %1062 = vxpose.xlu0.b32.cont [11/16] 0.0, 128
        %1063 = vxpose.xlu0.b32.cont [12/16] 0.0, 128
        %1064 = vxpose.xlu0.b32.cont [13/16] 0.0, 128
        %1065 = vxpose.xlu0.b32.cont [14/16] 0.0, 128
        %1066 = vxpose.xlu0.b32.cont [15/16] 0.0, 128
        %1067 = vxpose.xlu0.b32.end [16/16] 0.0, 128
        %v1068 = vpop.trf.xlu0
        %v1069 = vpop.trf.xlu0
        %v1070 = vpop.trf.xlu0
        %v1071 = vpop.trf.xlu0
        %v1072 = vpop.trf.xlu0
        %v1073 = vpop.trf.xlu0
        %v1074 = vpop.trf.xlu0
        %v1075 = vpop.trf.xlu0
        %v1076 = vpop.trf.xlu0
        %v1077 = vpop.trf.xlu0
        %v1078 = vpop.trf.xlu0
        %v1079 = vpop.trf.xlu0
        %v1080 = vpop.trf.xlu0
        %v1081 = vpop.trf.xlu0
        %v1082 = vpop.trf.xlu0
        %v1083 = vpop.trf.xlu0
        %1085 = vset.pattern.permute.xlu0 0
        %1086 = vperm.xlu0 %1085, %v972
        %v1087 = vpop.permute.xlu0 %1086
        %1090 = vset.pattern.permute.xlu0 0
        %1091 = vperm.xlu0 %1090, %v973
        %v1092 = vpop.permute.xlu0 %1091
        %1095 = vset.pattern.permute.xlu0 0
        %1096 = vperm.xlu0 %1095, %v974
        %v1097 = vpop.permute.xlu0 %1096
        %1100 = vset.pattern.permute.xlu0 0
        %1101 = vperm.xlu0 %1100, %v975
        %v1102 = vpop.permute.xlu0 %1101
        %1105 = vset.pattern.permute.xlu0 0
        %1106 = vperm.xlu0 %1105, %v976
        %v1107 = vpop.permute.xlu0 %1106
        %1110 = vset.pattern.permute.xlu0 0
        %1111 = vperm.xlu0 %1110, %v977
        %v1112 = vpop.permute.xlu0 %1111
        %1115 = vset.pattern.permute.xlu0 0
        %1116 = vperm.xlu0 %1115, %v978
        %v1117 = vpop.permute.xlu0 %1116
        %1120 = vset.pattern.permute.xlu0 0
        %1121 = vperm.xlu0 %1120, %v979
        %v1122 = vpop.permute.xlu0 %1121
        %1125 = vset.pattern.permute.xlu0 0
        %1126 = vperm.xlu0 %1125, %v980
        %v1127 = vpop.permute.xlu0 %1126
        %1130 = vset.pattern.permute.xlu0 0
        %1131 = vperm.xlu0 %1130, %v981
        %v1132 = vpop.permute.xlu0 %1131
        %1135 = vset.pattern.permute.xlu0 0
        %1136 = vperm.xlu0 %1135, %v982
        %v1137 = vpop.permute.xlu0 %1136
        %1140 = vset.pattern.permute.xlu0 0
        %1141 = vperm.xlu0 %1140, %v983
        %v1142 = vpop.permute.xlu0 %1141
        %1145 = vset.pattern.permute.xlu0 0
        %1146 = vperm.xlu0 %1145, %v984
        %v1147 = vpop.permute.xlu0 %1146
        %1150 = vset.pattern.permute.xlu0 0
        %1151 = vperm.xlu0 %1150, %v985
        %v1152 = vpop.permute.xlu0 %1151
        %1155 = vset.pattern.permute.xlu0 0
        %1156 = vperm.xlu0 %1155, %v986
        %v1157 = vpop.permute.xlu0 %1156
        %1160 = vset.pattern.permute.xlu0 0
        %1161 = vperm.xlu0 %1160, %v987
        %v1162 = vpop.permute.xlu0 %1161
        %1165 = vset.pattern.permute.xlu0 0
        %1166 = vperm.xlu0 %1165, %v1004
        %v1167 = vpop.permute.xlu0 %1166
        %1170 = vset.pattern.permute.xlu0 0
        %1171 = vperm.xlu0 %1170, %v1005
        %v1172 = vpop.permute.xlu0 %1171
        %1175 = vset.pattern.permute.xlu0 0
        %1176 = vperm.xlu0 %1175, %v1006
        %v1177 = vpop.permute.xlu0 %1176
        %1180 = vset.pattern.permute.xlu0 0
        %1181 = vperm.xlu0 %1180, %v1007
        %v1182 = vpop.permute.xlu0 %1181
        %1185 = vset.pattern.permute.xlu0 0
        %1186 = vperm.xlu0 %1185, %v1008
        %v1187 = vpop.permute.xlu0 %1186
        %1190 = vset.pattern.permute.xlu0 0
        %1191 = vperm.xlu0 %1190, %v1009
        %v1192 = vpop.permute.xlu0 %1191
        %1195 = vset.pattern.permute.xlu0 0
        %1196 = vperm.xlu0 %1195, %v1010
        %v1197 = vpop.permute.xlu0 %1196
        %1200 = vset.pattern.permute.xlu0 0
        %1201 = vperm.xlu0 %1200, %v1011
        %v1202 = vpop.permute.xlu0 %1201
        %1205 = vset.pattern.permute.xlu0 0
        %1206 = vperm.xlu0 %1205, %v1012
        %v1207 = vpop.permute.xlu0 %1206
        %1210 = vset.pattern.permute.xlu0 0
        %1211 = vperm.xlu0 %1210, %v1013
        %v1212 = vpop.permute.xlu0 %1211
        %1215 = vset.pattern.permute.xlu0 0
        %1216 = vperm.xlu0 %1215, %v1014
        %v1217 = vpop.permute.xlu0 %1216
        %1220 = vset.pattern.permute.xlu0 0
        %1221 = vperm.xlu0 %1220, %v1015
        %v1222 = vpop.permute.xlu0 %1221
        %1225 = vset.pattern.permute.xlu0 0
        %1226 = vperm.xlu0 %1225, %v1016
        %v1227 = vpop.permute.xlu0 %1226
        %1230 = vset.pattern.permute.xlu0 0
        %1231 = vperm.xlu0 %1230, %v1017
        %v1232 = vpop.permute.xlu0 %1231
        %1235 = vset.pattern.permute.xlu0 0
        %1236 = vperm.xlu0 %1235, %v1018
        %v1237 = vpop.permute.xlu0 %1236
        %1240 = vset.pattern.permute.xlu0 0
        %1241 = vperm.xlu0 %1240, %v1019
        %v1242 = vpop.permute.xlu0 %1241
        %1245 = vset.pattern.permute.xlu0 0
        %1246 = vperm.xlu0 %1245, %v1036
        %v1247 = vpop.permute.xlu0 %1246
        %1250 = vset.pattern.permute.xlu0 0
        %1251 = vperm.xlu0 %1250, %v1037
        %v1252 = vpop.permute.xlu0 %1251
        %1255 = vset.pattern.permute.xlu0 0
        %1256 = vperm.xlu0 %1255, %v1038
        %v1257 = vpop.permute.xlu0 %1256
        %1260 = vset.pattern.permute.xlu0 0
        %1261 = vperm.xlu0 %1260, %v1039
        %v1262 = vpop.permute.xlu0 %1261
        %1265 = vset.pattern.permute.xlu0 0
        %1266 = vperm.xlu0 %1265, %v1040
        %v1267 = vpop.permute.xlu0 %1266
        %1270 = vset.pattern.permute.xlu0 0
        %1271 = vperm.xlu0 %1270, %v1041
        %v1272 = vpop.permute.xlu0 %1271
        %1275 = vset.pattern.permute.xlu0 0
        %1276 = vperm.xlu0 %1275, %v1042
        %v1277 = vpop.permute.xlu0 %1276
        %1280 = vset.pattern.permute.xlu0 0
        %1281 = vperm.xlu0 %1280, %v1043
        %v1282 = vpop.permute.xlu0 %1281
        %1285 = vset.pattern.permute.xlu0 0
        %1286 = vperm.xlu0 %1285, %v1044
        %v1287 = vpop.permute.xlu0 %1286
        %1290 = vset.pattern.permute.xlu0 0
        %1291 = vperm.xlu0 %1290, %v1045
        %v1292 = vpop.permute.xlu0 %1291
        %1295 = vset.pattern.permute.xlu0 0
        %1296 = vperm.xlu0 %1295, %v1046
        %v1297 = vpop.permute.xlu0 %1296
        %1300 = vset.pattern.permute.xlu0 0
        %1301 = vperm.xlu0 %1300, %v1047
        %v1302 = vpop.permute.xlu0 %1301
        %1305 = vset.pattern.permute.xlu0 0
        %1306 = vperm.xlu0 %1305, %v1048
        %v1307 = vpop.permute.xlu0 %1306
        %1310 = vset.pattern.permute.xlu0 0
        %1311 = vperm.xlu0 %1310, %v1049
        %v1312 = vpop.permute.xlu0 %1311
        %1315 = vset.pattern.permute.xlu0 0
        %1316 = vperm.xlu0 %1315, %v1050
        %v1317 = vpop.permute.xlu0 %1316
        %1320 = vset.pattern.permute.xlu0 0
        %1321 = vperm.xlu0 %1320, %v1051
        %v1322 = vpop.permute.xlu0 %1321
        %1325 = vset.pattern.permute.xlu0 0
        %1326 = vperm.xlu0 %1325, %v1068
        %v1327 = vpop.permute.xlu0 %1326
        %1330 = vset.pattern.permute.xlu0 0
        %1331 = vperm.xlu0 %1330, %v1069
        %v1332 = vpop.permute.xlu0 %1331
        %1335 = vset.pattern.permute.xlu0 0
        %1336 = vperm.xlu0 %1335, %v1070
        %v1337 = vpop.permute.xlu0 %1336
        %1340 = vset.pattern.permute.xlu0 0
        %1341 = vperm.xlu0 %1340, %v1071
        %v1342 = vpop.permute.xlu0 %1341
        %1345 = vset.pattern.permute.xlu0 0
        %1346 = vperm.xlu0 %1345, %v1072
        %v1347 = vpop.permute.xlu0 %1346
        %1350 = vset.pattern.permute.xlu0 0
        %1351 = vperm.xlu0 %1350, %v1073
        %v1352 = vpop.permute.xlu0 %1351
        %1355 = vset.pattern.permute.xlu0 0
        %1356 = vperm.xlu0 %1355, %v1074
        %v1357 = vpop.permute.xlu0 %1356
        %1360 = vset.pattern.permute.xlu0 0
        %1361 = vperm.xlu0 %1360, %v1075
        %v1362 = vpop.permute.xlu0 %1361
        %1365 = vset.pattern.permute.xlu0 0
        %1366 = vperm.xlu0 %1365, %v1076
        %v1367 = vpop.permute.xlu0 %1366
        %1370 = vset.pattern.permute.xlu0 0
        %1371 = vperm.xlu0 %1370, %v1077
        %v1372 = vpop.permute.xlu0 %1371
        %1375 = vset.pattern.permute.xlu0 0
        %1376 = vperm.xlu0 %1375, %v1078
        %v1377 = vpop.permute.xlu0 %1376
        %1380 = vset.pattern.permute.xlu0 0
        %1381 = vperm.xlu0 %1380, %v1079
        %v1382 = vpop.permute.xlu0 %1381
        %1385 = vset.pattern.permute.xlu0 0
        %1386 = vperm.xlu0 %1385, %v1080
        %v1387 = vpop.permute.xlu0 %1386
        %1390 = vset.pattern.permute.xlu0 0
        %1391 = vperm.xlu0 %1390, %v1081
        %v1392 = vpop.permute.xlu0 %1391
        %1395 = vset.pattern.permute.xlu0 0
        %1396 = vperm.xlu0 %1395, %v1082
        %v1397 = vpop.permute.xlu0 %1396
        %1400 = vset.pattern.permute.xlu0 0
        %1401 = vperm.xlu0 %1400, %v1083
        %v1402 = vpop.permute.xlu0 %1401
        %v1404 = vlaneseq
        %v1405 = vshrl.u32 %v1404, 7
        %v1406 = vsub.s32 1, %v1405
        %v1407 = vrot.slane %v444, %v1406
        %v1408 = vmul.f32 %v1087, %v1407
        %v1409 = vmul.f32 %v1092, %v1407
        %v1410 = vmul.f32 %v1097, %v1407
        %v1411 = vmul.f32 %v1102, %v1407
        %v1412 = vmul.f32 %v1107, %v1407
        %v1413 = vmul.f32 %v1112, %v1407
        %v1414 = vmul.f32 %v1117, %v1407
        %v1415 = vmul.f32 %v1122, %v1407
        %v1416 = vmul.f32 %v1127, %v1407
        %v1417 = vmul.f32 %v1132, %v1407
        %v1418 = vmul.f32 %v1137, %v1407
        %v1419 = vmul.f32 %v1142, %v1407
        %v1420 = vmul.f32 %v1147, %v1407
        %v1421 = vmul.f32 %v1152, %v1407
        %v1422 = vmul.f32 %v1157, %v1407
        %v1423 = vmul.f32 %v1162, %v1407
        %v1424 = vmul.f32 %v1167, %v1407
        %v1425 = vmul.f32 %v1172, %v1407
        %v1426 = vmul.f32 %v1177, %v1407
        %v1427 = vmul.f32 %v1182, %v1407
        %v1428 = vmul.f32 %v1187, %v1407
        %v1429 = vmul.f32 %v1192, %v1407
        %v1430 = vmul.f32 %v1197, %v1407
        %v1431 = vmul.f32 %v1202, %v1407
        %v1432 = vmul.f32 %v1207, %v1407
        %v1433 = vmul.f32 %v1212, %v1407
        %v1434 = vmul.f32 %v1217, %v1407
        %v1435 = vmul.f32 %v1222, %v1407
        %v1436 = vmul.f32 %v1227, %v1407
        %v1437 = vmul.f32 %v1232, %v1407
        %v1438 = vmul.f32 %v1237, %v1407
        %v1439 = vmul.f32 %v1242, %v1407
        %v1440 = vmul.f32 %v1247, %v1407
        %v1441 = vmul.f32 %v1252, %v1407
        %v1442 = vmul.f32 %v1257, %v1407
        %v1443 = vmul.f32 %v1262, %v1407
        %v1444 = vmul.f32 %v1267, %v1407
        %v1445 = vmul.f32 %v1272, %v1407
        %v1446 = vmul.f32 %v1277, %v1407
        %v1447 = vmul.f32 %v1282, %v1407
        %v1448 = vmul.f32 %v1287, %v1407
        %v1449 = vmul.f32 %v1292, %v1407
        %v1450 = vmul.f32 %v1297, %v1407
        %v1451 = vmul.f32 %v1302, %v1407
        %v1452 = vmul.f32 %v1307, %v1407
        %v1453 = vmul.f32 %v1312, %v1407
        %v1454 = vmul.f32 %v1317, %v1407
        %v1455 = vmul.f32 %v1322, %v1407
        %v1456 = vmul.f32 %v1327, %v1407
        %v1457 = vmul.f32 %v1332, %v1407
        %v1458 = vmul.f32 %v1337, %v1407
        %v1459 = vmul.f32 %v1342, %v1407
        %v1460 = vmul.f32 %v1347, %v1407
        %v1461 = vmul.f32 %v1352, %v1407
        %v1462 = vmul.f32 %v1357, %v1407
        %v1463 = vmul.f32 %v1362, %v1407
        %v1464 = vmul.f32 %v1367, %v1407
        %v1465 = vmul.f32 %v1372, %v1407
        %v1466 = vmul.f32 %v1377, %v1407
        %v1467 = vmul.f32 %v1382, %v1407
        %v1468 = vmul.f32 %v1387, %v1407
        %v1469 = vmul.f32 %v1392, %v1407
        %v1470 = vmul.f32 %v1397, %v1407
        %v1471 = vmul.f32 %v1402, %v1407
        %v1472 = vlaneseq
        %v1473 = vshrl.u32 %v1472, 7
        %v1474 = vsub.s32 0, %v1473
        %v1475 = vrot.slane %v436, %v1474
        %v1476 = vadd.f32 %v1475, %v1408
        %v1477 = vadd.f32 %v1475, %v1409
        %v1478 = vadd.f32 %v1475, %v1410
        %v1479 = vadd.f32 %v1475, %v1411
        %v1480 = vadd.f32 %v1475, %v1412
        %v1481 = vadd.f32 %v1475, %v1413
        %v1482 = vadd.f32 %v1475, %v1414
        %v1483 = vadd.f32 %v1475, %v1415
        %v1484 = vadd.f32 %v1475, %v1416
        %v1485 = vadd.f32 %v1475, %v1417
        %v1486 = vadd.f32 %v1475, %v1418
        %v1487 = vadd.f32 %v1475, %v1419
        %v1488 = vadd.f32 %v1475, %v1420
        %v1489 = vadd.f32 %v1475, %v1421
        %v1490 = vadd.f32 %v1475, %v1422
        %v1491 = vadd.f32 %v1475, %v1423
        %v1492 = vadd.f32 %v1475, %v1424
        %v1493 = vadd.f32 %v1475, %v1425
        %v1494 = vadd.f32 %v1475, %v1426
        %v1495 = vadd.f32 %v1475, %v1427
        %v1496 = vadd.f32 %v1475, %v1428
        %v1497 = vadd.f32 %v1475, %v1429
        %v1498 = vadd.f32 %v1475, %v1430
        %v1499 = vadd.f32 %v1475, %v1431
        %v1500 = vadd.f32 %v1475, %v1432
        %v1501 = vadd.f32 %v1475, %v1433
        %v1502 = vadd.f32 %v1475, %v1434
        %v1503 = vadd.f32 %v1475, %v1435
        %v1504 = vadd.f32 %v1475, %v1436
        %v1505 = vadd.f32 %v1475, %v1437
        %v1506 = vadd.f32 %v1475, %v1438
        %v1507 = vadd.f32 %v1475, %v1439
        %v1508 = vadd.f32 %v1475, %v1440
        %v1509 = vadd.f32 %v1475, %v1441
        %v1510 = vadd.f32 %v1475, %v1442
        %v1511 = vadd.f32 %v1475, %v1443
        %v1512 = vadd.f32 %v1475, %v1444
        %v1513 = vadd.f32 %v1475, %v1445
        %v1514 = vadd.f32 %v1475, %v1446
        %v1515 = vadd.f32 %v1475, %v1447
        %v1516 = vadd.f32 %v1475, %v1448
        %v1517 = vadd.f32 %v1475, %v1449
        %v1518 = vadd.f32 %v1475, %v1450
        %v1519 = vadd.f32 %v1475, %v1451
        %v1520 = vadd.f32 %v1475, %v1452
        %v1521 = vadd.f32 %v1475, %v1453
        %v1522 = vadd.f32 %v1475, %v1454
        %v1523 = vadd.f32 %v1475, %v1455
        %v1524 = vadd.f32 %v1475, %v1456
        %v1525 = vadd.f32 %v1475, %v1457
        %v1526 = vadd.f32 %v1475, %v1458
        %v1527 = vadd.f32 %v1475, %v1459
        %v1528 = vadd.f32 %v1475, %v1460
        %v1529 = vadd.f32 %v1475, %v1461
        %v1530 = vadd.f32 %v1475, %v1462
        %v1531 = vadd.f32 %v1475, %v1463
        %v1532 = vadd.f32 %v1475, %v1464
        %v1533 = vadd.f32 %v1475, %v1465
        %v1534 = vadd.f32 %v1475, %v1466
        %v1535 = vadd.f32 %v1475, %v1467
        %v1536 = vadd.f32 %v1475, %v1468
        %v1537 = vadd.f32 %v1475, %v1469
        %v1538 = vadd.f32 %v1475, %v1470
        %v1539 = vadd.f32 %v1475, %v1471
        %1540 = vset.pattern.permute.xlu0 1
        %1541 = vperm.xlu0 %1540, %v972
        %v1542 = vpop.permute.xlu0 %1541
        %1544 = vset.pattern.permute.xlu0 1
        %1545 = vperm.xlu0 %1544, %v973
        %v1546 = vpop.permute.xlu0 %1545
        %1548 = vset.pattern.permute.xlu0 1
        %1549 = vperm.xlu0 %1548, %v974
        %v1550 = vpop.permute.xlu0 %1549
        %1552 = vset.pattern.permute.xlu0 1
        %1553 = vperm.xlu0 %1552, %v975
        %v1554 = vpop.permute.xlu0 %1553
        %1556 = vset.pattern.permute.xlu0 1
        %1557 = vperm.xlu0 %1556, %v976
        %v1558 = vpop.permute.xlu0 %1557
        %1560 = vset.pattern.permute.xlu0 1
        %1561 = vperm.xlu0 %1560, %v977
        %v1562 = vpop.permute.xlu0 %1561
        %1564 = vset.pattern.permute.xlu0 1
        %1565 = vperm.xlu0 %1564, %v978
        %v1566 = vpop.permute.xlu0 %1565
        %1568 = vset.pattern.permute.xlu0 1
        %1569 = vperm.xlu0 %1568, %v979
        %v1570 = vpop.permute.xlu0 %1569
        %1572 = vset.pattern.permute.xlu0 1
        %1573 = vperm.xlu0 %1572, %v980
        %v1574 = vpop.permute.xlu0 %1573
        %1576 = vset.pattern.permute.xlu0 1
        %1577 = vperm.xlu0 %1576, %v981
        %v1578 = vpop.permute.xlu0 %1577
        %1580 = vset.pattern.permute.xlu0 1
        %1581 = vperm.xlu0 %1580, %v982
        %v1582 = vpop.permute.xlu0 %1581
        %1584 = vset.pattern.permute.xlu0 1
        %1585 = vperm.xlu0 %1584, %v983
        %v1586 = vpop.permute.xlu0 %1585
        %1588 = vset.pattern.permute.xlu0 1
        %1589 = vperm.xlu0 %1588, %v984
        %v1590 = vpop.permute.xlu0 %1589
        %1592 = vset.pattern.permute.xlu0 1
        %1593 = vperm.xlu0 %1592, %v985
        %v1594 = vpop.permute.xlu0 %1593
        %1596 = vset.pattern.permute.xlu0 1
        %1597 = vperm.xlu0 %1596, %v986
        %v1598 = vpop.permute.xlu0 %1597
        %1600 = vset.pattern.permute.xlu0 1
        %1601 = vperm.xlu0 %1600, %v987
        %v1602 = vpop.permute.xlu0 %1601
        %1604 = vset.pattern.permute.xlu0 1
        %1605 = vperm.xlu0 %1604, %v1004
        %v1606 = vpop.permute.xlu0 %1605
        %1608 = vset.pattern.permute.xlu0 1
        %1609 = vperm.xlu0 %1608, %v1005
        %v1610 = vpop.permute.xlu0 %1609
        %1612 = vset.pattern.permute.xlu0 1
        %1613 = vperm.xlu0 %1612, %v1006
        %v1614 = vpop.permute.xlu0 %1613
        %1616 = vset.pattern.permute.xlu0 1
        %1617 = vperm.xlu0 %1616, %v1007
        %v1618 = vpop.permute.xlu0 %1617
        %1620 = vset.pattern.permute.xlu0 1
        %1621 = vperm.xlu0 %1620, %v1008
        %v1622 = vpop.permute.xlu0 %1621
        %1624 = vset.pattern.permute.xlu0 1
        %1625 = vperm.xlu0 %1624, %v1009
        %v1626 = vpop.permute.xlu0 %1625
        %1628 = vset.pattern.permute.xlu0 1
        %1629 = vperm.xlu0 %1628, %v1010
        %v1630 = vpop.permute.xlu0 %1629
        %1632 = vset.pattern.permute.xlu0 1
        %1633 = vperm.xlu0 %1632, %v1011
        %v1634 = vpop.permute.xlu0 %1633
        %1636 = vset.pattern.permute.xlu0 1
        %1637 = vperm.xlu0 %1636, %v1012
        %v1638 = vpop.permute.xlu0 %1637
        %1640 = vset.pattern.permute.xlu0 1
        %1641 = vperm.xlu0 %1640, %v1013
        %v1642 = vpop.permute.xlu0 %1641
        %1644 = vset.pattern.permute.xlu0 1
        %1645 = vperm.xlu0 %1644, %v1014
        %v1646 = vpop.permute.xlu0 %1645
        %1648 = vset.pattern.permute.xlu0 1
        %1649 = vperm.xlu0 %1648, %v1015
        %v1650 = vpop.permute.xlu0 %1649
        %1652 = vset.pattern.permute.xlu0 1
        %1653 = vperm.xlu0 %1652, %v1016
        %v1654 = vpop.permute.xlu0 %1653
        %1656 = vset.pattern.permute.xlu0 1
        %1657 = vperm.xlu0 %1656, %v1017
        %v1658 = vpop.permute.xlu0 %1657
        %1660 = vset.pattern.permute.xlu0 1
        %1661 = vperm.xlu0 %1660, %v1018
        %v1662 = vpop.permute.xlu0 %1661
        %1664 = vset.pattern.permute.xlu0 1
        %1665 = vperm.xlu0 %1664, %v1019
        %v1666 = vpop.permute.xlu0 %1665
        %1668 = vset.pattern.permute.xlu0 1
        %1669 = vperm.xlu0 %1668, %v1036
        %v1670 = vpop.permute.xlu0 %1669
        %1672 = vset.pattern.permute.xlu0 1
        %1673 = vperm.xlu0 %1672, %v1037
        %v1674 = vpop.permute.xlu0 %1673
        %1676 = vset.pattern.permute.xlu0 1
        %1677 = vperm.xlu0 %1676, %v1038
        %v1678 = vpop.permute.xlu0 %1677
        %1680 = vset.pattern.permute.xlu0 1
        %1681 = vperm.xlu0 %1680, %v1039
        %v1682 = vpop.permute.xlu0 %1681
        %1684 = vset.pattern.permute.xlu0 1
        %1685 = vperm.xlu0 %1684, %v1040
        %v1686 = vpop.permute.xlu0 %1685
        %1688 = vset.pattern.permute.xlu0 1
        %1689 = vperm.xlu0 %1688, %v1041
        %v1690 = vpop.permute.xlu0 %1689
        %1692 = vset.pattern.permute.xlu0 1
        %1693 = vperm.xlu0 %1692, %v1042
        %v1694 = vpop.permute.xlu0 %1693
        %1696 = vset.pattern.permute.xlu0 1
        %1697 = vperm.xlu0 %1696, %v1043
        %v1698 = vpop.permute.xlu0 %1697
        %1700 = vset.pattern.permute.xlu0 1
        %1701 = vperm.xlu0 %1700, %v1044
        %v1702 = vpop.permute.xlu0 %1701
        %1704 = vset.pattern.permute.xlu0 1
        %1705 = vperm.xlu0 %1704, %v1045
        %v1706 = vpop.permute.xlu0 %1705
        %1708 = vset.pattern.permute.xlu0 1
        %1709 = vperm.xlu0 %1708, %v1046
        %v1710 = vpop.permute.xlu0 %1709
        %1712 = vset.pattern.permute.xlu0 1
        %1713 = vperm.xlu0 %1712, %v1047
        %v1714 = vpop.permute.xlu0 %1713
        %1716 = vset.pattern.permute.xlu0 1
        %1717 = vperm.xlu0 %1716, %v1048
        %v1718 = vpop.permute.xlu0 %1717
        %1720 = vset.pattern.permute.xlu0 1
        %1721 = vperm.xlu0 %1720, %v1049
        %v1722 = vpop.permute.xlu0 %1721
        %1724 = vset.pattern.permute.xlu0 1
        %1725 = vperm.xlu0 %1724, %v1050
        %v1726 = vpop.permute.xlu0 %1725
        %1728 = vset.pattern.permute.xlu0 1
        %1729 = vperm.xlu0 %1728, %v1051
        %v1730 = vpop.permute.xlu0 %1729
        %1732 = vset.pattern.permute.xlu0 1
        %1733 = vperm.xlu0 %1732, %v1068
        %v1734 = vpop.permute.xlu0 %1733
        %1736 = vset.pattern.permute.xlu0 1
        %1737 = vperm.xlu0 %1736, %v1069
        %v1738 = vpop.permute.xlu0 %1737
        %1740 = vset.pattern.permute.xlu0 1
        %1741 = vperm.xlu0 %1740, %v1070
        %v1742 = vpop.permute.xlu0 %1741
        %1744 = vset.pattern.permute.xlu0 1
        %1745 = vperm.xlu0 %1744, %v1071
        %v1746 = vpop.permute.xlu0 %1745
        %1748 = vset.pattern.permute.xlu0 1
        %1749 = vperm.xlu0 %1748, %v1072
        %v1750 = vpop.permute.xlu0 %1749
        %1752 = vset.pattern.permute.xlu0 1
        %1753 = vperm.xlu0 %1752, %v1073
        %v1754 = vpop.permute.xlu0 %1753
        %1756 = vset.pattern.permute.xlu0 1
        %1757 = vperm.xlu0 %1756, %v1074
        %v1758 = vpop.permute.xlu0 %1757
        %1760 = vset.pattern.permute.xlu0 1
        %1761 = vperm.xlu0 %1760, %v1075
        %v1762 = vpop.permute.xlu0 %1761
        %1764 = vset.pattern.permute.xlu0 1
        %1765 = vperm.xlu0 %1764, %v1076
        %v1766 = vpop.permute.xlu0 %1765
        %1768 = vset.pattern.permute.xlu0 1
        %1769 = vperm.xlu0 %1768, %v1077
        %v1770 = vpop.permute.xlu0 %1769
        %1772 = vset.pattern.permute.xlu0 1
        %1773 = vperm.xlu0 %1772, %v1078
        %v1774 = vpop.permute.xlu0 %1773
        %1776 = vset.pattern.permute.xlu0 1
        %1777 = vperm.xlu0 %1776, %v1079
        %v1778 = vpop.permute.xlu0 %1777
        %1780 = vset.pattern.permute.xlu0 1
        %1781 = vperm.xlu0 %1780, %v1080
        %v1782 = vpop.permute.xlu0 %1781
        %1784 = vset.pattern.permute.xlu0 1
        %1785 = vperm.xlu0 %1784, %v1081
        %v1786 = vpop.permute.xlu0 %1785
        %1788 = vset.pattern.permute.xlu0 1
        %1789 = vperm.xlu0 %1788, %v1082
        %v1790 = vpop.permute.xlu0 %1789
        %1792 = vset.pattern.permute.xlu0 1
        %1793 = vperm.xlu0 %1792, %v1083
        %v1794 = vpop.permute.xlu0 %1793
        %v1796 = vlaneseq
        %v1797 = vshrl.u32 %v1796, 7
        %v1798 = vsub.s32 2, %v1797
        %v1799 = vrot.slane %v444, %v1798
        %v1800 = vmul.f32 %v1542, %v1799
        %v1801 = vmul.f32 %v1546, %v1799
        %v1802 = vmul.f32 %v1550, %v1799
        %v1803 = vmul.f32 %v1554, %v1799
        %v1804 = vmul.f32 %v1558, %v1799
        %v1805 = vmul.f32 %v1562, %v1799
        %v1806 = vmul.f32 %v1566, %v1799
        %v1807 = vmul.f32 %v1570, %v1799
        %v1808 = vmul.f32 %v1574, %v1799
        %v1809 = vmul.f32 %v1578, %v1799
        %v1810 = vmul.f32 %v1582, %v1799
        %v1811 = vmul.f32 %v1586, %v1799
        %v1812 = vmul.f32 %v1590, %v1799
        %v1813 = vmul.f32 %v1594, %v1799
        %v1814 = vmul.f32 %v1598, %v1799
        %v1815 = vmul.f32 %v1602, %v1799
        %v1816 = vmul.f32 %v1606, %v1799
        %v1817 = vmul.f32 %v1610, %v1799
        %v1818 = vmul.f32 %v1614, %v1799
        %v1819 = vmul.f32 %v1618, %v1799
        %v1820 = vmul.f32 %v1622, %v1799
        %v1821 = vmul.f32 %v1626, %v1799
        %v1822 = vmul.f32 %v1630, %v1799
        %v1823 = vmul.f32 %v1634, %v1799
        %v1824 = vmul.f32 %v1638, %v1799
        %v1825 = vmul.f32 %v1642, %v1799
        %v1826 = vmul.f32 %v1646, %v1799
        %v1827 = vmul.f32 %v1650, %v1799
        %v1828 = vmul.f32 %v1654, %v1799
        %v1829 = vmul.f32 %v1658, %v1799
        %v1830 = vmul.f32 %v1662, %v1799
        %v1831 = vmul.f32 %v1666, %v1799
        %v1832 = vmul.f32 %v1670, %v1799
        %v1833 = vmul.f32 %v1674, %v1799
        %v1834 = vmul.f32 %v1678, %v1799
        %v1835 = vmul.f32 %v1682, %v1799
        %v1836 = vmul.f32 %v1686, %v1799
        %v1837 = vmul.f32 %v1690, %v1799
        %v1838 = vmul.f32 %v1694, %v1799
        %v1839 = vmul.f32 %v1698, %v1799
        %v1840 = vmul.f32 %v1702, %v1799
        %v1841 = vmul.f32 %v1706, %v1799
        %v1842 = vmul.f32 %v1710, %v1799
        %v1843 = vmul.f32 %v1714, %v1799
        %v1844 = vmul.f32 %v1718, %v1799
        %v1845 = vmul.f32 %v1722, %v1799
        %v1846 = vmul.f32 %v1726, %v1799
        %v1847 = vmul.f32 %v1730, %v1799
        %v1848 = vmul.f32 %v1734, %v1799
        %v1849 = vmul.f32 %v1738, %v1799
        %v1850 = vmul.f32 %v1742, %v1799
        %v1851 = vmul.f32 %v1746, %v1799
        %v1852 = vmul.f32 %v1750, %v1799
        %v1853 = vmul.f32 %v1754, %v1799
        %v1854 = vmul.f32 %v1758, %v1799
        %v1855 = vmul.f32 %v1762, %v1799
        %v1856 = vmul.f32 %v1766, %v1799
        %v1857 = vmul.f32 %v1770, %v1799
        %v1858 = vmul.f32 %v1774, %v1799
        %v1859 = vmul.f32 %v1778, %v1799
        %v1860 = vmul.f32 %v1782, %v1799
        %v1861 = vmul.f32 %v1786, %v1799
        %v1862 = vmul.f32 %v1790, %v1799
        %v1863 = vmul.f32 %v1794, %v1799
        %v1864 = vadd.f32 %v1476, %v1800
        %v1865 = vadd.f32 %v1477, %v1801
        %v1866 = vadd.f32 %v1478, %v1802
        %v1867 = vadd.f32 %v1479, %v1803
        %v1868 = vadd.f32 %v1480, %v1804
        %v1869 = vadd.f32 %v1481, %v1805
        %v1870 = vadd.f32 %v1482, %v1806
        %v1871 = vadd.f32 %v1483, %v1807
        %v1872 = vadd.f32 %v1484, %v1808
        %v1873 = vadd.f32 %v1485, %v1809
        %v1874 = vadd.f32 %v1486, %v1810
        %v1875 = vadd.f32 %v1487, %v1811
        %v1876 = vadd.f32 %v1488, %v1812
        %v1877 = vadd.f32 %v1489, %v1813
        %v1878 = vadd.f32 %v1490, %v1814
        %v1879 = vadd.f32 %v1491, %v1815
        %v1880 = vadd.f32 %v1492, %v1816
        %v1881 = vadd.f32 %v1493, %v1817
        %v1882 = vadd.f32 %v1494, %v1818
        %v1883 = vadd.f32 %v1495, %v1819
        %v1884 = vadd.f32 %v1496, %v1820
        %v1885 = vadd.f32 %v1497, %v1821
        %v1886 = vadd.f32 %v1498, %v1822
        %v1887 = vadd.f32 %v1499, %v1823
        %v1888 = vadd.f32 %v1500, %v1824
        %v1889 = vadd.f32 %v1501, %v1825
        %v1890 = vadd.f32 %v1502, %v1826
        %v1891 = vadd.f32 %v1503, %v1827
        %v1892 = vadd.f32 %v1504, %v1828
        %v1893 = vadd.f32 %v1505, %v1829
        %v1894 = vadd.f32 %v1506, %v1830
        %v1895 = vadd.f32 %v1507, %v1831
        %v1896 = vadd.f32 %v1508, %v1832
        %v1897 = vadd.f32 %v1509, %v1833
        %v1898 = vadd.f32 %v1510, %v1834
        %v1899 = vadd.f32 %v1511, %v1835
        %v1900 = vadd.f32 %v1512, %v1836
        %v1901 = vadd.f32 %v1513, %v1837
        %v1902 = vadd.f32 %v1514, %v1838
        %v1903 = vadd.f32 %v1515, %v1839
        %v1904 = vadd.f32 %v1516, %v1840
        %v1905 = vadd.f32 %v1517, %v1841
        %v1906 = vadd.f32 %v1518, %v1842
        %v1907 = vadd.f32 %v1519, %v1843
        %v1908 = vadd.f32 %v1520, %v1844
        %v1909 = vadd.f32 %v1521, %v1845
        %v1910 = vadd.f32 %v1522, %v1846
        %v1911 = vadd.f32 %v1523, %v1847
        %v1912 = vadd.f32 %v1524, %v1848
        %v1913 = vadd.f32 %v1525, %v1849
        %v1914 = vadd.f32 %v1526, %v1850
        %v1915 = vadd.f32 %v1527, %v1851
        %v1916 = vadd.f32 %v1528, %v1852
        %v1917 = vadd.f32 %v1529, %v1853
        %v1918 = vadd.f32 %v1530, %v1854
        %v1919 = vadd.f32 %v1531, %v1855
        %v1920 = vadd.f32 %v1532, %v1856
        %v1921 = vadd.f32 %v1533, %v1857
        %v1922 = vadd.f32 %v1534, %v1858
        %v1923 = vadd.f32 %v1535, %v1859
        %v1924 = vadd.f32 %v1536, %v1860
        %v1925 = vadd.f32 %v1537, %v1861
        %v1926 = vadd.f32 %v1538, %v1862
        %v1927 = vadd.f32 %v1539, %v1863
        %1928 = vset.pattern.permute.xlu0 2
        %1929 = vperm.xlu0 %1928, %v972
        %v1930 = vpop.permute.xlu0 %1929
        %1932 = vset.pattern.permute.xlu0 2
        %1933 = vperm.xlu0 %1932, %v973
        %v1934 = vpop.permute.xlu0 %1933
        %1936 = vset.pattern.permute.xlu0 2
        %1937 = vperm.xlu0 %1936, %v974
        %v1938 = vpop.permute.xlu0 %1937
        %1940 = vset.pattern.permute.xlu0 2
        %1941 = vperm.xlu0 %1940, %v975
        %v1942 = vpop.permute.xlu0 %1941
        %1944 = vset.pattern.permute.xlu0 2
        %1945 = vperm.xlu0 %1944, %v976
        %v1946 = vpop.permute.xlu0 %1945
        %1948 = vset.pattern.permute.xlu0 2
        %1949 = vperm.xlu0 %1948, %v977
        %v1950 = vpop.permute.xlu0 %1949
        %1952 = vset.pattern.permute.xlu0 2
        %1953 = vperm.xlu0 %1952, %v978
        %v1954 = vpop.permute.xlu0 %1953
        %1956 = vset.pattern.permute.xlu0 2
        %1957 = vperm.xlu0 %1956, %v979
        %v1958 = vpop.permute.xlu0 %1957
        %1960 = vset.pattern.permute.xlu0 2
        %1961 = vperm.xlu0 %1960, %v980
        %v1962 = vpop.permute.xlu0 %1961
        %1964 = vset.pattern.permute.xlu0 2
        %1965 = vperm.xlu0 %1964, %v981
        %v1966 = vpop.permute.xlu0 %1965
        %1968 = vset.pattern.permute.xlu0 2
        %1969 = vperm.xlu0 %1968, %v982
        %v1970 = vpop.permute.xlu0 %1969
        %1972 = vset.pattern.permute.xlu0 2
        %1973 = vperm.xlu0 %1972, %v983
        %v1974 = vpop.permute.xlu0 %1973
        %1976 = vset.pattern.permute.xlu0 2
        %1977 = vperm.xlu0 %1976, %v984
        %v1978 = vpop.permute.xlu0 %1977
        %1980 = vset.pattern.permute.xlu0 2
        %1981 = vperm.xlu0 %1980, %v985
        %v1982 = vpop.permute.xlu0 %1981
        %1984 = vset.pattern.permute.xlu0 2
        %1985 = vperm.xlu0 %1984, %v986
        %v1986 = vpop.permute.xlu0 %1985
        %1988 = vset.pattern.permute.xlu0 2
        %1989 = vperm.xlu0 %1988, %v987
        %v1990 = vpop.permute.xlu0 %1989
        %1992 = vset.pattern.permute.xlu0 2
        %1993 = vperm.xlu0 %1992, %v1004
        %v1994 = vpop.permute.xlu0 %1993
        %1996 = vset.pattern.permute.xlu0 2
        %1997 = vperm.xlu0 %1996, %v1005
        %v1998 = vpop.permute.xlu0 %1997
        %2000 = vset.pattern.permute.xlu0 2
        %2001 = vperm.xlu0 %2000, %v1006
        %v2002 = vpop.permute.xlu0 %2001
        %2004 = vset.pattern.permute.xlu0 2
        %2005 = vperm.xlu0 %2004, %v1007
        %v2006 = vpop.permute.xlu0 %2005
        %2008 = vset.pattern.permute.xlu0 2
        %2009 = vperm.xlu0 %2008, %v1008
        %v2010 = vpop.permute.xlu0 %2009
        %2012 = vset.pattern.permute.xlu0 2
        %2013 = vperm.xlu0 %2012, %v1009
        %v2014 = vpop.permute.xlu0 %2013
        %2016 = vset.pattern.permute.xlu0 2
        %2017 = vperm.xlu0 %2016, %v1010
        %v2018 = vpop.permute.xlu0 %2017
        %2020 = vset.pattern.permute.xlu0 2
        %2021 = vperm.xlu0 %2020, %v1011
        %v2022 = vpop.permute.xlu0 %2021
        %2024 = vset.pattern.permute.xlu0 2
        %2025 = vperm.xlu0 %2024, %v1012
        %v2026 = vpop.permute.xlu0 %2025
        %2028 = vset.pattern.permute.xlu0 2
        %2029 = vperm.xlu0 %2028, %v1013
        %v2030 = vpop.permute.xlu0 %2029
        %2032 = vset.pattern.permute.xlu0 2
        %2033 = vperm.xlu0 %2032, %v1014
        %v2034 = vpop.permute.xlu0 %2033
        %2036 = vset.pattern.permute.xlu0 2
        %2037 = vperm.xlu0 %2036, %v1015
        %v2038 = vpop.permute.xlu0 %2037
        %2040 = vset.pattern.permute.xlu0 2
        %2041 = vperm.xlu0 %2040, %v1016
        %v2042 = vpop.permute.xlu0 %2041
        %2044 = vset.pattern.permute.xlu0 2
        %2045 = vperm.xlu0 %2044, %v1017
        %v2046 = vpop.permute.xlu0 %2045
        %2048 = vset.pattern.permute.xlu0 2
        %2049 = vperm.xlu0 %2048, %v1018
        %v2050 = vpop.permute.xlu0 %2049
        %2052 = vset.pattern.permute.xlu0 2
        %2053 = vperm.xlu0 %2052, %v1019
        %v2054 = vpop.permute.xlu0 %2053
        %2056 = vset.pattern.permute.xlu0 2
        %2057 = vperm.xlu0 %2056, %v1036
        %v2058 = vpop.permute.xlu0 %2057
        %2060 = vset.pattern.permute.xlu0 2
        %2061 = vperm.xlu0 %2060, %v1037
        %v2062 = vpop.permute.xlu0 %2061
        %2064 = vset.pattern.permute.xlu0 2
        %2065 = vperm.xlu0 %2064, %v1038
        %v2066 = vpop.permute.xlu0 %2065
        %2068 = vset.pattern.permute.xlu0 2
        %2069 = vperm.xlu0 %2068, %v1039
        %v2070 = vpop.permute.xlu0 %2069
        %2072 = vset.pattern.permute.xlu0 2
        %2073 = vperm.xlu0 %2072, %v1040
        %v2074 = vpop.permute.xlu0 %2073
        %2076 = vset.pattern.permute.xlu0 2
        %2077 = vperm.xlu0 %2076, %v1041
        %v2078 = vpop.permute.xlu0 %2077
        %2080 = vset.pattern.permute.xlu0 2
        %2081 = vperm.xlu0 %2080, %v1042
        %v2082 = vpop.permute.xlu0 %2081
        %2084 = vset.pattern.permute.xlu0 2
        %2085 = vperm.xlu0 %2084, %v1043
        %v2086 = vpop.permute.xlu0 %2085
        %2088 = vset.pattern.permute.xlu0 2
        %2089 = vperm.xlu0 %2088, %v1044
        %v2090 = vpop.permute.xlu0 %2089
        %2092 = vset.pattern.permute.xlu0 2
        %2093 = vperm.xlu0 %2092, %v1045
        %v2094 = vpop.permute.xlu0 %2093
        %2096 = vset.pattern.permute.xlu0 2
        %2097 = vperm.xlu0 %2096, %v1046
        %v2098 = vpop.permute.xlu0 %2097
        %2100 = vset.pattern.permute.xlu0 2
        %2101 = vperm.xlu0 %2100, %v1047
        %v2102 = vpop.permute.xlu0 %2101
        %2104 = vset.pattern.permute.xlu0 2
        %2105 = vperm.xlu0 %2104, %v1048
        %v2106 = vpop.permute.xlu0 %2105
        %2108 = vset.pattern.permute.xlu0 2
        %2109 = vperm.xlu0 %2108, %v1049
        %v2110 = vpop.permute.xlu0 %2109
        %2112 = vset.pattern.permute.xlu0 2
        %2113 = vperm.xlu0 %2112, %v1050
        %v2114 = vpop.permute.xlu0 %2113
        %2116 = vset.pattern.permute.xlu0 2
        %2117 = vperm.xlu0 %2116, %v1051
        %v2118 = vpop.permute.xlu0 %2117
        %2120 = vset.pattern.permute.xlu0 2
        %2121 = vperm.xlu0 %2120, %v1068
        %v2122 = vpop.permute.xlu0 %2121
        %2124 = vset.pattern.permute.xlu0 2
        %2125 = vperm.xlu0 %2124, %v1069
        %v2126 = vpop.permute.xlu0 %2125
        %2128 = vset.pattern.permute.xlu0 2
        %2129 = vperm.xlu0 %2128, %v1070
        %v2130 = vpop.permute.xlu0 %2129
        %2132 = vset.pattern.permute.xlu0 2
        %2133 = vperm.xlu0 %2132, %v1071
        %v2134 = vpop.permute.xlu0 %2133
        %2136 = vset.pattern.permute.xlu0 2
        %2137 = vperm.xlu0 %2136, %v1072
        %v2138 = vpop.permute.xlu0 %2137
        %2140 = vset.pattern.permute.xlu0 2
        %2141 = vperm.xlu0 %2140, %v1073
        %v2142 = vpop.permute.xlu0 %2141
        %2144 = vset.pattern.permute.xlu0 2
        %2145 = vperm.xlu0 %2144, %v1074
        %v2146 = vpop.permute.xlu0 %2145
        %2148 = vset.pattern.permute.xlu0 2
        %2149 = vperm.xlu0 %2148, %v1075
        %v2150 = vpop.permute.xlu0 %2149
        %2152 = vset.pattern.permute.xlu0 2
        %2153 = vperm.xlu0 %2152, %v1076
        %v2154 = vpop.permute.xlu0 %2153
        %2156 = vset.pattern.permute.xlu0 2
        %2157 = vperm.xlu0 %2156, %v1077
        %v2158 = vpop.permute.xlu0 %2157
        %2160 = vset.pattern.permute.xlu0 2
        %2161 = vperm.xlu0 %2160, %v1078
        %v2162 = vpop.permute.xlu0 %2161
        %2164 = vset.pattern.permute.xlu0 2
        %2165 = vperm.xlu0 %2164, %v1079
        %v2166 = vpop.permute.xlu0 %2165
        %2168 = vset.pattern.permute.xlu0 2
        %2169 = vperm.xlu0 %2168, %v1080
        %v2170 = vpop.permute.xlu0 %2169
        %2172 = vset.pattern.permute.xlu0 2
        %2173 = vperm.xlu0 %2172, %v1081
        %v2174 = vpop.permute.xlu0 %2173
        %2176 = vset.pattern.permute.xlu0 2
        %2177 = vperm.xlu0 %2176, %v1082
        %v2178 = vpop.permute.xlu0 %2177
        %2180 = vset.pattern.permute.xlu0 2
        %2181 = vperm.xlu0 %2180, %v1083
        %v2182 = vpop.permute.xlu0 %2181
        %v2184 = vlaneseq
        %v2185 = vshrl.u32 %v2184, 7
        %v2186 = vsub.s32 3, %v2185
        %v2187 = vrot.slane %v444, %v2186
        %v2188 = vmul.f32 %v1930, %v2187
        %v2189 = vmul.f32 %v1934, %v2187
        %v2190 = vmul.f32 %v1938, %v2187
        %v2191 = vmul.f32 %v1942, %v2187
        %v2192 = vmul.f32 %v1946, %v2187
        %v2193 = vmul.f32 %v1950, %v2187
        %v2194 = vmul.f32 %v1954, %v2187
        %v2195 = vmul.f32 %v1958, %v2187
        %v2196 = vmul.f32 %v1962, %v2187
        %v2197 = vmul.f32 %v1966, %v2187
        %v2198 = vmul.f32 %v1970, %v2187
        %v2199 = vmul.f32 %v1974, %v2187
        %v2200 = vmul.f32 %v1978, %v2187
        %v2201 = vmul.f32 %v1982, %v2187
        %v2202 = vmul.f32 %v1986, %v2187
        %v2203 = vmul.f32 %v1990, %v2187
        %v2204 = vmul.f32 %v1994, %v2187
        %v2205 = vmul.f32 %v1998, %v2187
        %v2206 = vmul.f32 %v2002, %v2187
        %v2207 = vmul.f32 %v2006, %v2187
        %v2208 = vmul.f32 %v2010, %v2187
        %v2209 = vmul.f32 %v2014, %v2187
        %v2210 = vmul.f32 %v2018, %v2187
        %v2211 = vmul.f32 %v2022, %v2187
        %v2212 = vmul.f32 %v2026, %v2187
        %v2213 = vmul.f32 %v2030, %v2187
        %v2214 = vmul.f32 %v2034, %v2187
        %v2215 = vmul.f32 %v2038, %v2187
        %v2216 = vmul.f32 %v2042, %v2187
        %v2217 = vmul.f32 %v2046, %v2187
        %v2218 = vmul.f32 %v2050, %v2187
        %v2219 = vmul.f32 %v2054, %v2187
        %v2220 = vmul.f32 %v2058, %v2187
        %v2221 = vmul.f32 %v2062, %v2187
        %v2222 = vmul.f32 %v2066, %v2187
        %v2223 = vmul.f32 %v2070, %v2187
        %v2224 = vmul.f32 %v2074, %v2187
        %v2225 = vmul.f32 %v2078, %v2187
        %v2226 = vmul.f32 %v2082, %v2187
        %v2227 = vmul.f32 %v2086, %v2187
        %v2228 = vmul.f32 %v2090, %v2187
        %v2229 = vmul.f32 %v2094, %v2187
        %v2230 = vmul.f32 %v2098, %v2187
        %v2231 = vmul.f32 %v2102, %v2187
        %v2232 = vmul.f32 %v2106, %v2187
        %v2233 = vmul.f32 %v2110, %v2187
        %v2234 = vmul.f32 %v2114, %v2187
        %v2235 = vmul.f32 %v2118, %v2187
        %v2236 = vmul.f32 %v2122, %v2187
        %v2237 = vmul.f32 %v2126, %v2187
        %v2238 = vmul.f32 %v2130, %v2187
        %v2239 = vmul.f32 %v2134, %v2187
        %v2240 = vmul.f32 %v2138, %v2187
        %v2241 = vmul.f32 %v2142, %v2187
        %v2242 = vmul.f32 %v2146, %v2187
        %v2243 = vmul.f32 %v2150, %v2187
        %v2244 = vmul.f32 %v2154, %v2187
        %v2245 = vmul.f32 %v2158, %v2187
        %v2246 = vmul.f32 %v2162, %v2187
        %v2247 = vmul.f32 %v2166, %v2187
        %v2248 = vmul.f32 %v2170, %v2187
        %v2249 = vmul.f32 %v2174, %v2187
        %v2250 = vmul.f32 %v2178, %v2187
        %v2251 = vmul.f32 %v2182, %v2187
        %v2252 = vadd.f32 %v1864, %v2188
        %v2253 = vadd.f32 %v1865, %v2189
        %v2254 = vadd.f32 %v1866, %v2190
        %v2255 = vadd.f32 %v1867, %v2191
        %v2256 = vadd.f32 %v1868, %v2192
        %v2257 = vadd.f32 %v1869, %v2193
        %v2258 = vadd.f32 %v1870, %v2194
        %v2259 = vadd.f32 %v1871, %v2195
        %v2260 = vadd.f32 %v1872, %v2196
        %v2261 = vadd.f32 %v1873, %v2197
        %v2262 = vadd.f32 %v1874, %v2198
        %v2263 = vadd.f32 %v1875, %v2199
        %v2264 = vadd.f32 %v1876, %v2200
        %v2265 = vadd.f32 %v1877, %v2201
        %v2266 = vadd.f32 %v1878, %v2202
        %v2267 = vadd.f32 %v1879, %v2203
        %v2268 = vadd.f32 %v1880, %v2204
        %v2269 = vadd.f32 %v1881, %v2205
        %v2270 = vadd.f32 %v1882, %v2206
        %v2271 = vadd.f32 %v1883, %v2207
        %v2272 = vadd.f32 %v1884, %v2208
        %v2273 = vadd.f32 %v1885, %v2209
        %v2274 = vadd.f32 %v1886, %v2210
        %v2275 = vadd.f32 %v1887, %v2211
        %v2276 = vadd.f32 %v1888, %v2212
        %v2277 = vadd.f32 %v1889, %v2213
        %v2278 = vadd.f32 %v1890, %v2214
        %v2279 = vadd.f32 %v1891, %v2215
        %v2280 = vadd.f32 %v1892, %v2216
        %v2281 = vadd.f32 %v1893, %v2217
        %v2282 = vadd.f32 %v1894, %v2218
        %v2283 = vadd.f32 %v1895, %v2219
        %v2284 = vadd.f32 %v1896, %v2220
        %v2285 = vadd.f32 %v1897, %v2221
        %v2286 = vadd.f32 %v1898, %v2222
        %v2287 = vadd.f32 %v1899, %v2223
        %v2288 = vadd.f32 %v1900, %v2224
        %v2289 = vadd.f32 %v1901, %v2225
        %v2290 = vadd.f32 %v1902, %v2226
        %v2291 = vadd.f32 %v1903, %v2227
        %v2292 = vadd.f32 %v1904, %v2228
        %v2293 = vadd.f32 %v1905, %v2229
        %v2294 = vadd.f32 %v1906, %v2230
        %v2295 = vadd.f32 %v1907, %v2231
        %v2296 = vadd.f32 %v1908, %v2232
        %v2297 = vadd.f32 %v1909, %v2233
        %v2298 = vadd.f32 %v1910, %v2234
        %v2299 = vadd.f32 %v1911, %v2235
        %v2300 = vadd.f32 %v1912, %v2236
        %v2301 = vadd.f32 %v1913, %v2237
        %v2302 = vadd.f32 %v1914, %v2238
        %v2303 = vadd.f32 %v1915, %v2239
        %v2304 = vadd.f32 %v1916, %v2240
        %v2305 = vadd.f32 %v1917, %v2241
        %v2306 = vadd.f32 %v1918, %v2242
        %v2307 = vadd.f32 %v1919, %v2243
        %v2308 = vadd.f32 %v1920, %v2244
        %v2309 = vadd.f32 %v1921, %v2245
        %v2310 = vadd.f32 %v1922, %v2246
        %v2311 = vadd.f32 %v1923, %v2247
        %v2312 = vadd.f32 %v1924, %v2248
        %v2313 = vadd.f32 %v1925, %v2249
        %v2314 = vadd.f32 %v1926, %v2250
        %v2315 = vadd.f32 %v1927, %v2251
        %v2316 = vmax.f32 %v2252, 0.0
        %v2317 = vmax.f32 %v2253, 0.0
        %v2318 = vmax.f32 %v2254, 0.0
        %v2319 = vmax.f32 %v2255, 0.0
        %v2320 = vmax.f32 %v2256, 0.0
        %v2321 = vmax.f32 %v2257, 0.0
        %v2322 = vmax.f32 %v2258, 0.0
        %v2323 = vmax.f32 %v2259, 0.0
        %v2324 = vmax.f32 %v2260, 0.0
        %v2325 = vmax.f32 %v2261, 0.0
        %v2326 = vmax.f32 %v2262, 0.0
        %v2327 = vmax.f32 %v2263, 0.0
        %v2328 = vmax.f32 %v2264, 0.0
        %v2329 = vmax.f32 %v2265, 0.0
        %v2330 = vmax.f32 %v2266, 0.0
        %v2331 = vmax.f32 %v2267, 0.0
        %v2332 = vmax.f32 %v2268, 0.0
        %v2333 = vmax.f32 %v2269, 0.0
        %v2334 = vmax.f32 %v2270, 0.0
        %v2335 = vmax.f32 %v2271, 0.0
        %v2336 = vmax.f32 %v2272, 0.0
        %v2337 = vmax.f32 %v2273, 0.0
        %v2338 = vmax.f32 %v2274, 0.0
        %v2339 = vmax.f32 %v2275, 0.0
        %v2340 = vmax.f32 %v2276, 0.0
        %v2341 = vmax.f32 %v2277, 0.0
        %v2342 = vmax.f32 %v2278, 0.0
        %v2343 = vmax.f32 %v2279, 0.0
        %v2344 = vmax.f32 %v2280, 0.0
        %v2345 = vmax.f32 %v2281, 0.0
        %v2346 = vmax.f32 %v2282, 0.0
        %v2347 = vmax.f32 %v2283, 0.0
        %v2348 = vmax.f32 %v2284, 0.0
        %v2349 = vmax.f32 %v2285, 0.0
        %v2350 = vmax.f32 %v2286, 0.0
        %v2351 = vmax.f32 %v2287, 0.0
        %v2352 = vmax.f32 %v2288, 0.0
        %v2353 = vmax.f32 %v2289, 0.0
        %v2354 = vmax.f32 %v2290, 0.0
        %v2355 = vmax.f32 %v2291, 0.0
        %v2356 = vmax.f32 %v2292, 0.0
        %v2357 = vmax.f32 %v2293, 0.0
        %v2358 = vmax.f32 %v2294, 0.0
        %v2359 = vmax.f32 %v2295, 0.0
        %v2360 = vmax.f32 %v2296, 0.0
        %v2361 = vmax.f32 %v2297, 0.0
        %v2362 = vmax.f32 %v2298, 0.0
        %v2363 = vmax.f32 %v2299, 0.0
        %v2364 = vmax.f32 %v2300, 0.0
        %v2365 = vmax.f32 %v2301, 0.0
        %v2366 = vmax.f32 %v2302, 0.0
        %v2367 = vmax.f32 %v2303, 0.0
        %v2368 = vmax.f32 %v2304, 0.0
        %v2369 = vmax.f32 %v2305, 0.0
        %v2370 = vmax.f32 %v2306, 0.0
        %v2371 = vmax.f32 %v2307, 0.0
        %v2372 = vmax.f32 %v2308, 0.0
        %v2373 = vmax.f32 %v2309, 0.0
        %v2374 = vmax.f32 %v2310, 0.0
        %v2375 = vmax.f32 %v2311, 0.0
        %v2376 = vmax.f32 %v2312, 0.0
        %v2377 = vmax.f32 %v2313, 0.0
        %v2378 = vmax.f32 %v2314, 0.0
        %v2379 = vmax.f32 %v2315, 0.0
        %v2380 = vpack.c.bf16 %v2317, %v2316
        %v2381 = vpack.c.bf16 %v2319, %v2318
        %v2382 = vpack.c.bf16 %v2321, %v2320
        %v2383 = vpack.c.bf16 %v2323, %v2322
        %v2384 = vpack.c.bf16 %v2325, %v2324
        %v2385 = vpack.c.bf16 %v2327, %v2326
        %v2386 = vpack.c.bf16 %v2329, %v2328
        %v2387 = vpack.c.bf16 %v2331, %v2330
        %v2388 = vpack.c.bf16 %v2333, %v2332
        %v2389 = vpack.c.bf16 %v2335, %v2334
        %v2390 = vpack.c.bf16 %v2337, %v2336
        %v2391 = vpack.c.bf16 %v2339, %v2338
        %v2392 = vpack.c.bf16 %v2341, %v2340
        %v2393 = vpack.c.bf16 %v2343, %v2342
        %v2394 = vpack.c.bf16 %v2345, %v2344
        %v2395 = vpack.c.bf16 %v2347, %v2346
        %v2396 = vpack.c.bf16 %v2349, %v2348
        %v2397 = vpack.c.bf16 %v2351, %v2350
        %v2398 = vpack.c.bf16 %v2353, %v2352
        %v2399 = vpack.c.bf16 %v2355, %v2354
        %v2400 = vpack.c.bf16 %v2357, %v2356
        %v2401 = vpack.c.bf16 %v2359, %v2358
        %v2402 = vpack.c.bf16 %v2361, %v2360
        %v2403 = vpack.c.bf16 %v2363, %v2362
        %v2404 = vpack.c.bf16 %v2365, %v2364
        %v2405 = vpack.c.bf16 %v2367, %v2366
        %v2406 = vpack.c.bf16 %v2369, %v2368
        %v2407 = vpack.c.bf16 %v2371, %v2370
        %v2408 = vpack.c.bf16 %v2373, %v2372
        %v2409 = vpack.c.bf16 %v2375, %v2374
        %v2410 = vpack.c.bf16 %v2377, %v2376
        %v2411 = vpack.c.bf16 %v2379, %v2378
        %v2412 = vlaneseq
        %v2413 = vshrl.u32 %v2412, 7
        %v2414 = vsub.s32 1, %v2413
        %v2415 = vrot.slane %v436, %v2414
        %v2424 = vunpack.c.l.b16 %v452
        %v2425 = vunpack.c.l.b16 %v453
        %v2426 = vunpack.c.l.b16 %v454
        %v2427 = vunpack.c.l.b16 %v455
        %v2428 = vunpack.c.l.b16 %v456
        %v2429 = vunpack.c.l.b16 %v457
        %v2430 = vunpack.c.l.b16 %v458
        %v2431 = vunpack.c.l.b16 %v459
        %v2432 = vpack.c.b16 %v2425, %v2424
        %v2433 = vpack.c.b16 %v2427, %v2426
        %v2434 = vpack.c.b16 %v2429, %v2428
        %v2435 = vpack.c.b16 %v2431, %v2430
        %vm2440 = vcmask 523264
        %v2442 = vsel %vm2440, %v2380, 0
        %v2445 = vsel %vm2440, %v2381, 0
        %v2448 = vsel %vm2440, %v2382, 0
        %v2451 = vsel %vm2440, %v2383, 0
        %v2454 = vsel %vm2440, %v2384, 0
        %v2457 = vsel %vm2440, %v2385, 0
        %v2460 = vsel %vm2440, %v2386, 0
        %v2463 = vsel %vm2440, %v2387, 0
        %v2466 = vsel %vm2440, %v2388, 0
        %v2469 = vsel %vm2440, %v2389, 0
        %v2472 = vsel %vm2440, %v2390, 0
        %v2475 = vsel %vm2440, %v2391, 0
        %v2478 = vsel %vm2440, %v2392, 0
        %v2481 = vsel %vm2440, %v2393, 0
        %v2484 = vsel %vm2440, %v2394, 0
        %v2487 = vsel %vm2440, %v2395, 0
        %v2490 = vsel %vm2440, %v2396, 0
        %v2493 = vsel %vm2440, %v2397, 0
        %v2496 = vsel %vm2440, %v2398, 0
        %v2499 = vsel %vm2440, %v2399, 0
        %v2502 = vsel %vm2440, %v2400, 0
        %v2505 = vsel %vm2440, %v2401, 0
        %v2508 = vsel %vm2440, %v2402, 0
        %v2511 = vsel %vm2440, %v2403, 0
        %v2514 = vsel %vm2440, %v2404, 0
        %v2517 = vsel %vm2440, %v2405, 0
        %v2520 = vsel %vm2440, %v2406, 0
        %v2523 = vsel %vm2440, %v2407, 0
        %v2526 = vsel %vm2440, %v2408, 0
        %v2529 = vsel %vm2440, %v2409, 0
        %v2532 = vsel %vm2440, %v2410, 0
        %v2535 = vsel %vm2440, %v2411, 0
        %2537 = vmatprep.subr.bf16.mxu0 0
        %2538 = vmatpush1.bf16.msra.mxu0 0
        %2539 = vmatprep.subr.bf16.mxu0 0
        %2540 = vmatpush1.bf16.msra.mxu0 0
        %2541 = vmatprep.subr.bf16.mxu0 0
        %2542 = vmatpush1.bf16.msra.mxu0 0
        %2543 = vmatprep.subr.bf16.mxu0 0
        %2544 = vmatpush1.bf16.msra.mxu0 0
        %2545 = vmatprep.subr.bf16.mxu0 0
        %2546 = vmatpush1.bf16.msra.mxu0 %v2435
        %2547 = vmatprep.subr.bf16.mxu0 0
        %2548 = vmatpush1.bf16.msra.mxu0 %v2434
        %2549 = vmatprep.subr.bf16.mxu0 0
        %2550 = vmatpush1.bf16.msra.mxu0 %v2433
        %2551 = vmatprep.subr.bf16.mxu0 0
        %2552 = vmatpush1.bf16.msra.mxu0 %v2432
        %2553 = vmatprep.subr.bf16.mxu0 0
        %2554 = vmatpush2.bf16.msra.mxu0 0
        %2555 = vmatprep.subr.bf16.mxu0 0
        %2556 = vmatpush2.bf16.msra.mxu0 0
        %2557 = vmatprep.subr.bf16.mxu0 0
        %2558 = vmatpush2.bf16.msra.mxu0 0
        %2559 = vmatprep.subr.bf16.mxu0 0
        %2560 = vmatpush2.bf16.msra.mxu0 0
        %2561 = vmatprep.subr.bf16.mxu0 0
        %2562 = vmatpush2.bf16.msra.mxu0 0
        %2563 = vmatprep.subr.bf16.mxu0 0
        %2564 = vmatpush2.bf16.msra.mxu0 0
        %2565 = vmatprep.subr.bf16.mxu0 0
        %2566 = vmatpush2.bf16.msra.mxu0 0
        %2567 = vmatprep.subr.bf16.mxu0 0
        %2568 = vmatpush2.bf16.msra.mxu0 0
        %2569 = vmatprep.mubr.bf16.mxu0 0
        %2570 = vmatmul.mubr.bf16.gmra.mxu0 %v2442
        %v2571 = vpop.f32.mrf.mxu0
        %v2572 = vadd.f32 %v2415, %v2571
        %v2573 = vpop.f32.mrf.mxu0
        %v2574 = vpop.f32.mrf.mxu0
        %v2575 = vadd.f32 %v2415, %v2574
        %v2576 = vpop.f32.mrf.mxu0
        %2577 = vmatprep.mubr.bf16.mxu0 0
        %2578 = vmatmul.mubr.bf16.gmra.mxu0 %v2445
        %v2579 = vpop.f32.mrf.mxu0
        %v2580 = vadd.f32 %v2415, %v2579
        %v2581 = vpop.f32.mrf.mxu0
        %v2582 = vpop.f32.mrf.mxu0
        %v2583 = vadd.f32 %v2415, %v2582
        %v2584 = vpop.f32.mrf.mxu0
        %2585 = vmatprep.mubr.bf16.mxu0 0
        %2586 = vmatmul.mubr.bf16.gmra.mxu0 %v2448
        %v2587 = vpop.f32.mrf.mxu0
        %v2588 = vadd.f32 %v2415, %v2587
        %v2589 = vpop.f32.mrf.mxu0
        %v2590 = vpop.f32.mrf.mxu0
        %v2591 = vadd.f32 %v2415, %v2590
        %v2592 = vpop.f32.mrf.mxu0
        %2593 = vmatprep.mubr.bf16.mxu0 0
        %2594 = vmatmul.mubr.bf16.gmra.mxu0 %v2451
        %v2595 = vpop.f32.mrf.mxu0
        %v2596 = vadd.f32 %v2415, %v2595
        %v2597 = vpop.f32.mrf.mxu0
        %v2598 = vpop.f32.mrf.mxu0
        %v2599 = vadd.f32 %v2415, %v2598
        %v2600 = vpop.f32.mrf.mxu0
        %2601 = vmatprep.mubr.bf16.mxu0 0
        %2602 = vmatmul.mubr.bf16.gmra.mxu0 %v2454
        %v2603 = vpop.f32.mrf.mxu0
        %v2604 = vadd.f32 %v2415, %v2603
        %v2605 = vpop.f32.mrf.mxu0
        %v2606 = vpop.f32.mrf.mxu0
        %v2607 = vadd.f32 %v2415, %v2606
        %v2608 = vpop.f32.mrf.mxu0
        %2609 = vmatprep.mubr.bf16.mxu0 0
        %2610 = vmatmul.mubr.bf16.gmra.mxu0 %v2457
        %v2611 = vpop.f32.mrf.mxu0
        %v2612 = vadd.f32 %v2415, %v2611
        %v2613 = vpop.f32.mrf.mxu0
        %v2614 = vpop.f32.mrf.mxu0
        %v2615 = vadd.f32 %v2415, %v2614
        %v2616 = vpop.f32.mrf.mxu0
        %2617 = vmatprep.mubr.bf16.mxu0 0
        %2618 = vmatmul.mubr.bf16.gmra.mxu0 %v2460
        %v2619 = vpop.f32.mrf.mxu0
        %v2620 = vadd.f32 %v2415, %v2619
        %v2621 = vpop.f32.mrf.mxu0
        %v2622 = vpop.f32.mrf.mxu0
        %v2623 = vadd.f32 %v2415, %v2622
        %v2624 = vpop.f32.mrf.mxu0
        %2625 = vmatprep.mubr.bf16.mxu0 0
        %2626 = vmatmul.mubr.bf16.gmra.mxu0 %v2463
        %v2627 = vpop.f32.mrf.mxu0
        %v2628 = vadd.f32 %v2415, %v2627
        %v2629 = vpop.f32.mrf.mxu0
        %v2630 = vpop.f32.mrf.mxu0
        %v2631 = vadd.f32 %v2415, %v2630
        %v2632 = vpop.f32.mrf.mxu0
        %2633 = vmatprep.mubr.bf16.mxu0 0
        %2634 = vmatmul.mubr.bf16.gmra.mxu0 %v2466
        %v2635 = vpop.f32.mrf.mxu0
        %v2636 = vadd.f32 %v2415, %v2635
        %v2637 = vpop.f32.mrf.mxu0
        %v2638 = vpop.f32.mrf.mxu0
        %v2639 = vadd.f32 %v2415, %v2638
        %v2640 = vpop.f32.mrf.mxu0
        %2641 = vmatprep.mubr.bf16.mxu0 0
        %2642 = vmatmul.mubr.bf16.gmra.mxu0 %v2469
        %v2643 = vpop.f32.mrf.mxu0
        %v2644 = vadd.f32 %v2415, %v2643
        %v2645 = vpop.f32.mrf.mxu0
        %v2646 = vpop.f32.mrf.mxu0
        %v2647 = vadd.f32 %v2415, %v2646
        %v2648 = vpop.f32.mrf.mxu0
        %2649 = vmatprep.mubr.bf16.mxu0 0
        %2650 = vmatmul.mubr.bf16.gmra.mxu0 %v2472
        %v2651 = vpop.f32.mrf.mxu0
        %v2652 = vadd.f32 %v2415, %v2651
        %v2653 = vpop.f32.mrf.mxu0
        %v2654 = vpop.f32.mrf.mxu0
        %v2655 = vadd.f32 %v2415, %v2654
        %v2656 = vpop.f32.mrf.mxu0
        %2657 = vmatprep.mubr.bf16.mxu0 0
        %2658 = vmatmul.mubr.bf16.gmra.mxu0 %v2475
        %v2659 = vpop.f32.mrf.mxu0
        %v2660 = vadd.f32 %v2415, %v2659
        %v2661 = vpop.f32.mrf.mxu0
        %v2662 = vpop.f32.mrf.mxu0
        %v2663 = vadd.f32 %v2415, %v2662
        %v2664 = vpop.f32.mrf.mxu0
        %2665 = vmatprep.mubr.bf16.mxu0 0
        %2666 = vmatmul.mubr.bf16.gmra.mxu0 %v2478
        %v2667 = vpop.f32.mrf.mxu0
        %v2668 = vadd.f32 %v2415, %v2667
        %v2669 = vpop.f32.mrf.mxu0
        %v2670 = vpop.f32.mrf.mxu0
        %v2671 = vadd.f32 %v2415, %v2670
        %v2672 = vpop.f32.mrf.mxu0
        %2673 = vmatprep.mubr.bf16.mxu0 0
        %2674 = vmatmul.mubr.bf16.gmra.mxu0 %v2481
        %v2675 = vpop.f32.mrf.mxu0
        %v2676 = vadd.f32 %v2415, %v2675
        %v2677 = vpop.f32.mrf.mxu0
        %v2678 = vpop.f32.mrf.mxu0
        %v2679 = vadd.f32 %v2415, %v2678
        %v2680 = vpop.f32.mrf.mxu0
        %2681 = vmatprep.mubr.bf16.mxu0 0
        %2682 = vmatmul.mubr.bf16.gmra.mxu0 %v2484
        %v2683 = vpop.f32.mrf.mxu0
        %v2684 = vadd.f32 %v2415, %v2683
        %v2685 = vpop.f32.mrf.mxu0
        %v2686 = vpop.f32.mrf.mxu0
        %v2687 = vadd.f32 %v2415, %v2686
        %v2688 = vpop.f32.mrf.mxu0
        %2689 = vmatprep.mubr.bf16.mxu0 0
        %2690 = vmatmul.mubr.bf16.gmra.mxu0 %v2487
        %v2691 = vpop.f32.mrf.mxu0
        %v2692 = vadd.f32 %v2415, %v2691
        %v2693 = vpop.f32.mrf.mxu0
        %v2694 = vpop.f32.mrf.mxu0
        %v2695 = vadd.f32 %v2415, %v2694
        %v2696 = vpop.f32.mrf.mxu0
        %2697 = vmatprep.mubr.bf16.mxu0 0
        %2698 = vmatmul.mubr.bf16.gmra.mxu0 %v2490
        %v2699 = vpop.f32.mrf.mxu0
        %v2700 = vadd.f32 %v2415, %v2699
        %v2701 = vpop.f32.mrf.mxu0
        %v2702 = vpop.f32.mrf.mxu0
        %v2703 = vadd.f32 %v2415, %v2702
        %v2704 = vpop.f32.mrf.mxu0
        %2705 = vmatprep.mubr.bf16.mxu0 0
        %2706 = vmatmul.mubr.bf16.gmra.mxu0 %v2493
        %v2707 = vpop.f32.mrf.mxu0
        %v2708 = vadd.f32 %v2415, %v2707
        %v2709 = vpop.f32.mrf.mxu0
        %v2710 = vpop.f32.mrf.mxu0
        %v2711 = vadd.f32 %v2415, %v2710
        %v2712 = vpop.f32.mrf.mxu0
        %2713 = vmatprep.mubr.bf16.mxu0 0
        %2714 = vmatmul.mubr.bf16.gmra.mxu0 %v2496
        %v2715 = vpop.f32.mrf.mxu0
        %v2716 = vadd.f32 %v2415, %v2715
        %v2717 = vpop.f32.mrf.mxu0
        %v2718 = vpop.f32.mrf.mxu0
        %v2719 = vadd.f32 %v2415, %v2718
        %v2720 = vpop.f32.mrf.mxu0
        %2721 = vmatprep.mubr.bf16.mxu0 0
        %2722 = vmatmul.mubr.bf16.gmra.mxu0 %v2499
        %v2723 = vpop.f32.mrf.mxu0
        %v2724 = vadd.f32 %v2415, %v2723
        %v2725 = vpop.f32.mrf.mxu0
        %v2726 = vpop.f32.mrf.mxu0
        %v2727 = vadd.f32 %v2415, %v2726
        %v2728 = vpop.f32.mrf.mxu0
        %2729 = vmatprep.mubr.bf16.mxu0 0
        %2730 = vmatmul.mubr.bf16.gmra.mxu0 %v2502
        %v2731 = vpop.f32.mrf.mxu0
        %v2732 = vadd.f32 %v2415, %v2731
        %v2733 = vpop.f32.mrf.mxu0
        %v2734 = vpop.f32.mrf.mxu0
        %v2735 = vadd.f32 %v2415, %v2734
        %v2736 = vpop.f32.mrf.mxu0
        %2737 = vmatprep.mubr.bf16.mxu0 0
        %2738 = vmatmul.mubr.bf16.gmra.mxu0 %v2505
        %v2739 = vpop.f32.mrf.mxu0
        %v2740 = vadd.f32 %v2415, %v2739
        %v2741 = vpop.f32.mrf.mxu0
        %v2742 = vpop.f32.mrf.mxu0
        %v2743 = vadd.f32 %v2415, %v2742
        %v2744 = vpop.f32.mrf.mxu0
        %2745 = vmatprep.mubr.bf16.mxu0 0
        %2746 = vmatmul.mubr.bf16.gmra.mxu0 %v2508
        %v2747 = vpop.f32.mrf.mxu0
        %v2748 = vadd.f32 %v2415, %v2747
        %v2749 = vpop.f32.mrf.mxu0
        %v2750 = vpop.f32.mrf.mxu0
        %v2751 = vadd.f32 %v2415, %v2750
        %v2752 = vpop.f32.mrf.mxu0
        %2753 = vmatprep.mubr.bf16.mxu0 0
        %2754 = vmatmul.mubr.bf16.gmra.mxu0 %v2511
        %v2755 = vpop.f32.mrf.mxu0
        %v2756 = vadd.f32 %v2415, %v2755
        %v2757 = vpop.f32.mrf.mxu0
        %v2758 = vpop.f32.mrf.mxu0
        %v2759 = vadd.f32 %v2415, %v2758
        %v2760 = vpop.f32.mrf.mxu0
        %2761 = vmatprep.mubr.bf16.mxu0 0
        %2762 = vmatmul.mubr.bf16.gmra.mxu0 %v2514
        %v2763 = vpop.f32.mrf.mxu0
        %v2764 = vadd.f32 %v2415, %v2763
        %v2765 = vpop.f32.mrf.mxu0
        %v2766 = vpop.f32.mrf.mxu0
        %v2767 = vadd.f32 %v2415, %v2766
        %v2768 = vpop.f32.mrf.mxu0
        %2769 = vmatprep.mubr.bf16.mxu0 0
        %2770 = vmatmul.mubr.bf16.gmra.mxu0 %v2517
        %v2771 = vpop.f32.mrf.mxu0
        %v2772 = vadd.f32 %v2415, %v2771
        %v2773 = vpop.f32.mrf.mxu0
        %v2774 = vpop.f32.mrf.mxu0
        %v2775 = vadd.f32 %v2415, %v2774
        %v2776 = vpop.f32.mrf.mxu0
        %2777 = vmatprep.mubr.bf16.mxu0 0
        %2778 = vmatmul.mubr.bf16.gmra.mxu0 %v2520
        %v2779 = vpop.f32.mrf.mxu0
        %v2780 = vadd.f32 %v2415, %v2779
        %v2781 = vpop.f32.mrf.mxu0
        %v2782 = vpop.f32.mrf.mxu0
        %v2783 = vadd.f32 %v2415, %v2782
        %v2784 = vpop.f32.mrf.mxu0
        %2785 = vmatprep.mubr.bf16.mxu0 0
        %2786 = vmatmul.mubr.bf16.gmra.mxu0 %v2523
        %v2787 = vpop.f32.mrf.mxu0
        %v2788 = vadd.f32 %v2415, %v2787
        %v2789 = vpop.f32.mrf.mxu0
        %v2790 = vpop.f32.mrf.mxu0
        %v2791 = vadd.f32 %v2415, %v2790
        %v2792 = vpop.f32.mrf.mxu0
        %2793 = vmatprep.mubr.bf16.mxu0 0
        %2794 = vmatmul.mubr.bf16.gmra.mxu0 %v2526
        %v2795 = vpop.f32.mrf.mxu0
        %v2796 = vadd.f32 %v2415, %v2795
        %v2797 = vpop.f32.mrf.mxu0
        %v2798 = vpop.f32.mrf.mxu0
        %v2799 = vadd.f32 %v2415, %v2798
        %v2800 = vpop.f32.mrf.mxu0
        %2801 = vmatprep.mubr.bf16.mxu0 0
        %2802 = vmatmul.mubr.bf16.gmra.mxu0 %v2529
        %v2803 = vpop.f32.mrf.mxu0
        %v2804 = vadd.f32 %v2415, %v2803
        %v2805 = vpop.f32.mrf.mxu0
        %v2806 = vpop.f32.mrf.mxu0
        %v2807 = vadd.f32 %v2415, %v2806
        %v2808 = vpop.f32.mrf.mxu0
        %2809 = vmatprep.mubr.bf16.mxu0 0
        %2810 = vmatmul.mubr.bf16.gmra.mxu0 %v2532
        %v2811 = vpop.f32.mrf.mxu0
        %v2812 = vadd.f32 %v2415, %v2811
        %v2813 = vpop.f32.mrf.mxu0
        %v2814 = vpop.f32.mrf.mxu0
        %v2815 = vadd.f32 %v2415, %v2814
        %v2816 = vpop.f32.mrf.mxu0
        %2817 = vmatprep.mubr.bf16.mxu0 0
        %2818 = vmatmul.mubr.bf16.gmra.mxu0 %v2535
        %v2819 = vpop.f32.mrf.mxu0
        %v2820 = vadd.f32 %v2415, %v2819
        %v2821 = vpop.f32.mrf.mxu0
        %v2822 = vpop.f32.mrf.mxu0
        %v2823 = vadd.f32 %v2415, %v2822
        %v2824 = vpop.f32.mrf.mxu0
        %2825 = vdwg.mxu0
        %v2826 = vmax.f32 %v2572, 0.0
        %v2827 = vmax.f32 %v2575, 0.0
        %v2828 = vmax.f32 %v2580, 0.0
        %v2829 = vmax.f32 %v2583, 0.0
        %v2830 = vmax.f32 %v2588, 0.0
        %v2831 = vmax.f32 %v2591, 0.0
        %v2832 = vmax.f32 %v2596, 0.0
        %v2833 = vmax.f32 %v2599, 0.0
        %v2834 = vmax.f32 %v2604, 0.0
        %v2835 = vmax.f32 %v2607, 0.0
        %v2836 = vmax.f32 %v2612, 0.0
        %v2837 = vmax.f32 %v2615, 0.0
        %v2838 = vmax.f32 %v2620, 0.0
        %v2839 = vmax.f32 %v2623, 0.0
        %v2840 = vmax.f32 %v2628, 0.0
        %v2841 = vmax.f32 %v2631, 0.0
        %v2842 = vmax.f32 %v2636, 0.0
        %v2843 = vmax.f32 %v2639, 0.0
        %v2844 = vmax.f32 %v2644, 0.0
        %v2845 = vmax.f32 %v2647, 0.0
        %v2846 = vmax.f32 %v2652, 0.0
        %v2847 = vmax.f32 %v2655, 0.0
        %v2848 = vmax.f32 %v2660, 0.0
        %v2849 = vmax.f32 %v2663, 0.0
        %v2850 = vmax.f32 %v2668, 0.0
        %v2851 = vmax.f32 %v2671, 0.0
        %v2852 = vmax.f32 %v2676, 0.0
        %v2853 = vmax.f32 %v2679, 0.0
        %v2854 = vmax.f32 %v2684, 0.0
        %v2855 = vmax.f32 %v2687, 0.0
        %v2856 = vmax.f32 %v2692, 0.0
        %v2857 = vmax.f32 %v2695, 0.0
        %v2858 = vmax.f32 %v2700, 0.0
        %v2859 = vmax.f32 %v2703, 0.0
        %v2860 = vmax.f32 %v2708, 0.0
        %v2861 = vmax.f32 %v2711, 0.0
        %v2862 = vmax.f32 %v2716, 0.0
        %v2863 = vmax.f32 %v2719, 0.0
        %v2864 = vmax.f32 %v2724, 0.0
        %v2865 = vmax.f32 %v2727, 0.0
        %v2866 = vmax.f32 %v2732, 0.0
        %v2867 = vmax.f32 %v2735, 0.0
        %v2868 = vmax.f32 %v2740, 0.0
        %v2869 = vmax.f32 %v2743, 0.0
        %v2870 = vmax.f32 %v2748, 0.0
        %v2871 = vmax.f32 %v2751, 0.0
        %v2872 = vmax.f32 %v2756, 0.0
        %v2873 = vmax.f32 %v2759, 0.0
        %v2874 = vmax.f32 %v2764, 0.0
        %v2875 = vmax.f32 %v2767, 0.0
        %v2876 = vmax.f32 %v2772, 0.0
        %v2877 = vmax.f32 %v2775, 0.0
        %v2878 = vmax.f32 %v2780, 0.0
        %v2879 = vmax.f32 %v2783, 0.0
        %v2880 = vmax.f32 %v2788, 0.0
        %v2881 = vmax.f32 %v2791, 0.0
        %v2882 = vmax.f32 %v2796, 0.0
        %v2883 = vmax.f32 %v2799, 0.0
        %v2884 = vmax.f32 %v2804, 0.0
        %v2885 = vmax.f32 %v2807, 0.0
        %v2886 = vmax.f32 %v2812, 0.0
        %v2887 = vmax.f32 %v2815, 0.0
        %v2888 = vmax.f32 %v2820, 0.0
        %v2889 = vmax.f32 %v2823, 0.0
        %v2890 = vpack.c.bf16 %v2827, %v2826
        %v2891 = vpack.c.bf16 %v2829, %v2828
        %v2892 = vpack.c.bf16 %v2831, %v2830
        %v2893 = vpack.c.bf16 %v2833, %v2832
        %v2894 = vpack.c.bf16 %v2835, %v2834
        %v2895 = vpack.c.bf16 %v2837, %v2836
        %v2896 = vpack.c.bf16 %v2839, %v2838
        %v2897 = vpack.c.bf16 %v2841, %v2840
        %v2898 = vpack.c.bf16 %v2843, %v2842
        %v2899 = vpack.c.bf16 %v2845, %v2844
        %v2900 = vpack.c.bf16 %v2847, %v2846
        %v2901 = vpack.c.bf16 %v2849, %v2848
        %v2902 = vpack.c.bf16 %v2851, %v2850
        %v2903 = vpack.c.bf16 %v2853, %v2852
        %v2904 = vpack.c.bf16 %v2855, %v2854
        %v2905 = vpack.c.bf16 %v2857, %v2856
        %v2906 = vpack.c.bf16 %v2859, %v2858
        %v2907 = vpack.c.bf16 %v2861, %v2860
        %v2908 = vpack.c.bf16 %v2863, %v2862
        %v2909 = vpack.c.bf16 %v2865, %v2864
        %v2910 = vpack.c.bf16 %v2867, %v2866
        %v2911 = vpack.c.bf16 %v2869, %v2868
        %v2912 = vpack.c.bf16 %v2871, %v2870
        %v2913 = vpack.c.bf16 %v2873, %v2872
        %v2914 = vpack.c.bf16 %v2875, %v2874
        %v2915 = vpack.c.bf16 %v2877, %v2876
        %v2916 = vpack.c.bf16 %v2879, %v2878
        %v2917 = vpack.c.bf16 %v2881, %v2880
        %v2918 = vpack.c.bf16 %v2883, %v2882
        %v2919 = vpack.c.bf16 %v2885, %v2884
        %v2920 = vpack.c.bf16 %v2887, %v2886
        %v2921 = vpack.c.bf16 %v2889, %v2888
        %v2922 = vlaneseq
        %v2923 = vshrl.u32 %v2922, 7
        %v2924 = vsub.s32 2, %v2923
        %v2925 = vrot.slane %v436, %v2924
        %v2926 = vlaneseq
        %v2927 = vshrl.u32 %v2926, 7
        %v2928 = vsub.s32 2, %v2927
        %v2929 = vrot.slane %v437, %v2928
        %v2930 = vlaneseq
        %v2931 = vshrl.u32 %v2930, 7
        %v2932 = vsub.s32 2, %v2931
        %v2933 = vrot.slane %v438, %v2932
        %v2934 = vlaneseq
        %v2935 = vshrl.u32 %v2934, 7
        %v2936 = vsub.s32 2, %v2935
        %v2937 = vrot.slane %v439, %v2936
        %v2938 = vlaneseq
        %v2939 = vshrl.u32 %v2938, 7
        %v2940 = vsub.s32 2, %v2939
        %v2941 = vrot.slane %v440, %v2940
        %v2942 = vlaneseq
        %v2943 = vshrl.u32 %v2942, 7
        %v2944 = vsub.s32 2, %v2943
        %v2945 = vrot.slane %v441, %v2944
        %v2946 = vlaneseq
        %v2947 = vshrl.u32 %v2946, 7
        %v2948 = vsub.s32 2, %v2947
        %v2949 = vrot.slane %v442, %v2948
        %v2950 = vlaneseq
        %v2951 = vshrl.u32 %v2950, 7
        %v2952 = vsub.s32 2, %v2951
        %v2953 = vrot.slane %v443, %v2952
        %v3018 = vunpack.c.l.b16 %v460
        %v3019 = vunpack.c.h.b16 %v460
        %v3020 = vunpack.c.l.b16 %v461
        %v3021 = vunpack.c.h.b16 %v461
        %v3022 = vunpack.c.l.b16 %v462
        %v3023 = vunpack.c.h.b16 %v462
        %v3024 = vunpack.c.l.b16 %v463
        %v3025 = vunpack.c.h.b16 %v463
        %v3026 = vunpack.c.l.b16 %v464
        %v3027 = vunpack.c.h.b16 %v464
        %v3028 = vunpack.c.l.b16 %v465
        %v3029 = vunpack.c.h.b16 %v465
        %v3030 = vunpack.c.l.b16 %v466
        %v3031 = vunpack.c.h.b16 %v466
        %v3032 = vunpack.c.l.b16 %v467
        %v3033 = vunpack.c.h.b16 %v467
        %v3034 = vunpack.c.l.b16 %v468
        %v3035 = vunpack.c.h.b16 %v468
        %v3036 = vunpack.c.l.b16 %v469
        %v3037 = vunpack.c.h.b16 %v469
        %v3038 = vunpack.c.l.b16 %v470
        %v3039 = vunpack.c.h.b16 %v470
        %v3040 = vunpack.c.l.b16 %v471
        %v3041 = vunpack.c.h.b16 %v471
        %v3042 = vunpack.c.l.b16 %v472
        %v3043 = vunpack.c.h.b16 %v472
        %v3044 = vunpack.c.l.b16 %v473
        %v3045 = vunpack.c.h.b16 %v473
        %v3046 = vunpack.c.l.b16 %v474
        %v3047 = vunpack.c.h.b16 %v474
        %v3048 = vunpack.c.l.b16 %v475
        %v3049 = vunpack.c.h.b16 %v475
        %v3050 = vunpack.c.l.b16 %v476
        %v3051 = vunpack.c.h.b16 %v476
        %v3052 = vunpack.c.l.b16 %v477
        %v3053 = vunpack.c.h.b16 %v477
        %v3054 = vunpack.c.l.b16 %v478
        %v3055 = vunpack.c.h.b16 %v478
        %v3056 = vunpack.c.l.b16 %v479
        %v3057 = vunpack.c.h.b16 %v479
        %v3058 = vunpack.c.l.b16 %v480
        %v3059 = vunpack.c.h.b16 %v480
        %v3060 = vunpack.c.l.b16 %v481
        %v3061 = vunpack.c.h.b16 %v481
        %v3062 = vunpack.c.l.b16 %v482
        %v3063 = vunpack.c.h.b16 %v482
        %v3064 = vunpack.c.l.b16 %v483
        %v3065 = vunpack.c.h.b16 %v483
        %v3066 = vunpack.c.l.b16 %v484
        %v3067 = vunpack.c.h.b16 %v484
        %v3068 = vunpack.c.l.b16 %v485
        %v3069 = vunpack.c.h.b16 %v485
        %v3070 = vunpack.c.l.b16 %v486
        %v3071 = vunpack.c.h.b16 %v486
        %v3072 = vunpack.c.l.b16 %v487
        %v3073 = vunpack.c.h.b16 %v487
        %v3074 = vunpack.c.l.b16 %v488
        %v3075 = vunpack.c.h.b16 %v488
        %v3076 = vunpack.c.l.b16 %v489
        %v3077 = vunpack.c.h.b16 %v489
        %v3078 = vunpack.c.l.b16 %v490
        %v3079 = vunpack.c.h.b16 %v490
        %v3080 = vunpack.c.l.b16 %v491
        %v3081 = vunpack.c.h.b16 %v491
        %v3082 = vunpack.c.l.b16 %v492
        %v3083 = vunpack.c.h.b16 %v492
        %v3084 = vunpack.c.l.b16 %v493
        %v3085 = vunpack.c.h.b16 %v493
        %v3086 = vunpack.c.l.b16 %v494
        %v3087 = vunpack.c.h.b16 %v494
        %v3088 = vunpack.c.l.b16 %v495
        %v3089 = vunpack.c.h.b16 %v495
        %v3090 = vunpack.c.l.b16 %v496
        %v3091 = vunpack.c.h.b16 %v496
        %v3092 = vunpack.c.l.b16 %v497
        %v3093 = vunpack.c.h.b16 %v497
        %v3094 = vunpack.c.l.b16 %v498
        %v3095 = vunpack.c.h.b16 %v498
        %v3096 = vunpack.c.l.b16 %v499
        %v3097 = vunpack.c.h.b16 %v499
        %v3098 = vunpack.c.l.b16 %v500
        %v3099 = vunpack.c.h.b16 %v500
        %v3100 = vunpack.c.l.b16 %v501
        %v3101 = vunpack.c.h.b16 %v501
        %v3102 = vunpack.c.l.b16 %v502
        %v3103 = vunpack.c.h.b16 %v502
        %v3104 = vunpack.c.l.b16 %v503
        %v3105 = vunpack.c.h.b16 %v503
        %v3106 = vunpack.c.l.b16 %v504
        %v3107 = vunpack.c.h.b16 %v504
        %v3108 = vunpack.c.l.b16 %v505
        %v3109 = vunpack.c.h.b16 %v505
        %v3110 = vunpack.c.l.b16 %v506
        %v3111 = vunpack.c.h.b16 %v506
        %v3112 = vunpack.c.l.b16 %v507
        %v3113 = vunpack.c.h.b16 %v507
        %v3114 = vunpack.c.l.b16 %v508
        %v3115 = vunpack.c.h.b16 %v508
        %v3116 = vunpack.c.l.b16 %v509
        %v3117 = vunpack.c.h.b16 %v509
        %v3118 = vunpack.c.l.b16 %v510
        %v3119 = vunpack.c.h.b16 %v510
        %v3120 = vunpack.c.l.b16 %v511
        %v3121 = vunpack.c.h.b16 %v511
        %v3122 = vunpack.c.l.b16 %v512
        %v3123 = vunpack.c.h.b16 %v512
        %v3124 = vunpack.c.l.b16 %v513
        %v3125 = vunpack.c.h.b16 %v513
        %v3126 = vunpack.c.l.b16 %v514
        %v3127 = vunpack.c.h.b16 %v514
        %v3128 = vunpack.c.l.b16 %v515
        %v3129 = vunpack.c.h.b16 %v515
        %v3130 = vunpack.c.l.b16 %v516
        %v3131 = vunpack.c.h.b16 %v516
        %v3132 = vunpack.c.l.b16 %v517
        %v3133 = vunpack.c.h.b16 %v517
        %v3134 = vunpack.c.l.b16 %v518
        %v3135 = vunpack.c.h.b16 %v518
        %v3136 = vunpack.c.l.b16 %v519
        %v3137 = vunpack.c.h.b16 %v519
        %v3138 = vunpack.c.l.b16 %v520
        %v3139 = vunpack.c.h.b16 %v520
        %v3140 = vunpack.c.l.b16 %v521
        %v3141 = vunpack.c.h.b16 %v521
        %v3142 = vunpack.c.l.b16 %v522
        %v3143 = vunpack.c.h.b16 %v522
        %v3144 = vunpack.c.l.b16 %v523
        %v3145 = vunpack.c.h.b16 %v523
        %v3146 = vpack.c.b16 %v3026, %v3018
        %v3147 = vpack.c.b16 %v3027, %v3019
        %v3148 = vpack.c.b16 %v3028, %v3020
        %v3149 = vpack.c.b16 %v3029, %v3021
        %v3150 = vpack.c.b16 %v3030, %v3022
        %v3151 = vpack.c.b16 %v3031, %v3023
        %v3152 = vpack.c.b16 %v3032, %v3024
        %v3153 = vpack.c.b16 %v3033, %v3025
        %v3154 = vpack.c.b16 %v3042, %v3034
        %v3155 = vpack.c.b16 %v3043, %v3035
        %v3156 = vpack.c.b16 %v3044, %v3036
        %v3157 = vpack.c.b16 %v3045, %v3037
        %v3158 = vpack.c.b16 %v3046, %v3038
        %v3159 = vpack.c.b16 %v3047, %v3039
        %v3160 = vpack.c.b16 %v3048, %v3040
        %v3161 = vpack.c.b16 %v3049, %v3041
        %v3162 = vpack.c.b16 %v3058, %v3050
        %v3163 = vpack.c.b16 %v3059, %v3051
        %v3164 = vpack.c.b16 %v3060, %v3052
        %v3165 = vpack.c.b16 %v3061, %v3053
        %v3166 = vpack.c.b16 %v3062, %v3054
        %v3167 = vpack.c.b16 %v3063, %v3055
        %v3168 = vpack.c.b16 %v3064, %v3056
        %v3169 = vpack.c.b16 %v3065, %v3057
        %v3170 = vpack.c.b16 %v3074, %v3066
        %v3171 = vpack.c.b16 %v3075, %v3067
        %v3172 = vpack.c.b16 %v3076, %v3068
        %v3173 = vpack.c.b16 %v3077, %v3069
        %v3174 = vpack.c.b16 %v3078, %v3070
        %v3175 = vpack.c.b16 %v3079, %v3071
        %v3176 = vpack.c.b16 %v3080, %v3072
        %v3177 = vpack.c.b16 %v3081, %v3073
        %v3178 = vpack.c.b16 %v3090, %v3082
        %v3179 = vpack.c.b16 %v3091, %v3083
        %v3180 = vpack.c.b16 %v3092, %v3084
        %v3181 = vpack.c.b16 %v3093, %v3085
        %v3182 = vpack.c.b16 %v3094, %v3086
        %v3183 = vpack.c.b16 %v3095, %v3087
        %v3184 = vpack.c.b16 %v3096, %v3088
        %v3185 = vpack.c.b16 %v3097, %v3089
        %v3186 = vpack.c.b16 %v3106, %v3098
        %v3187 = vpack.c.b16 %v3107, %v3099
        %v3188 = vpack.c.b16 %v3108, %v3100
        %v3189 = vpack.c.b16 %v3109, %v3101
        %v3190 = vpack.c.b16 %v3110, %v3102
        %v3191 = vpack.c.b16 %v3111, %v3103
        %v3192 = vpack.c.b16 %v3112, %v3104
        %v3193 = vpack.c.b16 %v3113, %v3105
        %v3194 = vpack.c.b16 %v3122, %v3114
        %v3195 = vpack.c.b16 %v3123, %v3115
        %v3196 = vpack.c.b16 %v3124, %v3116
        %v3197 = vpack.c.b16 %v3125, %v3117
        %v3198 = vpack.c.b16 %v3126, %v3118
        %v3199 = vpack.c.b16 %v3127, %v3119
        %v3200 = vpack.c.b16 %v3128, %v3120
        %v3201 = vpack.c.b16 %v3129, %v3121
        %v3202 = vpack.c.b16 %v3138, %v3130
        %v3203 = vpack.c.b16 %v3139, %v3131
        %v3204 = vpack.c.b16 %v3140, %v3132
        %v3205 = vpack.c.b16 %v3141, %v3133
        %v3206 = vpack.c.b16 %v3142, %v3134
        %v3207 = vpack.c.b16 %v3143, %v3135
        %v3208 = vpack.c.b16 %v3144, %v3136
        %v3209 = vpack.c.b16 %v3145, %v3137
        %3274 = vmatprep.subr.bf16.mxu0 %v3203
        %3275 = vmatpush1.bf16.msra.mxu0 %v3202
        %3276 = vmatprep.subr.bf16.mxu0 %v3195
        %3277 = vmatpush1.bf16.msra.mxu0 %v3194
        %3278 = vmatprep.subr.bf16.mxu0 %v3187
        %3279 = vmatpush1.bf16.msra.mxu0 %v3186
        %3280 = vmatprep.subr.bf16.mxu0 %v3179
        %3281 = vmatpush1.bf16.msra.mxu0 %v3178
        %3282 = vmatprep.subr.bf16.mxu0 %v3171
        %3283 = vmatpush1.bf16.msra.mxu0 %v3170
        %3284 = vmatprep.subr.bf16.mxu0 %v3163
        %3285 = vmatpush1.bf16.msra.mxu0 %v3162
        %3286 = vmatprep.subr.bf16.mxu0 %v3155
        %3287 = vmatpush1.bf16.msra.mxu0 %v3154
        %3288 = vmatprep.subr.bf16.mxu0 %v3147
        %3289 = vmatpush1.bf16.msra.mxu0 %v3146
        %3290 = vmatprep.subr.bf16.mxu0 0
        %3291 = vmatpush2.bf16.msra.mxu0 0
        %3292 = vmatprep.subr.bf16.mxu0 0
        %3293 = vmatpush2.bf16.msra.mxu0 0
        %3294 = vmatprep.subr.bf16.mxu0 0
        %3295 = vmatpush2.bf16.msra.mxu0 0
        %3296 = vmatprep.subr.bf16.mxu0 0
        %3297 = vmatpush2.bf16.msra.mxu0 0
        %3298 = vmatprep.subr.bf16.mxu0 0
        %3299 = vmatpush2.bf16.msra.mxu0 0
        %3300 = vmatprep.subr.bf16.mxu0 0
        %3301 = vmatpush2.bf16.msra.mxu0 0
        %3302 = vmatprep.subr.bf16.mxu0 0
        %3303 = vmatpush2.bf16.msra.mxu0 0
        %3304 = vmatprep.subr.bf16.mxu0 0
        %3305 = vmatpush2.bf16.msra.mxu0 0
        %3306 = vmatprep.mubr.bf16.mxu0 0
        %3307 = vmatmul.mubr.bf16.gmra.mxu0 %v2890
        %v3308 = vpop.f32.mrf.mxu0
        %v3309 = vadd.f32 %v2925, %v3308
        %v3310 = vpop.f32.mrf.mxu0
        %v3311 = vadd.f32 %v2929, %v3310
        %v3312 = vpop.f32.mrf.mxu0
        %v3313 = vadd.f32 %v2925, %v3312
        %v3314 = vpop.f32.mrf.mxu0
        %v3315 = vadd.f32 %v2929, %v3314
        %3316 = vmatprep.mubr.bf16.mxu0 0
        %3317 = vmatmul.mubr.bf16.gmra.mxu0 %v2891
        %v3318 = vpop.f32.mrf.mxu0
        %v3319 = vadd.f32 %v2925, %v3318
        %v3320 = vpop.f32.mrf.mxu0
        %v3321 = vadd.f32 %v2929, %v3320
        %v3322 = vpop.f32.mrf.mxu0
        %v3323 = vadd.f32 %v2925, %v3322
        %v3324 = vpop.f32.mrf.mxu0
        %v3325 = vadd.f32 %v2929, %v3324
        %3326 = vmatprep.mubr.bf16.mxu0 0
        %3327 = vmatmul.mubr.bf16.gmra.mxu0 %v2892
        %v3328 = vpop.f32.mrf.mxu0
        %v3329 = vadd.f32 %v2925, %v3328
        %v3330 = vpop.f32.mrf.mxu0
        %v3331 = vadd.f32 %v2929, %v3330
        %v3332 = vpop.f32.mrf.mxu0
        %v3333 = vadd.f32 %v2925, %v3332
        %v3334 = vpop.f32.mrf.mxu0
        %v3335 = vadd.f32 %v2929, %v3334
        %3336 = vmatprep.mubr.bf16.mxu0 0
        %3337 = vmatmul.mubr.bf16.gmra.mxu0 %v2893
        %v3338 = vpop.f32.mrf.mxu0
        %v3339 = vadd.f32 %v2925, %v3338
        %v3340 = vpop.f32.mrf.mxu0
        %v3341 = vadd.f32 %v2929, %v3340
        %v3342 = vpop.f32.mrf.mxu0
        %v3343 = vadd.f32 %v2925, %v3342
        %v3344 = vpop.f32.mrf.mxu0
        %v3345 = vadd.f32 %v2929, %v3344
        %3346 = vmatprep.mubr.bf16.mxu0 0
        %3347 = vmatmul.mubr.bf16.gmra.mxu0 %v2894
        %v3348 = vpop.f32.mrf.mxu0
        %v3349 = vadd.f32 %v2925, %v3348
        %v3350 = vpop.f32.mrf.mxu0
        %v3351 = vadd.f32 %v2929, %v3350
        %v3352 = vpop.f32.mrf.mxu0
        %v3353 = vadd.f32 %v2925, %v3352
        %v3354 = vpop.f32.mrf.mxu0
        %v3355 = vadd.f32 %v2929, %v3354
        %3356 = vmatprep.mubr.bf16.mxu0 0
        %3357 = vmatmul.mubr.bf16.gmra.mxu0 %v2895
        %v3358 = vpop.f32.mrf.mxu0
        %v3359 = vadd.f32 %v2925, %v3358
        %v3360 = vpop.f32.mrf.mxu0
        %v3361 = vadd.f32 %v2929, %v3360
        %v3362 = vpop.f32.mrf.mxu0
        %v3363 = vadd.f32 %v2925, %v3362
        %v3364 = vpop.f32.mrf.mxu0
        %v3365 = vadd.f32 %v2929, %v3364
        %3366 = vmatprep.mubr.bf16.mxu0 0
        %3367 = vmatmul.mubr.bf16.gmra.mxu0 %v2896
        %v3368 = vpop.f32.mrf.mxu0
        %v3369 = vadd.f32 %v2925, %v3368
        %v3370 = vpop.f32.mrf.mxu0
        %v3371 = vadd.f32 %v2929, %v3370
        %v3372 = vpop.f32.mrf.mxu0
        %v3373 = vadd.f32 %v2925, %v3372
        %v3374 = vpop.f32.mrf.mxu0
        %v3375 = vadd.f32 %v2929, %v3374
        %3376 = vmatprep.mubr.bf16.mxu0 0
        %3377 = vmatmul.mubr.bf16.gmra.mxu0 %v2897
        %v3378 = vpop.f32.mrf.mxu0
        %v3379 = vadd.f32 %v2925, %v3378
        %v3380 = vpop.f32.mrf.mxu0
        %v3381 = vadd.f32 %v2929, %v3380
        %v3382 = vpop.f32.mrf.mxu0
        %v3383 = vadd.f32 %v2925, %v3382
        %v3384 = vpop.f32.mrf.mxu0
        %v3385 = vadd.f32 %v2929, %v3384
        %3386 = vmatprep.mubr.bf16.mxu0 0
        %3387 = vmatmul.mubr.bf16.gmra.mxu0 %v2898
        %v3388 = vpop.f32.mrf.mxu0
        %v3389 = vadd.f32 %v2925, %v3388
        %v3390 = vpop.f32.mrf.mxu0
        %v3391 = vadd.f32 %v2929, %v3390
        %v3392 = vpop.f32.mrf.mxu0
        %v3393 = vadd.f32 %v2925, %v3392
        %v3394 = vpop.f32.mrf.mxu0
        %v3395 = vadd.f32 %v2929, %v3394
        %3396 = vmatprep.mubr.bf16.mxu0 0
        %3397 = vmatmul.mubr.bf16.gmra.mxu0 %v2899
        %v3398 = vpop.f32.mrf.mxu0
        %v3399 = vadd.f32 %v2925, %v3398
        %v3400 = vpop.f32.mrf.mxu0
        %v3401 = vadd.f32 %v2929, %v3400
        %v3402 = vpop.f32.mrf.mxu0
        %v3403 = vadd.f32 %v2925, %v3402
        %v3404 = vpop.f32.mrf.mxu0
        %v3405 = vadd.f32 %v2929, %v3404
        %3406 = vmatprep.mubr.bf16.mxu0 0
        %3407 = vmatmul.mubr.bf16.gmra.mxu0 %v2900
        %v3408 = vpop.f32.mrf.mxu0
        %v3409 = vadd.f32 %v2925, %v3408
        %v3410 = vpop.f32.mrf.mxu0
        %v3411 = vadd.f32 %v2929, %v3410
        %v3412 = vpop.f32.mrf.mxu0
        %v3413 = vadd.f32 %v2925, %v3412
        %v3414 = vpop.f32.mrf.mxu0
        %v3415 = vadd.f32 %v2929, %v3414
        %3416 = vmatprep.mubr.bf16.mxu0 0
        %3417 = vmatmul.mubr.bf16.gmra.mxu0 %v2901
        %v3418 = vpop.f32.mrf.mxu0
        %v3419 = vadd.f32 %v2925, %v3418
        %v3420 = vpop.f32.mrf.mxu0
        %v3421 = vadd.f32 %v2929, %v3420
        %v3422 = vpop.f32.mrf.mxu0
        %v3423 = vadd.f32 %v2925, %v3422
        %v3424 = vpop.f32.mrf.mxu0
        %v3425 = vadd.f32 %v2929, %v3424
        %3426 = vmatprep.mubr.bf16.mxu0 0
        %3427 = vmatmul.mubr.bf16.gmra.mxu0 %v2902
        %v3428 = vpop.f32.mrf.mxu0
        %v3429 = vadd.f32 %v2925, %v3428
        %v3430 = vpop.f32.mrf.mxu0
        %v3431 = vadd.f32 %v2929, %v3430
        %v3432 = vpop.f32.mrf.mxu0
        %v3433 = vadd.f32 %v2925, %v3432
        %v3434 = vpop.f32.mrf.mxu0
        %v3435 = vadd.f32 %v2929, %v3434
        %3436 = vmatprep.mubr.bf16.mxu0 0
        %3437 = vmatmul.mubr.bf16.gmra.mxu0 %v2903
        %v3438 = vpop.f32.mrf.mxu0
        %v3439 = vadd.f32 %v2925, %v3438
        %v3440 = vpop.f32.mrf.mxu0
        %v3441 = vadd.f32 %v2929, %v3440
        %v3442 = vpop.f32.mrf.mxu0
        %v3443 = vadd.f32 %v2925, %v3442
        %v3444 = vpop.f32.mrf.mxu0
        %v3445 = vadd.f32 %v2929, %v3444
        %3446 = vmatprep.mubr.bf16.mxu0 0
        %3447 = vmatmul.mubr.bf16.gmra.mxu0 %v2904
        %v3448 = vpop.f32.mrf.mxu0
        %v3449 = vadd.f32 %v2925, %v3448
        %v3450 = vpop.f32.mrf.mxu0
        %v3451 = vadd.f32 %v2929, %v3450
        %v3452 = vpop.f32.mrf.mxu0
        %v3453 = vadd.f32 %v2925, %v3452
        %v3454 = vpop.f32.mrf.mxu0
        %v3455 = vadd.f32 %v2929, %v3454
        %3456 = vmatprep.mubr.bf16.mxu0 0
        %3457 = vmatmul.mubr.bf16.gmra.mxu0 %v2905
        %v3458 = vpop.f32.mrf.mxu0
        %v3459 = vadd.f32 %v2925, %v3458
        %v3460 = vpop.f32.mrf.mxu0
        %v3461 = vadd.f32 %v2929, %v3460
        %v3462 = vpop.f32.mrf.mxu0
        %v3463 = vadd.f32 %v2925, %v3462
        %v3464 = vpop.f32.mrf.mxu0
        %v3465 = vadd.f32 %v2929, %v3464
        %3466 = vmatprep.mubr.bf16.mxu0 0
        %3467 = vmatmul.mubr.bf16.gmra.mxu0 %v2906
        %v3468 = vpop.f32.mrf.mxu0
        %v3469 = vadd.f32 %v2925, %v3468
        %v3470 = vpop.f32.mrf.mxu0
        %v3471 = vadd.f32 %v2929, %v3470
        %v3472 = vpop.f32.mrf.mxu0
        %v3473 = vadd.f32 %v2925, %v3472
        %v3474 = vpop.f32.mrf.mxu0
        %v3475 = vadd.f32 %v2929, %v3474
        %3476 = vmatprep.mubr.bf16.mxu0 0
        %3477 = vmatmul.mubr.bf16.gmra.mxu0 %v2907
        %v3478 = vpop.f32.mrf.mxu0
        %v3479 = vadd.f32 %v2925, %v3478
        %v3480 = vpop.f32.mrf.mxu0
        %v3481 = vadd.f32 %v2929, %v3480
        %v3482 = vpop.f32.mrf.mxu0
        %v3483 = vadd.f32 %v2925, %v3482
        %v3484 = vpop.f32.mrf.mxu0
        %v3485 = vadd.f32 %v2929, %v3484
        %3486 = vmatprep.mubr.bf16.mxu0 0
        %3487 = vmatmul.mubr.bf16.gmra.mxu0 %v2908
        %v3488 = vpop.f32.mrf.mxu0
        %v3489 = vadd.f32 %v2925, %v3488
        %v3490 = vpop.f32.mrf.mxu0
        %v3491 = vadd.f32 %v2929, %v3490
        %v3492 = vpop.f32.mrf.mxu0
        %v3493 = vadd.f32 %v2925, %v3492
        %v3494 = vpop.f32.mrf.mxu0
        %v3495 = vadd.f32 %v2929, %v3494
        %3496 = vmatprep.mubr.bf16.mxu0 0
        %3497 = vmatmul.mubr.bf16.gmra.mxu0 %v2909
        %v3498 = vpop.f32.mrf.mxu0
        %v3499 = vadd.f32 %v2925, %v3498
        %v3500 = vpop.f32.mrf.mxu0
        %v3501 = vadd.f32 %v2929, %v3500
        %v3502 = vpop.f32.mrf.mxu0
        %v3503 = vadd.f32 %v2925, %v3502
        %v3504 = vpop.f32.mrf.mxu0
        %v3505 = vadd.f32 %v2929, %v3504
        %3506 = vmatprep.mubr.bf16.mxu0 0
        %3507 = vmatmul.mubr.bf16.gmra.mxu0 %v2910
        %v3508 = vpop.f32.mrf.mxu0
        %v3509 = vadd.f32 %v2925, %v3508
        %v3510 = vpop.f32.mrf.mxu0
        %v3511 = vadd.f32 %v2929, %v3510
        %v3512 = vpop.f32.mrf.mxu0
        %v3513 = vadd.f32 %v2925, %v3512
        %v3514 = vpop.f32.mrf.mxu0
        %v3515 = vadd.f32 %v2929, %v3514
        %3516 = vmatprep.mubr.bf16.mxu0 0
        %3517 = vmatmul.mubr.bf16.gmra.mxu0 %v2911
        %v3518 = vpop.f32.mrf.mxu0
        %v3519 = vadd.f32 %v2925, %v3518
        %v3520 = vpop.f32.mrf.mxu0
        %v3521 = vadd.f32 %v2929, %v3520
        %v3522 = vpop.f32.mrf.mxu0
        %v3523 = vadd.f32 %v2925, %v3522
        %v3524 = vpop.f32.mrf.mxu0
        %v3525 = vadd.f32 %v2929, %v3524
        %3526 = vmatprep.mubr.bf16.mxu0 0
        %3527 = vmatmul.mubr.bf16.gmra.mxu0 %v2912
        %v3528 = vpop.f32.mrf.mxu0
        %v3529 = vadd.f32 %v2925, %v3528
        %v3530 = vpop.f32.mrf.mxu0
        %v3531 = vadd.f32 %v2929, %v3530
        %v3532 = vpop.f32.mrf.mxu0
        %v3533 = vadd.f32 %v2925, %v3532
        %v3534 = vpop.f32.mrf.mxu0
        %v3535 = vadd.f32 %v2929, %v3534
        %3536 = vmatprep.mubr.bf16.mxu0 0
        %3537 = vmatmul.mubr.bf16.gmra.mxu0 %v2913
        %v3538 = vpop.f32.mrf.mxu0
        %v3539 = vadd.f32 %v2925, %v3538
        %v3540 = vpop.f32.mrf.mxu0
        %v3541 = vadd.f32 %v2929, %v3540
        %v3542 = vpop.f32.mrf.mxu0
        %v3543 = vadd.f32 %v2925, %v3542
        %v3544 = vpop.f32.mrf.mxu0
        %v3545 = vadd.f32 %v2929, %v3544
        %3546 = vmatprep.mubr.bf16.mxu0 0
        %3547 = vmatmul.mubr.bf16.gmra.mxu0 %v2914
        %v3548 = vpop.f32.mrf.mxu0
        %v3549 = vadd.f32 %v2925, %v3548
        %v3550 = vpop.f32.mrf.mxu0
        %v3551 = vadd.f32 %v2929, %v3550
        %v3552 = vpop.f32.mrf.mxu0
        %v3553 = vadd.f32 %v2925, %v3552
        %v3554 = vpop.f32.mrf.mxu0
        %v3555 = vadd.f32 %v2929, %v3554
        %3556 = vmatprep.mubr.bf16.mxu0 0
        %3557 = vmatmul.mubr.bf16.gmra.mxu0 %v2915
        %v3558 = vpop.f32.mrf.mxu0
        %v3559 = vadd.f32 %v2925, %v3558
        %v3560 = vpop.f32.mrf.mxu0
        %v3561 = vadd.f32 %v2929, %v3560
        %v3562 = vpop.f32.mrf.mxu0
        %v3563 = vadd.f32 %v2925, %v3562
        %v3564 = vpop.f32.mrf.mxu0
        %v3565 = vadd.f32 %v2929, %v3564
        %3566 = vmatprep.mubr.bf16.mxu0 0
        %3567 = vmatmul.mubr.bf16.gmra.mxu0 %v2916
        %v3568 = vpop.f32.mrf.mxu0
        %v3569 = vadd.f32 %v2925, %v3568
        %v3570 = vpop.f32.mrf.mxu0
        %v3571 = vadd.f32 %v2929, %v3570
        %v3572 = vpop.f32.mrf.mxu0
        %v3573 = vadd.f32 %v2925, %v3572
        %v3574 = vpop.f32.mrf.mxu0
        %v3575 = vadd.f32 %v2929, %v3574
        %3576 = vmatprep.mubr.bf16.mxu0 0
        %3577 = vmatmul.mubr.bf16.gmra.mxu0 %v2917
        %v3578 = vpop.f32.mrf.mxu0
        %v3579 = vadd.f32 %v2925, %v3578
        %v3580 = vpop.f32.mrf.mxu0
        %v3581 = vadd.f32 %v2929, %v3580
        %v3582 = vpop.f32.mrf.mxu0
        %v3583 = vadd.f32 %v2925, %v3582
        %v3584 = vpop.f32.mrf.mxu0
        %v3585 = vadd.f32 %v2929, %v3584
        %3586 = vmatprep.mubr.bf16.mxu0 0
        %3587 = vmatmul.mubr.bf16.gmra.mxu0 %v2918
        %v3588 = vpop.f32.mrf.mxu0
        %v3589 = vadd.f32 %v2925, %v3588
        %v3590 = vpop.f32.mrf.mxu0
        %v3591 = vadd.f32 %v2929, %v3590
        %v3592 = vpop.f32.mrf.mxu0
        %v3593 = vadd.f32 %v2925, %v3592
        %v3594 = vpop.f32.mrf.mxu0
        %v3595 = vadd.f32 %v2929, %v3594
        %3596 = vmatprep.mubr.bf16.mxu0 0
        %3597 = vmatmul.mubr.bf16.gmra.mxu0 %v2919
        %v3598 = vpop.f32.mrf.mxu0
        %v3599 = vadd.f32 %v2925, %v3598
        %v3600 = vpop.f32.mrf.mxu0
        %v3601 = vadd.f32 %v2929, %v3600
        %v3602 = vpop.f32.mrf.mxu0
        %v3603 = vadd.f32 %v2925, %v3602
        %v3604 = vpop.f32.mrf.mxu0
        %v3605 = vadd.f32 %v2929, %v3604
        %3606 = vmatprep.mubr.bf16.mxu0 0
        %3607 = vmatmul.mubr.bf16.gmra.mxu0 %v2920
        %v3608 = vpop.f32.mrf.mxu0
        %v3609 = vadd.f32 %v2925, %v3608
        %v3610 = vpop.f32.mrf.mxu0
        %v3611 = vadd.f32 %v2929, %v3610
        %v3612 = vpop.f32.mrf.mxu0
        %v3613 = vadd.f32 %v2925, %v3612
        %v3614 = vpop.f32.mrf.mxu0
        %v3615 = vadd.f32 %v2929, %v3614
        %3616 = vmatprep.mubr.bf16.mxu0 0
        %3617 = vmatmul.mubr.bf16.gmra.mxu0 %v2921
        %v3618 = vpop.f32.mrf.mxu0
        %v3619 = vadd.f32 %v2925, %v3618
        %v3620 = vpop.f32.mrf.mxu0
        %v3621 = vadd.f32 %v2929, %v3620
        %v3622 = vpop.f32.mrf.mxu0
        %v3623 = vadd.f32 %v2925, %v3622
        %v3624 = vpop.f32.mrf.mxu0
        %v3625 = vadd.f32 %v2929, %v3624
        %3626 = vdwg.mxu0
        %3627 = vmatprep.subr.bf16.mxu0 %v3205
        %3628 = vmatpush1.bf16.msra.mxu0 %v3204
        %3629 = vmatprep.subr.bf16.mxu0 %v3197
        %3630 = vmatpush1.bf16.msra.mxu0 %v3196
        %3631 = vmatprep.subr.bf16.mxu0 %v3189
        %3632 = vmatpush1.bf16.msra.mxu0 %v3188
        %3633 = vmatprep.subr.bf16.mxu0 %v3181
        %3634 = vmatpush1.bf16.msra.mxu0 %v3180
        %3635 = vmatprep.subr.bf16.mxu0 %v3173
        %3636 = vmatpush1.bf16.msra.mxu0 %v3172
        %3637 = vmatprep.subr.bf16.mxu0 %v3165
        %3638 = vmatpush1.bf16.msra.mxu0 %v3164
        %3639 = vmatprep.subr.bf16.mxu0 %v3157
        %3640 = vmatpush1.bf16.msra.mxu0 %v3156
        %3641 = vmatprep.subr.bf16.mxu0 %v3149
        %3642 = vmatpush1.bf16.msra.mxu0 %v3148
        %3643 = vmatprep.subr.bf16.mxu0 0
        %3644 = vmatpush2.bf16.msra.mxu0 0
        %3645 = vmatprep.subr.bf16.mxu0 0
        %3646 = vmatpush2.bf16.msra.mxu0 0
        %3647 = vmatprep.subr.bf16.mxu0 0
        %3648 = vmatpush2.bf16.msra.mxu0 0
        %3649 = vmatprep.subr.bf16.mxu0 0
        %3650 = vmatpush2.bf16.msra.mxu0 0
        %3651 = vmatprep.subr.bf16.mxu0 0
        %3652 = vmatpush2.bf16.msra.mxu0 0
        %3653 = vmatprep.subr.bf16.mxu0 0
        %3654 = vmatpush2.bf16.msra.mxu0 0
        %3655 = vmatprep.subr.bf16.mxu0 0
        %3656 = vmatpush2.bf16.msra.mxu0 0
        %3657 = vmatprep.subr.bf16.mxu0 0
        %3658 = vmatpush2.bf16.msra.mxu0 0
        %3659 = vmatprep.mubr.bf16.mxu0 0
        %3660 = vmatmul.mubr.bf16.gmra.mxu0 %v2890
        %v3661 = vpop.f32.mrf.mxu0
        %v3662 = vadd.f32 %v2933, %v3661
        %v3663 = vpop.f32.mrf.mxu0
        %v3664 = vadd.f32 %v2937, %v3663
        %v3665 = vpop.f32.mrf.mxu0
        %v3666 = vadd.f32 %v2933, %v3665
        %v3667 = vpop.f32.mrf.mxu0
        %v3668 = vadd.f32 %v2937, %v3667
        %3669 = vmatprep.mubr.bf16.mxu0 0
        %3670 = vmatmul.mubr.bf16.gmra.mxu0 %v2891
        %v3671 = vpop.f32.mrf.mxu0
        %v3672 = vadd.f32 %v2933, %v3671
        %v3673 = vpop.f32.mrf.mxu0
        %v3674 = vadd.f32 %v2937, %v3673
        %v3675 = vpop.f32.mrf.mxu0
        %v3676 = vadd.f32 %v2933, %v3675
        %v3677 = vpop.f32.mrf.mxu0
        %v3678 = vadd.f32 %v2937, %v3677
        %3679 = vmatprep.mubr.bf16.mxu0 0
        %3680 = vmatmul.mubr.bf16.gmra.mxu0 %v2892
        %v3681 = vpop.f32.mrf.mxu0
        %v3682 = vadd.f32 %v2933, %v3681
        %v3683 = vpop.f32.mrf.mxu0
        %v3684 = vadd.f32 %v2937, %v3683
        %v3685 = vpop.f32.mrf.mxu0
        %v3686 = vadd.f32 %v2933, %v3685
        %v3687 = vpop.f32.mrf.mxu0
        %v3688 = vadd.f32 %v2937, %v3687
        %3689 = vmatprep.mubr.bf16.mxu0 0
        %3690 = vmatmul.mubr.bf16.gmra.mxu0 %v2893
        %v3691 = vpop.f32.mrf.mxu0
        %v3692 = vadd.f32 %v2933, %v3691
        %v3693 = vpop.f32.mrf.mxu0
        %v3694 = vadd.f32 %v2937, %v3693
        %v3695 = vpop.f32.mrf.mxu0
        %v3696 = vadd.f32 %v2933, %v3695
        %v3697 = vpop.f32.mrf.mxu0
        %v3698 = vadd.f32 %v2937, %v3697
        %3699 = vmatprep.mubr.bf16.mxu0 0
        %3700 = vmatmul.mubr.bf16.gmra.mxu0 %v2894
        %v3701 = vpop.f32.mrf.mxu0
        %v3702 = vadd.f32 %v2933, %v3701
        %v3703 = vpop.f32.mrf.mxu0
        %v3704 = vadd.f32 %v2937, %v3703
        %v3705 = vpop.f32.mrf.mxu0
        %v3706 = vadd.f32 %v2933, %v3705
        %v3707 = vpop.f32.mrf.mxu0
        %v3708 = vadd.f32 %v2937, %v3707
        %3709 = vmatprep.mubr.bf16.mxu0 0
        %3710 = vmatmul.mubr.bf16.gmra.mxu0 %v2895
        %v3711 = vpop.f32.mrf.mxu0
        %v3712 = vadd.f32 %v2933, %v3711
        %v3713 = vpop.f32.mrf.mxu0
        %v3714 = vadd.f32 %v2937, %v3713
        %v3715 = vpop.f32.mrf.mxu0
        %v3716 = vadd.f32 %v2933, %v3715
        %v3717 = vpop.f32.mrf.mxu0
        %v3718 = vadd.f32 %v2937, %v3717
        %3719 = vmatprep.mubr.bf16.mxu0 0
        %3720 = vmatmul.mubr.bf16.gmra.mxu0 %v2896
        %v3721 = vpop.f32.mrf.mxu0
        %v3722 = vadd.f32 %v2933, %v3721
        %v3723 = vpop.f32.mrf.mxu0
        %v3724 = vadd.f32 %v2937, %v3723
        %v3725 = vpop.f32.mrf.mxu0
        %v3726 = vadd.f32 %v2933, %v3725
        %v3727 = vpop.f32.mrf.mxu0
        %v3728 = vadd.f32 %v2937, %v3727
        %3729 = vmatprep.mubr.bf16.mxu0 0
        %3730 = vmatmul.mubr.bf16.gmra.mxu0 %v2897
        %v3731 = vpop.f32.mrf.mxu0
        %v3732 = vadd.f32 %v2933, %v3731
        %v3733 = vpop.f32.mrf.mxu0
        %v3734 = vadd.f32 %v2937, %v3733
        %v3735 = vpop.f32.mrf.mxu0
        %v3736 = vadd.f32 %v2933, %v3735
        %v3737 = vpop.f32.mrf.mxu0
        %v3738 = vadd.f32 %v2937, %v3737
        %3739 = vmatprep.mubr.bf16.mxu0 0
        %3740 = vmatmul.mubr.bf16.gmra.mxu0 %v2898
        %v3741 = vpop.f32.mrf.mxu0
        %v3742 = vadd.f32 %v2933, %v3741
        %v3743 = vpop.f32.mrf.mxu0
        %v3744 = vadd.f32 %v2937, %v3743
        %v3745 = vpop.f32.mrf.mxu0
        %v3746 = vadd.f32 %v2933, %v3745
        %v3747 = vpop.f32.mrf.mxu0
        %v3748 = vadd.f32 %v2937, %v3747
        %3749 = vmatprep.mubr.bf16.mxu0 0
        %3750 = vmatmul.mubr.bf16.gmra.mxu0 %v2899
        %v3751 = vpop.f32.mrf.mxu0
        %v3752 = vadd.f32 %v2933, %v3751
        %v3753 = vpop.f32.mrf.mxu0
        %v3754 = vadd.f32 %v2937, %v3753
        %v3755 = vpop.f32.mrf.mxu0
        %v3756 = vadd.f32 %v2933, %v3755
        %v3757 = vpop.f32.mrf.mxu0
        %v3758 = vadd.f32 %v2937, %v3757
        %3759 = vmatprep.mubr.bf16.mxu0 0
        %3760 = vmatmul.mubr.bf16.gmra.mxu0 %v2900
        %v3761 = vpop.f32.mrf.mxu0
        %v3762 = vadd.f32 %v2933, %v3761
        %v3763 = vpop.f32.mrf.mxu0
        %v3764 = vadd.f32 %v2937, %v3763
        %v3765 = vpop.f32.mrf.mxu0
        %v3766 = vadd.f32 %v2933, %v3765
        %v3767 = vpop.f32.mrf.mxu0
        %v3768 = vadd.f32 %v2937, %v3767
        %3769 = vmatprep.mubr.bf16.mxu0 0
        %3770 = vmatmul.mubr.bf16.gmra.mxu0 %v2901
        %v3771 = vpop.f32.mrf.mxu0
        %v3772 = vadd.f32 %v2933, %v3771
        %v3773 = vpop.f32.mrf.mxu0
        %v3774 = vadd.f32 %v2937, %v3773
        %v3775 = vpop.f32.mrf.mxu0
        %v3776 = vadd.f32 %v2933, %v3775
        %v3777 = vpop.f32.mrf.mxu0
        %v3778 = vadd.f32 %v2937, %v3777
        %3779 = vmatprep.mubr.bf16.mxu0 0
        %3780 = vmatmul.mubr.bf16.gmra.mxu0 %v2902
        %v3781 = vpop.f32.mrf.mxu0
        %v3782 = vadd.f32 %v2933, %v3781
        %v3783 = vpop.f32.mrf.mxu0
        %v3784 = vadd.f32 %v2937, %v3783
        %v3785 = vpop.f32.mrf.mxu0
        %v3786 = vadd.f32 %v2933, %v3785
        %v3787 = vpop.f32.mrf.mxu0
        %v3788 = vadd.f32 %v2937, %v3787
        %3789 = vmatprep.mubr.bf16.mxu0 0
        %3790 = vmatmul.mubr.bf16.gmra.mxu0 %v2903
        %v3791 = vpop.f32.mrf.mxu0
        %v3792 = vadd.f32 %v2933, %v3791
        %v3793 = vpop.f32.mrf.mxu0
        %v3794 = vadd.f32 %v2937, %v3793
        %v3795 = vpop.f32.mrf.mxu0
        %v3796 = vadd.f32 %v2933, %v3795
        %v3797 = vpop.f32.mrf.mxu0
        %v3798 = vadd.f32 %v2937, %v3797
        %3799 = vmatprep.mubr.bf16.mxu0 0
        %3800 = vmatmul.mubr.bf16.gmra.mxu0 %v2904
        %v3801 = vpop.f32.mrf.mxu0
        %v3802 = vadd.f32 %v2933, %v3801
        %v3803 = vpop.f32.mrf.mxu0
        %v3804 = vadd.f32 %v2937, %v3803
        %v3805 = vpop.f32.mrf.mxu0
        %v3806 = vadd.f32 %v2933, %v3805
        %v3807 = vpop.f32.mrf.mxu0
        %v3808 = vadd.f32 %v2937, %v3807
        %3809 = vmatprep.mubr.bf16.mxu0 0
        %3810 = vmatmul.mubr.bf16.gmra.mxu0 %v2905
        %v3811 = vpop.f32.mrf.mxu0
        %v3812 = vadd.f32 %v2933, %v3811
        %v3813 = vpop.f32.mrf.mxu0
        %v3814 = vadd.f32 %v2937, %v3813
        %v3815 = vpop.f32.mrf.mxu0
        %v3816 = vadd.f32 %v2933, %v3815
        %v3817 = vpop.f32.mrf.mxu0
        %v3818 = vadd.f32 %v2937, %v3817
        %3819 = vmatprep.mubr.bf16.mxu0 0
        %3820 = vmatmul.mubr.bf16.gmra.mxu0 %v2906
        %v3821 = vpop.f32.mrf.mxu0
        %v3822 = vadd.f32 %v2933, %v3821
        %v3823 = vpop.f32.mrf.mxu0
        %v3824 = vadd.f32 %v2937, %v3823
        %v3825 = vpop.f32.mrf.mxu0
        %v3826 = vadd.f32 %v2933, %v3825
        %v3827 = vpop.f32.mrf.mxu0
        %v3828 = vadd.f32 %v2937, %v3827
        %3829 = vmatprep.mubr.bf16.mxu0 0
        %3830 = vmatmul.mubr.bf16.gmra.mxu0 %v2907
        %v3831 = vpop.f32.mrf.mxu0
        %v3832 = vadd.f32 %v2933, %v3831
        %v3833 = vpop.f32.mrf.mxu0
        %v3834 = vadd.f32 %v2937, %v3833
        %v3835 = vpop.f32.mrf.mxu0
        %v3836 = vadd.f32 %v2933, %v3835
        %v3837 = vpop.f32.mrf.mxu0
        %v3838 = vadd.f32 %v2937, %v3837
        %3839 = vmatprep.mubr.bf16.mxu0 0
        %3840 = vmatmul.mubr.bf16.gmra.mxu0 %v2908
        %v3841 = vpop.f32.mrf.mxu0
        %v3842 = vadd.f32 %v2933, %v3841
        %v3843 = vpop.f32.mrf.mxu0
        %v3844 = vadd.f32 %v2937, %v3843
        %v3845 = vpop.f32.mrf.mxu0
        %v3846 = vadd.f32 %v2933, %v3845
        %v3847 = vpop.f32.mrf.mxu0
        %v3848 = vadd.f32 %v2937, %v3847
        %3849 = vmatprep.mubr.bf16.mxu0 0
        %3850 = vmatmul.mubr.bf16.gmra.mxu0 %v2909
        %v3851 = vpop.f32.mrf.mxu0
        %v3852 = vadd.f32 %v2933, %v3851
        %v3853 = vpop.f32.mrf.mxu0
        %v3854 = vadd.f32 %v2937, %v3853
        %v3855 = vpop.f32.mrf.mxu0
        %v3856 = vadd.f32 %v2933, %v3855
        %v3857 = vpop.f32.mrf.mxu0
        %v3858 = vadd.f32 %v2937, %v3857
        %3859 = vmatprep.mubr.bf16.mxu0 0
        %3860 = vmatmul.mubr.bf16.gmra.mxu0 %v2910
        %v3861 = vpop.f32.mrf.mxu0
        %v3862 = vadd.f32 %v2933, %v3861
        %v3863 = vpop.f32.mrf.mxu0
        %v3864 = vadd.f32 %v2937, %v3863
        %v3865 = vpop.f32.mrf.mxu0
        %v3866 = vadd.f32 %v2933, %v3865
        %v3867 = vpop.f32.mrf.mxu0
        %v3868 = vadd.f32 %v2937, %v3867
        %3869 = vmatprep.mubr.bf16.mxu0 0
        %3870 = vmatmul.mubr.bf16.gmra.mxu0 %v2911
        %v3871 = vpop.f32.mrf.mxu0
        %v3872 = vadd.f32 %v2933, %v3871
        %v3873 = vpop.f32.mrf.mxu0
        %v3874 = vadd.f32 %v2937, %v3873
        %v3875 = vpop.f32.mrf.mxu0
        %v3876 = vadd.f32 %v2933, %v3875
        %v3877 = vpop.f32.mrf.mxu0
        %v3878 = vadd.f32 %v2937, %v3877
        %3879 = vmatprep.mubr.bf16.mxu0 0
        %3880 = vmatmul.mubr.bf16.gmra.mxu0 %v2912
        %v3881 = vpop.f32.mrf.mxu0
        %v3882 = vadd.f32 %v2933, %v3881
        %v3883 = vpop.f32.mrf.mxu0
        %v3884 = vadd.f32 %v2937, %v3883
        %v3885 = vpop.f32.mrf.mxu0
        %v3886 = vadd.f32 %v2933, %v3885
        %v3887 = vpop.f32.mrf.mxu0
        %v3888 = vadd.f32 %v2937, %v3887
        %3889 = vmatprep.mubr.bf16.mxu0 0
        %3890 = vmatmul.mubr.bf16.gmra.mxu0 %v2913
        %v3891 = vpop.f32.mrf.mxu0
        %v3892 = vadd.f32 %v2933, %v3891
        %v3893 = vpop.f32.mrf.mxu0
        %v3894 = vadd.f32 %v2937, %v3893
        %v3895 = vpop.f32.mrf.mxu0
        %v3896 = vadd.f32 %v2933, %v3895
        %v3897 = vpop.f32.mrf.mxu0
        %v3898 = vadd.f32 %v2937, %v3897
        %3899 = vmatprep.mubr.bf16.mxu0 0
        %3900 = vmatmul.mubr.bf16.gmra.mxu0 %v2914
        %v3901 = vpop.f32.mrf.mxu0
        %v3902 = vadd.f32 %v2933, %v3901
        %v3903 = vpop.f32.mrf.mxu0
        %v3904 = vadd.f32 %v2937, %v3903
        %v3905 = vpop.f32.mrf.mxu0
        %v3906 = vadd.f32 %v2933, %v3905
        %v3907 = vpop.f32.mrf.mxu0
        %v3908 = vadd.f32 %v2937, %v3907
        %3909 = vmatprep.mubr.bf16.mxu0 0
        %3910 = vmatmul.mubr.bf16.gmra.mxu0 %v2915
        %v3911 = vpop.f32.mrf.mxu0
        %v3912 = vadd.f32 %v2933, %v3911
        %v3913 = vpop.f32.mrf.mxu0
        %v3914 = vadd.f32 %v2937, %v3913
        %v3915 = vpop.f32.mrf.mxu0
        %v3916 = vadd.f32 %v2933, %v3915
        %v3917 = vpop.f32.mrf.mxu0
        %v3918 = vadd.f32 %v2937, %v3917
        %3919 = vmatprep.mubr.bf16.mxu0 0
        %3920 = vmatmul.mubr.bf16.gmra.mxu0 %v2916
        %v3921 = vpop.f32.mrf.mxu0
        %v3922 = vadd.f32 %v2933, %v3921
        %v3923 = vpop.f32.mrf.mxu0
        %v3924 = vadd.f32 %v2937, %v3923
        %v3925 = vpop.f32.mrf.mxu0
        %v3926 = vadd.f32 %v2933, %v3925
        %v3927 = vpop.f32.mrf.mxu0
        %v3928 = vadd.f32 %v2937, %v3927
        %3929 = vmatprep.mubr.bf16.mxu0 0
        %3930 = vmatmul.mubr.bf16.gmra.mxu0 %v2917
        %v3931 = vpop.f32.mrf.mxu0
        %v3932 = vadd.f32 %v2933, %v3931
        %v3933 = vpop.f32.mrf.mxu0
        %v3934 = vadd.f32 %v2937, %v3933
        %v3935 = vpop.f32.mrf.mxu0
        %v3936 = vadd.f32 %v2933, %v3935
        %v3937 = vpop.f32.mrf.mxu0
        %v3938 = vadd.f32 %v2937, %v3937
        %3939 = vmatprep.mubr.bf16.mxu0 0
        %3940 = vmatmul.mubr.bf16.gmra.mxu0 %v2918
        %v3941 = vpop.f32.mrf.mxu0
        %v3942 = vadd.f32 %v2933, %v3941
        %v3943 = vpop.f32.mrf.mxu0
        %v3944 = vadd.f32 %v2937, %v3943
        %v3945 = vpop.f32.mrf.mxu0
        %v3946 = vadd.f32 %v2933, %v3945
        %v3947 = vpop.f32.mrf.mxu0
        %v3948 = vadd.f32 %v2937, %v3947
        %3949 = vmatprep.mubr.bf16.mxu0 0
        %3950 = vmatmul.mubr.bf16.gmra.mxu0 %v2919
        %v3951 = vpop.f32.mrf.mxu0
        %v3952 = vadd.f32 %v2933, %v3951
        %v3953 = vpop.f32.mrf.mxu0
        %v3954 = vadd.f32 %v2937, %v3953
        %v3955 = vpop.f32.mrf.mxu0
        %v3956 = vadd.f32 %v2933, %v3955
        %v3957 = vpop.f32.mrf.mxu0
        %v3958 = vadd.f32 %v2937, %v3957
        %3959 = vmatprep.mubr.bf16.mxu0 0
        %3960 = vmatmul.mubr.bf16.gmra.mxu0 %v2920
        %v3961 = vpop.f32.mrf.mxu0
        %v3962 = vadd.f32 %v2933, %v3961
        %v3963 = vpop.f32.mrf.mxu0
        %v3964 = vadd.f32 %v2937, %v3963
        %v3965 = vpop.f32.mrf.mxu0
        %v3966 = vadd.f32 %v2933, %v3965
        %v3967 = vpop.f32.mrf.mxu0
        %v3968 = vadd.f32 %v2937, %v3967
        %3969 = vmatprep.mubr.bf16.mxu0 0
        %3970 = vmatmul.mubr.bf16.gmra.mxu0 %v2921
        %v3971 = vpop.f32.mrf.mxu0
        %v3972 = vadd.f32 %v2933, %v3971
        %v3973 = vpop.f32.mrf.mxu0
        %v3974 = vadd.f32 %v2937, %v3973
        %v3975 = vpop.f32.mrf.mxu0
        %v3976 = vadd.f32 %v2933, %v3975
        %v3977 = vpop.f32.mrf.mxu0
        %v3978 = vadd.f32 %v2937, %v3977
        %3979 = vdwg.mxu0
        %3980 = vmatprep.subr.bf16.mxu0 %v3207
        %3981 = vmatpush1.bf16.msra.mxu0 %v3206
        %3982 = vmatprep.subr.bf16.mxu0 %v3199
        %3983 = vmatpush1.bf16.msra.mxu0 %v3198
        %3984 = vmatprep.subr.bf16.mxu0 %v3191
        %3985 = vmatpush1.bf16.msra.mxu0 %v3190
        %3986 = vmatprep.subr.bf16.mxu0 %v3183
        %3987 = vmatpush1.bf16.msra.mxu0 %v3182
        %3988 = vmatprep.subr.bf16.mxu0 %v3175
        %3989 = vmatpush1.bf16.msra.mxu0 %v3174
        %3990 = vmatprep.subr.bf16.mxu0 %v3167
        %3991 = vmatpush1.bf16.msra.mxu0 %v3166
        %3992 = vmatprep.subr.bf16.mxu0 %v3159
        %3993 = vmatpush1.bf16.msra.mxu0 %v3158
        %3994 = vmatprep.subr.bf16.mxu0 %v3151
        %3995 = vmatpush1.bf16.msra.mxu0 %v3150
        %3996 = vmatprep.subr.bf16.mxu0 0
        %3997 = vmatpush2.bf16.msra.mxu0 0
        %3998 = vmatprep.subr.bf16.mxu0 0
        %3999 = vmatpush2.bf16.msra.mxu0 0
        %4000 = vmatprep.subr.bf16.mxu0 0
        %4001 = vmatpush2.bf16.msra.mxu0 0
        %4002 = vmatprep.subr.bf16.mxu0 0
        %4003 = vmatpush2.bf16.msra.mxu0 0
        %4004 = vmatprep.subr.bf16.mxu0 0
        %4005 = vmatpush2.bf16.msra.mxu0 0
        %4006 = vmatprep.subr.bf16.mxu0 0
        %4007 = vmatpush2.bf16.msra.mxu0 0
        %4008 = vmatprep.subr.bf16.mxu0 0
        %4009 = vmatpush2.bf16.msra.mxu0 0
        %4010 = vmatprep.subr.bf16.mxu0 0
        %4011 = vmatpush2.bf16.msra.mxu0 0
        %4012 = vmatprep.mubr.bf16.mxu0 0
        %4013 = vmatmul.mubr.bf16.gmra.mxu0 %v2890
        %v4014 = vpop.f32.mrf.mxu0
        %v4015 = vadd.f32 %v2941, %v4014
        %v4016 = vpop.f32.mrf.mxu0
        %v4017 = vadd.f32 %v2945, %v4016
        %v4018 = vpop.f32.mrf.mxu0
        %v4019 = vadd.f32 %v2941, %v4018
        %v4020 = vpop.f32.mrf.mxu0
        %v4021 = vadd.f32 %v2945, %v4020
        %4022 = vmatprep.mubr.bf16.mxu0 0
        %4023 = vmatmul.mubr.bf16.gmra.mxu0 %v2891
        %v4024 = vpop.f32.mrf.mxu0
        %v4025 = vadd.f32 %v2941, %v4024
        %v4026 = vpop.f32.mrf.mxu0
        %v4027 = vadd.f32 %v2945, %v4026
        %v4028 = vpop.f32.mrf.mxu0
        %v4029 = vadd.f32 %v2941, %v4028
        %v4030 = vpop.f32.mrf.mxu0
        %v4031 = vadd.f32 %v2945, %v4030
        %4032 = vmatprep.mubr.bf16.mxu0 0
        %4033 = vmatmul.mubr.bf16.gmra.mxu0 %v2892
        %v4034 = vpop.f32.mrf.mxu0
        %v4035 = vadd.f32 %v2941, %v4034
        %v4036 = vpop.f32.mrf.mxu0
        %v4037 = vadd.f32 %v2945, %v4036
        %v4038 = vpop.f32.mrf.mxu0
        %v4039 = vadd.f32 %v2941, %v4038
        %v4040 = vpop.f32.mrf.mxu0
        %v4041 = vadd.f32 %v2945, %v4040
        %4042 = vmatprep.mubr.bf16.mxu0 0
        %4043 = vmatmul.mubr.bf16.gmra.mxu0 %v2893
        %v4044 = vpop.f32.mrf.mxu0
        %v4045 = vadd.f32 %v2941, %v4044
        %v4046 = vpop.f32.mrf.mxu0
        %v4047 = vadd.f32 %v2945, %v4046
        %v4048 = vpop.f32.mrf.mxu0
        %v4049 = vadd.f32 %v2941, %v4048
        %v4050 = vpop.f32.mrf.mxu0
        %v4051 = vadd.f32 %v2945, %v4050
        %4052 = vmatprep.mubr.bf16.mxu0 0
        %4053 = vmatmul.mubr.bf16.gmra.mxu0 %v2894
        %v4054 = vpop.f32.mrf.mxu0
        %v4055 = vadd.f32 %v2941, %v4054
        %v4056 = vpop.f32.mrf.mxu0
        %v4057 = vadd.f32 %v2945, %v4056
        %v4058 = vpop.f32.mrf.mxu0
        %v4059 = vadd.f32 %v2941, %v4058
        %v4060 = vpop.f32.mrf.mxu0
        %v4061 = vadd.f32 %v2945, %v4060
        %4062 = vmatprep.mubr.bf16.mxu0 0
        %4063 = vmatmul.mubr.bf16.gmra.mxu0 %v2895
        %v4064 = vpop.f32.mrf.mxu0
        %v4065 = vadd.f32 %v2941, %v4064
        %v4066 = vpop.f32.mrf.mxu0
        %v4067 = vadd.f32 %v2945, %v4066
        %v4068 = vpop.f32.mrf.mxu0
        %v4069 = vadd.f32 %v2941, %v4068
        %v4070 = vpop.f32.mrf.mxu0
        %v4071 = vadd.f32 %v2945, %v4070
        %4072 = vmatprep.mubr.bf16.mxu0 0
        %4073 = vmatmul.mubr.bf16.gmra.mxu0 %v2896
        %v4074 = vpop.f32.mrf.mxu0
        %v4075 = vadd.f32 %v2941, %v4074
        %v4076 = vpop.f32.mrf.mxu0
        %v4077 = vadd.f32 %v2945, %v4076
        %v4078 = vpop.f32.mrf.mxu0
        %v4079 = vadd.f32 %v2941, %v4078
        %v4080 = vpop.f32.mrf.mxu0
        %v4081 = vadd.f32 %v2945, %v4080
        %4082 = vmatprep.mubr.bf16.mxu0 0
        %4083 = vmatmul.mubr.bf16.gmra.mxu0 %v2897
        %v4084 = vpop.f32.mrf.mxu0
        %v4085 = vadd.f32 %v2941, %v4084
        %v4086 = vpop.f32.mrf.mxu0
        %v4087 = vadd.f32 %v2945, %v4086
        %v4088 = vpop.f32.mrf.mxu0
        %v4089 = vadd.f32 %v2941, %v4088
        %v4090 = vpop.f32.mrf.mxu0
        %v4091 = vadd.f32 %v2945, %v4090
        %4092 = vmatprep.mubr.bf16.mxu0 0
        %4093 = vmatmul.mubr.bf16.gmra.mxu0 %v2898
        %v4094 = vpop.f32.mrf.mxu0
        %v4095 = vadd.f32 %v2941, %v4094
        %v4096 = vpop.f32.mrf.mxu0
        %v4097 = vadd.f32 %v2945, %v4096
        %v4098 = vpop.f32.mrf.mxu0
        %v4099 = vadd.f32 %v2941, %v4098
        %v4100 = vpop.f32.mrf.mxu0
        %v4101 = vadd.f32 %v2945, %v4100
        %4102 = vmatprep.mubr.bf16.mxu0 0
        %4103 = vmatmul.mubr.bf16.gmra.mxu0 %v2899
        %v4104 = vpop.f32.mrf.mxu0
        %v4105 = vadd.f32 %v2941, %v4104
        %v4106 = vpop.f32.mrf.mxu0
        %v4107 = vadd.f32 %v2945, %v4106
        %v4108 = vpop.f32.mrf.mxu0
        %v4109 = vadd.f32 %v2941, %v4108
        %v4110 = vpop.f32.mrf.mxu0
        %v4111 = vadd.f32 %v2945, %v4110
        %4112 = vmatprep.mubr.bf16.mxu0 0
        %4113 = vmatmul.mubr.bf16.gmra.mxu0 %v2900
        %v4114 = vpop.f32.mrf.mxu0
        %v4115 = vadd.f32 %v2941, %v4114
        %v4116 = vpop.f32.mrf.mxu0
        %v4117 = vadd.f32 %v2945, %v4116
        %v4118 = vpop.f32.mrf.mxu0
        %v4119 = vadd.f32 %v2941, %v4118
        %v4120 = vpop.f32.mrf.mxu0
        %v4121 = vadd.f32 %v2945, %v4120
        %4122 = vmatprep.mubr.bf16.mxu0 0
        %4123 = vmatmul.mubr.bf16.gmra.mxu0 %v2901
        %v4124 = vpop.f32.mrf.mxu0
        %v4125 = vadd.f32 %v2941, %v4124
        %v4126 = vpop.f32.mrf.mxu0
        %v4127 = vadd.f32 %v2945, %v4126
        %v4128 = vpop.f32.mrf.mxu0
        %v4129 = vadd.f32 %v2941, %v4128
        %v4130 = vpop.f32.mrf.mxu0
        %v4131 = vadd.f32 %v2945, %v4130
        %4132 = vmatprep.mubr.bf16.mxu0 0
        %4133 = vmatmul.mubr.bf16.gmra.mxu0 %v2902
        %v4134 = vpop.f32.mrf.mxu0
        %v4135 = vadd.f32 %v2941, %v4134
        %v4136 = vpop.f32.mrf.mxu0
        %v4137 = vadd.f32 %v2945, %v4136
        %v4138 = vpop.f32.mrf.mxu0
        %v4139 = vadd.f32 %v2941, %v4138
        %v4140 = vpop.f32.mrf.mxu0
        %v4141 = vadd.f32 %v2945, %v4140
        %4142 = vmatprep.mubr.bf16.mxu0 0
        %4143 = vmatmul.mubr.bf16.gmra.mxu0 %v2903
        %v4144 = vpop.f32.mrf.mxu0
        %v4145 = vadd.f32 %v2941, %v4144
        %v4146 = vpop.f32.mrf.mxu0
        %v4147 = vadd.f32 %v2945, %v4146
        %v4148 = vpop.f32.mrf.mxu0
        %v4149 = vadd.f32 %v2941, %v4148
        %v4150 = vpop.f32.mrf.mxu0
        %v4151 = vadd.f32 %v2945, %v4150
        %4152 = vmatprep.mubr.bf16.mxu0 0
        %4153 = vmatmul.mubr.bf16.gmra.mxu0 %v2904
        %v4154 = vpop.f32.mrf.mxu0
        %v4155 = vadd.f32 %v2941, %v4154
        %v4156 = vpop.f32.mrf.mxu0
        %v4157 = vadd.f32 %v2945, %v4156
        %v4158 = vpop.f32.mrf.mxu0
        %v4159 = vadd.f32 %v2941, %v4158
        %v4160 = vpop.f32.mrf.mxu0
        %v4161 = vadd.f32 %v2945, %v4160
        %4162 = vmatprep.mubr.bf16.mxu0 0
        %4163 = vmatmul.mubr.bf16.gmra.mxu0 %v2905
        %v4164 = vpop.f32.mrf.mxu0
        %v4165 = vadd.f32 %v2941, %v4164
        %v4166 = vpop.f32.mrf.mxu0
        %v4167 = vadd.f32 %v2945, %v4166
        %v4168 = vpop.f32.mrf.mxu0
        %v4169 = vadd.f32 %v2941, %v4168
        %v4170 = vpop.f32.mrf.mxu0
        %v4171 = vadd.f32 %v2945, %v4170
        %4172 = vmatprep.mubr.bf16.mxu0 0
        %4173 = vmatmul.mubr.bf16.gmra.mxu0 %v2906
        %v4174 = vpop.f32.mrf.mxu0
        %v4175 = vadd.f32 %v2941, %v4174
        %v4176 = vpop.f32.mrf.mxu0
        %v4177 = vadd.f32 %v2945, %v4176
        %v4178 = vpop.f32.mrf.mxu0
        %v4179 = vadd.f32 %v2941, %v4178
        %v4180 = vpop.f32.mrf.mxu0
        %v4181 = vadd.f32 %v2945, %v4180
        %4182 = vmatprep.mubr.bf16.mxu0 0
        %4183 = vmatmul.mubr.bf16.gmra.mxu0 %v2907
        %v4184 = vpop.f32.mrf.mxu0
        %v4185 = vadd.f32 %v2941, %v4184
        %v4186 = vpop.f32.mrf.mxu0
        %v4187 = vadd.f32 %v2945, %v4186
        %v4188 = vpop.f32.mrf.mxu0
        %v4189 = vadd.f32 %v2941, %v4188
        %v4190 = vpop.f32.mrf.mxu0
        %v4191 = vadd.f32 %v2945, %v4190
        %4192 = vmatprep.mubr.bf16.mxu0 0
        %4193 = vmatmul.mubr.bf16.gmra.mxu0 %v2908
        %v4194 = vpop.f32.mrf.mxu0
        %v4195 = vadd.f32 %v2941, %v4194
        %v4196 = vpop.f32.mrf.mxu0
        %v4197 = vadd.f32 %v2945, %v4196
        %v4198 = vpop.f32.mrf.mxu0
        %v4199 = vadd.f32 %v2941, %v4198
        %v4200 = vpop.f32.mrf.mxu0
        %v4201 = vadd.f32 %v2945, %v4200
        %4202 = vmatprep.mubr.bf16.mxu0 0
        %4203 = vmatmul.mubr.bf16.gmra.mxu0 %v2909
        %v4204 = vpop.f32.mrf.mxu0
        %v4205 = vadd.f32 %v2941, %v4204
        %v4206 = vpop.f32.mrf.mxu0
        %v4207 = vadd.f32 %v2945, %v4206
        %v4208 = vpop.f32.mrf.mxu0
        %v4209 = vadd.f32 %v2941, %v4208
        %v4210 = vpop.f32.mrf.mxu0
        %v4211 = vadd.f32 %v2945, %v4210
        %4212 = vmatprep.mubr.bf16.mxu0 0
        %4213 = vmatmul.mubr.bf16.gmra.mxu0 %v2910
        %v4214 = vpop.f32.mrf.mxu0
        %v4215 = vadd.f32 %v2941, %v4214
        %v4216 = vpop.f32.mrf.mxu0
        %v4217 = vadd.f32 %v2945, %v4216
        %v4218 = vpop.f32.mrf.mxu0
        %v4219 = vadd.f32 %v2941, %v4218
        %v4220 = vpop.f32.mrf.mxu0
        %v4221 = vadd.f32 %v2945, %v4220
        %4222 = vmatprep.mubr.bf16.mxu0 0
        %4223 = vmatmul.mubr.bf16.gmra.mxu0 %v2911
        %v4224 = vpop.f32.mrf.mxu0
        %v4225 = vadd.f32 %v2941, %v4224
        %v4226 = vpop.f32.mrf.mxu0
        %v4227 = vadd.f32 %v2945, %v4226
        %v4228 = vpop.f32.mrf.mxu0
        %v4229 = vadd.f32 %v2941, %v4228
        %v4230 = vpop.f32.mrf.mxu0
        %v4231 = vadd.f32 %v2945, %v4230
        %4232 = vmatprep.mubr.bf16.mxu0 0
        %4233 = vmatmul.mubr.bf16.gmra.mxu0 %v2912
        %v4234 = vpop.f32.mrf.mxu0
        %v4235 = vadd.f32 %v2941, %v4234
        %v4236 = vpop.f32.mrf.mxu0
        %v4237 = vadd.f32 %v2945, %v4236
        %v4238 = vpop.f32.mrf.mxu0
        %v4239 = vadd.f32 %v2941, %v4238
        %v4240 = vpop.f32.mrf.mxu0
        %v4241 = vadd.f32 %v2945, %v4240
        %4242 = vmatprep.mubr.bf16.mxu0 0
        %4243 = vmatmul.mubr.bf16.gmra.mxu0 %v2913
        %v4244 = vpop.f32.mrf.mxu0
        %v4245 = vadd.f32 %v2941, %v4244
        %v4246 = vpop.f32.mrf.mxu0
        %v4247 = vadd.f32 %v2945, %v4246
        %v4248 = vpop.f32.mrf.mxu0
        %v4249 = vadd.f32 %v2941, %v4248
        %v4250 = vpop.f32.mrf.mxu0
        %v4251 = vadd.f32 %v2945, %v4250
        %4252 = vmatprep.mubr.bf16.mxu0 0
        %4253 = vmatmul.mubr.bf16.gmra.mxu0 %v2914
        %v4254 = vpop.f32.mrf.mxu0
        %v4255 = vadd.f32 %v2941, %v4254
        %v4256 = vpop.f32.mrf.mxu0
        %v4257 = vadd.f32 %v2945, %v4256
        %v4258 = vpop.f32.mrf.mxu0
        %v4259 = vadd.f32 %v2941, %v4258
        %v4260 = vpop.f32.mrf.mxu0
        %v4261 = vadd.f32 %v2945, %v4260
        %4262 = vmatprep.mubr.bf16.mxu0 0
        %4263 = vmatmul.mubr.bf16.gmra.mxu0 %v2915
        %v4264 = vpop.f32.mrf.mxu0
        %v4265 = vadd.f32 %v2941, %v4264
        %v4266 = vpop.f32.mrf.mxu0
        %v4267 = vadd.f32 %v2945, %v4266
        %v4268 = vpop.f32.mrf.mxu0
        %v4269 = vadd.f32 %v2941, %v4268
        %v4270 = vpop.f32.mrf.mxu0
        %v4271 = vadd.f32 %v2945, %v4270
        %4272 = vmatprep.mubr.bf16.mxu0 0
        %4273 = vmatmul.mubr.bf16.gmra.mxu0 %v2916
        %v4274 = vpop.f32.mrf.mxu0
        %v4275 = vadd.f32 %v2941, %v4274
        %v4276 = vpop.f32.mrf.mxu0
        %v4277 = vadd.f32 %v2945, %v4276
        %v4278 = vpop.f32.mrf.mxu0
        %v4279 = vadd.f32 %v2941, %v4278
        %v4280 = vpop.f32.mrf.mxu0
        %v4281 = vadd.f32 %v2945, %v4280
        %4282 = vmatprep.mubr.bf16.mxu0 0
        %4283 = vmatmul.mubr.bf16.gmra.mxu0 %v2917
        %v4284 = vpop.f32.mrf.mxu0
        %v4285 = vadd.f32 %v2941, %v4284
        %v4286 = vpop.f32.mrf.mxu0
        %v4287 = vadd.f32 %v2945, %v4286
        %v4288 = vpop.f32.mrf.mxu0
        %v4289 = vadd.f32 %v2941, %v4288
        %v4290 = vpop.f32.mrf.mxu0
        %v4291 = vadd.f32 %v2945, %v4290
        %4292 = vmatprep.mubr.bf16.mxu0 0
        %4293 = vmatmul.mubr.bf16.gmra.mxu0 %v2918
        %v4294 = vpop.f32.mrf.mxu0
        %v4295 = vadd.f32 %v2941, %v4294
        %v4296 = vpop.f32.mrf.mxu0
        %v4297 = vadd.f32 %v2945, %v4296
        %v4298 = vpop.f32.mrf.mxu0
        %v4299 = vadd.f32 %v2941, %v4298
        %v4300 = vpop.f32.mrf.mxu0
        %v4301 = vadd.f32 %v2945, %v4300
        %4302 = vmatprep.mubr.bf16.mxu0 0
        %4303 = vmatmul.mubr.bf16.gmra.mxu0 %v2919
        %v4304 = vpop.f32.mrf.mxu0
        %v4305 = vadd.f32 %v2941, %v4304
        %v4306 = vpop.f32.mrf.mxu0
        %v4307 = vadd.f32 %v2945, %v4306
        %v4308 = vpop.f32.mrf.mxu0
        %v4309 = vadd.f32 %v2941, %v4308
        %v4310 = vpop.f32.mrf.mxu0
        %v4311 = vadd.f32 %v2945, %v4310
        %4312 = vmatprep.mubr.bf16.mxu0 0
        %4313 = vmatmul.mubr.bf16.gmra.mxu0 %v2920
        %v4314 = vpop.f32.mrf.mxu0
        %v4315 = vadd.f32 %v2941, %v4314
        %v4316 = vpop.f32.mrf.mxu0
        %v4317 = vadd.f32 %v2945, %v4316
        %v4318 = vpop.f32.mrf.mxu0
        %v4319 = vadd.f32 %v2941, %v4318
        %v4320 = vpop.f32.mrf.mxu0
        %v4321 = vadd.f32 %v2945, %v4320
        %4322 = vmatprep.mubr.bf16.mxu0 0
        %4323 = vmatmul.mubr.bf16.gmra.mxu0 %v2921
        %v4324 = vpop.f32.mrf.mxu0
        %v4325 = vadd.f32 %v2941, %v4324
        %v4326 = vpop.f32.mrf.mxu0
        %v4327 = vadd.f32 %v2945, %v4326
        %v4328 = vpop.f32.mrf.mxu0
        %v4329 = vadd.f32 %v2941, %v4328
        %v4330 = vpop.f32.mrf.mxu0
        %v4331 = vadd.f32 %v2945, %v4330
        %4332 = vdwg.mxu0
        %4333 = vmatprep.subr.bf16.mxu0 %v3209
        %4334 = vmatpush1.bf16.msra.mxu0 %v3208
        %4335 = vmatprep.subr.bf16.mxu0 %v3201
        %4336 = vmatpush1.bf16.msra.mxu0 %v3200
        %4337 = vmatprep.subr.bf16.mxu0 %v3193
        %4338 = vmatpush1.bf16.msra.mxu0 %v3192
        %4339 = vmatprep.subr.bf16.mxu0 %v3185
        %4340 = vmatpush1.bf16.msra.mxu0 %v3184
        %4341 = vmatprep.subr.bf16.mxu0 %v3177
        %4342 = vmatpush1.bf16.msra.mxu0 %v3176
        %4343 = vmatprep.subr.bf16.mxu0 %v3169
        %4344 = vmatpush1.bf16.msra.mxu0 %v3168
        %4345 = vmatprep.subr.bf16.mxu0 %v3161
        %4346 = vmatpush1.bf16.msra.mxu0 %v3160
        %4347 = vmatprep.subr.bf16.mxu0 %v3153
        %4348 = vmatpush1.bf16.msra.mxu0 %v3152
        %4349 = vmatprep.subr.bf16.mxu0 0
        %4350 = vmatpush2.bf16.msra.mxu0 0
        %4351 = vmatprep.subr.bf16.mxu0 0
        %4352 = vmatpush2.bf16.msra.mxu0 0
        %4353 = vmatprep.subr.bf16.mxu0 0
        %4354 = vmatpush2.bf16.msra.mxu0 0
        %4355 = vmatprep.subr.bf16.mxu0 0
        %4356 = vmatpush2.bf16.msra.mxu0 0
        %4357 = vmatprep.subr.bf16.mxu0 0
        %4358 = vmatpush2.bf16.msra.mxu0 0
        %4359 = vmatprep.subr.bf16.mxu0 0
        %4360 = vmatpush2.bf16.msra.mxu0 0
        %4361 = vmatprep.subr.bf16.mxu0 0
        %4362 = vmatpush2.bf16.msra.mxu0 0
        %4363 = vmatprep.subr.bf16.mxu0 0
        %4364 = vmatpush2.bf16.msra.mxu0 0
        %4365 = vmatprep.mubr.bf16.mxu0 0
        %4366 = vmatmul.mubr.bf16.gmra.mxu0 %v2890
        %v4367 = vpop.f32.mrf.mxu0
        %v4368 = vadd.f32 %v2949, %v4367
        %v4369 = vpop.f32.mrf.mxu0
        %v4370 = vadd.f32 %v2953, %v4369
        %v4371 = vpop.f32.mrf.mxu0
        %v4372 = vadd.f32 %v2949, %v4371
        %v4373 = vpop.f32.mrf.mxu0
        %v4374 = vadd.f32 %v2953, %v4373
        %4375 = vmatprep.mubr.bf16.mxu0 0
        %4376 = vmatmul.mubr.bf16.gmra.mxu0 %v2891
        %v4377 = vpop.f32.mrf.mxu0
        %v4378 = vadd.f32 %v2949, %v4377
        %v4379 = vpop.f32.mrf.mxu0
        %v4380 = vadd.f32 %v2953, %v4379
        %v4381 = vpop.f32.mrf.mxu0
        %v4382 = vadd.f32 %v2949, %v4381
        %v4383 = vpop.f32.mrf.mxu0
        %v4384 = vadd.f32 %v2953, %v4383
        %4385 = vmatprep.mubr.bf16.mxu0 0
        %4386 = vmatmul.mubr.bf16.gmra.mxu0 %v2892
        %v4387 = vpop.f32.mrf.mxu0
        %v4388 = vadd.f32 %v2949, %v4387
        %v4389 = vpop.f32.mrf.mxu0
        %v4390 = vadd.f32 %v2953, %v4389
        %v4391 = vpop.f32.mrf.mxu0
        %v4392 = vadd.f32 %v2949, %v4391
        %v4393 = vpop.f32.mrf.mxu0
        %v4394 = vadd.f32 %v2953, %v4393
        %4395 = vmatprep.mubr.bf16.mxu0 0
        %4396 = vmatmul.mubr.bf16.gmra.mxu0 %v2893
        %v4397 = vpop.f32.mrf.mxu0
        %v4398 = vadd.f32 %v2949, %v4397
        %v4399 = vpop.f32.mrf.mxu0
        %v4400 = vadd.f32 %v2953, %v4399
        %v4401 = vpop.f32.mrf.mxu0
        %v4402 = vadd.f32 %v2949, %v4401
        %v4403 = vpop.f32.mrf.mxu0
        %v4404 = vadd.f32 %v2953, %v4403
        %4405 = vmatprep.mubr.bf16.mxu0 0
        %4406 = vmatmul.mubr.bf16.gmra.mxu0 %v2894
        %v4407 = vpop.f32.mrf.mxu0
        %v4408 = vadd.f32 %v2949, %v4407
        %v4409 = vpop.f32.mrf.mxu0
        %v4410 = vadd.f32 %v2953, %v4409
        %v4411 = vpop.f32.mrf.mxu0
        %v4412 = vadd.f32 %v2949, %v4411
        %v4413 = vpop.f32.mrf.mxu0
        %v4414 = vadd.f32 %v2953, %v4413
        %4415 = vmatprep.mubr.bf16.mxu0 0
        %4416 = vmatmul.mubr.bf16.gmra.mxu0 %v2895
        %v4417 = vpop.f32.mrf.mxu0
        %v4418 = vadd.f32 %v2949, %v4417
        %v4419 = vpop.f32.mrf.mxu0
        %v4420 = vadd.f32 %v2953, %v4419
        %v4421 = vpop.f32.mrf.mxu0
        %v4422 = vadd.f32 %v2949, %v4421
        %v4423 = vpop.f32.mrf.mxu0
        %v4424 = vadd.f32 %v2953, %v4423
        %4425 = vmatprep.mubr.bf16.mxu0 0
        %4426 = vmatmul.mubr.bf16.gmra.mxu0 %v2896
        %v4427 = vpop.f32.mrf.mxu0
        %v4428 = vadd.f32 %v2949, %v4427
        %v4429 = vpop.f32.mrf.mxu0
        %v4430 = vadd.f32 %v2953, %v4429
        %v4431 = vpop.f32.mrf.mxu0
        %v4432 = vadd.f32 %v2949, %v4431
        %v4433 = vpop.f32.mrf.mxu0
        %v4434 = vadd.f32 %v2953, %v4433
        %4435 = vmatprep.mubr.bf16.mxu0 0
        %4436 = vmatmul.mubr.bf16.gmra.mxu0 %v2897
        %v4437 = vpop.f32.mrf.mxu0
        %v4438 = vadd.f32 %v2949, %v4437
        %v4439 = vpop.f32.mrf.mxu0
        %v4440 = vadd.f32 %v2953, %v4439
        %v4441 = vpop.f32.mrf.mxu0
        %v4442 = vadd.f32 %v2949, %v4441
        %v4443 = vpop.f32.mrf.mxu0
        %v4444 = vadd.f32 %v2953, %v4443
        %4445 = vmatprep.mubr.bf16.mxu0 0
        %4446 = vmatmul.mubr.bf16.gmra.mxu0 %v2898
        %v4447 = vpop.f32.mrf.mxu0
        %v4448 = vadd.f32 %v2949, %v4447
        %v4449 = vpop.f32.mrf.mxu0
        %v4450 = vadd.f32 %v2953, %v4449
        %v4451 = vpop.f32.mrf.mxu0
        %v4452 = vadd.f32 %v2949, %v4451
        %v4453 = vpop.f32.mrf.mxu0
        %v4454 = vadd.f32 %v2953, %v4453
        %4455 = vmatprep.mubr.bf16.mxu0 0
        %4456 = vmatmul.mubr.bf16.gmra.mxu0 %v2899
        %v4457 = vpop.f32.mrf.mxu0
        %v4458 = vadd.f32 %v2949, %v4457
        %v4459 = vpop.f32.mrf.mxu0
        %v4460 = vadd.f32 %v2953, %v4459
        %v4461 = vpop.f32.mrf.mxu0
        %v4462 = vadd.f32 %v2949, %v4461
        %v4463 = vpop.f32.mrf.mxu0
        %v4464 = vadd.f32 %v2953, %v4463
        %4465 = vmatprep.mubr.bf16.mxu0 0
        %4466 = vmatmul.mubr.bf16.gmra.mxu0 %v2900
        %v4467 = vpop.f32.mrf.mxu0
        %v4468 = vadd.f32 %v2949, %v4467
        %v4469 = vpop.f32.mrf.mxu0
        %v4470 = vadd.f32 %v2953, %v4469
        %v4471 = vpop.f32.mrf.mxu0
        %v4472 = vadd.f32 %v2949, %v4471
        %v4473 = vpop.f32.mrf.mxu0
        %v4474 = vadd.f32 %v2953, %v4473
        %4475 = vmatprep.mubr.bf16.mxu0 0
        %4476 = vmatmul.mubr.bf16.gmra.mxu0 %v2901
        %v4477 = vpop.f32.mrf.mxu0
        %v4478 = vadd.f32 %v2949, %v4477
        %v4479 = vpop.f32.mrf.mxu0
        %v4480 = vadd.f32 %v2953, %v4479
        %v4481 = vpop.f32.mrf.mxu0
        %v4482 = vadd.f32 %v2949, %v4481
        %v4483 = vpop.f32.mrf.mxu0
        %v4484 = vadd.f32 %v2953, %v4483
        %4485 = vmatprep.mubr.bf16.mxu0 0
        %4486 = vmatmul.mubr.bf16.gmra.mxu0 %v2902
        %v4487 = vpop.f32.mrf.mxu0
        %v4488 = vadd.f32 %v2949, %v4487
        %v4489 = vpop.f32.mrf.mxu0
        %v4490 = vadd.f32 %v2953, %v4489
        %v4491 = vpop.f32.mrf.mxu0
        %v4492 = vadd.f32 %v2949, %v4491
        %v4493 = vpop.f32.mrf.mxu0
        %v4494 = vadd.f32 %v2953, %v4493
        %4495 = vmatprep.mubr.bf16.mxu0 0
        %4496 = vmatmul.mubr.bf16.gmra.mxu0 %v2903
        %v4497 = vpop.f32.mrf.mxu0
        %v4498 = vadd.f32 %v2949, %v4497
        %v4499 = vpop.f32.mrf.mxu0
        %v4500 = vadd.f32 %v2953, %v4499
        %v4501 = vpop.f32.mrf.mxu0
        %v4502 = vadd.f32 %v2949, %v4501
        %v4503 = vpop.f32.mrf.mxu0
        %v4504 = vadd.f32 %v2953, %v4503
        %4505 = vmatprep.mubr.bf16.mxu0 0
        %4506 = vmatmul.mubr.bf16.gmra.mxu0 %v2904
        %v4507 = vpop.f32.mrf.mxu0
        %v4508 = vadd.f32 %v2949, %v4507
        %v4509 = vpop.f32.mrf.mxu0
        %v4510 = vadd.f32 %v2953, %v4509
        %v4511 = vpop.f32.mrf.mxu0
        %v4512 = vadd.f32 %v2949, %v4511
        %v4513 = vpop.f32.mrf.mxu0
        %v4514 = vadd.f32 %v2953, %v4513
        %4515 = vmatprep.mubr.bf16.mxu0 0
        %4516 = vmatmul.mubr.bf16.gmra.mxu0 %v2905
        %v4517 = vpop.f32.mrf.mxu0
        %v4518 = vadd.f32 %v2949, %v4517
        %v4519 = vpop.f32.mrf.mxu0
        %v4520 = vadd.f32 %v2953, %v4519
        %v4521 = vpop.f32.mrf.mxu0
        %v4522 = vadd.f32 %v2949, %v4521
        %v4523 = vpop.f32.mrf.mxu0
        %v4524 = vadd.f32 %v2953, %v4523
        %4525 = vmatprep.mubr.bf16.mxu0 0
        %4526 = vmatmul.mubr.bf16.gmra.mxu0 %v2906
        %v4527 = vpop.f32.mrf.mxu0
        %v4528 = vadd.f32 %v2949, %v4527
        %v4529 = vpop.f32.mrf.mxu0
        %v4530 = vadd.f32 %v2953, %v4529
        %v4531 = vpop.f32.mrf.mxu0
        %v4532 = vadd.f32 %v2949, %v4531
        %v4533 = vpop.f32.mrf.mxu0
        %v4534 = vadd.f32 %v2953, %v4533
        %4535 = vmatprep.mubr.bf16.mxu0 0
        %4536 = vmatmul.mubr.bf16.gmra.mxu0 %v2907
        %v4537 = vpop.f32.mrf.mxu0
        %v4538 = vadd.f32 %v2949, %v4537
        %v4539 = vpop.f32.mrf.mxu0
        %v4540 = vadd.f32 %v2953, %v4539
        %v4541 = vpop.f32.mrf.mxu0
        %v4542 = vadd.f32 %v2949, %v4541
        %v4543 = vpop.f32.mrf.mxu0
        %v4544 = vadd.f32 %v2953, %v4543
        %4545 = vmatprep.mubr.bf16.mxu0 0
        %4546 = vmatmul.mubr.bf16.gmra.mxu0 %v2908
        %v4547 = vpop.f32.mrf.mxu0
        %v4548 = vadd.f32 %v2949, %v4547
        %v4549 = vpop.f32.mrf.mxu0
        %v4550 = vadd.f32 %v2953, %v4549
        %v4551 = vpop.f32.mrf.mxu0
        %v4552 = vadd.f32 %v2949, %v4551
        %v4553 = vpop.f32.mrf.mxu0
        %v4554 = vadd.f32 %v2953, %v4553
        %4555 = vmatprep.mubr.bf16.mxu0 0
        %4556 = vmatmul.mubr.bf16.gmra.mxu0 %v2909
        %v4557 = vpop.f32.mrf.mxu0
        %v4558 = vadd.f32 %v2949, %v4557
        %v4559 = vpop.f32.mrf.mxu0
        %v4560 = vadd.f32 %v2953, %v4559
        %v4561 = vpop.f32.mrf.mxu0
        %v4562 = vadd.f32 %v2949, %v4561
        %v4563 = vpop.f32.mrf.mxu0
        %v4564 = vadd.f32 %v2953, %v4563
        %4565 = vmatprep.mubr.bf16.mxu0 0
        %4566 = vmatmul.mubr.bf16.gmra.mxu0 %v2910
        %v4567 = vpop.f32.mrf.mxu0
        %v4568 = vadd.f32 %v2949, %v4567
        %v4569 = vpop.f32.mrf.mxu0
        %v4570 = vadd.f32 %v2953, %v4569
        %v4571 = vpop.f32.mrf.mxu0
        %v4572 = vadd.f32 %v2949, %v4571
        %v4573 = vpop.f32.mrf.mxu0
        %v4574 = vadd.f32 %v2953, %v4573
        %4575 = vmatprep.mubr.bf16.mxu0 0
        %4576 = vmatmul.mubr.bf16.gmra.mxu0 %v2911
        %v4577 = vpop.f32.mrf.mxu0
        %v4578 = vadd.f32 %v2949, %v4577
        %v4579 = vpop.f32.mrf.mxu0
        %v4580 = vadd.f32 %v2953, %v4579
        %v4581 = vpop.f32.mrf.mxu0
        %v4582 = vadd.f32 %v2949, %v4581
        %v4583 = vpop.f32.mrf.mxu0
        %v4584 = vadd.f32 %v2953, %v4583
        %4585 = vmatprep.mubr.bf16.mxu0 0
        %4586 = vmatmul.mubr.bf16.gmra.mxu0 %v2912
        %v4587 = vpop.f32.mrf.mxu0
        %v4588 = vadd.f32 %v2949, %v4587
        %v4589 = vpop.f32.mrf.mxu0
        %v4590 = vadd.f32 %v2953, %v4589
        %v4591 = vpop.f32.mrf.mxu0
        %v4592 = vadd.f32 %v2949, %v4591
        %v4593 = vpop.f32.mrf.mxu0
        %v4594 = vadd.f32 %v2953, %v4593
        %4595 = vmatprep.mubr.bf16.mxu0 0
        %4596 = vmatmul.mubr.bf16.gmra.mxu0 %v2913
        %v4597 = vpop.f32.mrf.mxu0
        %v4598 = vadd.f32 %v2949, %v4597
        %v4599 = vpop.f32.mrf.mxu0
        %v4600 = vadd.f32 %v2953, %v4599
        %v4601 = vpop.f32.mrf.mxu0
        %v4602 = vadd.f32 %v2949, %v4601
        %v4603 = vpop.f32.mrf.mxu0
        %v4604 = vadd.f32 %v2953, %v4603
        %4605 = vmatprep.mubr.bf16.mxu0 0
        %4606 = vmatmul.mubr.bf16.gmra.mxu0 %v2914
        %v4607 = vpop.f32.mrf.mxu0
        %v4608 = vadd.f32 %v2949, %v4607
        %v4609 = vpop.f32.mrf.mxu0
        %v4610 = vadd.f32 %v2953, %v4609
        %v4611 = vpop.f32.mrf.mxu0
        %v4612 = vadd.f32 %v2949, %v4611
        %v4613 = vpop.f32.mrf.mxu0
        %v4614 = vadd.f32 %v2953, %v4613
        %4615 = vmatprep.mubr.bf16.mxu0 0
        %4616 = vmatmul.mubr.bf16.gmra.mxu0 %v2915
        %v4617 = vpop.f32.mrf.mxu0
        %v4618 = vadd.f32 %v2949, %v4617
        %v4619 = vpop.f32.mrf.mxu0
        %v4620 = vadd.f32 %v2953, %v4619
        %v4621 = vpop.f32.mrf.mxu0
        %v4622 = vadd.f32 %v2949, %v4621
        %v4623 = vpop.f32.mrf.mxu0
        %v4624 = vadd.f32 %v2953, %v4623
        %4625 = vmatprep.mubr.bf16.mxu0 0
        %4626 = vmatmul.mubr.bf16.gmra.mxu0 %v2916
        %v4627 = vpop.f32.mrf.mxu0
        %v4628 = vadd.f32 %v2949, %v4627
        %v4629 = vpop.f32.mrf.mxu0
        %v4630 = vadd.f32 %v2953, %v4629
        %v4631 = vpop.f32.mrf.mxu0
        %v4632 = vadd.f32 %v2949, %v4631
        %v4633 = vpop.f32.mrf.mxu0
        %v4634 = vadd.f32 %v2953, %v4633
        %4635 = vmatprep.mubr.bf16.mxu0 0
        %4636 = vmatmul.mubr.bf16.gmra.mxu0 %v2917
        %v4637 = vpop.f32.mrf.mxu0
        %v4638 = vadd.f32 %v2949, %v4637
        %v4639 = vpop.f32.mrf.mxu0
        %v4640 = vadd.f32 %v2953, %v4639
        %v4641 = vpop.f32.mrf.mxu0
        %v4642 = vadd.f32 %v2949, %v4641
        %v4643 = vpop.f32.mrf.mxu0
        %v4644 = vadd.f32 %v2953, %v4643
        %4645 = vmatprep.mubr.bf16.mxu0 0
        %4646 = vmatmul.mubr.bf16.gmra.mxu0 %v2918
        %v4647 = vpop.f32.mrf.mxu0
        %v4648 = vadd.f32 %v2949, %v4647
        %v4649 = vpop.f32.mrf.mxu0
        %v4650 = vadd.f32 %v2953, %v4649
        %v4651 = vpop.f32.mrf.mxu0
        %v4652 = vadd.f32 %v2949, %v4651
        %v4653 = vpop.f32.mrf.mxu0
        %v4654 = vadd.f32 %v2953, %v4653
        %4655 = vmatprep.mubr.bf16.mxu0 0
        %4656 = vmatmul.mubr.bf16.gmra.mxu0 %v2919
        %v4657 = vpop.f32.mrf.mxu0
        %v4658 = vadd.f32 %v2949, %v4657
        %v4659 = vpop.f32.mrf.mxu0
        %v4660 = vadd.f32 %v2953, %v4659
        %v4661 = vpop.f32.mrf.mxu0
        %v4662 = vadd.f32 %v2949, %v4661
        %v4663 = vpop.f32.mrf.mxu0
        %v4664 = vadd.f32 %v2953, %v4663
        %4665 = vmatprep.mubr.bf16.mxu0 0
        %4666 = vmatmul.mubr.bf16.gmra.mxu0 %v2920
        %v4667 = vpop.f32.mrf.mxu0
        %v4668 = vadd.f32 %v2949, %v4667
        %v4669 = vpop.f32.mrf.mxu0
        %v4670 = vadd.f32 %v2953, %v4669
        %v4671 = vpop.f32.mrf.mxu0
        %v4672 = vadd.f32 %v2949, %v4671
        %v4673 = vpop.f32.mrf.mxu0
        %v4674 = vadd.f32 %v2953, %v4673
        %4675 = vmatprep.mubr.bf16.mxu0 0
        %4676 = vmatmul.mubr.bf16.gmra.mxu0 %v2921
        %v4677 = vpop.f32.mrf.mxu0
        %v4678 = vadd.f32 %v2949, %v4677
        %v4679 = vpop.f32.mrf.mxu0
        %v4680 = vadd.f32 %v2953, %v4679
        %v4681 = vpop.f32.mrf.mxu0
        %v4682 = vadd.f32 %v2949, %v4681
        %v4683 = vpop.f32.mrf.mxu0
        %v4684 = vadd.f32 %v2953, %v4683
        %4685 = vdwg.mxu0
        %v4686 = vmax.f32 %v3309, %v3313
        %v4687 = vmax.f32 %v4686, %v3319
        %v4688 = vmax.f32 %v4687, %v3323
        %v4689 = vmax.f32 %v4688, %v3329
        %v4690 = vmax.f32 %v4689, %v3333
        %v4691 = vmax.f32 %v4690, %v3339
        %v4692 = vmax.f32 %v4691, %v3343
        %v4693 = vmax.f32 %v4692, %v3349
        %v4694 = vmax.f32 %v4693, %v3353
        %v4695 = vmax.f32 %v4694, %v3359
        %v4696 = vmax.f32 %v4695, %v3363
        %v4697 = vmax.f32 %v4696, %v3369
        %v4698 = vmax.f32 %v4697, %v3373
        %v4699 = vmax.f32 %v4698, %v3379
        %v4700 = vmax.f32 %v4699, %v3383
        %v4701 = vmax.f32 %v4700, %v3389
        %v4702 = vmax.f32 %v4701, %v3393
        %v4703 = vmax.f32 %v4702, %v3399
        %v4704 = vmax.f32 %v4703, %v3403
        %v4705 = vmax.f32 %v4704, %v3409
        %v4706 = vmax.f32 %v4705, %v3413
        %v4707 = vmax.f32 %v4706, %v3419
        %v4708 = vmax.f32 %v4707, %v3423
        %v4709 = vmax.f32 %v4708, %v3429
        %v4710 = vmax.f32 %v4709, %v3433
        %v4711 = vmax.f32 %v4710, %v3439
        %v4712 = vmax.f32 %v4711, %v3443
        %v4713 = vmax.f32 %v4712, %v3449
        %v4714 = vmax.f32 %v4713, %v3453
        %v4715 = vmax.f32 %v4714, %v3459
        %v4716 = vmax.f32 %v4715, %v3463
        %v4717 = vrot.slane %v4716, 4
        %v4718 = vmax.f32 %v4716, %v4717
        %v4719 = vrot.slane %v4718, 2
        %v4720 = vmax.f32 %v4718, %v4719
        %v4721 = vrot.slane %v4720, 1
        %v4722 = vmax.f32 %v4720, %v4721
        %v4723 = vmax.f32 %v3311, %v3315
        %v4724 = vmax.f32 %v4723, %v3321
        %v4725 = vmax.f32 %v4724, %v3325
        %v4726 = vmax.f32 %v4725, %v3331
        %v4727 = vmax.f32 %v4726, %v3335
        %v4728 = vmax.f32 %v4727, %v3341
        %v4729 = vmax.f32 %v4728, %v3345
        %v4730 = vmax.f32 %v4729, %v3351
        %v4731 = vmax.f32 %v4730, %v3355
        %v4732 = vmax.f32 %v4731, %v3361
        %v4733 = vmax.f32 %v4732, %v3365
        %v4734 = vmax.f32 %v4733, %v3371
        %v4735 = vmax.f32 %v4734, %v3375
        %v4736 = vmax.f32 %v4735, %v3381
        %v4737 = vmax.f32 %v4736, %v3385
        %v4738 = vmax.f32 %v4737, %v3391
        %v4739 = vmax.f32 %v4738, %v3395
        %v4740 = vmax.f32 %v4739, %v3401
        %v4741 = vmax.f32 %v4740, %v3405
        %v4742 = vmax.f32 %v4741, %v3411
        %v4743 = vmax.f32 %v4742, %v3415
        %v4744 = vmax.f32 %v4743, %v3421
        %v4745 = vmax.f32 %v4744, %v3425
        %v4746 = vmax.f32 %v4745, %v3431
        %v4747 = vmax.f32 %v4746, %v3435
        %v4748 = vmax.f32 %v4747, %v3441
        %v4749 = vmax.f32 %v4748, %v3445
        %v4750 = vmax.f32 %v4749, %v3451
        %v4751 = vmax.f32 %v4750, %v3455
        %v4752 = vmax.f32 %v4751, %v3461
        %v4753 = vmax.f32 %v4752, %v3465
        %v4754 = vrot.slane %v4753, 4
        %v4755 = vmax.f32 %v4753, %v4754
        %v4756 = vrot.slane %v4755, 2
        %v4757 = vmax.f32 %v4755, %v4756
        %v4758 = vrot.slane %v4757, 1
        %v4759 = vmax.f32 %v4757, %v4758
        %v4760 = vmax.f32 %v3662, %v3666
        %v4761 = vmax.f32 %v4760, %v3672
        %v4762 = vmax.f32 %v4761, %v3676
        %v4763 = vmax.f32 %v4762, %v3682
        %v4764 = vmax.f32 %v4763, %v3686
        %v4765 = vmax.f32 %v4764, %v3692
        %v4766 = vmax.f32 %v4765, %v3696
        %v4767 = vmax.f32 %v4766, %v3702
        %v4768 = vmax.f32 %v4767, %v3706
        %v4769 = vmax.f32 %v4768, %v3712
        %v4770 = vmax.f32 %v4769, %v3716
        %v4771 = vmax.f32 %v4770, %v3722
        %v4772 = vmax.f32 %v4771, %v3726
        %v4773 = vmax.f32 %v4772, %v3732
        %v4774 = vmax.f32 %v4773, %v3736
        %v4775 = vmax.f32 %v4774, %v3742
        %v4776 = vmax.f32 %v4775, %v3746
        %v4777 = vmax.f32 %v4776, %v3752
        %v4778 = vmax.f32 %v4777, %v3756
        %v4779 = vmax.f32 %v4778, %v3762
        %v4780 = vmax.f32 %v4779, %v3766
        %v4781 = vmax.f32 %v4780, %v3772
        %v4782 = vmax.f32 %v4781, %v3776
        %v4783 = vmax.f32 %v4782, %v3782
        %v4784 = vmax.f32 %v4783, %v3786
        %v4785 = vmax.f32 %v4784, %v3792
        %v4786 = vmax.f32 %v4785, %v3796
        %v4787 = vmax.f32 %v4786, %v3802
        %v4788 = vmax.f32 %v4787, %v3806
        %v4789 = vmax.f32 %v4788, %v3812
        %v4790 = vmax.f32 %v4789, %v3816
        %v4791 = vrot.slane %v4790, 4
        %v4792 = vmax.f32 %v4790, %v4791
        %v4793 = vrot.slane %v4792, 2
        %v4794 = vmax.f32 %v4792, %v4793
        %v4795 = vrot.slane %v4794, 1
        %v4796 = vmax.f32 %v4794, %v4795
        %v4797 = vmax.f32 %v3664, %v3668
        %v4798 = vmax.f32 %v4797, %v3674
        %v4799 = vmax.f32 %v4798, %v3678
        %v4800 = vmax.f32 %v4799, %v3684
        %v4801 = vmax.f32 %v4800, %v3688
        %v4802 = vmax.f32 %v4801, %v3694
        %v4803 = vmax.f32 %v4802, %v3698
        %v4804 = vmax.f32 %v4803, %v3704
        %v4805 = vmax.f32 %v4804, %v3708
        %v4806 = vmax.f32 %v4805, %v3714
        %v4807 = vmax.f32 %v4806, %v3718
        %v4808 = vmax.f32 %v4807, %v3724
        %v4809 = vmax.f32 %v4808, %v3728
        %v4810 = vmax.f32 %v4809, %v3734
        %v4811 = vmax.f32 %v4810, %v3738
        %v4812 = vmax.f32 %v4811, %v3744
        %v4813 = vmax.f32 %v4812, %v3748
        %v4814 = vmax.f32 %v4813, %v3754
        %v4815 = vmax.f32 %v4814, %v3758
        %v4816 = vmax.f32 %v4815, %v3764
        %v4817 = vmax.f32 %v4816, %v3768
        %v4818 = vmax.f32 %v4817, %v3774
        %v4819 = vmax.f32 %v4818, %v3778
        %v4820 = vmax.f32 %v4819, %v3784
        %v4821 = vmax.f32 %v4820, %v3788
        %v4822 = vmax.f32 %v4821, %v3794
        %v4823 = vmax.f32 %v4822, %v3798
        %v4824 = vmax.f32 %v4823, %v3804
        %v4825 = vmax.f32 %v4824, %v3808
        %v4826 = vmax.f32 %v4825, %v3814
        %v4827 = vmax.f32 %v4826, %v3818
        %v4828 = vrot.slane %v4827, 4
        %v4829 = vmax.f32 %v4827, %v4828
        %v4830 = vrot.slane %v4829, 2
        %v4831 = vmax.f32 %v4829, %v4830
        %v4832 = vrot.slane %v4831, 1
        %v4833 = vmax.f32 %v4831, %v4832
        %v4834 = vmax.f32 %v4015, %v4019
        %v4835 = vmax.f32 %v4834, %v4025
        %v4836 = vmax.f32 %v4835, %v4029
        %v4837 = vmax.f32 %v4836, %v4035
        %v4838 = vmax.f32 %v4837, %v4039
        %v4839 = vmax.f32 %v4838, %v4045
        %v4840 = vmax.f32 %v4839, %v4049
        %v4841 = vmax.f32 %v4840, %v4055
        %v4842 = vmax.f32 %v4841, %v4059
        %v4843 = vmax.f32 %v4842, %v4065
        %v4844 = vmax.f32 %v4843, %v4069
        %v4845 = vmax.f32 %v4844, %v4075
        %v4846 = vmax.f32 %v4845, %v4079
        %v4847 = vmax.f32 %v4846, %v4085
        %v4848 = vmax.f32 %v4847, %v4089
        %v4849 = vmax.f32 %v4848, %v4095
        %v4850 = vmax.f32 %v4849, %v4099
        %v4851 = vmax.f32 %v4850, %v4105
        %v4852 = vmax.f32 %v4851, %v4109
        %v4853 = vmax.f32 %v4852, %v4115
        %v4854 = vmax.f32 %v4853, %v4119
        %v4855 = vmax.f32 %v4854, %v4125
        %v4856 = vmax.f32 %v4855, %v4129
        %v4857 = vmax.f32 %v4856, %v4135
        %v4858 = vmax.f32 %v4857, %v4139
        %v4859 = vmax.f32 %v4858, %v4145
        %v4860 = vmax.f32 %v4859, %v4149
        %v4861 = vmax.f32 %v4860, %v4155
        %v4862 = vmax.f32 %v4861, %v4159
        %v4863 = vmax.f32 %v4862, %v4165
        %v4864 = vmax.f32 %v4863, %v4169
        %v4865 = vrot.slane %v4864, 4
        %v4866 = vmax.f32 %v4864, %v4865
        %v4867 = vrot.slane %v4866, 2
        %v4868 = vmax.f32 %v4866, %v4867
        %v4869 = vrot.slane %v4868, 1
        %v4870 = vmax.f32 %v4868, %v4869
        %v4871 = vmax.f32 %v4017, %v4021
        %v4872 = vmax.f32 %v4871, %v4027
        %v4873 = vmax.f32 %v4872, %v4031
        %v4874 = vmax.f32 %v4873, %v4037
        %v4875 = vmax.f32 %v4874, %v4041
        %v4876 = vmax.f32 %v4875, %v4047
        %v4877 = vmax.f32 %v4876, %v4051
        %v4878 = vmax.f32 %v4877, %v4057
        %v4879 = vmax.f32 %v4878, %v4061
        %v4880 = vmax.f32 %v4879, %v4067
        %v4881 = vmax.f32 %v4880, %v4071
        %v4882 = vmax.f32 %v4881, %v4077
        %v4883 = vmax.f32 %v4882, %v4081
        %v4884 = vmax.f32 %v4883, %v4087
        %v4885 = vmax.f32 %v4884, %v4091
        %v4886 = vmax.f32 %v4885, %v4097
        %v4887 = vmax.f32 %v4886, %v4101
        %v4888 = vmax.f32 %v4887, %v4107
        %v4889 = vmax.f32 %v4888, %v4111
        %v4890 = vmax.f32 %v4889, %v4117
        %v4891 = vmax.f32 %v4890, %v4121
        %v4892 = vmax.f32 %v4891, %v4127
        %v4893 = vmax.f32 %v4892, %v4131
        %v4894 = vmax.f32 %v4893, %v4137
        %v4895 = vmax.f32 %v4894, %v4141
        %v4896 = vmax.f32 %v4895, %v4147
        %v4897 = vmax.f32 %v4896, %v4151
        %v4898 = vmax.f32 %v4897, %v4157
        %v4899 = vmax.f32 %v4898, %v4161
        %v4900 = vmax.f32 %v4899, %v4167
        %v4901 = vmax.f32 %v4900, %v4171
        %v4902 = vrot.slane %v4901, 4
        %v4903 = vmax.f32 %v4901, %v4902
        %v4904 = vrot.slane %v4903, 2
        %v4905 = vmax.f32 %v4903, %v4904
        %v4906 = vrot.slane %v4905, 1
        %v4907 = vmax.f32 %v4905, %v4906
        %v4908 = vmax.f32 %v4368, %v4372
        %v4909 = vmax.f32 %v4908, %v4378
        %v4910 = vmax.f32 %v4909, %v4382
        %v4911 = vmax.f32 %v4910, %v4388
        %v4912 = vmax.f32 %v4911, %v4392
        %v4913 = vmax.f32 %v4912, %v4398
        %v4914 = vmax.f32 %v4913, %v4402
        %v4915 = vmax.f32 %v4914, %v4408
        %v4916 = vmax.f32 %v4915, %v4412
        %v4917 = vmax.f32 %v4916, %v4418
        %v4918 = vmax.f32 %v4917, %v4422
        %v4919 = vmax.f32 %v4918, %v4428
        %v4920 = vmax.f32 %v4919, %v4432
        %v4921 = vmax.f32 %v4920, %v4438
        %v4922 = vmax.f32 %v4921, %v4442
        %v4923 = vmax.f32 %v4922, %v4448
        %v4924 = vmax.f32 %v4923, %v4452
        %v4925 = vmax.f32 %v4924, %v4458
        %v4926 = vmax.f32 %v4925, %v4462
        %v4927 = vmax.f32 %v4926, %v4468
        %v4928 = vmax.f32 %v4927, %v4472
        %v4929 = vmax.f32 %v4928, %v4478
        %v4930 = vmax.f32 %v4929, %v4482
        %v4931 = vmax.f32 %v4930, %v4488
        %v4932 = vmax.f32 %v4931, %v4492
        %v4933 = vmax.f32 %v4932, %v4498
        %v4934 = vmax.f32 %v4933, %v4502
        %v4935 = vmax.f32 %v4934, %v4508
        %v4936 = vmax.f32 %v4935, %v4512
        %v4937 = vmax.f32 %v4936, %v4518
        %v4938 = vmax.f32 %v4937, %v4522
        %v4939 = vrot.slane %v4938, 4
        %v4940 = vmax.f32 %v4938, %v4939
        %v4941 = vrot.slane %v4940, 2
        %v4942 = vmax.f32 %v4940, %v4941
        %v4943 = vrot.slane %v4942, 1
        %v4944 = vmax.f32 %v4942, %v4943
        %v4945 = vmax.f32 %v4370, %v4374
        %v4946 = vmax.f32 %v4945, %v4380
        %v4947 = vmax.f32 %v4946, %v4384
        %v4948 = vmax.f32 %v4947, %v4390
        %v4949 = vmax.f32 %v4948, %v4394
        %v4950 = vmax.f32 %v4949, %v4400
        %v4951 = vmax.f32 %v4950, %v4404
        %v4952 = vmax.f32 %v4951, %v4410
        %v4953 = vmax.f32 %v4952, %v4414
        %v4954 = vmax.f32 %v4953, %v4420
        %v4955 = vmax.f32 %v4954, %v4424
        %v4956 = vmax.f32 %v4955, %v4430
        %v4957 = vmax.f32 %v4956, %v4434
        %v4958 = vmax.f32 %v4957, %v4440
        %v4959 = vmax.f32 %v4958, %v4444
        %v4960 = vmax.f32 %v4959, %v4450
        %v4961 = vmax.f32 %v4960, %v4454
        %v4962 = vmax.f32 %v4961, %v4460
        %v4963 = vmax.f32 %v4962, %v4464
        %v4964 = vmax.f32 %v4963, %v4470
        %v4965 = vmax.f32 %v4964, %v4474
        %v4966 = vmax.f32 %v4965, %v4480
        %v4967 = vmax.f32 %v4966, %v4484
        %v4968 = vmax.f32 %v4967, %v4490
        %v4969 = vmax.f32 %v4968, %v4494
        %v4970 = vmax.f32 %v4969, %v4500
        %v4971 = vmax.f32 %v4970, %v4504
        %v4972 = vmax.f32 %v4971, %v4510
        %v4973 = vmax.f32 %v4972, %v4514
        %v4974 = vmax.f32 %v4973, %v4520
        %v4975 = vmax.f32 %v4974, %v4524
        %v4976 = vrot.slane %v4975, 4
        %v4977 = vmax.f32 %v4975, %v4976
        %v4978 = vrot.slane %v4977, 2
        %v4979 = vmax.f32 %v4977, %v4978
        %v4980 = vrot.slane %v4979, 1
        %v4981 = vmax.f32 %v4979, %v4980
        %v4982 = vmax.f32 %v3469, %v3473
        %v4983 = vmax.f32 %v4982, %v3479
        %v4984 = vmax.f32 %v4983, %v3483
        %v4985 = vmax.f32 %v4984, %v3489
        %v4986 = vmax.f32 %v4985, %v3493
        %v4987 = vmax.f32 %v4986, %v3499
        %v4988 = vmax.f32 %v4987, %v3503
        %v4989 = vmax.f32 %v4988, %v3509
        %v4990 = vmax.f32 %v4989, %v3513
        %v4991 = vmax.f32 %v4990, %v3519
        %v4992 = vmax.f32 %v4991, %v3523
        %v4993 = vmax.f32 %v4992, %v3529
        %v4994 = vmax.f32 %v4993, %v3533
        %v4995 = vmax.f32 %v4994, %v3539
        %v4996 = vmax.f32 %v4995, %v3543
        %v4997 = vmax.f32 %v4996, %v3549
        %v4998 = vmax.f32 %v4997, %v3553
        %v4999 = vmax.f32 %v4998, %v3559
        %v5000 = vmax.f32 %v4999, %v3563
        %v5001 = vmax.f32 %v5000, %v3569
        %v5002 = vmax.f32 %v5001, %v3573
        %v5003 = vmax.f32 %v5002, %v3579
        %v5004 = vmax.f32 %v5003, %v3583
        %v5005 = vmax.f32 %v5004, %v3589
        %v5006 = vmax.f32 %v5005, %v3593
        %v5007 = vmax.f32 %v5006, %v3599
        %v5008 = vmax.f32 %v5007, %v3603
        %v5009 = vmax.f32 %v5008, %v3609
        %v5010 = vmax.f32 %v5009, %v3613
        %v5011 = vmax.f32 %v5010, %v3619
        %v5012 = vmax.f32 %v5011, %v3623
        %v5013 = vrot.slane %v5012, 4
        %v5014 = vmax.f32 %v5012, %v5013
        %v5015 = vrot.slane %v5014, 2
        %v5016 = vmax.f32 %v5014, %v5015
        %v5017 = vrot.slane %v5016, 1
        %v5018 = vmax.f32 %v5016, %v5017
        %v5019 = vmax.f32 %v3471, %v3475
        %v5020 = vmax.f32 %v5019, %v3481
        %v5021 = vmax.f32 %v5020, %v3485
        %v5022 = vmax.f32 %v5021, %v3491
        %v5023 = vmax.f32 %v5022, %v3495
        %v5024 = vmax.f32 %v5023, %v3501
        %v5025 = vmax.f32 %v5024, %v3505
        %v5026 = vmax.f32 %v5025, %v3511
        %v5027 = vmax.f32 %v5026, %v3515
        %v5028 = vmax.f32 %v5027, %v3521
        %v5029 = vmax.f32 %v5028, %v3525
        %v5030 = vmax.f32 %v5029, %v3531
        %v5031 = vmax.f32 %v5030, %v3535
        %v5032 = vmax.f32 %v5031, %v3541
        %v5033 = vmax.f32 %v5032, %v3545
        %v5034 = vmax.f32 %v5033, %v3551
        %v5035 = vmax.f32 %v5034, %v3555
        %v5036 = vmax.f32 %v5035, %v3561
        %v5037 = vmax.f32 %v5036, %v3565
        %v5038 = vmax.f32 %v5037, %v3571
        %v5039 = vmax.f32 %v5038, %v3575
        %v5040 = vmax.f32 %v5039, %v3581
        %v5041 = vmax.f32 %v5040, %v3585
        %v5042 = vmax.f32 %v5041, %v3591
        %v5043 = vmax.f32 %v5042, %v3595
        %v5044 = vmax.f32 %v5043, %v3601
        %v5045 = vmax.f32 %v5044, %v3605
        %v5046 = vmax.f32 %v5045, %v3611
        %v5047 = vmax.f32 %v5046, %v3615
        %v5048 = vmax.f32 %v5047, %v3621
        %v5049 = vmax.f32 %v5048, %v3625
        %v5050 = vrot.slane %v5049, 4
        %v5051 = vmax.f32 %v5049, %v5050
        %v5052 = vrot.slane %v5051, 2
        %v5053 = vmax.f32 %v5051, %v5052
        %v5054 = vrot.slane %v5053, 1
        %v5055 = vmax.f32 %v5053, %v5054
        %v5056 = vmax.f32 %v3822, %v3826
        %v5057 = vmax.f32 %v5056, %v3832
        %v5058 = vmax.f32 %v5057, %v3836
        %v5059 = vmax.f32 %v5058, %v3842
        %v5060 = vmax.f32 %v5059, %v3846
        %v5061 = vmax.f32 %v5060, %v3852
        %v5062 = vmax.f32 %v5061, %v3856
        %v5063 = vmax.f32 %v5062, %v3862
        %v5064 = vmax.f32 %v5063, %v3866
        %v5065 = vmax.f32 %v5064, %v3872
        %v5066 = vmax.f32 %v5065, %v3876
        %v5067 = vmax.f32 %v5066, %v3882
        %v5068 = vmax.f32 %v5067, %v3886
        %v5069 = vmax.f32 %v5068, %v3892
        %v5070 = vmax.f32 %v5069, %v3896
        %v5071 = vmax.f32 %v5070, %v3902
        %v5072 = vmax.f32 %v5071, %v3906
        %v5073 = vmax.f32 %v5072, %v3912
        %v5074 = vmax.f32 %v5073, %v3916
        %v5075 = vmax.f32 %v5074, %v3922
        %v5076 = vmax.f32 %v5075, %v3926
        %v5077 = vmax.f32 %v5076, %v3932
        %v5078 = vmax.f32 %v5077, %v3936
        %v5079 = vmax.f32 %v5078, %v3942
        %v5080 = vmax.f32 %v5079, %v3946
        %v5081 = vmax.f32 %v5080, %v3952
        %v5082 = vmax.f32 %v5081, %v3956
        %v5083 = vmax.f32 %v5082, %v3962
        %v5084 = vmax.f32 %v5083, %v3966
        %v5085 = vmax.f32 %v5084, %v3972
        %v5086 = vmax.f32 %v5085, %v3976
        %v5087 = vrot.slane %v5086, 4
        %v5088 = vmax.f32 %v5086, %v5087
        %v5089 = vrot.slane %v5088, 2
        %v5090 = vmax.f32 %v5088, %v5089
        %v5091 = vrot.slane %v5090, 1
        %v5092 = vmax.f32 %v5090, %v5091
        %v5093 = vmax.f32 %v3824, %v3828
        %v5094 = vmax.f32 %v5093, %v3834
        %v5095 = vmax.f32 %v5094, %v3838
        %v5096 = vmax.f32 %v5095, %v3844
        %v5097 = vmax.f32 %v5096, %v3848
        %v5098 = vmax.f32 %v5097, %v3854
        %v5099 = vmax.f32 %v5098, %v3858
        %v5100 = vmax.f32 %v5099, %v3864
        %v5101 = vmax.f32 %v5100, %v3868
        %v5102 = vmax.f32 %v5101, %v3874
        %v5103 = vmax.f32 %v5102, %v3878
        %v5104 = vmax.f32 %v5103, %v3884
        %v5105 = vmax.f32 %v5104, %v3888
        %v5106 = vmax.f32 %v5105, %v3894
        %v5107 = vmax.f32 %v5106, %v3898
        %v5108 = vmax.f32 %v5107, %v3904
        %v5109 = vmax.f32 %v5108, %v3908
        %v5110 = vmax.f32 %v5109, %v3914
        %v5111 = vmax.f32 %v5110, %v3918
        %v5112 = vmax.f32 %v5111, %v3924
        %v5113 = vmax.f32 %v5112, %v3928
        %v5114 = vmax.f32 %v5113, %v3934
        %v5115 = vmax.f32 %v5114, %v3938
        %v5116 = vmax.f32 %v5115, %v3944
        %v5117 = vmax.f32 %v5116, %v3948
        %v5118 = vmax.f32 %v5117, %v3954
        %v5119 = vmax.f32 %v5118, %v3958
        %v5120 = vmax.f32 %v5119, %v3964
        %v5121 = vmax.f32 %v5120, %v3968
        %v5122 = vmax.f32 %v5121, %v3974
        %v5123 = vmax.f32 %v5122, %v3978
        %v5124 = vrot.slane %v5123, 4
        %v5125 = vmax.f32 %v5123, %v5124
        %v5126 = vrot.slane %v5125, 2
        %v5127 = vmax.f32 %v5125, %v5126
        %v5128 = vrot.slane %v5127, 1
        %v5129 = vmax.f32 %v5127, %v5128
        %v5130 = vmax.f32 %v4175, %v4179
        %v5131 = vmax.f32 %v5130, %v4185
        %v5132 = vmax.f32 %v5131, %v4189
        %v5133 = vmax.f32 %v5132, %v4195
        %v5134 = vmax.f32 %v5133, %v4199
        %v5135 = vmax.f32 %v5134, %v4205
        %v5136 = vmax.f32 %v5135, %v4209
        %v5137 = vmax.f32 %v5136, %v4215
        %v5138 = vmax.f32 %v5137, %v4219
        %v5139 = vmax.f32 %v5138, %v4225
        %v5140 = vmax.f32 %v5139, %v4229
        %v5141 = vmax.f32 %v5140, %v4235
        %v5142 = vmax.f32 %v5141, %v4239
        %v5143 = vmax.f32 %v5142, %v4245
        %v5144 = vmax.f32 %v5143, %v4249
        %v5145 = vmax.f32 %v5144, %v4255
        %v5146 = vmax.f32 %v5145, %v4259
        %v5147 = vmax.f32 %v5146, %v4265
        %v5148 = vmax.f32 %v5147, %v4269
        %v5149 = vmax.f32 %v5148, %v4275
        %v5150 = vmax.f32 %v5149, %v4279
        %v5151 = vmax.f32 %v5150, %v4285
        %v5152 = vmax.f32 %v5151, %v4289
        %v5153 = vmax.f32 %v5152, %v4295
        %v5154 = vmax.f32 %v5153, %v4299
        %v5155 = vmax.f32 %v5154, %v4305
        %v5156 = vmax.f32 %v5155, %v4309
        %v5157 = vmax.f32 %v5156, %v4315
        %v5158 = vmax.f32 %v5157, %v4319
        %v5159 = vmax.f32 %v5158, %v4325
        %v5160 = vmax.f32 %v5159, %v4329
        %v5161 = vrot.slane %v5160, 4
        %v5162 = vmax.f32 %v5160, %v5161
        %v5163 = vrot.slane %v5162, 2
        %v5164 = vmax.f32 %v5162, %v5163
        %v5165 = vrot.slane %v5164, 1
        %v5166 = vmax.f32 %v5164, %v5165
        %v5167 = vmax.f32 %v4177, %v4181
        %v5168 = vmax.f32 %v5167, %v4187
        %v5169 = vmax.f32 %v5168, %v4191
        %v5170 = vmax.f32 %v5169, %v4197
        %v5171 = vmax.f32 %v5170, %v4201
        %v5172 = vmax.f32 %v5171, %v4207
        %v5173 = vmax.f32 %v5172, %v4211
        %v5174 = vmax.f32 %v5173, %v4217
        %v5175 = vmax.f32 %v5174, %v4221
        %v5176 = vmax.f32 %v5175, %v4227
        %v5177 = vmax.f32 %v5176, %v4231
        %v5178 = vmax.f32 %v5177, %v4237
        %v5179 = vmax.f32 %v5178, %v4241
        %v5180 = vmax.f32 %v5179, %v4247
        %v5181 = vmax.f32 %v5180, %v4251
        %v5182 = vmax.f32 %v5181, %v4257
        %v5183 = vmax.f32 %v5182, %v4261
        %v5184 = vmax.f32 %v5183, %v4267
        %v5185 = vmax.f32 %v5184, %v4271
        %v5186 = vmax.f32 %v5185, %v4277
        %v5187 = vmax.f32 %v5186, %v4281
        %v5188 = vmax.f32 %v5187, %v4287
        %v5189 = vmax.f32 %v5188, %v4291
        %v5190 = vmax.f32 %v5189, %v4297
        %v5191 = vmax.f32 %v5190, %v4301
        %v5192 = vmax.f32 %v5191, %v4307
        %v5193 = vmax.f32 %v5192, %v4311
        %v5194 = vmax.f32 %v5193, %v4317
        %v5195 = vmax.f32 %v5194, %v4321
        %v5196 = vmax.f32 %v5195, %v4327
        %v5197 = vmax.f32 %v5196, %v4331
        %v5198 = vrot.slane %v5197, 4
        %v5199 = vmax.f32 %v5197, %v5198
        %v5200 = vrot.slane %v5199, 2
        %v5201 = vmax.f32 %v5199, %v5200
        %v5202 = vrot.slane %v5201, 1
        %v5203 = vmax.f32 %v5201, %v5202
        %v5204 = vmax.f32 %v4528, %v4532
        %v5205 = vmax.f32 %v5204, %v4538
        %v5206 = vmax.f32 %v5205, %v4542
        %v5207 = vmax.f32 %v5206, %v4548
        %v5208 = vmax.f32 %v5207, %v4552
        %v5209 = vmax.f32 %v5208, %v4558
        %v5210 = vmax.f32 %v5209, %v4562
        %v5211 = vmax.f32 %v5210, %v4568
        %v5212 = vmax.f32 %v5211, %v4572
        %v5213 = vmax.f32 %v5212, %v4578
        %v5214 = vmax.f32 %v5213, %v4582
        %v5215 = vmax.f32 %v5214, %v4588
        %v5216 = vmax.f32 %v5215, %v4592
        %v5217 = vmax.f32 %v5216, %v4598
        %v5218 = vmax.f32 %v5217, %v4602
        %v5219 = vmax.f32 %v5218, %v4608
        %v5220 = vmax.f32 %v5219, %v4612
        %v5221 = vmax.f32 %v5220, %v4618
        %v5222 = vmax.f32 %v5221, %v4622
        %v5223 = vmax.f32 %v5222, %v4628
        %v5224 = vmax.f32 %v5223, %v4632
        %v5225 = vmax.f32 %v5224, %v4638
        %v5226 = vmax.f32 %v5225, %v4642
        %v5227 = vmax.f32 %v5226, %v4648
        %v5228 = vmax.f32 %v5227, %v4652
        %v5229 = vmax.f32 %v5228, %v4658
        %v5230 = vmax.f32 %v5229, %v4662
        %v5231 = vmax.f32 %v5230, %v4668
        %v5232 = vmax.f32 %v5231, %v4672
        %v5233 = vmax.f32 %v5232, %v4678
        %v5234 = vmax.f32 %v5233, %v4682
        %v5235 = vrot.slane %v5234, 4
        %v5236 = vmax.f32 %v5234, %v5235
        %v5237 = vrot.slane %v5236, 2
        %v5238 = vmax.f32 %v5236, %v5237
        %v5239 = vrot.slane %v5238, 1
        %v5240 = vmax.f32 %v5238, %v5239
        %v5241 = vmax.f32 %v4530, %v4534
        %v5242 = vmax.f32 %v5241, %v4540
        %v5243 = vmax.f32 %v5242, %v4544
        %v5244 = vmax.f32 %v5243, %v4550
        %v5245 = vmax.f32 %v5244, %v4554
        %v5246 = vmax.f32 %v5245, %v4560
        %v5247 = vmax.f32 %v5246, %v4564
        %v5248 = vmax.f32 %v5247, %v4570
        %v5249 = vmax.f32 %v5248, %v4574
        %v5250 = vmax.f32 %v5249, %v4580
        %v5251 = vmax.f32 %v5250, %v4584
        %v5252 = vmax.f32 %v5251, %v4590
        %v5253 = vmax.f32 %v5252, %v4594
        %v5254 = vmax.f32 %v5253, %v4600
        %v5255 = vmax.f32 %v5254, %v4604
        %v5256 = vmax.f32 %v5255, %v4610
        %v5257 = vmax.f32 %v5256, %v4614
        %v5258 = vmax.f32 %v5257, %v4620
        %v5259 = vmax.f32 %v5258, %v4624
        %v5260 = vmax.f32 %v5259, %v4630
        %v5261 = vmax.f32 %v5260, %v4634
        %v5262 = vmax.f32 %v5261, %v4640
        %v5263 = vmax.f32 %v5262, %v4644
        %v5264 = vmax.f32 %v5263, %v4650
        %v5265 = vmax.f32 %v5264, %v4654
        %v5266 = vmax.f32 %v5265, %v4660
        %v5267 = vmax.f32 %v5266, %v4664
        %v5268 = vmax.f32 %v5267, %v4670
        %v5269 = vmax.f32 %v5268, %v4674
        %v5270 = vmax.f32 %v5269, %v4680
        %v5271 = vmax.f32 %v5270, %v4684
        %v5272 = vrot.slane %v5271, 4
        %v5273 = vmax.f32 %v5271, %v5272
        %v5274 = vrot.slane %v5273, 2
        %v5275 = vmax.f32 %v5273, %v5274
        %v5276 = vrot.slane %v5275, 1
        %v5277 = vmax.f32 %v5275, %v5276
        %v5278 = vmax.f32 %v4722, 0.0
        %v5279 = vmax.f32 %v4759, 0.0
        %v5280 = vmax.f32 %v4796, 0.0
        %v5281 = vmax.f32 %v4833, 0.0
        %v5282 = vmax.f32 %v4870, 0.0
        %v5283 = vmax.f32 %v4907, 0.0
        %v5284 = vmax.f32 %v4944, 0.0
        %v5285 = vmax.f32 %v4981, 0.0
        %v5286 = vmax.f32 %v5018, 0.0
        %v5287 = vmax.f32 %v5055, 0.0
        %v5288 = vmax.f32 %v5092, 0.0
        %v5289 = vmax.f32 %v5129, 0.0
        %v5290 = vmax.f32 %v5166, 0.0
        %v5291 = vmax.f32 %v5203, 0.0
        %v5292 = vmax.f32 %v5240, 0.0
        %v5293 = vmax.f32 %v5277, 0.0
        %v5294 = vpack.c.bf16 %v5278, %v5278
        %v5295 = vpack.c.bf16 %v5279, %v5279
        %v5296 = vpack.c.bf16 %v5280, %v5280
        %v5297 = vpack.c.bf16 %v5281, %v5281
        %v5298 = vpack.c.bf16 %v5282, %v5282
        %v5299 = vpack.c.bf16 %v5283, %v5283
        %v5300 = vpack.c.bf16 %v5284, %v5284
        %v5301 = vpack.c.bf16 %v5285, %v5285
        %v5302 = vpack.c.bf16 %v5286, %v5286
        %v5303 = vpack.c.bf16 %v5287, %v5287
        %v5304 = vpack.c.bf16 %v5288, %v5288
        %v5305 = vpack.c.bf16 %v5289, %v5289
        %v5306 = vpack.c.bf16 %v5290, %v5290
        %v5307 = vpack.c.bf16 %v5291, %v5291
        %v5308 = vpack.c.bf16 %v5292, %v5292
        %v5309 = vpack.c.bf16 %v5293, %v5293
        %v5310 = vlaneseq
        %v5311 = vshrl.u32 %v5310, 7
        %v5312 = vsub.s32 3, %v5311
        %v5313 = vrot.slane %v436, %v5312
        %v5314 = vlaneseq
        %v5315 = vshrl.u32 %v5314, 7
        %v5316 = vsub.s32 3, %v5315
        %v5317 = vrot.slane %v437, %v5316
        %v5318 = vlaneseq
        %v5319 = vshrl.u32 %v5318, 7
        %v5320 = vsub.s32 3, %v5319
        %v5321 = vrot.slane %v438, %v5320
        %v5322 = vlaneseq
        %v5323 = vshrl.u32 %v5322, 7
        %v5324 = vsub.s32 3, %v5323
        %v5325 = vrot.slane %v439, %v5324
        %v5342 = vunpack.c.l.b16 %v5294
        %v5343 = vunpack.c.l.b16 %v5295
        %v5344 = vunpack.c.l.b16 %v5296
        %v5345 = vunpack.c.l.b16 %v5297
        %v5346 = vunpack.c.l.b16 %v5298
        %v5347 = vunpack.c.l.b16 %v5299
        %v5348 = vunpack.c.l.b16 %v5300
        %v5349 = vunpack.c.l.b16 %v5301
        %v5350 = vunpack.c.l.b16 %v5302
        %v5351 = vunpack.c.l.b16 %v5303
        %v5352 = vunpack.c.l.b16 %v5304
        %v5353 = vunpack.c.l.b16 %v5305
        %v5354 = vunpack.c.l.b16 %v5306
        %v5355 = vunpack.c.l.b16 %v5307
        %v5356 = vunpack.c.l.b16 %v5308
        %v5357 = vunpack.c.l.b16 %v5309
        %vm5358 = vcmask 1041409
        %v5359 = vsel %vm5358, %v5350, %v5342
        %v5360 = vsel %vm5358, %v5351, %v5343
        %v5361 = vsel %vm5358, %v5352, %v5344
        %v5362 = vsel %vm5358, %v5353, %v5345
        %v5363 = vsel %vm5358, %v5354, %v5346
        %v5364 = vsel %vm5358, %v5355, %v5347
        %v5365 = vsel %vm5358, %v5356, %v5348
        %v5366 = vsel %vm5358, %v5357, %v5349
        %v5367 = vpack.c.b16 %v5359, %v5359
        %v5368 = vpack.c.b16 %v5360, %v5360
        %v5369 = vpack.c.b16 %v5361, %v5361
        %v5370 = vpack.c.b16 %v5362, %v5362
        %v5371 = vpack.c.b16 %v5363, %v5363
        %v5372 = vpack.c.b16 %v5364, %v5364
        %v5373 = vpack.c.b16 %v5365, %v5365
        %v5374 = vpack.c.b16 %v5366, %v5366
        %v5639 = vunpack.c.l.b16 %v524
        %v5640 = vunpack.c.h.b16 %v524
        %v5641 = vunpack.c.l.b16 %v525
        %v5642 = vunpack.c.h.b16 %v525
        %v5643 = vunpack.c.l.b16 %v526
        %v5644 = vunpack.c.h.b16 %v526
        %v5645 = vunpack.c.l.b16 %v527
        %v5646 = vunpack.c.h.b16 %v527
        %v5647 = vunpack.c.l.b16 %v528
        %v5648 = vunpack.c.h.b16 %v528
        %v5649 = vunpack.c.l.b16 %v529
        %v5650 = vunpack.c.h.b16 %v529
        %v5651 = vunpack.c.l.b16 %v530
        %v5652 = vunpack.c.h.b16 %v530
        %v5653 = vunpack.c.l.b16 %v531
        %v5654 = vunpack.c.h.b16 %v531
        %v5655 = vunpack.c.l.b16 %v532
        %v5656 = vunpack.c.h.b16 %v532
        %v5657 = vunpack.c.l.b16 %v533
        %v5658 = vunpack.c.h.b16 %v533
        %v5659 = vunpack.c.l.b16 %v534
        %v5660 = vunpack.c.h.b16 %v534
        %v5661 = vunpack.c.l.b16 %v535
        %v5662 = vunpack.c.h.b16 %v535
        %v5663 = vunpack.c.l.b16 %v536
        %v5664 = vunpack.c.h.b16 %v536
        %v5665 = vunpack.c.l.b16 %v537
        %v5666 = vunpack.c.h.b16 %v537
        %v5667 = vunpack.c.l.b16 %v538
        %v5668 = vunpack.c.h.b16 %v538
        %v5669 = vunpack.c.l.b16 %v539
        %v5670 = vunpack.c.h.b16 %v539
        %v5671 = vunpack.c.l.b16 %v540
        %v5672 = vunpack.c.h.b16 %v540
        %v5673 = vunpack.c.l.b16 %v541
        %v5674 = vunpack.c.h.b16 %v541
        %v5675 = vunpack.c.l.b16 %v542
        %v5676 = vunpack.c.h.b16 %v542
        %v5677 = vunpack.c.l.b16 %v543
        %v5678 = vunpack.c.h.b16 %v543
        %v5679 = vunpack.c.l.b16 %v544
        %v5680 = vunpack.c.h.b16 %v544
        %v5681 = vunpack.c.l.b16 %v545
        %v5682 = vunpack.c.h.b16 %v545
        %v5683 = vunpack.c.l.b16 %v546
        %v5684 = vunpack.c.h.b16 %v546
        %v5685 = vunpack.c.l.b16 %v547
        %v5686 = vunpack.c.h.b16 %v547
        %v5687 = vunpack.c.l.b16 %v548
        %v5688 = vunpack.c.h.b16 %v548
        %v5689 = vunpack.c.l.b16 %v549
        %v5690 = vunpack.c.h.b16 %v549
        %v5691 = vunpack.c.l.b16 %v550
        %v5692 = vunpack.c.h.b16 %v550
        %v5693 = vunpack.c.l.b16 %v551
        %v5694 = vunpack.c.h.b16 %v551
        %v5695 = vunpack.c.l.b16 %v552
        %v5696 = vunpack.c.h.b16 %v552
        %v5697 = vunpack.c.l.b16 %v553
        %v5698 = vunpack.c.h.b16 %v553
        %v5699 = vunpack.c.l.b16 %v554
        %v5700 = vunpack.c.h.b16 %v554
        %v5701 = vunpack.c.l.b16 %v555
        %v5702 = vunpack.c.h.b16 %v555
        %v5703 = vunpack.c.l.b16 %v556
        %v5704 = vunpack.c.h.b16 %v556
        %v5705 = vunpack.c.l.b16 %v557
        %v5706 = vunpack.c.h.b16 %v557
        %v5707 = vunpack.c.l.b16 %v558
        %v5708 = vunpack.c.h.b16 %v558
        %v5709 = vunpack.c.l.b16 %v559
        %v5710 = vunpack.c.h.b16 %v559
        %v5711 = vunpack.c.l.b16 %v560
        %v5712 = vunpack.c.h.b16 %v560
        %v5713 = vunpack.c.l.b16 %v561
        %v5714 = vunpack.c.h.b16 %v561
        %v5715 = vunpack.c.l.b16 %v562
        %v5716 = vunpack.c.h.b16 %v562
        %v5717 = vunpack.c.l.b16 %v563
        %v5718 = vunpack.c.h.b16 %v563
        %v5719 = vunpack.c.l.b16 %v564
        %v5720 = vunpack.c.h.b16 %v564
        %v5721 = vunpack.c.l.b16 %v565
        %v5722 = vunpack.c.h.b16 %v565
        %v5723 = vunpack.c.l.b16 %v566
        %v5724 = vunpack.c.h.b16 %v566
        %v5725 = vunpack.c.l.b16 %v567
        %v5726 = vunpack.c.h.b16 %v567
        %v5727 = vunpack.c.l.b16 %v568
        %v5728 = vunpack.c.h.b16 %v568
        %v5729 = vunpack.c.l.b16 %v569
        %v5730 = vunpack.c.h.b16 %v569
        %v5731 = vunpack.c.l.b16 %v570
        %v5732 = vunpack.c.h.b16 %v570
        %v5733 = vunpack.c.l.b16 %v571
        %v5734 = vunpack.c.h.b16 %v571
        %v5735 = vunpack.c.l.b16 %v572
        %v5736 = vunpack.c.h.b16 %v572
        %v5737 = vunpack.c.l.b16 %v573
        %v5738 = vunpack.c.h.b16 %v573
        %v5739 = vunpack.c.l.b16 %v574
        %v5740 = vunpack.c.h.b16 %v574
        %v5741 = vunpack.c.l.b16 %v575
        %v5742 = vunpack.c.h.b16 %v575
        %v5743 = vunpack.c.l.b16 %v576
        %v5744 = vunpack.c.h.b16 %v576
        %v5745 = vunpack.c.l.b16 %v577
        %v5746 = vunpack.c.h.b16 %v577
        %v5747 = vunpack.c.l.b16 %v578
        %v5748 = vunpack.c.h.b16 %v578
        %v5749 = vunpack.c.l.b16 %v579
        %v5750 = vunpack.c.h.b16 %v579
        %v5751 = vunpack.c.l.b16 %v580
        %v5752 = vunpack.c.h.b16 %v580
        %v5753 = vunpack.c.l.b16 %v581
        %v5754 = vunpack.c.h.b16 %v581
        %v5755 = vunpack.c.l.b16 %v582
        %v5756 = vunpack.c.h.b16 %v582
        %v5757 = vunpack.c.l.b16 %v583
        %v5758 = vunpack.c.h.b16 %v583
        %v5759 = vunpack.c.l.b16 %v584
        %v5760 = vunpack.c.h.b16 %v584
        %v5761 = vunpack.c.l.b16 %v585
        %v5762 = vunpack.c.h.b16 %v585
        %v5763 = vunpack.c.l.b16 %v586
        %v5764 = vunpack.c.h.b16 %v586
        %v5765 = vunpack.c.l.b16 %v587
        %v5766 = vunpack.c.h.b16 %v587
        %v5767 = vunpack.c.l.b16 %v588
        %v5768 = vunpack.c.h.b16 %v588
        %v5769 = vunpack.c.l.b16 %v589
        %v5770 = vunpack.c.h.b16 %v589
        %v5771 = vunpack.c.l.b16 %v590
        %v5772 = vunpack.c.h.b16 %v590
        %v5773 = vunpack.c.l.b16 %v591
        %v5774 = vunpack.c.h.b16 %v591
        %v5775 = vunpack.c.l.b16 %v592
        %v5776 = vunpack.c.h.b16 %v592
        %v5777 = vunpack.c.l.b16 %v593
        %v5778 = vunpack.c.h.b16 %v593
        %v5779 = vunpack.c.l.b16 %v594
        %v5780 = vunpack.c.h.b16 %v594
        %v5781 = vunpack.c.l.b16 %v595
        %v5782 = vunpack.c.h.b16 %v595
        %v5783 = vunpack.c.l.b16 %v596
        %v5784 = vunpack.c.h.b16 %v596
        %v5785 = vunpack.c.l.b16 %v597
        %v5786 = vunpack.c.h.b16 %v597
        %v5787 = vunpack.c.l.b16 %v598
        %v5788 = vunpack.c.h.b16 %v598
        %v5789 = vunpack.c.l.b16 %v599
        %v5790 = vunpack.c.h.b16 %v599
        %v5791 = vunpack.c.l.b16 %v600
        %v5792 = vunpack.c.h.b16 %v600
        %v5793 = vunpack.c.l.b16 %v601
        %v5794 = vunpack.c.h.b16 %v601
        %v5795 = vunpack.c.l.b16 %v602
        %v5796 = vunpack.c.h.b16 %v602
        %v5797 = vunpack.c.l.b16 %v603
        %v5798 = vunpack.c.h.b16 %v603
        %v5799 = vunpack.c.l.b16 %v604
        %v5800 = vunpack.c.h.b16 %v604
        %v5801 = vunpack.c.l.b16 %v605
        %v5802 = vunpack.c.h.b16 %v605
        %v5803 = vunpack.c.l.b16 %v606
        %v5804 = vunpack.c.h.b16 %v606
        %v5805 = vunpack.c.l.b16 %v607
        %v5806 = vunpack.c.h.b16 %v607
        %v5807 = vunpack.c.l.b16 %v608
        %v5808 = vunpack.c.h.b16 %v608
        %v5809 = vunpack.c.l.b16 %v609
        %v5810 = vunpack.c.h.b16 %v609
        %v5811 = vunpack.c.l.b16 %v610
        %v5812 = vunpack.c.h.b16 %v610
        %v5813 = vunpack.c.l.b16 %v611
        %v5814 = vunpack.c.h.b16 %v611
        %v5815 = vunpack.c.l.b16 %v612
        %v5816 = vunpack.c.h.b16 %v612
        %v5817 = vunpack.c.l.b16 %v613
        %v5818 = vunpack.c.h.b16 %v613
        %v5819 = vunpack.c.l.b16 %v614
        %v5820 = vunpack.c.h.b16 %v614
        %v5821 = vunpack.c.l.b16 %v615
        %v5822 = vunpack.c.h.b16 %v615
        %v5823 = vunpack.c.l.b16 %v616
        %v5824 = vunpack.c.h.b16 %v616
        %v5825 = vunpack.c.l.b16 %v617
        %v5826 = vunpack.c.h.b16 %v617
        %v5827 = vunpack.c.l.b16 %v618
        %v5828 = vunpack.c.h.b16 %v618
        %v5829 = vunpack.c.l.b16 %v619
        %v5830 = vunpack.c.h.b16 %v619
        %v5831 = vunpack.c.l.b16 %v620
        %v5832 = vunpack.c.h.b16 %v620
        %v5833 = vunpack.c.l.b16 %v621
        %v5834 = vunpack.c.h.b16 %v621
        %v5835 = vunpack.c.l.b16 %v622
        %v5836 = vunpack.c.h.b16 %v622
        %v5837 = vunpack.c.l.b16 %v623
        %v5838 = vunpack.c.h.b16 %v623
        %v5839 = vunpack.c.l.b16 %v624
        %v5840 = vunpack.c.h.b16 %v624
        %v5841 = vunpack.c.l.b16 %v625
        %v5842 = vunpack.c.h.b16 %v625
        %v5843 = vunpack.c.l.b16 %v626
        %v5844 = vunpack.c.h.b16 %v626
        %v5845 = vunpack.c.l.b16 %v627
        %v5846 = vunpack.c.h.b16 %v627
        %v5847 = vunpack.c.l.b16 %v628
        %v5848 = vunpack.c.h.b16 %v628
        %v5849 = vunpack.c.l.b16 %v629
        %v5850 = vunpack.c.h.b16 %v629
        %v5851 = vunpack.c.l.b16 %v630
        %v5852 = vunpack.c.h.b16 %v630
        %v5853 = vunpack.c.l.b16 %v631
        %v5854 = vunpack.c.h.b16 %v631
        %v5855 = vunpack.c.l.b16 %v632
        %v5856 = vunpack.c.h.b16 %v632
        %v5857 = vunpack.c.l.b16 %v633
        %v5858 = vunpack.c.h.b16 %v633
        %v5859 = vunpack.c.l.b16 %v634
        %v5860 = vunpack.c.h.b16 %v634
        %v5861 = vunpack.c.l.b16 %v635
        %v5862 = vunpack.c.h.b16 %v635
        %v5863 = vunpack.c.l.b16 %v636
        %v5864 = vunpack.c.h.b16 %v636
        %v5865 = vunpack.c.l.b16 %v637
        %v5866 = vunpack.c.h.b16 %v637
        %v5867 = vunpack.c.l.b16 %v638
        %v5868 = vunpack.c.h.b16 %v638
        %v5869 = vunpack.c.l.b16 %v639
        %v5870 = vunpack.c.h.b16 %v639
        %v5871 = vunpack.c.l.b16 %v640
        %v5872 = vunpack.c.h.b16 %v640
        %v5873 = vunpack.c.l.b16 %v641
        %v5874 = vunpack.c.h.b16 %v641
        %v5875 = vunpack.c.l.b16 %v642
        %v5876 = vunpack.c.h.b16 %v642
        %v5877 = vunpack.c.l.b16 %v643
        %v5878 = vunpack.c.h.b16 %v643
        %v5879 = vunpack.c.l.b16 %v644
        %v5880 = vunpack.c.h.b16 %v644
        %v5881 = vunpack.c.l.b16 %v645
        %v5882 = vunpack.c.h.b16 %v645
        %v5883 = vunpack.c.l.b16 %v646
        %v5884 = vunpack.c.h.b16 %v646
        %v5885 = vunpack.c.l.b16 %v647
        %v5886 = vunpack.c.h.b16 %v647
        %v5887 = vunpack.c.l.b16 %v648
        %v5888 = vunpack.c.h.b16 %v648
        %v5889 = vunpack.c.l.b16 %v649
        %v5890 = vunpack.c.h.b16 %v649
        %v5891 = vunpack.c.l.b16 %v650
        %v5892 = vunpack.c.h.b16 %v650
        %v5893 = vunpack.c.l.b16 %v651
        %v5894 = vunpack.c.h.b16 %v651
        %v5895 = vunpack.c.l.b16 %v652
        %v5896 = vunpack.c.h.b16 %v652
        %v5897 = vunpack.c.l.b16 %v653
        %v5898 = vunpack.c.h.b16 %v653
        %v5899 = vunpack.c.l.b16 %v654
        %v5900 = vunpack.c.h.b16 %v654
        %v5901 = vunpack.c.l.b16 %v655
        %v5902 = vunpack.c.h.b16 %v655
        %v5903 = vunpack.c.l.b16 %v656
        %v5904 = vunpack.c.h.b16 %v656
        %v5905 = vunpack.c.l.b16 %v657
        %v5906 = vunpack.c.h.b16 %v657
        %v5907 = vunpack.c.l.b16 %v658
        %v5908 = vunpack.c.h.b16 %v658
        %v5909 = vunpack.c.l.b16 %v659
        %v5910 = vunpack.c.h.b16 %v659
        %v5911 = vunpack.c.l.b16 %v660
        %v5912 = vunpack.c.h.b16 %v660
        %v5913 = vunpack.c.l.b16 %v661
        %v5914 = vunpack.c.h.b16 %v661
        %v5915 = vunpack.c.l.b16 %v662
        %v5916 = vunpack.c.h.b16 %v662
        %v5917 = vunpack.c.l.b16 %v663
        %v5918 = vunpack.c.h.b16 %v663
        %v5919 = vunpack.c.l.b16 %v664
        %v5920 = vunpack.c.h.b16 %v664
        %v5921 = vunpack.c.l.b16 %v665
        %v5922 = vunpack.c.h.b16 %v665
        %v5923 = vunpack.c.l.b16 %v666
        %v5924 = vunpack.c.h.b16 %v666
        %v5925 = vunpack.c.l.b16 %v667
        %v5926 = vunpack.c.h.b16 %v667
        %v5927 = vunpack.c.l.b16 %v668
        %v5928 = vunpack.c.h.b16 %v668
        %v5929 = vunpack.c.l.b16 %v669
        %v5930 = vunpack.c.h.b16 %v669
        %v5931 = vunpack.c.l.b16 %v670
        %v5932 = vunpack.c.h.b16 %v670
        %v5933 = vunpack.c.l.b16 %v671
        %v5934 = vunpack.c.h.b16 %v671
        %v5935 = vunpack.c.l.b16 %v672
        %v5936 = vunpack.c.h.b16 %v672
        %v5937 = vunpack.c.l.b16 %v673
        %v5938 = vunpack.c.h.b16 %v673
        %v5939 = vunpack.c.l.b16 %v674
        %v5940 = vunpack.c.h.b16 %v674
        %v5941 = vunpack.c.l.b16 %v675
        %v5942 = vunpack.c.h.b16 %v675
        %v5943 = vunpack.c.l.b16 %v676
        %v5944 = vunpack.c.h.b16 %v676
        %v5945 = vunpack.c.l.b16 %v677
        %v5946 = vunpack.c.h.b16 %v677
        %v5947 = vunpack.c.l.b16 %v678
        %v5948 = vunpack.c.h.b16 %v678
        %v5949 = vunpack.c.l.b16 %v679
        %v5950 = vunpack.c.h.b16 %v679
        %v5951 = vunpack.c.l.b16 %v680
        %v5952 = vunpack.c.h.b16 %v680
        %v5953 = vunpack.c.l.b16 %v681
        %v5954 = vunpack.c.h.b16 %v681
        %v5955 = vunpack.c.l.b16 %v682
        %v5956 = vunpack.c.h.b16 %v682
        %v5957 = vunpack.c.l.b16 %v683
        %v5958 = vunpack.c.h.b16 %v683
        %v5959 = vunpack.c.l.b16 %v684
        %v5960 = vunpack.c.h.b16 %v684
        %v5961 = vunpack.c.l.b16 %v685
        %v5962 = vunpack.c.h.b16 %v685
        %v5963 = vunpack.c.l.b16 %v686
        %v5964 = vunpack.c.h.b16 %v686
        %v5965 = vunpack.c.l.b16 %v687
        %v5966 = vunpack.c.h.b16 %v687
        %v5967 = vunpack.c.l.b16 %v688
        %v5968 = vunpack.c.h.b16 %v688
        %v5969 = vunpack.c.l.b16 %v689
        %v5970 = vunpack.c.h.b16 %v689
        %v5971 = vunpack.c.l.b16 %v690
        %v5972 = vunpack.c.h.b16 %v690
        %v5973 = vunpack.c.l.b16 %v691
        %v5974 = vunpack.c.h.b16 %v691
        %v5975 = vunpack.c.l.b16 %v692
        %v5976 = vunpack.c.h.b16 %v692
        %v5977 = vunpack.c.l.b16 %v693
        %v5978 = vunpack.c.h.b16 %v693
        %v5979 = vunpack.c.l.b16 %v694
        %v5980 = vunpack.c.h.b16 %v694
        %v5981 = vunpack.c.l.b16 %v695
        %v5982 = vunpack.c.h.b16 %v695
        %v5983 = vunpack.c.l.b16 %v696
        %v5984 = vunpack.c.h.b16 %v696
        %v5985 = vunpack.c.l.b16 %v697
        %v5986 = vunpack.c.h.b16 %v697
        %v5987 = vunpack.c.l.b16 %v698
        %v5988 = vunpack.c.h.b16 %v698
        %v5989 = vunpack.c.l.b16 %v699
        %v5990 = vunpack.c.h.b16 %v699
        %v5991 = vunpack.c.l.b16 %v700
        %v5992 = vunpack.c.h.b16 %v700
        %v5993 = vunpack.c.l.b16 %v701
        %v5994 = vunpack.c.h.b16 %v701
        %v5995 = vunpack.c.l.b16 %v702
        %v5996 = vunpack.c.h.b16 %v702
        %v5997 = vunpack.c.l.b16 %v703
        %v5998 = vunpack.c.h.b16 %v703
        %v5999 = vunpack.c.l.b16 %v704
        %v6000 = vunpack.c.h.b16 %v704
        %v6001 = vunpack.c.l.b16 %v705
        %v6002 = vunpack.c.h.b16 %v705
        %v6003 = vunpack.c.l.b16 %v706
        %v6004 = vunpack.c.h.b16 %v706
        %v6005 = vunpack.c.l.b16 %v707
        %v6006 = vunpack.c.h.b16 %v707
        %v6007 = vunpack.c.l.b16 %v708
        %v6008 = vunpack.c.h.b16 %v708
        %v6009 = vunpack.c.l.b16 %v709
        %v6010 = vunpack.c.h.b16 %v709
        %v6011 = vunpack.c.l.b16 %v710
        %v6012 = vunpack.c.h.b16 %v710
        %v6013 = vunpack.c.l.b16 %v711
        %v6014 = vunpack.c.h.b16 %v711
        %v6015 = vunpack.c.l.b16 %v712
        %v6016 = vunpack.c.h.b16 %v712
        %v6017 = vunpack.c.l.b16 %v713
        %v6018 = vunpack.c.h.b16 %v713
        %v6019 = vunpack.c.l.b16 %v714
        %v6020 = vunpack.c.h.b16 %v714
        %v6021 = vunpack.c.l.b16 %v715
        %v6022 = vunpack.c.h.b16 %v715
        %v6023 = vunpack.c.l.b16 %v716
        %v6024 = vunpack.c.h.b16 %v716
        %v6025 = vunpack.c.l.b16 %v717
        %v6026 = vunpack.c.h.b16 %v717
        %v6027 = vunpack.c.l.b16 %v718
        %v6028 = vunpack.c.h.b16 %v718
        %v6029 = vunpack.c.l.b16 %v719
        %v6030 = vunpack.c.h.b16 %v719
        %v6031 = vunpack.c.l.b16 %v720
        %v6032 = vunpack.c.h.b16 %v720
        %v6033 = vunpack.c.l.b16 %v721
        %v6034 = vunpack.c.h.b16 %v721
        %v6035 = vunpack.c.l.b16 %v722
        %v6036 = vunpack.c.h.b16 %v722
        %v6037 = vunpack.c.l.b16 %v723
        %v6038 = vunpack.c.h.b16 %v723
        %v6039 = vunpack.c.l.b16 %v724
        %v6040 = vunpack.c.h.b16 %v724
        %v6041 = vunpack.c.l.b16 %v725
        %v6042 = vunpack.c.h.b16 %v725
        %v6043 = vunpack.c.l.b16 %v726
        %v6044 = vunpack.c.h.b16 %v726
        %v6045 = vunpack.c.l.b16 %v727
        %v6046 = vunpack.c.h.b16 %v727
        %v6047 = vunpack.c.l.b16 %v728
        %v6048 = vunpack.c.h.b16 %v728
        %v6049 = vunpack.c.l.b16 %v729
        %v6050 = vunpack.c.h.b16 %v729
        %v6051 = vunpack.c.l.b16 %v730
        %v6052 = vunpack.c.h.b16 %v730
        %v6053 = vunpack.c.l.b16 %v731
        %v6054 = vunpack.c.h.b16 %v731
        %v6055 = vunpack.c.l.b16 %v732
        %v6056 = vunpack.c.h.b16 %v732
        %v6057 = vunpack.c.l.b16 %v733
        %v6058 = vunpack.c.h.b16 %v733
        %v6059 = vunpack.c.l.b16 %v734
        %v6060 = vunpack.c.h.b16 %v734
        %v6061 = vunpack.c.l.b16 %v735
        %v6062 = vunpack.c.h.b16 %v735
        %v6063 = vunpack.c.l.b16 %v736
        %v6064 = vunpack.c.h.b16 %v736
        %v6065 = vunpack.c.l.b16 %v737
        %v6066 = vunpack.c.h.b16 %v737
        %v6067 = vunpack.c.l.b16 %v738
        %v6068 = vunpack.c.h.b16 %v738
        %v6069 = vunpack.c.l.b16 %v739
        %v6070 = vunpack.c.h.b16 %v739
        %v6071 = vunpack.c.l.b16 %v740
        %v6072 = vunpack.c.h.b16 %v740
        %v6073 = vunpack.c.l.b16 %v741
        %v6074 = vunpack.c.h.b16 %v741
        %v6075 = vunpack.c.l.b16 %v742
        %v6076 = vunpack.c.h.b16 %v742
        %v6077 = vunpack.c.l.b16 %v743
        %v6078 = vunpack.c.h.b16 %v743
        %v6079 = vunpack.c.l.b16 %v744
        %v6080 = vunpack.c.h.b16 %v744
        %v6081 = vunpack.c.l.b16 %v745
        %v6082 = vunpack.c.h.b16 %v745
        %v6083 = vunpack.c.l.b16 %v746
        %v6084 = vunpack.c.h.b16 %v746
        %v6085 = vunpack.c.l.b16 %v747
        %v6086 = vunpack.c.h.b16 %v747
        %v6087 = vunpack.c.l.b16 %v748
        %v6088 = vunpack.c.h.b16 %v748
        %v6089 = vunpack.c.l.b16 %v749
        %v6090 = vunpack.c.h.b16 %v749
        %v6091 = vunpack.c.l.b16 %v750
        %v6092 = vunpack.c.h.b16 %v750
        %v6093 = vunpack.c.l.b16 %v751
        %v6094 = vunpack.c.h.b16 %v751
        %v6095 = vunpack.c.l.b16 %v752
        %v6096 = vunpack.c.h.b16 %v752
        %v6097 = vunpack.c.l.b16 %v753
        %v6098 = vunpack.c.h.b16 %v753
        %v6099 = vunpack.c.l.b16 %v754
        %v6100 = vunpack.c.h.b16 %v754
        %v6101 = vunpack.c.l.b16 %v755
        %v6102 = vunpack.c.h.b16 %v755
        %v6103 = vunpack.c.l.b16 %v756
        %v6104 = vunpack.c.h.b16 %v756
        %v6105 = vunpack.c.l.b16 %v757
        %v6106 = vunpack.c.h.b16 %v757
        %v6107 = vunpack.c.l.b16 %v758
        %v6108 = vunpack.c.h.b16 %v758
        %v6109 = vunpack.c.l.b16 %v759
        %v6110 = vunpack.c.h.b16 %v759
        %v6111 = vunpack.c.l.b16 %v760
        %v6112 = vunpack.c.h.b16 %v760
        %v6113 = vunpack.c.l.b16 %v761
        %v6114 = vunpack.c.h.b16 %v761
        %v6115 = vunpack.c.l.b16 %v762
        %v6116 = vunpack.c.h.b16 %v762
        %v6117 = vunpack.c.l.b16 %v763
        %v6118 = vunpack.c.h.b16 %v763
        %v6119 = vunpack.c.l.b16 %v764
        %v6120 = vunpack.c.h.b16 %v764
        %v6121 = vunpack.c.l.b16 %v765
        %v6122 = vunpack.c.h.b16 %v765
        %v6123 = vunpack.c.l.b16 %v766
        %v6124 = vunpack.c.h.b16 %v766
        %v6125 = vunpack.c.l.b16 %v767
        %v6126 = vunpack.c.h.b16 %v767
        %v6127 = vunpack.c.l.b16 %v768
        %v6128 = vunpack.c.h.b16 %v768
        %v6129 = vunpack.c.l.b16 %v769
        %v6130 = vunpack.c.h.b16 %v769
        %v6131 = vunpack.c.l.b16 %v770
        %v6132 = vunpack.c.h.b16 %v770
        %v6133 = vunpack.c.l.b16 %v771
        %v6134 = vunpack.c.h.b16 %v771
        %v6135 = vunpack.c.l.b16 %v772
        %v6136 = vunpack.c.h.b16 %v772
        %v6137 = vunpack.c.l.b16 %v773
        %v6138 = vunpack.c.h.b16 %v773
        %v6139 = vunpack.c.l.b16 %v774
        %v6140 = vunpack.c.h.b16 %v774
        %v6141 = vunpack.c.l.b16 %v775
        %v6142 = vunpack.c.h.b16 %v775
        %v6143 = vunpack.c.l.b16 %v776
        %v6144 = vunpack.c.h.b16 %v776
        %v6145 = vunpack.c.l.b16 %v777
        %v6146 = vunpack.c.h.b16 %v777
        %v6147 = vunpack.c.l.b16 %v778
        %v6148 = vunpack.c.h.b16 %v778
        %v6149 = vunpack.c.l.b16 %v779
        %v6150 = vunpack.c.h.b16 %v779
        %v6151 = vpack.c.b16 %v5643, %v5639
        %v6152 = vpack.c.b16 %v5644, %v5640
        %v6153 = vpack.c.b16 %v5645, %v5641
        %v6154 = vpack.c.b16 %v5646, %v5642
        %v6155 = vpack.c.b16 %v5651, %v5647
        %v6156 = vpack.c.b16 %v5652, %v5648
        %v6157 = vpack.c.b16 %v5653, %v5649
        %v6158 = vpack.c.b16 %v5654, %v5650
        %v6159 = vpack.c.b16 %v5659, %v5655
        %v6160 = vpack.c.b16 %v5660, %v5656
        %v6161 = vpack.c.b16 %v5661, %v5657
        %v6162 = vpack.c.b16 %v5662, %v5658
        %v6163 = vpack.c.b16 %v5667, %v5663
        %v6164 = vpack.c.b16 %v5668, %v5664
        %v6165 = vpack.c.b16 %v5669, %v5665
        %v6166 = vpack.c.b16 %v5670, %v5666
        %v6167 = vpack.c.b16 %v5675, %v5671
        %v6168 = vpack.c.b16 %v5676, %v5672
        %v6169 = vpack.c.b16 %v5677, %v5673
        %v6170 = vpack.c.b16 %v5678, %v5674
        %v6171 = vpack.c.b16 %v5683, %v5679
        %v6172 = vpack.c.b16 %v5684, %v5680
        %v6173 = vpack.c.b16 %v5685, %v5681
        %v6174 = vpack.c.b16 %v5686, %v5682
        %v6175 = vpack.c.b16 %v5691, %v5687
        %v6176 = vpack.c.b16 %v5692, %v5688
        %v6177 = vpack.c.b16 %v5693, %v5689
        %v6178 = vpack.c.b16 %v5694, %v5690
        %v6179 = vpack.c.b16 %v5699, %v5695
        %v6180 = vpack.c.b16 %v5700, %v5696
        %v6181 = vpack.c.b16 %v5701, %v5697
        %v6182 = vpack.c.b16 %v5702, %v5698
        %v6183 = vpack.c.b16 %v5707, %v5703
        %v6184 = vpack.c.b16 %v5708, %v5704
        %v6185 = vpack.c.b16 %v5709, %v5705
        %v6186 = vpack.c.b16 %v5710, %v5706
        %v6187 = vpack.c.b16 %v5715, %v5711
        %v6188 = vpack.c.b16 %v5716, %v5712
        %v6189 = vpack.c.b16 %v5717, %v5713
        %v6190 = vpack.c.b16 %v5718, %v5714
        %v6191 = vpack.c.b16 %v5723, %v5719
        %v6192 = vpack.c.b16 %v5724, %v5720
        %v6193 = vpack.c.b16 %v5725, %v5721
        %v6194 = vpack.c.b16 %v5726, %v5722
        %v6195 = vpack.c.b16 %v5731, %v5727
        %v6196 = vpack.c.b16 %v5732, %v5728
        %v6197 = vpack.c.b16 %v5733, %v5729
        %v6198 = vpack.c.b16 %v5734, %v5730
        %v6199 = vpack.c.b16 %v5739, %v5735
        %v6200 = vpack.c.b16 %v5740, %v5736
        %v6201 = vpack.c.b16 %v5741, %v5737
        %v6202 = vpack.c.b16 %v5742, %v5738
        %v6203 = vpack.c.b16 %v5747, %v5743
        %v6204 = vpack.c.b16 %v5748, %v5744
        %v6205 = vpack.c.b16 %v5749, %v5745
        %v6206 = vpack.c.b16 %v5750, %v5746
        %v6207 = vpack.c.b16 %v5755, %v5751
        %v6208 = vpack.c.b16 %v5756, %v5752
        %v6209 = vpack.c.b16 %v5757, %v5753
        %v6210 = vpack.c.b16 %v5758, %v5754
        %v6211 = vpack.c.b16 %v5763, %v5759
        %v6212 = vpack.c.b16 %v5764, %v5760
        %v6213 = vpack.c.b16 %v5765, %v5761
        %v6214 = vpack.c.b16 %v5766, %v5762
        %v6215 = vpack.c.b16 %v5771, %v5767
        %v6216 = vpack.c.b16 %v5772, %v5768
        %v6217 = vpack.c.b16 %v5773, %v5769
        %v6218 = vpack.c.b16 %v5774, %v5770
        %v6219 = vpack.c.b16 %v5779, %v5775
        %v6220 = vpack.c.b16 %v5780, %v5776
        %v6221 = vpack.c.b16 %v5781, %v5777
        %v6222 = vpack.c.b16 %v5782, %v5778
        %v6223 = vpack.c.b16 %v5787, %v5783
        %v6224 = vpack.c.b16 %v5788, %v5784
        %v6225 = vpack.c.b16 %v5789, %v5785
        %v6226 = vpack.c.b16 %v5790, %v5786
        %v6227 = vpack.c.b16 %v5795, %v5791
        %v6228 = vpack.c.b16 %v5796, %v5792
        %v6229 = vpack.c.b16 %v5797, %v5793
        %v6230 = vpack.c.b16 %v5798, %v5794
        %v6231 = vpack.c.b16 %v5803, %v5799
        %v6232 = vpack.c.b16 %v5804, %v5800
        %v6233 = vpack.c.b16 %v5805, %v5801
        %v6234 = vpack.c.b16 %v5806, %v5802
        %v6235 = vpack.c.b16 %v5811, %v5807
        %v6236 = vpack.c.b16 %v5812, %v5808
        %v6237 = vpack.c.b16 %v5813, %v5809
        %v6238 = vpack.c.b16 %v5814, %v5810
        %v6239 = vpack.c.b16 %v5819, %v5815
        %v6240 = vpack.c.b16 %v5820, %v5816
        %v6241 = vpack.c.b16 %v5821, %v5817
        %v6242 = vpack.c.b16 %v5822, %v5818
        %v6243 = vpack.c.b16 %v5827, %v5823
        %v6244 = vpack.c.b16 %v5828, %v5824
        %v6245 = vpack.c.b16 %v5829, %v5825
        %v6246 = vpack.c.b16 %v5830, %v5826
        %v6247 = vpack.c.b16 %v5835, %v5831
        %v6248 = vpack.c.b16 %v5836, %v5832
        %v6249 = vpack.c.b16 %v5837, %v5833
        %v6250 = vpack.c.b16 %v5838, %v5834
        %v6251 = vpack.c.b16 %v5843, %v5839
        %v6252 = vpack.c.b16 %v5844, %v5840
        %v6253 = vpack.c.b16 %v5845, %v5841
        %v6254 = vpack.c.b16 %v5846, %v5842
        %v6255 = vpack.c.b16 %v5851, %v5847
        %v6256 = vpack.c.b16 %v5852, %v5848
        %v6257 = vpack.c.b16 %v5853, %v5849
        %v6258 = vpack.c.b16 %v5854, %v5850
        %v6259 = vpack.c.b16 %v5859, %v5855
        %v6260 = vpack.c.b16 %v5860, %v5856
        %v6261 = vpack.c.b16 %v5861, %v5857
        %v6262 = vpack.c.b16 %v5862, %v5858
        %v6263 = vpack.c.b16 %v5867, %v5863
        %v6264 = vpack.c.b16 %v5868, %v5864
        %v6265 = vpack.c.b16 %v5869, %v5865
        %v6266 = vpack.c.b16 %v5870, %v5866
        %v6267 = vpack.c.b16 %v5875, %v5871
        %v6268 = vpack.c.b16 %v5876, %v5872
        %v6269 = vpack.c.b16 %v5877, %v5873
        %v6270 = vpack.c.b16 %v5878, %v5874
        %v6271 = vpack.c.b16 %v5883, %v5879
        %v6272 = vpack.c.b16 %v5884, %v5880
        %v6273 = vpack.c.b16 %v5885, %v5881
        %v6274 = vpack.c.b16 %v5886, %v5882
        %v6275 = vpack.c.b16 %v5891, %v5887
        %v6276 = vpack.c.b16 %v5892, %v5888
        %v6277 = vpack.c.b16 %v5893, %v5889
        %v6278 = vpack.c.b16 %v5894, %v5890
        %v6279 = vpack.c.b16 %v5899, %v5895
        %v6280 = vpack.c.b16 %v5900, %v5896
        %v6281 = vpack.c.b16 %v5901, %v5897
        %v6282 = vpack.c.b16 %v5902, %v5898
        %v6283 = vpack.c.b16 %v5907, %v5903
        %v6284 = vpack.c.b16 %v5908, %v5904
        %v6285 = vpack.c.b16 %v5909, %v5905
        %v6286 = vpack.c.b16 %v5910, %v5906
        %v6287 = vpack.c.b16 %v5915, %v5911
        %v6288 = vpack.c.b16 %v5916, %v5912
        %v6289 = vpack.c.b16 %v5917, %v5913
        %v6290 = vpack.c.b16 %v5918, %v5914
        %v6291 = vpack.c.b16 %v5923, %v5919
        %v6292 = vpack.c.b16 %v5924, %v5920
        %v6293 = vpack.c.b16 %v5925, %v5921
        %v6294 = vpack.c.b16 %v5926, %v5922
        %v6295 = vpack.c.b16 %v5931, %v5927
        %v6296 = vpack.c.b16 %v5932, %v5928
        %v6297 = vpack.c.b16 %v5933, %v5929
        %v6298 = vpack.c.b16 %v5934, %v5930
        %v6299 = vpack.c.b16 %v5939, %v5935
        %v6300 = vpack.c.b16 %v5940, %v5936
        %v6301 = vpack.c.b16 %v5941, %v5937
        %v6302 = vpack.c.b16 %v5942, %v5938
        %v6303 = vpack.c.b16 %v5947, %v5943
        %v6304 = vpack.c.b16 %v5948, %v5944
        %v6305 = vpack.c.b16 %v5949, %v5945
        %v6306 = vpack.c.b16 %v5950, %v5946
        %v6307 = vpack.c.b16 %v5955, %v5951
        %v6308 = vpack.c.b16 %v5956, %v5952
        %v6309 = vpack.c.b16 %v5957, %v5953
        %v6310 = vpack.c.b16 %v5958, %v5954
        %v6311 = vpack.c.b16 %v5963, %v5959
        %v6312 = vpack.c.b16 %v5964, %v5960
        %v6313 = vpack.c.b16 %v5965, %v5961
        %v6314 = vpack.c.b16 %v5966, %v5962
        %v6315 = vpack.c.b16 %v5971, %v5967
        %v6316 = vpack.c.b16 %v5972, %v5968
        %v6317 = vpack.c.b16 %v5973, %v5969
        %v6318 = vpack.c.b16 %v5974, %v5970
        %v6319 = vpack.c.b16 %v5979, %v5975
        %v6320 = vpack.c.b16 %v5980, %v5976
        %v6321 = vpack.c.b16 %v5981, %v5977
        %v6322 = vpack.c.b16 %v5982, %v5978
        %v6323 = vpack.c.b16 %v5987, %v5983
        %v6324 = vpack.c.b16 %v5988, %v5984
        %v6325 = vpack.c.b16 %v5989, %v5985
        %v6326 = vpack.c.b16 %v5990, %v5986
        %v6327 = vpack.c.b16 %v5995, %v5991
        %v6328 = vpack.c.b16 %v5996, %v5992
        %v6329 = vpack.c.b16 %v5997, %v5993
        %v6330 = vpack.c.b16 %v5998, %v5994
        %v6331 = vpack.c.b16 %v6003, %v5999
        %v6332 = vpack.c.b16 %v6004, %v6000
        %v6333 = vpack.c.b16 %v6005, %v6001
        %v6334 = vpack.c.b16 %v6006, %v6002
        %v6335 = vpack.c.b16 %v6011, %v6007
        %v6336 = vpack.c.b16 %v6012, %v6008
        %v6337 = vpack.c.b16 %v6013, %v6009
        %v6338 = vpack.c.b16 %v6014, %v6010
        %v6339 = vpack.c.b16 %v6019, %v6015
        %v6340 = vpack.c.b16 %v6020, %v6016
        %v6341 = vpack.c.b16 %v6021, %v6017
        %v6342 = vpack.c.b16 %v6022, %v6018
        %v6343 = vpack.c.b16 %v6027, %v6023
        %v6344 = vpack.c.b16 %v6028, %v6024
        %v6345 = vpack.c.b16 %v6029, %v6025
        %v6346 = vpack.c.b16 %v6030, %v6026
        %v6347 = vpack.c.b16 %v6035, %v6031
        %v6348 = vpack.c.b16 %v6036, %v6032
        %v6349 = vpack.c.b16 %v6037, %v6033
        %v6350 = vpack.c.b16 %v6038, %v6034
        %v6351 = vpack.c.b16 %v6043, %v6039
        %v6352 = vpack.c.b16 %v6044, %v6040
        %v6353 = vpack.c.b16 %v6045, %v6041
        %v6354 = vpack.c.b16 %v6046, %v6042
        %v6355 = vpack.c.b16 %v6051, %v6047
        %v6356 = vpack.c.b16 %v6052, %v6048
        %v6357 = vpack.c.b16 %v6053, %v6049
        %v6358 = vpack.c.b16 %v6054, %v6050
        %v6359 = vpack.c.b16 %v6059, %v6055
        %v6360 = vpack.c.b16 %v6060, %v6056
        %v6361 = vpack.c.b16 %v6061, %v6057
        %v6362 = vpack.c.b16 %v6062, %v6058
        %v6363 = vpack.c.b16 %v6067, %v6063
        %v6364 = vpack.c.b16 %v6068, %v6064
        %v6365 = vpack.c.b16 %v6069, %v6065
        %v6366 = vpack.c.b16 %v6070, %v6066
        %v6367 = vpack.c.b16 %v6075, %v6071
        %v6368 = vpack.c.b16 %v6076, %v6072
        %v6369 = vpack.c.b16 %v6077, %v6073
        %v6370 = vpack.c.b16 %v6078, %v6074
        %v6371 = vpack.c.b16 %v6083, %v6079
        %v6372 = vpack.c.b16 %v6084, %v6080
        %v6373 = vpack.c.b16 %v6085, %v6081
        %v6374 = vpack.c.b16 %v6086, %v6082
        %v6375 = vpack.c.b16 %v6091, %v6087
        %v6376 = vpack.c.b16 %v6092, %v6088
        %v6377 = vpack.c.b16 %v6093, %v6089
        %v6378 = vpack.c.b16 %v6094, %v6090
        %v6379 = vpack.c.b16 %v6099, %v6095
        %v6380 = vpack.c.b16 %v6100, %v6096
        %v6381 = vpack.c.b16 %v6101, %v6097
        %v6382 = vpack.c.b16 %v6102, %v6098
        %v6383 = vpack.c.b16 %v6107, %v6103
        %v6384 = vpack.c.b16 %v6108, %v6104
        %v6385 = vpack.c.b16 %v6109, %v6105
        %v6386 = vpack.c.b16 %v6110, %v6106
        %v6387 = vpack.c.b16 %v6115, %v6111
        %v6388 = vpack.c.b16 %v6116, %v6112
        %v6389 = vpack.c.b16 %v6117, %v6113
        %v6390 = vpack.c.b16 %v6118, %v6114
        %v6391 = vpack.c.b16 %v6123, %v6119
        %v6392 = vpack.c.b16 %v6124, %v6120
        %v6393 = vpack.c.b16 %v6125, %v6121
        %v6394 = vpack.c.b16 %v6126, %v6122
        %v6395 = vpack.c.b16 %v6131, %v6127
        %v6396 = vpack.c.b16 %v6132, %v6128
        %v6397 = vpack.c.b16 %v6133, %v6129
        %v6398 = vpack.c.b16 %v6134, %v6130
        %v6399 = vpack.c.b16 %v6139, %v6135
        %v6400 = vpack.c.b16 %v6140, %v6136
        %v6401 = vpack.c.b16 %v6141, %v6137
        %v6402 = vpack.c.b16 %v6142, %v6138
        %v6403 = vpack.c.b16 %v6147, %v6143
        %v6404 = vpack.c.b16 %v6148, %v6144
        %v6405 = vpack.c.b16 %v6149, %v6145
        %v6406 = vpack.c.b16 %v6150, %v6146
        %6663 = vmatprep.subr.bf16.mxu0 %v6180
        %6664 = vmatpush1.bf16.msra.mxu0 %v6179
        %6665 = vmatprep.subr.bf16.mxu0 %v6176
        %6666 = vmatpush1.bf16.msra.mxu0 %v6175
        %6667 = vmatprep.subr.bf16.mxu0 %v6172
        %6668 = vmatpush1.bf16.msra.mxu0 %v6171
        %6669 = vmatprep.subr.bf16.mxu0 %v6168
        %6670 = vmatpush1.bf16.msra.mxu0 %v6167
        %6671 = vmatprep.subr.bf16.mxu0 %v6164
        %6672 = vmatpush1.bf16.msra.mxu0 %v6163
        %6673 = vmatprep.subr.bf16.mxu0 %v6160
        %6674 = vmatpush1.bf16.msra.mxu0 %v6159
        %6675 = vmatprep.subr.bf16.mxu0 %v6156
        %6676 = vmatpush1.bf16.msra.mxu0 %v6155
        %6677 = vmatprep.subr.bf16.mxu0 %v6152
        %6678 = vmatpush1.bf16.msra.mxu0 %v6151
        %6679 = vmatprep.subr.bf16.mxu0 %v6212
        %6680 = vmatpush2.bf16.msra.mxu0 %v6211
        %6681 = vmatprep.subr.bf16.mxu0 %v6208
        %6682 = vmatpush2.bf16.msra.mxu0 %v6207
        %6683 = vmatprep.subr.bf16.mxu0 %v6204
        %6684 = vmatpush2.bf16.msra.mxu0 %v6203
        %6685 = vmatprep.subr.bf16.mxu0 %v6200
        %6686 = vmatpush2.bf16.msra.mxu0 %v6199
        %6687 = vmatprep.subr.bf16.mxu0 %v6196
        %6688 = vmatpush2.bf16.msra.mxu0 %v6195
        %6689 = vmatprep.subr.bf16.mxu0 %v6192
        %6690 = vmatpush2.bf16.msra.mxu0 %v6191
        %6691 = vmatprep.subr.bf16.mxu0 %v6188
        %6692 = vmatpush2.bf16.msra.mxu0 %v6187
        %6693 = vmatprep.subr.bf16.mxu0 %v6184
        %6694 = vmatpush2.bf16.msra.mxu0 %v6183
        %6695 = vmatprep.mubr.bf16.mxu0 %v5368
        %6696 = vmatmul.mubr.bf16.gmra.mxu0 %v5367
        %v6697 = vpop.f32.mrf.mxu0
        %v6698 = vadd.f32 %v5313, %v6697
        %v6699 = vpop.f32.mrf.mxu0
        %v6700 = vadd.f32 %v5317, %v6699
        %v6701 = vpop.f32.mrf.mxu0
        %v6702 = vpop.f32.mrf.mxu0
        %6703 = vdwg.mxu0
        %6704 = vmatprep.subr.bf16.mxu0 %v6244
        %6705 = vmatpush1.bf16.msra.mxu0 %v6243
        %6706 = vmatprep.subr.bf16.mxu0 %v6240
        %6707 = vmatpush1.bf16.msra.mxu0 %v6239
        %6708 = vmatprep.subr.bf16.mxu0 %v6236
        %6709 = vmatpush1.bf16.msra.mxu0 %v6235
        %6710 = vmatprep.subr.bf16.mxu0 %v6232
        %6711 = vmatpush1.bf16.msra.mxu0 %v6231
        %6712 = vmatprep.subr.bf16.mxu0 %v6228
        %6713 = vmatpush1.bf16.msra.mxu0 %v6227
        %6714 = vmatprep.subr.bf16.mxu0 %v6224
        %6715 = vmatpush1.bf16.msra.mxu0 %v6223
        %6716 = vmatprep.subr.bf16.mxu0 %v6220
        %6717 = vmatpush1.bf16.msra.mxu0 %v6219
        %6718 = vmatprep.subr.bf16.mxu0 %v6216
        %6719 = vmatpush1.bf16.msra.mxu0 %v6215
        %6720 = vmatprep.subr.bf16.mxu0 %v6276
        %6721 = vmatpush2.bf16.msra.mxu0 %v6275
        %6722 = vmatprep.subr.bf16.mxu0 %v6272
        %6723 = vmatpush2.bf16.msra.mxu0 %v6271
        %6724 = vmatprep.subr.bf16.mxu0 %v6268
        %6725 = vmatpush2.bf16.msra.mxu0 %v6267
        %6726 = vmatprep.subr.bf16.mxu0 %v6264
        %6727 = vmatpush2.bf16.msra.mxu0 %v6263
        %6728 = vmatprep.subr.bf16.mxu0 %v6260
        %6729 = vmatpush2.bf16.msra.mxu0 %v6259
        %6730 = vmatprep.subr.bf16.mxu0 %v6256
        %6731 = vmatpush2.bf16.msra.mxu0 %v6255
        %6732 = vmatprep.subr.bf16.mxu0 %v6252
        %6733 = vmatpush2.bf16.msra.mxu0 %v6251
        %6734 = vmatprep.subr.bf16.mxu0 %v6248
        %6735 = vmatpush2.bf16.msra.mxu0 %v6247
        %6736 = vmatprep.mubr.bf16.mxu0 %v5370
        %6737 = vmatmul.mubr.bf16.gmra.mxu0 %v5369
        %v6738 = vpop.f32.mrf.mxu0
        %v6739 = vadd.f32 %v6698, %v6738
        %v6740 = vpop.f32.mrf.mxu0
        %v6741 = vadd.f32 %v6700, %v6740
        %v6742 = vpop.f32.mrf.mxu0
        %v6743 = vpop.f32.mrf.mxu0
        %6744 = vdwg.mxu0
        %6745 = vmatprep.subr.bf16.mxu0 %v6308
        %6746 = vmatpush1.bf16.msra.mxu0 %v6307
        %6747 = vmatprep.subr.bf16.mxu0 %v6304
        %6748 = vmatpush1.bf16.msra.mxu0 %v6303
        %6749 = vmatprep.subr.bf16.mxu0 %v6300
        %6750 = vmatpush1.bf16.msra.mxu0 %v6299
        %6751 = vmatprep.subr.bf16.mxu0 %v6296
        %6752 = vmatpush1.bf16.msra.mxu0 %v6295
        %6753 = vmatprep.subr.bf16.mxu0 %v6292
        %6754 = vmatpush1.bf16.msra.mxu0 %v6291
        %6755 = vmatprep.subr.bf16.mxu0 %v6288
        %6756 = vmatpush1.bf16.msra.mxu0 %v6287
        %6757 = vmatprep.subr.bf16.mxu0 %v6284
        %6758 = vmatpush1.bf16.msra.mxu0 %v6283
        %6759 = vmatprep.subr.bf16.mxu0 %v6280
        %6760 = vmatpush1.bf16.msra.mxu0 %v6279
        %6761 = vmatprep.subr.bf16.mxu0 %v6340
        %6762 = vmatpush2.bf16.msra.mxu0 %v6339
        %6763 = vmatprep.subr.bf16.mxu0 %v6336
        %6764 = vmatpush2.bf16.msra.mxu0 %v6335
        %6765 = vmatprep.subr.bf16.mxu0 %v6332
        %6766 = vmatpush2.bf16.msra.mxu0 %v6331
        %6767 = vmatprep.subr.bf16.mxu0 %v6328
        %6768 = vmatpush2.bf16.msra.mxu0 %v6327
        %6769 = vmatprep.subr.bf16.mxu0 %v6324
        %6770 = vmatpush2.bf16.msra.mxu0 %v6323
        %6771 = vmatprep.subr.bf16.mxu0 %v6320
        %6772 = vmatpush2.bf16.msra.mxu0 %v6319
        %6773 = vmatprep.subr.bf16.mxu0 %v6316
        %6774 = vmatpush2.bf16.msra.mxu0 %v6315
        %6775 = vmatprep.subr.bf16.mxu0 %v6312
        %6776 = vmatpush2.bf16.msra.mxu0 %v6311
        %6777 = vmatprep.mubr.bf16.mxu0 %v5372
        %6778 = vmatmul.mubr.bf16.gmra.mxu0 %v5371
        %v6779 = vpop.f32.mrf.mxu0
        %v6780 = vadd.f32 %v6739, %v6779
        %v6781 = vpop.f32.mrf.mxu0
        %v6782 = vadd.f32 %v6741, %v6781
        %v6783 = vpop.f32.mrf.mxu0
        %v6784 = vpop.f32.mrf.mxu0
        %6785 = vdwg.mxu0
        %6786 = vmatprep.subr.bf16.mxu0 %v6372
        %6787 = vmatpush1.bf16.msra.mxu0 %v6371
        %6788 = vmatprep.subr.bf16.mxu0 %v6368
        %6789 = vmatpush1.bf16.msra.mxu0 %v6367
        %6790 = vmatprep.subr.bf16.mxu0 %v6364
        %6791 = vmatpush1.bf16.msra.mxu0 %v6363
        %6792 = vmatprep.subr.bf16.mxu0 %v6360
        %6793 = vmatpush1.bf16.msra.mxu0 %v6359
        %6794 = vmatprep.subr.bf16.mxu0 %v6356
        %6795 = vmatpush1.bf16.msra.mxu0 %v6355
        %6796 = vmatprep.subr.bf16.mxu0 %v6352
        %6797 = vmatpush1.bf16.msra.mxu0 %v6351
        %6798 = vmatprep.subr.bf16.mxu0 %v6348
        %6799 = vmatpush1.bf16.msra.mxu0 %v6347
        %6800 = vmatprep.subr.bf16.mxu0 %v6344
        %6801 = vmatpush1.bf16.msra.mxu0 %v6343
        %6802 = vmatprep.subr.bf16.mxu0 %v6404
        %6803 = vmatpush2.bf16.msra.mxu0 %v6403
        %6804 = vmatprep.subr.bf16.mxu0 %v6400
        %6805 = vmatpush2.bf16.msra.mxu0 %v6399
        %6806 = vmatprep.subr.bf16.mxu0 %v6396
        %6807 = vmatpush2.bf16.msra.mxu0 %v6395
        %6808 = vmatprep.subr.bf16.mxu0 %v6392
        %6809 = vmatpush2.bf16.msra.mxu0 %v6391
        %6810 = vmatprep.subr.bf16.mxu0 %v6388
        %6811 = vmatpush2.bf16.msra.mxu0 %v6387
        %6812 = vmatprep.subr.bf16.mxu0 %v6384
        %6813 = vmatpush2.bf16.msra.mxu0 %v6383
        %6814 = vmatprep.subr.bf16.mxu0 %v6380
        %6815 = vmatpush2.bf16.msra.mxu0 %v6379
        %6816 = vmatprep.subr.bf16.mxu0 %v6376
        %6817 = vmatpush2.bf16.msra.mxu0 %v6375
        %6818 = vmatprep.mubr.bf16.mxu0 %v5374
        %6819 = vmatmul.mubr.bf16.gmra.mxu0 %v5373
        %v6820 = vpop.f32.mrf.mxu0
        %v6821 = vadd.f32 %v6780, %v6820
        %v6822 = vpop.f32.mrf.mxu0
        %v6823 = vadd.f32 %v6782, %v6822
        %v6824 = vpop.f32.mrf.mxu0
        %v6825 = vpop.f32.mrf.mxu0
        %6826 = vdwg.mxu0
        %6827 = vmatprep.subr.bf16.mxu0 %v6182
        %6828 = vmatpush1.bf16.msra.mxu0 %v6181
        %6829 = vmatprep.subr.bf16.mxu0 %v6178
        %6830 = vmatpush1.bf16.msra.mxu0 %v6177
        %6831 = vmatprep.subr.bf16.mxu0 %v6174
        %6832 = vmatpush1.bf16.msra.mxu0 %v6173
        %6833 = vmatprep.subr.bf16.mxu0 %v6170
        %6834 = vmatpush1.bf16.msra.mxu0 %v6169
        %6835 = vmatprep.subr.bf16.mxu0 %v6166
        %6836 = vmatpush1.bf16.msra.mxu0 %v6165
        %6837 = vmatprep.subr.bf16.mxu0 %v6162
        %6838 = vmatpush1.bf16.msra.mxu0 %v6161
        %6839 = vmatprep.subr.bf16.mxu0 %v6158
        %6840 = vmatpush1.bf16.msra.mxu0 %v6157
        %6841 = vmatprep.subr.bf16.mxu0 %v6154
        %6842 = vmatpush1.bf16.msra.mxu0 %v6153
        %6843 = vmatprep.subr.bf16.mxu0 %v6214
        %6844 = vmatpush2.bf16.msra.mxu0 %v6213
        %6845 = vmatprep.subr.bf16.mxu0 %v6210
        %6846 = vmatpush2.bf16.msra.mxu0 %v6209
        %6847 = vmatprep.subr.bf16.mxu0 %v6206
        %6848 = vmatpush2.bf16.msra.mxu0 %v6205
        %6849 = vmatprep.subr.bf16.mxu0 %v6202
        %6850 = vmatpush2.bf16.msra.mxu0 %v6201
        %6851 = vmatprep.subr.bf16.mxu0 %v6198
        %6852 = vmatpush2.bf16.msra.mxu0 %v6197
        %6853 = vmatprep.subr.bf16.mxu0 %v6194
        %6854 = vmatpush2.bf16.msra.mxu0 %v6193
        %6855 = vmatprep.subr.bf16.mxu0 %v6190
        %6856 = vmatpush2.bf16.msra.mxu0 %v6189
        %6857 = vmatprep.subr.bf16.mxu0 %v6186
        %6858 = vmatpush2.bf16.msra.mxu0 %v6185
        %6859 = vmatprep.mubr.bf16.mxu0 %v5368
        %6860 = vmatmul.mubr.bf16.gmra.mxu0 %v5367
        %v6861 = vpop.f32.mrf.mxu0
        %v6862 = vadd.f32 %v5321, %v6861
        %v6863 = vpop.f32.mrf.mxu0
        %v6864 = vadd.f32 %v5325, %v6863
        %v6865 = vpop.f32.mrf.mxu0
        %v6866 = vpop.f32.mrf.mxu0
        %6867 = vdwg.mxu0
        %6868 = vmatprep.subr.bf16.mxu0 %v6246
        %6869 = vmatpush1.bf16.msra.mxu0 %v6245
        %6870 = vmatprep.subr.bf16.mxu0 %v6242
        %6871 = vmatpush1.bf16.msra.mxu0 %v6241
        %6872 = vmatprep.subr.bf16.mxu0 %v6238
        %6873 = vmatpush1.bf16.msra.mxu0 %v6237
        %6874 = vmatprep.subr.bf16.mxu0 %v6234
        %6875 = vmatpush1.bf16.msra.mxu0 %v6233
        %6876 = vmatprep.subr.bf16.mxu0 %v6230
        %6877 = vmatpush1.bf16.msra.mxu0 %v6229
        %6878 = vmatprep.subr.bf16.mxu0 %v6226
        %6879 = vmatpush1.bf16.msra.mxu0 %v6225
        %6880 = vmatprep.subr.bf16.mxu0 %v6222
        %6881 = vmatpush1.bf16.msra.mxu0 %v6221
        %6882 = vmatprep.subr.bf16.mxu0 %v6218
        %6883 = vmatpush1.bf16.msra.mxu0 %v6217
        %6884 = vmatprep.subr.bf16.mxu0 %v6278
        %6885 = vmatpush2.bf16.msra.mxu0 %v6277
        %6886 = vmatprep.subr.bf16.mxu0 %v6274
        %6887 = vmatpush2.bf16.msra.mxu0 %v6273
        %6888 = vmatprep.subr.bf16.mxu0 %v6270
        %6889 = vmatpush2.bf16.msra.mxu0 %v6269
        %6890 = vmatprep.subr.bf16.mxu0 %v6266
        %6891 = vmatpush2.bf16.msra.mxu0 %v6265
        %6892 = vmatprep.subr.bf16.mxu0 %v6262
        %6893 = vmatpush2.bf16.msra.mxu0 %v6261
        %6894 = vmatprep.subr.bf16.mxu0 %v6258
        %6895 = vmatpush2.bf16.msra.mxu0 %v6257
        %6896 = vmatprep.subr.bf16.mxu0 %v6254
        %6897 = vmatpush2.bf16.msra.mxu0 %v6253
        %6898 = vmatprep.subr.bf16.mxu0 %v6250
        %6899 = vmatpush2.bf16.msra.mxu0 %v6249
        %6900 = vmatprep.mubr.bf16.mxu0 %v5370
        %6901 = vmatmul.mubr.bf16.gmra.mxu0 %v5369
        %v6902 = vpop.f32.mrf.mxu0
        %v6903 = vadd.f32 %v6862, %v6902
        %v6904 = vpop.f32.mrf.mxu0
        %v6905 = vadd.f32 %v6864, %v6904
        %v6906 = vpop.f32.mrf.mxu0
        %v6907 = vpop.f32.mrf.mxu0
        %6908 = vdwg.mxu0
        %6909 = vmatprep.subr.bf16.mxu0 %v6310
        %6910 = vmatpush1.bf16.msra.mxu0 %v6309
        %6911 = vmatprep.subr.bf16.mxu0 %v6306
        %6912 = vmatpush1.bf16.msra.mxu0 %v6305
        %6913 = vmatprep.subr.bf16.mxu0 %v6302
        %6914 = vmatpush1.bf16.msra.mxu0 %v6301
        %6915 = vmatprep.subr.bf16.mxu0 %v6298
        %6916 = vmatpush1.bf16.msra.mxu0 %v6297
        %6917 = vmatprep.subr.bf16.mxu0 %v6294
        %6918 = vmatpush1.bf16.msra.mxu0 %v6293
        %6919 = vmatprep.subr.bf16.mxu0 %v6290
        %6920 = vmatpush1.bf16.msra.mxu0 %v6289
        %6921 = vmatprep.subr.bf16.mxu0 %v6286
        %6922 = vmatpush1.bf16.msra.mxu0 %v6285
        %6923 = vmatprep.subr.bf16.mxu0 %v6282
        %6924 = vmatpush1.bf16.msra.mxu0 %v6281
        %6925 = vmatprep.subr.bf16.mxu0 %v6342
        %6926 = vmatpush2.bf16.msra.mxu0 %v6341
        %6927 = vmatprep.subr.bf16.mxu0 %v6338
        %6928 = vmatpush2.bf16.msra.mxu0 %v6337
        %6929 = vmatprep.subr.bf16.mxu0 %v6334
        %6930 = vmatpush2.bf16.msra.mxu0 %v6333
        %6931 = vmatprep.subr.bf16.mxu0 %v6330
        %6932 = vmatpush2.bf16.msra.mxu0 %v6329
        %6933 = vmatprep.subr.bf16.mxu0 %v6326
        %6934 = vmatpush2.bf16.msra.mxu0 %v6325
        %6935 = vmatprep.subr.bf16.mxu0 %v6322
        %6936 = vmatpush2.bf16.msra.mxu0 %v6321
        %6937 = vmatprep.subr.bf16.mxu0 %v6318
        %6938 = vmatpush2.bf16.msra.mxu0 %v6317
        %6939 = vmatprep.subr.bf16.mxu0 %v6314
        %6940 = vmatpush2.bf16.msra.mxu0 %v6313
        %6941 = vmatprep.mubr.bf16.mxu0 %v5372
        %6942 = vmatmul.mubr.bf16.gmra.mxu0 %v5371
        %v6943 = vpop.f32.mrf.mxu0
        %v6944 = vadd.f32 %v6903, %v6943
        %v6945 = vpop.f32.mrf.mxu0
        %v6946 = vadd.f32 %v6905, %v6945
        %v6947 = vpop.f32.mrf.mxu0
        %v6948 = vpop.f32.mrf.mxu0
        %6949 = vdwg.mxu0
        %6950 = vmatprep.subr.bf16.mxu0 %v6374
        %6951 = vmatpush1.bf16.msra.mxu0 %v6373
        %6952 = vmatprep.subr.bf16.mxu0 %v6370
        %6953 = vmatpush1.bf16.msra.mxu0 %v6369
        %6954 = vmatprep.subr.bf16.mxu0 %v6366
        %6955 = vmatpush1.bf16.msra.mxu0 %v6365
        %6956 = vmatprep.subr.bf16.mxu0 %v6362
        %6957 = vmatpush1.bf16.msra.mxu0 %v6361
        %6958 = vmatprep.subr.bf16.mxu0 %v6358
        %6959 = vmatpush1.bf16.msra.mxu0 %v6357
        %6960 = vmatprep.subr.bf16.mxu0 %v6354
        %6961 = vmatpush1.bf16.msra.mxu0 %v6353
        %6962 = vmatprep.subr.bf16.mxu0 %v6350
        %6963 = vmatpush1.bf16.msra.mxu0 %v6349
        %6964 = vmatprep.subr.bf16.mxu0 %v6346
        %6965 = vmatpush1.bf16.msra.mxu0 %v6345
        %6966 = vmatprep.subr.bf16.mxu0 %v6406
        %6967 = vmatpush2.bf16.msra.mxu0 %v6405
        %6968 = vmatprep.subr.bf16.mxu0 %v6402
        %6969 = vmatpush2.bf16.msra.mxu0 %v6401
        %6970 = vmatprep.subr.bf16.mxu0 %v6398
        %6971 = vmatpush2.bf16.msra.mxu0 %v6397
        %6972 = vmatprep.subr.bf16.mxu0 %v6394
        %6973 = vmatpush2.bf16.msra.mxu0 %v6393
        %6974 = vmatprep.subr.bf16.mxu0 %v6390
        %6975 = vmatpush2.bf16.msra.mxu0 %v6389
        %6976 = vmatprep.subr.bf16.mxu0 %v6386
        %6977 = vmatpush2.bf16.msra.mxu0 %v6385
        %6978 = vmatprep.subr.bf16.mxu0 %v6382
        %6979 = vmatpush2.bf16.msra.mxu0 %v6381
        %6980 = vmatprep.subr.bf16.mxu0 %v6378
        %6981 = vmatpush2.bf16.msra.mxu0 %v6377
        %6982 = vmatprep.mubr.bf16.mxu0 %v5374
        %6983 = vmatmul.mubr.bf16.gmra.mxu0 %v5373
        %v6984 = vpop.f32.mrf.mxu0
        %v6985 = vadd.f32 %v6944, %v6984
        %v6986 = vpop.f32.mrf.mxu0
        %v6987 = vadd.f32 %v6946, %v6986
        %v6988 = vpop.f32.mrf.mxu0
        %v6989 = vpop.f32.mrf.mxu0
        %6990 = vdwg.mxu0
        %v6991 = vmax.f32 %v6821, 0.0
        %v6992 = vmax.f32 %v6823, 0.0
        %v6993 = vmax.f32 %v6985, 0.0
        %v6994 = vmax.f32 %v6987, 0.0
        %v6995 = vpack.c.bf16 %v6991, %v6991
        %v6996 = vpack.c.bf16 %v6992, %v6992
        %v6997 = vpack.c.bf16 %v6993, %v6993
        %v6998 = vpack.c.bf16 %v6994, %v6994
        %v6999 = vlaneseq
        %v7000 = vshrl.u32 %v6999, 7
        %v7001 = vsub.s32 4, %v7000
        %v7002 = vrot.slane %v436, %v7001
        %v7003 = vlaneseq
        %v7004 = vshrl.u32 %v7003, 7
        %v7005 = vsub.s32 4, %v7004
        %v7006 = vrot.slane %v437, %v7005
        %v7071 = vunpack.c.l.b16 %v780
        %v7072 = vunpack.c.h.b16 %v780
        %v7073 = vunpack.c.l.b16 %v781
        %v7074 = vunpack.c.h.b16 %v781
        %v7075 = vunpack.c.l.b16 %v782
        %v7076 = vunpack.c.h.b16 %v782
        %v7077 = vunpack.c.l.b16 %v783
        %v7078 = vunpack.c.h.b16 %v783
        %v7079 = vunpack.c.l.b16 %v784
        %v7080 = vunpack.c.h.b16 %v784
        %v7081 = vunpack.c.l.b16 %v785
        %v7082 = vunpack.c.h.b16 %v785
        %v7083 = vunpack.c.l.b16 %v786
        %v7084 = vunpack.c.h.b16 %v786
        %v7085 = vunpack.c.l.b16 %v787
        %v7086 = vunpack.c.h.b16 %v787
        %v7087 = vunpack.c.l.b16 %v788
        %v7088 = vunpack.c.h.b16 %v788
        %v7089 = vunpack.c.l.b16 %v789
        %v7090 = vunpack.c.h.b16 %v789
        %v7091 = vunpack.c.l.b16 %v790
        %v7092 = vunpack.c.h.b16 %v790
        %v7093 = vunpack.c.l.b16 %v791
        %v7094 = vunpack.c.h.b16 %v791
        %v7095 = vunpack.c.l.b16 %v792
        %v7096 = vunpack.c.h.b16 %v792
        %v7097 = vunpack.c.l.b16 %v793
        %v7098 = vunpack.c.h.b16 %v793
        %v7099 = vunpack.c.l.b16 %v794
        %v7100 = vunpack.c.h.b16 %v794
        %v7101 = vunpack.c.l.b16 %v795
        %v7102 = vunpack.c.h.b16 %v795
        %v7103 = vunpack.c.l.b16 %v796
        %v7104 = vunpack.c.h.b16 %v796
        %v7105 = vunpack.c.l.b16 %v797
        %v7106 = vunpack.c.h.b16 %v797
        %v7107 = vunpack.c.l.b16 %v798
        %v7108 = vunpack.c.h.b16 %v798
        %v7109 = vunpack.c.l.b16 %v799
        %v7110 = vunpack.c.h.b16 %v799
        %v7111 = vunpack.c.l.b16 %v800
        %v7112 = vunpack.c.h.b16 %v800
        %v7113 = vunpack.c.l.b16 %v801
        %v7114 = vunpack.c.h.b16 %v801
        %v7115 = vunpack.c.l.b16 %v802
        %v7116 = vunpack.c.h.b16 %v802
        %v7117 = vunpack.c.l.b16 %v803
        %v7118 = vunpack.c.h.b16 %v803
        %v7119 = vunpack.c.l.b16 %v804
        %v7120 = vunpack.c.h.b16 %v804
        %v7121 = vunpack.c.l.b16 %v805
        %v7122 = vunpack.c.h.b16 %v805
        %v7123 = vunpack.c.l.b16 %v806
        %v7124 = vunpack.c.h.b16 %v806
        %v7125 = vunpack.c.l.b16 %v807
        %v7126 = vunpack.c.h.b16 %v807
        %v7127 = vunpack.c.l.b16 %v808
        %v7128 = vunpack.c.h.b16 %v808
        %v7129 = vunpack.c.l.b16 %v809
        %v7130 = vunpack.c.h.b16 %v809
        %v7131 = vunpack.c.l.b16 %v810
        %v7132 = vunpack.c.h.b16 %v810
        %v7133 = vunpack.c.l.b16 %v811
        %v7134 = vunpack.c.h.b16 %v811
        %v7135 = vunpack.c.l.b16 %v812
        %v7136 = vunpack.c.h.b16 %v812
        %v7137 = vunpack.c.l.b16 %v813
        %v7138 = vunpack.c.h.b16 %v813
        %v7139 = vunpack.c.l.b16 %v814
        %v7140 = vunpack.c.h.b16 %v814
        %v7141 = vunpack.c.l.b16 %v815
        %v7142 = vunpack.c.h.b16 %v815
        %v7143 = vunpack.c.l.b16 %v816
        %v7144 = vunpack.c.h.b16 %v816
        %v7145 = vunpack.c.l.b16 %v817
        %v7146 = vunpack.c.h.b16 %v817
        %v7147 = vunpack.c.l.b16 %v818
        %v7148 = vunpack.c.h.b16 %v818
        %v7149 = vunpack.c.l.b16 %v819
        %v7150 = vunpack.c.h.b16 %v819
        %v7151 = vunpack.c.l.b16 %v820
        %v7152 = vunpack.c.h.b16 %v820
        %v7153 = vunpack.c.l.b16 %v821
        %v7154 = vunpack.c.h.b16 %v821
        %v7155 = vunpack.c.l.b16 %v822
        %v7156 = vunpack.c.h.b16 %v822
        %v7157 = vunpack.c.l.b16 %v823
        %v7158 = vunpack.c.h.b16 %v823
        %v7159 = vunpack.c.l.b16 %v824
        %v7160 = vunpack.c.h.b16 %v824
        %v7161 = vunpack.c.l.b16 %v825
        %v7162 = vunpack.c.h.b16 %v825
        %v7163 = vunpack.c.l.b16 %v826
        %v7164 = vunpack.c.h.b16 %v826
        %v7165 = vunpack.c.l.b16 %v827
        %v7166 = vunpack.c.h.b16 %v827
        %v7167 = vunpack.c.l.b16 %v828
        %v7168 = vunpack.c.h.b16 %v828
        %v7169 = vunpack.c.l.b16 %v829
        %v7170 = vunpack.c.h.b16 %v829
        %v7171 = vunpack.c.l.b16 %v830
        %v7172 = vunpack.c.h.b16 %v830
        %v7173 = vunpack.c.l.b16 %v831
        %v7174 = vunpack.c.h.b16 %v831
        %v7175 = vunpack.c.l.b16 %v832
        %v7176 = vunpack.c.h.b16 %v832
        %v7177 = vunpack.c.l.b16 %v833
        %v7178 = vunpack.c.h.b16 %v833
        %v7179 = vunpack.c.l.b16 %v834
        %v7180 = vunpack.c.h.b16 %v834
        %v7181 = vunpack.c.l.b16 %v835
        %v7182 = vunpack.c.h.b16 %v835
        %v7183 = vunpack.c.l.b16 %v836
        %v7184 = vunpack.c.h.b16 %v836
        %v7185 = vunpack.c.l.b16 %v837
        %v7186 = vunpack.c.h.b16 %v837
        %v7187 = vunpack.c.l.b16 %v838
        %v7188 = vunpack.c.h.b16 %v838
        %v7189 = vunpack.c.l.b16 %v839
        %v7190 = vunpack.c.h.b16 %v839
        %v7191 = vunpack.c.l.b16 %v840
        %v7192 = vunpack.c.h.b16 %v840
        %v7193 = vunpack.c.l.b16 %v841
        %v7194 = vunpack.c.h.b16 %v841
        %v7195 = vunpack.c.l.b16 %v842
        %v7196 = vunpack.c.h.b16 %v842
        %v7197 = vunpack.c.l.b16 %v843
        %v7198 = vunpack.c.h.b16 %v843
        %v7199 = vpack.c.b16 %v7073, %v7071
        %v7200 = vpack.c.b16 %v7074, %v7072
        %v7201 = vpack.c.b16 %v7077, %v7075
        %v7202 = vpack.c.b16 %v7078, %v7076
        %v7203 = vpack.c.b16 %v7081, %v7079
        %v7204 = vpack.c.b16 %v7082, %v7080
        %v7205 = vpack.c.b16 %v7085, %v7083
        %v7206 = vpack.c.b16 %v7086, %v7084
        %v7207 = vpack.c.b16 %v7089, %v7087
        %v7208 = vpack.c.b16 %v7090, %v7088
        %v7209 = vpack.c.b16 %v7093, %v7091
        %v7210 = vpack.c.b16 %v7094, %v7092
        %v7211 = vpack.c.b16 %v7097, %v7095
        %v7212 = vpack.c.b16 %v7098, %v7096
        %v7213 = vpack.c.b16 %v7101, %v7099
        %v7214 = vpack.c.b16 %v7102, %v7100
        %v7215 = vpack.c.b16 %v7105, %v7103
        %v7216 = vpack.c.b16 %v7106, %v7104
        %v7217 = vpack.c.b16 %v7109, %v7107
        %v7218 = vpack.c.b16 %v7110, %v7108
        %v7219 = vpack.c.b16 %v7113, %v7111
        %v7220 = vpack.c.b16 %v7114, %v7112
        %v7221 = vpack.c.b16 %v7117, %v7115
        %v7222 = vpack.c.b16 %v7118, %v7116
        %v7223 = vpack.c.b16 %v7121, %v7119
        %v7224 = vpack.c.b16 %v7122, %v7120
        %v7225 = vpack.c.b16 %v7125, %v7123
        %v7226 = vpack.c.b16 %v7126, %v7124
        %v7227 = vpack.c.b16 %v7129, %v7127
        %v7228 = vpack.c.b16 %v7130, %v7128
        %v7229 = vpack.c.b16 %v7133, %v7131
        %v7230 = vpack.c.b16 %v7134, %v7132
        %v7231 = vpack.c.b16 %v7137, %v7135
        %v7232 = vpack.c.b16 %v7138, %v7136
        %v7233 = vpack.c.b16 %v7141, %v7139
        %v7234 = vpack.c.b16 %v7142, %v7140
        %v7235 = vpack.c.b16 %v7145, %v7143
        %v7236 = vpack.c.b16 %v7146, %v7144
        %v7237 = vpack.c.b16 %v7149, %v7147
        %v7238 = vpack.c.b16 %v7150, %v7148
        %v7239 = vpack.c.b16 %v7153, %v7151
        %v7240 = vpack.c.b16 %v7154, %v7152
        %v7241 = vpack.c.b16 %v7157, %v7155
        %v7242 = vpack.c.b16 %v7158, %v7156
        %v7243 = vpack.c.b16 %v7161, %v7159
        %v7244 = vpack.c.b16 %v7162, %v7160
        %v7245 = vpack.c.b16 %v7165, %v7163
        %v7246 = vpack.c.b16 %v7166, %v7164
        %v7247 = vpack.c.b16 %v7169, %v7167
        %v7248 = vpack.c.b16 %v7170, %v7168
        %v7249 = vpack.c.b16 %v7173, %v7171
        %v7250 = vpack.c.b16 %v7174, %v7172
        %v7251 = vpack.c.b16 %v7177, %v7175
        %v7252 = vpack.c.b16 %v7178, %v7176
        %v7253 = vpack.c.b16 %v7181, %v7179
        %v7254 = vpack.c.b16 %v7182, %v7180
        %v7255 = vpack.c.b16 %v7185, %v7183
        %v7256 = vpack.c.b16 %v7186, %v7184
        %v7257 = vpack.c.b16 %v7189, %v7187
        %v7258 = vpack.c.b16 %v7190, %v7188
        %v7259 = vpack.c.b16 %v7193, %v7191
        %v7260 = vpack.c.b16 %v7194, %v7192
        %v7261 = vpack.c.b16 %v7197, %v7195
        %v7262 = vpack.c.b16 %v7198, %v7196
        %7327 = vmatprep.subr.bf16.mxu0 %v7214
        %7328 = vmatpush1.bf16.msra.mxu0 %v7213
        %7329 = vmatprep.subr.bf16.mxu0 %v7212
        %7330 = vmatpush1.bf16.msra.mxu0 %v7211
        %7331 = vmatprep.subr.bf16.mxu0 %v7210
        %7332 = vmatpush1.bf16.msra.mxu0 %v7209
        %7333 = vmatprep.subr.bf16.mxu0 %v7208
        %7334 = vmatpush1.bf16.msra.mxu0 %v7207
        %7335 = vmatprep.subr.bf16.mxu0 %v7206
        %7336 = vmatpush1.bf16.msra.mxu0 %v7205
        %7337 = vmatprep.subr.bf16.mxu0 %v7204
        %7338 = vmatpush1.bf16.msra.mxu0 %v7203
        %7339 = vmatprep.subr.bf16.mxu0 %v7202
        %7340 = vmatpush1.bf16.msra.mxu0 %v7201
        %7341 = vmatprep.subr.bf16.mxu0 %v7200
        %7342 = vmatpush1.bf16.msra.mxu0 %v7199
        %7343 = vmatprep.subr.bf16.mxu0 %v7230
        %7344 = vmatpush2.bf16.msra.mxu0 %v7229
        %7345 = vmatprep.subr.bf16.mxu0 %v7228
        %7346 = vmatpush2.bf16.msra.mxu0 %v7227
        %7347 = vmatprep.subr.bf16.mxu0 %v7226
        %7348 = vmatpush2.bf16.msra.mxu0 %v7225
        %7349 = vmatprep.subr.bf16.mxu0 %v7224
        %7350 = vmatpush2.bf16.msra.mxu0 %v7223
        %7351 = vmatprep.subr.bf16.mxu0 %v7222
        %7352 = vmatpush2.bf16.msra.mxu0 %v7221
        %7353 = vmatprep.subr.bf16.mxu0 %v7220
        %7354 = vmatpush2.bf16.msra.mxu0 %v7219
        %7355 = vmatprep.subr.bf16.mxu0 %v7218
        %7356 = vmatpush2.bf16.msra.mxu0 %v7217
        %7357 = vmatprep.subr.bf16.mxu0 %v7216
        %7358 = vmatpush2.bf16.msra.mxu0 %v7215
        %7359 = vmatprep.mubr.bf16.mxu0 %v6996
        %7360 = vmatmul.mubr.bf16.gmra.mxu0 %v6995
        %v7361 = vpop.f32.mrf.mxu0
        %v7362 = vadd.f32 %v7002, %v7361
        %v7363 = vpop.f32.mrf.mxu0
        %v7364 = vadd.f32 %v7006, %v7363
        %v7365 = vpop.f32.mrf.mxu0
        %v7366 = vpop.f32.mrf.mxu0
        %7367 = vdwg.mxu0
        %7368 = vmatprep.subr.bf16.mxu0 %v7246
        %7369 = vmatpush1.bf16.msra.mxu0 %v7245
        %7370 = vmatprep.subr.bf16.mxu0 %v7244
        %7371 = vmatpush1.bf16.msra.mxu0 %v7243
        %7372 = vmatprep.subr.bf16.mxu0 %v7242
        %7373 = vmatpush1.bf16.msra.mxu0 %v7241
        %7374 = vmatprep.subr.bf16.mxu0 %v7240
        %7375 = vmatpush1.bf16.msra.mxu0 %v7239
        %7376 = vmatprep.subr.bf16.mxu0 %v7238
        %7377 = vmatpush1.bf16.msra.mxu0 %v7237
        %7378 = vmatprep.subr.bf16.mxu0 %v7236
        %7379 = vmatpush1.bf16.msra.mxu0 %v7235
        %7380 = vmatprep.subr.bf16.mxu0 %v7234
        %7381 = vmatpush1.bf16.msra.mxu0 %v7233
        %7382 = vmatprep.subr.bf16.mxu0 %v7232
        %7383 = vmatpush1.bf16.msra.mxu0 %v7231
        %7384 = vmatprep.subr.bf16.mxu0 %v7262
        %7385 = vmatpush2.bf16.msra.mxu0 %v7261
        %7386 = vmatprep.subr.bf16.mxu0 %v7260
        %7387 = vmatpush2.bf16.msra.mxu0 %v7259
        %7388 = vmatprep.subr.bf16.mxu0 %v7258
        %7389 = vmatpush2.bf16.msra.mxu0 %v7257
        %7390 = vmatprep.subr.bf16.mxu0 %v7256
        %7391 = vmatpush2.bf16.msra.mxu0 %v7255
        %7392 = vmatprep.subr.bf16.mxu0 %v7254
        %7393 = vmatpush2.bf16.msra.mxu0 %v7253
        %7394 = vmatprep.subr.bf16.mxu0 %v7252
        %7395 = vmatpush2.bf16.msra.mxu0 %v7251
        %7396 = vmatprep.subr.bf16.mxu0 %v7250
        %7397 = vmatpush2.bf16.msra.mxu0 %v7249
        %7398 = vmatprep.subr.bf16.mxu0 %v7248
        %7399 = vmatpush2.bf16.msra.mxu0 %v7247
        %7400 = vmatprep.mubr.bf16.mxu0 %v6998
        %7401 = vmatmul.mubr.bf16.gmra.mxu0 %v6997
        %v7402 = vpop.f32.mrf.mxu0
        %v7403 = vadd.f32 %v7362, %v7402
        %v7404 = vpop.f32.mrf.mxu0
        %v7405 = vadd.f32 %v7364, %v7404
        %v7406 = vpop.f32.mrf.mxu0
        %v7407 = vpop.f32.mrf.mxu0
        %7408 = vdwg.mxu0
        %v7409 = vmax.f32 %v7403, 0.0
        %v7410 = vmax.f32 %v7405, 0.0
        %v7411 = vpack.c.bf16 %v7409, %v7409
        %v7412 = vpack.c.bf16 %v7410, %v7410
        %v7413 = vlaneseq
        %v7414 = vshrl.u32 %v7413, 7
        %v7415 = vsub.s32 5, %v7414
        %v7416 = vrot.slane %v436, %v7415
        %v7449 = vunpack.c.l.b16 %v844
        %v7450 = vunpack.c.l.b16 %v845
        %v7451 = vunpack.c.l.b16 %v846
        %v7452 = vunpack.c.l.b16 %v847
        %v7453 = vunpack.c.l.b16 %v848
        %v7454 = vunpack.c.l.b16 %v849
        %v7455 = vunpack.c.l.b16 %v850
        %v7456 = vunpack.c.l.b16 %v851
        %v7457 = vunpack.c.l.b16 %v852
        %v7458 = vunpack.c.l.b16 %v853
        %v7459 = vunpack.c.l.b16 %v854
        %v7460 = vunpack.c.l.b16 %v855
        %v7461 = vunpack.c.l.b16 %v856
        %v7462 = vunpack.c.l.b16 %v857
        %v7463 = vunpack.c.l.b16 %v858
        %v7464 = vunpack.c.l.b16 %v859
        %v7465 = vunpack.c.l.b16 %v860
        %v7466 = vunpack.c.l.b16 %v861
        %v7467 = vunpack.c.l.b16 %v862
        %v7468 = vunpack.c.l.b16 %v863
        %v7469 = vunpack.c.l.b16 %v864
        %v7470 = vunpack.c.l.b16 %v865
        %v7471 = vunpack.c.l.b16 %v866
        %v7472 = vunpack.c.l.b16 %v867
        %v7473 = vunpack.c.l.b16 %v868
        %v7474 = vunpack.c.l.b16 %v869
        %v7475 = vunpack.c.l.b16 %v870
        %v7476 = vunpack.c.l.b16 %v871
        %v7477 = vunpack.c.l.b16 %v872
        %v7478 = vunpack.c.l.b16 %v873
        %v7479 = vunpack.c.l.b16 %v874
        %v7480 = vunpack.c.l.b16 %v875
        %v7481 = vpack.c.b16 %v7450, %v7449
        %v7482 = vpack.c.b16 %v7452, %v7451
        %v7483 = vpack.c.b16 %v7454, %v7453
        %v7484 = vpack.c.b16 %v7456, %v7455
        %v7485 = vpack.c.b16 %v7458, %v7457
        %v7486 = vpack.c.b16 %v7460, %v7459
        %v7487 = vpack.c.b16 %v7462, %v7461
        %v7488 = vpack.c.b16 %v7464, %v7463
        %v7489 = vpack.c.b16 %v7466, %v7465
        %v7490 = vpack.c.b16 %v7468, %v7467
        %v7491 = vpack.c.b16 %v7470, %v7469
        %v7492 = vpack.c.b16 %v7472, %v7471
        %v7493 = vpack.c.b16 %v7474, %v7473
        %v7494 = vpack.c.b16 %v7476, %v7475
        %v7495 = vpack.c.b16 %v7478, %v7477
        %v7496 = vpack.c.b16 %v7480, %v7479
        %7513 = vmatprep.subr.bf16.mxu0 0
        %7514 = vmatpush1.bf16.msra.mxu0 %v7488
        %7515 = vmatprep.subr.bf16.mxu0 0
        %7516 = vmatpush1.bf16.msra.mxu0 %v7487
        %7517 = vmatprep.subr.bf16.mxu0 0
        %7518 = vmatpush1.bf16.msra.mxu0 %v7486
        %7519 = vmatprep.subr.bf16.mxu0 0
        %7520 = vmatpush1.bf16.msra.mxu0 %v7485
        %7521 = vmatprep.subr.bf16.mxu0 0
        %7522 = vmatpush1.bf16.msra.mxu0 %v7484
        %7523 = vmatprep.subr.bf16.mxu0 0
        %7524 = vmatpush1.bf16.msra.mxu0 %v7483
        %7525 = vmatprep.subr.bf16.mxu0 0
        %7526 = vmatpush1.bf16.msra.mxu0 %v7482
        %7527 = vmatprep.subr.bf16.mxu0 0
        %7528 = vmatpush1.bf16.msra.mxu0 %v7481
        %7529 = vmatprep.subr.bf16.mxu0 0
        %7530 = vmatpush2.bf16.msra.mxu0 %v7496
        %7531 = vmatprep.subr.bf16.mxu0 0
        %7532 = vmatpush2.bf16.msra.mxu0 %v7495
        %7533 = vmatprep.subr.bf16.mxu0 0
        %7534 = vmatpush2.bf16.msra.mxu0 %v7494
        %7535 = vmatprep.subr.bf16.mxu0 0
        %7536 = vmatpush2.bf16.msra.mxu0 %v7493
        %7537 = vmatprep.subr.bf16.mxu0 0
        %7538 = vmatpush2.bf16.msra.mxu0 %v7492
        %7539 = vmatprep.subr.bf16.mxu0 0
        %7540 = vmatpush2.bf16.msra.mxu0 %v7491
        %7541 = vmatprep.subr.bf16.mxu0 0
        %7542 = vmatpush2.bf16.msra.mxu0 %v7490
        %7543 = vmatprep.subr.bf16.mxu0 0
        %7544 = vmatpush2.bf16.msra.mxu0 %v7489
        %7545 = vmatprep.mubr.bf16.mxu0 %v7412
        %7546 = vmatmul.mubr.bf16.gmra.mxu0 %v7411
        %v7547 = vpop.f32.mrf.mxu0
        %v7548 = vadd.f32 %v7416, %v7547
        %v7549 = vpop.f32.mrf.mxu0
        %v7550 = vpop.f32.mrf.mxu0
        %v7551 = vpop.f32.mrf.mxu0
        %7552 = vdwg.mxu0
        %v7553 = vlaneseq
        %v7554 = vand.u32 %v7553, 127
        %vm7555 = vcmp.lt.s32.totalorder %v7554, 0
        %v7556 = vsub.s32 0, %v7554
        %v7557 = vsel %vm7555, %v7556, %v7554
        %v7558 = vshrl.u32 %v7557, 2
        %v7559 = vand.u32 %v7557, 3
        %v7560 = vsub.s32 0, %v7559
        %v7561 = vsel %vm7555, %v7560, %v7559
        %vm7562 = vcmp.ne.s32.totalorder %v7561, 0
        %vm7563 = vcmp.lt.s32.totalorder %v7561, 0
        %vm7564 = vmand %vm7563, %vm7562
        %v7565 = vadd.s32 %v7561, 4
        %v7566 = vsel %vm7564, %v7565, %v7561
        %vm7567 = vcmp.eq.s32.totalorder %v7566, 0
        %v7568 = vsel %vm7567, 1.0, 0.0
        %v7569 = vadd.f32 %v7548, %v7568
        %v7572 = vunpack.c.l.s4 1966171168
        %v7573 = vunpack.c.0.s8 %v7572
        %v7574 = vlaneseq
        %v7575 = vshrl.u32 %v7574, 7
        %v7576 = vsub.s32 %v7573, %v7575
        %v7577 = vrot.slane %v7569, %v7576
        %v7578 = vcombine.high %v7577, %v7577
        %v7580 = vunpack.c.l.s4 1966171168
        %v7581 = vunpack.c.0.s8 %v7580
        %v7582 = vlaneseq
        %v7583 = vshrl.u32 %v7582, 7
        %v7584 = vsub.s32 %v7581, %v7583
        %v7585 = vrot.slane %v7577, %v7584
        %v7587 = vunpack.c.l.s4 1966171168
        %v7588 = vunpack.c.0.s8 %v7587
        %v7589 = vlaneseq
        %v7590 = vshrl.u32 %v7589, 7
        %v7591 = vsub.s32 %v7588, %v7590
        %v7592 = vrot.slane %v7578, %v7591
        %vm7595 = vcmask 65536
        %7596 = vst.msk [vmem:[%s425] sm:$0x1] %vm7595, %v7585
        %7597 = vst.msk [vmem:[%s425 + $0x1] sm:$0x1] %vm7595, %v7592
        %7599 = vset.pattern.permute.xlu0 0
        %7600 = vperm.xlu0 %7599, %v7548
        %v7601 = vpop.permute.xlu0 %7600
        %v7603 = vlaneseq
        %v7604 = vshrl.u32 %v7603, 7
        %v7605 = vsub.s32 4, %v7604
        %v7606 = vrot.slane %v444, %v7605
        %v7607 = vmul.f32 %v7601, %v7606
        %v7608 = vadd.f32 %v7606, %v7607
        %7609 = vset.pattern.permute.xlu0 1
        %7610 = vperm.xlu0 %7609, %v7548
        %v7611 = vpop.permute.xlu0 %7610
        %v7613 = vlaneseq
        %v7614 = vshrl.u32 %v7613, 7
        %v7615 = vsub.s32 5, %v7614
        %v7616 = vrot.slane %v444, %v7615
        %v7617 = vmul.f32 %v7611, %v7616
        %v7618 = vadd.f32 %v7608, %v7617
        %7619 = vset.pattern.permute.xlu0 2
        %7620 = vperm.xlu0 %7619, %v7548
        %v7621 = vpop.permute.xlu0 %7620
        %v7623 = vlaneseq
        %v7624 = vshrl.u32 %v7623, 7
        %v7625 = vsub.s32 6, %v7624
        %v7626 = vrot.slane %v444, %v7625
        %v7627 = vmul.f32 %v7621, %v7626
        %v7628 = vadd.f32 %v7618, %v7627
        %v7631 = vunpack.c.l.s4 1966171168
        %v7632 = vunpack.c.0.s8 %v7631
        %v7633 = vlaneseq
        %v7634 = vshrl.u32 %v7633, 7
        %v7635 = vsub.s32 %v7632, %v7634
        %v7636 = vrot.slane %v7628, %v7635
        %v7637 = vcombine.high %v7636, %v7636
        %v7639 = vunpack.c.l.s4 1966171168
        %v7640 = vunpack.c.0.s8 %v7639
        %v7641 = vlaneseq
        %v7642 = vshrl.u32 %v7641, 7
        %v7643 = vsub.s32 %v7640, %v7642
        %v7644 = vrot.slane %v7636, %v7643
        %v7646 = vunpack.c.l.s4 1966171168
        %v7647 = vunpack.c.0.s8 %v7646
        %v7648 = vlaneseq
        %v7649 = vshrl.u32 %v7648, 7
        %v7650 = vsub.s32 %v7647, %v7649
        %v7651 = vrot.slane %v7637, %v7650
        %7652 = vset.pattern.permute.xlu0 3
        %7653 = vperm.xlu0 %7652, %v7548
        %v7654 = vpop.permute.xlu0 %7653
        %v7656 = vmul.f32 %v7654, %v7606
        %v7657 = vadd.f32 %v7616, %v7656
        %7658 = vset.pattern.permute.xlu0 4
        %7659 = vperm.xlu0 %7658, %v7548
        %v7660 = vpop.permute.xlu0 %7659
        %v7662 = vmul.f32 %v7660, %v7616
        %v7663 = vadd.f32 %v7657, %v7662
        %7664 = vset.pattern.permute.xlu0 5
        %7665 = vperm.xlu0 %7664, %v7548
        %v7666 = vpop.permute.xlu0 %7665
        %v7668 = vmul.f32 %v7666, %v7626
        %v7669 = vadd.f32 %v7663, %v7668
        %v7672 = vunpack.c.l.s4 1966171168
        %v7673 = vunpack.c.0.s8 %v7672
        %v7674 = vlaneseq
        %v7675 = vshrl.u32 %v7674, 7
        %v7676 = vsub.s32 %v7673, %v7675
        %v7677 = vrot.slane %v7669, %v7676
        %v7678 = vcombine.high %v7677, %v7677
        %v7680 = vunpack.c.l.s4 1966171168
        %v7681 = vunpack.c.0.s8 %v7680
        %v7682 = vlaneseq
        %v7683 = vshrl.u32 %v7682, 7
        %v7684 = vsub.s32 %v7681, %v7683
        %v7685 = vrot.slane %v7677, %v7684
        %v7687 = vunpack.c.l.s4 1966171168
        %v7688 = vunpack.c.0.s8 %v7687
        %v7689 = vlaneseq
        %v7690 = vshrl.u32 %v7689, 7
        %v7691 = vsub.s32 %v7688, %v7690
        %v7692 = vrot.slane %v7678, %v7691
        %7693 = vset.pattern.permute.xlu0 6
        %7694 = vperm.xlu0 %7693, %v7548
        %v7695 = vpop.permute.xlu0 %7694
        %v7697 = vmul.f32 %v7695, %v7606
        %v7698 = vadd.f32 %v7626, %v7697
        %7699 = vset.pattern.permute.xlu0 7
        %7700 = vperm.xlu0 %7699, %v7548
        %v7701 = vpop.permute.xlu0 %7700
        %v7703 = vmul.f32 %v7701, %v7616
        %v7704 = vadd.f32 %v7698, %v7703
        %7705 = vset.pattern.permute.xlu0 8
        %7706 = vperm.xlu0 %7705, %v7548
        %v7707 = vpop.permute.xlu0 %7706
        %v7709 = vmul.f32 %v7707, %v7626
        %v7710 = vadd.f32 %v7704, %v7709
        %v7713 = vunpack.c.l.s4 1966171168
        %v7714 = vunpack.c.0.s8 %v7713
        %v7715 = vlaneseq
        %v7716 = vshrl.u32 %v7715, 7
        %v7717 = vsub.s32 %v7714, %v7716
        %v7718 = vrot.slane %v7710, %v7717
        %v7719 = vcombine.high %v7718, %v7718
        %v7721 = vunpack.c.l.s4 1966171168
        %v7722 = vunpack.c.0.s8 %v7721
        %v7723 = vlaneseq
        %v7724 = vshrl.u32 %v7723, 7
        %v7725 = vsub.s32 %v7722, %v7724
        %v7726 = vrot.slane %v7718, %v7725
        %v7728 = vunpack.c.l.s4 1966171168
        %v7729 = vunpack.c.0.s8 %v7728
        %v7730 = vlaneseq
        %v7731 = vshrl.u32 %v7730, 7
        %v7732 = vsub.s32 %v7729, %v7731
        %v7733 = vrot.slane %v7719, %v7732
        %v7734 = vld [vmem:[%s431] sm:$0x77]
        %v7735 = vld [vmem:[%s431 + $0x8] sm:$0x77]
        %v7738 = vcombine.high %v7734, %v7734
        %v7739 = vcombine.high %v7735, %v7735
        %7742 = vxpose.xlu0.b32.start [1/16] %v7734, 128
        %7743 = vxpose.xlu0.b32.cont [2/16] 0.0, 128
        %7744 = vxpose.xlu0.b32.cont [3/16] 0.0, 128
        %7745 = vxpose.xlu0.b32.cont [4/16] 0.0, 128
        %7746 = vxpose.xlu0.b32.cont [5/16] 0.0, 128
        %7747 = vxpose.xlu0.b32.cont [6/16] 0.0, 128
        %7748 = vxpose.xlu0.b32.cont [7/16] 0.0, 128
        %7749 = vxpose.xlu0.b32.cont [8/16] 0.0, 128
        %7750 = vxpose.xlu0.b32.cont [9/16] 0.0, 128
        %7751 = vxpose.xlu0.b32.cont [10/16] 0.0, 128
        %7752 = vxpose.xlu0.b32.cont [11/16] 0.0, 128
        %7753 = vxpose.xlu0.b32.cont [12/16] 0.0, 128
        %7754 = vxpose.xlu0.b32.cont [13/16] 0.0, 128
        %7755 = vxpose.xlu0.b32.cont [14/16] 0.0, 128
        %7756 = vxpose.xlu0.b32.cont [15/16] 0.0, 128
        %7757 = vxpose.xlu0.b32.end [16/16] 0.0, 128
        %v7758 = vpop.trf.xlu0
        %v7759 = vpop.trf.xlu0
        %v7760 = vpop.trf.xlu0
        %v7761 = vpop.trf.xlu0
        %v7762 = vpop.trf.xlu0
        %v7763 = vpop.trf.xlu0
        %v7764 = vpop.trf.xlu0
        %v7765 = vpop.trf.xlu0
        %v7766 = vpop.trf.xlu0
        %v7767 = vpop.trf.xlu0
        %v7768 = vpop.trf.xlu0
        %v7769 = vpop.trf.xlu0
        %v7770 = vpop.trf.xlu0
        %v7771 = vpop.trf.xlu0
        %v7772 = vpop.trf.xlu0
        %v7773 = vpop.trf.xlu0
        %7774 = vxpose.xlu0.b32.start [1/16] %v7738, 128
        %7775 = vxpose.xlu0.b32.cont [2/16] 0.0, 128
        %7776 = vxpose.xlu0.b32.cont [3/16] 0.0, 128
        %7777 = vxpose.xlu0.b32.cont [4/16] 0.0, 128
        %7778 = vxpose.xlu0.b32.cont [5/16] 0.0, 128
        %7779 = vxpose.xlu0.b32.cont [6/16] 0.0, 128
        %7780 = vxpose.xlu0.b32.cont [7/16] 0.0, 128
        %7781 = vxpose.xlu0.b32.cont [8/16] 0.0, 128
        %7782 = vxpose.xlu0.b32.cont [9/16] 0.0, 128
        %7783 = vxpose.xlu0.b32.cont [10/16] 0.0, 128
        %7784 = vxpose.xlu0.b32.cont [11/16] 0.0, 128
        %7785 = vxpose.xlu0.b32.cont [12/16] 0.0, 128
        %7786 = vxpose.xlu0.b32.cont [13/16] 0.0, 128
        %7787 = vxpose.xlu0.b32.cont [14/16] 0.0, 128
        %7788 = vxpose.xlu0.b32.cont [15/16] 0.0, 128
        %7789 = vxpose.xlu0.b32.end [16/16] 0.0, 128
        %v7790 = vpop.trf.xlu0
        %v7791 = vpop.trf.xlu0
        %v7792 = vpop.trf.xlu0
        %v7793 = vpop.trf.xlu0
        %v7794 = vpop.trf.xlu0
        %v7795 = vpop.trf.xlu0
        %v7796 = vpop.trf.xlu0
        %v7797 = vpop.trf.xlu0
        %v7798 = vpop.trf.xlu0
        %v7799 = vpop.trf.xlu0
        %v7800 = vpop.trf.xlu0
        %v7801 = vpop.trf.xlu0
        %v7802 = vpop.trf.xlu0
        %v7803 = vpop.trf.xlu0
        %v7804 = vpop.trf.xlu0
        %v7805 = vpop.trf.xlu0
        %7806 = vxpose.xlu0.b32.start [1/16] %v7735, 128
        %7807 = vxpose.xlu0.b32.cont [2/16] 0.0, 128
        %7808 = vxpose.xlu0.b32.cont [3/16] 0.0, 128
        %7809 = vxpose.xlu0.b32.cont [4/16] 0.0, 128
        %7810 = vxpose.xlu0.b32.cont [5/16] 0.0, 128
        %7811 = vxpose.xlu0.b32.cont [6/16] 0.0, 128
        %7812 = vxpose.xlu0.b32.cont [7/16] 0.0, 128
        %7813 = vxpose.xlu0.b32.cont [8/16] 0.0, 128
        %7814 = vxpose.xlu0.b32.cont [9/16] 0.0, 128
        %7815 = vxpose.xlu0.b32.cont [10/16] 0.0, 128
        %7816 = vxpose.xlu0.b32.cont [11/16] 0.0, 128
        %7817 = vxpose.xlu0.b32.cont [12/16] 0.0, 128
        %7818 = vxpose.xlu0.b32.cont [13/16] 0.0, 128
        %7819 = vxpose.xlu0.b32.cont [14/16] 0.0, 128
        %7820 = vxpose.xlu0.b32.cont [15/16] 0.0, 128
        %7821 = vxpose.xlu0.b32.end [16/16] 0.0, 128
        %v7822 = vpop.trf.xlu0
        %v7823 = vpop.trf.xlu0
        %v7824 = vpop.trf.xlu0
        %v7825 = vpop.trf.xlu0
        %v7826 = vpop.trf.xlu0
        %v7827 = vpop.trf.xlu0
        %v7828 = vpop.trf.xlu0
        %v7829 = vpop.trf.xlu0
        %v7830 = vpop.trf.xlu0
        %v7831 = vpop.trf.xlu0
        %v7832 = vpop.trf.xlu0
        %v7833 = vpop.trf.xlu0
        %v7834 = vpop.trf.xlu0
        %v7835 = vpop.trf.xlu0
        %v7836 = vpop.trf.xlu0
        %v7837 = vpop.trf.xlu0
        %7838 = vxpose.xlu0.b32.start [1/16] %v7739, 128
        %7839 = vxpose.xlu0.b32.cont [2/16] 0.0, 128
        %7840 = vxpose.xlu0.b32.cont [3/16] 0.0, 128
        %7841 = vxpose.xlu0.b32.cont [4/16] 0.0, 128
        %7842 = vxpose.xlu0.b32.cont [5/16] 0.0, 128
        %7843 = vxpose.xlu0.b32.cont [6/16] 0.0, 128
        %7844 = vxpose.xlu0.b32.cont [7/16] 0.0, 128
        %7845 = vxpose.xlu0.b32.cont [8/16] 0.0, 128
        %7846 = vxpose.xlu0.b32.cont [9/16] 0.0, 128
        %7847 = vxpose.xlu0.b32.cont [10/16] 0.0, 128
        %7848 = vxpose.xlu0.b32.cont [11/16] 0.0, 128
        %7849 = vxpose.xlu0.b32.cont [12/16] 0.0, 128
        %7850 = vxpose.xlu0.b32.cont [13/16] 0.0, 128
        %7851 = vxpose.xlu0.b32.cont [14/16] 0.0, 128
        %7852 = vxpose.xlu0.b32.cont [15/16] 0.0, 128
        %7853 = vxpose.xlu0.b32.end [16/16] 0.0, 128
        %v7854 = vpop.trf.xlu0
        %v7855 = vpop.trf.xlu0
        %v7856 = vpop.trf.xlu0
        %v7857 = vpop.trf.xlu0
        %v7858 = vpop.trf.xlu0
        %v7859 = vpop.trf.xlu0
        %v7860 = vpop.trf.xlu0
        %v7861 = vpop.trf.xlu0
        %v7862 = vpop.trf.xlu0
        %v7863 = vpop.trf.xlu0
        %v7864 = vpop.trf.xlu0
        %v7865 = vpop.trf.xlu0
        %v7866 = vpop.trf.xlu0
        %v7867 = vpop.trf.xlu0
        %v7868 = vpop.trf.xlu0
        %v7869 = vpop.trf.xlu0
        %7871 = vset.pattern.permute.xlu0 0
        %7872 = vperm.xlu0 %7871, %v7758
        %v7873 = vpop.permute.xlu0 %7872
        %7876 = vset.pattern.permute.xlu0 0
        %7877 = vperm.xlu0 %7876, %v7759
        %v7878 = vpop.permute.xlu0 %7877
        %7881 = vset.pattern.permute.xlu0 0
        %7882 = vperm.xlu0 %7881, %v7760
        %v7883 = vpop.permute.xlu0 %7882
        %7886 = vset.pattern.permute.xlu0 0
        %7887 = vperm.xlu0 %7886, %v7761
        %v7888 = vpop.permute.xlu0 %7887
        %7891 = vset.pattern.permute.xlu0 0
        %7892 = vperm.xlu0 %7891, %v7762
        %v7893 = vpop.permute.xlu0 %7892
        %7896 = vset.pattern.permute.xlu0 0
        %7897 = vperm.xlu0 %7896, %v7763
        %v7898 = vpop.permute.xlu0 %7897
        %7901 = vset.pattern.permute.xlu0 0
        %7902 = vperm.xlu0 %7901, %v7764
        %v7903 = vpop.permute.xlu0 %7902
        %7906 = vset.pattern.permute.xlu0 0
        %7907 = vperm.xlu0 %7906, %v7765
        %v7908 = vpop.permute.xlu0 %7907
        %7911 = vset.pattern.permute.xlu0 0
        %7912 = vperm.xlu0 %7911, %v7766
        %v7913 = vpop.permute.xlu0 %7912
        %7916 = vset.pattern.permute.xlu0 0
        %7917 = vperm.xlu0 %7916, %v7767
        %v7918 = vpop.permute.xlu0 %7917
        %7921 = vset.pattern.permute.xlu0 0
        %7922 = vperm.xlu0 %7921, %v7768
        %v7923 = vpop.permute.xlu0 %7922
        %7926 = vset.pattern.permute.xlu0 0
        %7927 = vperm.xlu0 %7926, %v7769
        %v7928 = vpop.permute.xlu0 %7927
        %7931 = vset.pattern.permute.xlu0 0
        %7932 = vperm.xlu0 %7931, %v7770
        %v7933 = vpop.permute.xlu0 %7932
        %7936 = vset.pattern.permute.xlu0 0
        %7937 = vperm.xlu0 %7936, %v7771
        %v7938 = vpop.permute.xlu0 %7937
        %7941 = vset.pattern.permute.xlu0 0
        %7942 = vperm.xlu0 %7941, %v7772
        %v7943 = vpop.permute.xlu0 %7942
        %7946 = vset.pattern.permute.xlu0 0
        %7947 = vperm.xlu0 %7946, %v7773
        %v7948 = vpop.permute.xlu0 %7947
        %7951 = vset.pattern.permute.xlu0 0
        %7952 = vperm.xlu0 %7951, %v7790
        %v7953 = vpop.permute.xlu0 %7952
        %7956 = vset.pattern.permute.xlu0 0
        %7957 = vperm.xlu0 %7956, %v7791
        %v7958 = vpop.permute.xlu0 %7957
        %7961 = vset.pattern.permute.xlu0 0
        %7962 = vperm.xlu0 %7961, %v7792
        %v7963 = vpop.permute.xlu0 %7962
        %7966 = vset.pattern.permute.xlu0 0
        %7967 = vperm.xlu0 %7966, %v7793
        %v7968 = vpop.permute.xlu0 %7967
        %7971 = vset.pattern.permute.xlu0 0
        %7972 = vperm.xlu0 %7971, %v7794
        %v7973 = vpop.permute.xlu0 %7972
        %7976 = vset.pattern.permute.xlu0 0
        %7977 = vperm.xlu0 %7976, %v7795
        %v7978 = vpop.permute.xlu0 %7977
        %7981 = vset.pattern.permute.xlu0 0
        %7982 = vperm.xlu0 %7981, %v7796
        %v7983 = vpop.permute.xlu0 %7982
        %7986 = vset.pattern.permute.xlu0 0
        %7987 = vperm.xlu0 %7986, %v7797
        %v7988 = vpop.permute.xlu0 %7987
        %7991 = vset.pattern.permute.xlu0 0
        %7992 = vperm.xlu0 %7991, %v7798
        %v7993 = vpop.permute.xlu0 %7992
        %7996 = vset.pattern.permute.xlu0 0
        %7997 = vperm.xlu0 %7996, %v7799
        %v7998 = vpop.permute.xlu0 %7997
        %8001 = vset.pattern.permute.xlu0 0
        %8002 = vperm.xlu0 %8001, %v7800
        %v8003 = vpop.permute.xlu0 %8002
        %8006 = vset.pattern.permute.xlu0 0
        %8007 = vperm.xlu0 %8006, %v7801
        %v8008 = vpop.permute.xlu0 %8007
        %8011 = vset.pattern.permute.xlu0 0
        %8012 = vperm.xlu0 %8011, %v7802
        %v8013 = vpop.permute.xlu0 %8012
        %8016 = vset.pattern.permute.xlu0 0
        %8017 = vperm.xlu0 %8016, %v7803
        %v8018 = vpop.permute.xlu0 %8017
        %8021 = vset.pattern.permute.xlu0 0
        %8022 = vperm.xlu0 %8021, %v7804
        %v8023 = vpop.permute.xlu0 %8022
        %8026 = vset.pattern.permute.xlu0 0
        %8027 = vperm.xlu0 %8026, %v7805
        %v8028 = vpop.permute.xlu0 %8027
        %8031 = vset.pattern.permute.xlu0 0
        %8032 = vperm.xlu0 %8031, %v7822
        %v8033 = vpop.permute.xlu0 %8032
        %8036 = vset.pattern.permute.xlu0 0
        %8037 = vperm.xlu0 %8036, %v7823
        %v8038 = vpop.permute.xlu0 %8037
        %8041 = vset.pattern.permute.xlu0 0
        %8042 = vperm.xlu0 %8041, %v7824
        %v8043 = vpop.permute.xlu0 %8042
        %8046 = vset.pattern.permute.xlu0 0
        %8047 = vperm.xlu0 %8046, %v7825
        %v8048 = vpop.permute.xlu0 %8047
        %8051 = vset.pattern.permute.xlu0 0
        %8052 = vperm.xlu0 %8051, %v7826
        %v8053 = vpop.permute.xlu0 %8052
        %8056 = vset.pattern.permute.xlu0 0
        %8057 = vperm.xlu0 %8056, %v7827
        %v8058 = vpop.permute.xlu0 %8057
        %8061 = vset.pattern.permute.xlu0 0
        %8062 = vperm.xlu0 %8061, %v7828
        %v8063 = vpop.permute.xlu0 %8062
        %8066 = vset.pattern.permute.xlu0 0
        %8067 = vperm.xlu0 %8066, %v7829
        %v8068 = vpop.permute.xlu0 %8067
        %8071 = vset.pattern.permute.xlu0 0
        %8072 = vperm.xlu0 %8071, %v7830
        %v8073 = vpop.permute.xlu0 %8072
        %8076 = vset.pattern.permute.xlu0 0
        %8077 = vperm.xlu0 %8076, %v7831
        %v8078 = vpop.permute.xlu0 %8077
        %8081 = vset.pattern.permute.xlu0 0
        %8082 = vperm.xlu0 %8081, %v7832
        %v8083 = vpop.permute.xlu0 %8082
        %8086 = vset.pattern.permute.xlu0 0
        %8087 = vperm.xlu0 %8086, %v7833
        %v8088 = vpop.permute.xlu0 %8087
        %8091 = vset.pattern.permute.xlu0 0
        %8092 = vperm.xlu0 %8091, %v7834
        %v8093 = vpop.permute.xlu0 %8092
        %8096 = vset.pattern.permute.xlu0 0
        %8097 = vperm.xlu0 %8096, %v7835
        %v8098 = vpop.permute.xlu0 %8097
        %8101 = vset.pattern.permute.xlu0 0
        %8102 = vperm.xlu0 %8101, %v7836
        %v8103 = vpop.permute.xlu0 %8102
        %8106 = vset.pattern.permute.xlu0 0
        %8107 = vperm.xlu0 %8106, %v7837
        %v8108 = vpop.permute.xlu0 %8107
        %8111 = vset.pattern.permute.xlu0 0
        %8112 = vperm.xlu0 %8111, %v7854
        %v8113 = vpop.permute.xlu0 %8112
        %8116 = vset.pattern.permute.xlu0 0
        %8117 = vperm.xlu0 %8116, %v7855
        %v8118 = vpop.permute.xlu0 %8117
        %8121 = vset.pattern.permute.xlu0 0
        %8122 = vperm.xlu0 %8121, %v7856
        %v8123 = vpop.permute.xlu0 %8122
        %8126 = vset.pattern.permute.xlu0 0
        %8127 = vperm.xlu0 %8126, %v7857
        %v8128 = vpop.permute.xlu0 %8127
        %8131 = vset.pattern.permute.xlu0 0
        %8132 = vperm.xlu0 %8131, %v7858
        %v8133 = vpop.permute.xlu0 %8132
        %8136 = vset.pattern.permute.xlu0 0
        %8137 = vperm.xlu0 %8136, %v7859
        %v8138 = vpop.permute.xlu0 %8137
        %8141 = vset.pattern.permute.xlu0 0
        %8142 = vperm.xlu0 %8141, %v7860
        %v8143 = vpop.permute.xlu0 %8142
        %8146 = vset.pattern.permute.xlu0 0
        %8147 = vperm.xlu0 %8146, %v7861
        %v8148 = vpop.permute.xlu0 %8147
        %8151 = vset.pattern.permute.xlu0 0
        %8152 = vperm.xlu0 %8151, %v7862
        %v8153 = vpop.permute.xlu0 %8152
        %8156 = vset.pattern.permute.xlu0 0
        %8157 = vperm.xlu0 %8156, %v7863
        %v8158 = vpop.permute.xlu0 %8157
        %8161 = vset.pattern.permute.xlu0 0
        %8162 = vperm.xlu0 %8161, %v7864
        %v8163 = vpop.permute.xlu0 %8162
        %8166 = vset.pattern.permute.xlu0 0
        %8167 = vperm.xlu0 %8166, %v7865
        %v8168 = vpop.permute.xlu0 %8167
        %8171 = vset.pattern.permute.xlu0 0
        %8172 = vperm.xlu0 %8171, %v7866
        %v8173 = vpop.permute.xlu0 %8172
        %8176 = vset.pattern.permute.xlu0 0
        %8177 = vperm.xlu0 %8176, %v7867
        %v8178 = vpop.permute.xlu0 %8177
        %8181 = vset.pattern.permute.xlu0 0
        %8182 = vperm.xlu0 %8181, %v7868
        %v8183 = vpop.permute.xlu0 %8182
        %8186 = vset.pattern.permute.xlu0 0
        %8187 = vperm.xlu0 %8186, %v7869
        %v8188 = vpop.permute.xlu0 %8187
        %v8190 = vlaneseq
        %v8191 = vshrl.u32 %v8190, 7
        %v8192 = vsub.s32 0, %v8191
        %v8193 = vrot.slane %v7644, %v8192
        %v8194 = vlaneseq
        %v8195 = vshrl.u32 %v8194, 7
        %v8196 = vsub.s32 0, %v8195
        %v8197 = vrot.slane %v7651, %v8196
        %v8200 = vmul.f32 %v7873, %v8193
        %v8201 = vmul.f32 %v7878, %v8193
        %v8202 = vmul.f32 %v7883, %v8193
        %v8203 = vmul.f32 %v7888, %v8193
        %v8204 = vmul.f32 %v7893, %v8193
        %v8205 = vmul.f32 %v7898, %v8193
        %v8206 = vmul.f32 %v7903, %v8193
        %v8207 = vmul.f32 %v7908, %v8193
        %v8208 = vmul.f32 %v7913, %v8193
        %v8209 = vmul.f32 %v7918, %v8193
        %v8210 = vmul.f32 %v7923, %v8193
        %v8211 = vmul.f32 %v7928, %v8193
        %v8212 = vmul.f32 %v7933, %v8193
        %v8213 = vmul.f32 %v7938, %v8193
        %v8214 = vmul.f32 %v7943, %v8193
        %v8215 = vmul.f32 %v7948, %v8193
        %v8216 = vmul.f32 %v7953, %v8193
        %v8217 = vmul.f32 %v7958, %v8193
        %v8218 = vmul.f32 %v7963, %v8193
        %v8219 = vmul.f32 %v7968, %v8193
        %v8220 = vmul.f32 %v7973, %v8193
        %v8221 = vmul.f32 %v7978, %v8193
        %v8222 = vmul.f32 %v7983, %v8193
        %v8223 = vmul.f32 %v7988, %v8193
        %v8224 = vmul.f32 %v7993, %v8193
        %v8225 = vmul.f32 %v7998, %v8193
        %v8226 = vmul.f32 %v8003, %v8193
        %v8227 = vmul.f32 %v8008, %v8193
        %v8228 = vmul.f32 %v8013, %v8193
        %v8229 = vmul.f32 %v8018, %v8193
        %v8230 = vmul.f32 %v8023, %v8193
        %v8231 = vmul.f32 %v8028, %v8193
        %v8232 = vmul.f32 %v8033, %v8197
        %v8233 = vmul.f32 %v8038, %v8197
        %v8234 = vmul.f32 %v8043, %v8197
        %v8235 = vmul.f32 %v8048, %v8197
        %v8236 = vmul.f32 %v8053, %v8197
        %v8237 = vmul.f32 %v8058, %v8197
        %v8238 = vmul.f32 %v8063, %v8197
        %v8239 = vmul.f32 %v8068, %v8197
        %v8240 = vmul.f32 %v8073, %v8197
        %v8241 = vmul.f32 %v8078, %v8197
        %v8242 = vmul.f32 %v8083, %v8197
        %v8243 = vmul.f32 %v8088, %v8197
        %v8244 = vmul.f32 %v8093, %v8197
        %v8245 = vmul.f32 %v8098, %v8197
        %v8246 = vmul.f32 %v8103, %v8197
        %v8247 = vmul.f32 %v8108, %v8197
        %v8248 = vmul.f32 %v8113, %v8197
        %v8249 = vmul.f32 %v8118, %v8197
        %v8250 = vmul.f32 %v8123, %v8197
        %v8251 = vmul.f32 %v8128, %v8197
        %v8252 = vmul.f32 %v8133, %v8197
        %v8253 = vmul.f32 %v8138, %v8197
        %v8254 = vmul.f32 %v8143, %v8197
        %v8255 = vmul.f32 %v8148, %v8197
        %v8256 = vmul.f32 %v8153, %v8197
        %v8257 = vmul.f32 %v8158, %v8197
        %v8258 = vmul.f32 %v8163, %v8197
        %v8259 = vmul.f32 %v8168, %v8197
        %v8260 = vmul.f32 %v8173, %v8197
        %v8261 = vmul.f32 %v8178, %v8197
        %v8262 = vmul.f32 %v8183, %v8197
        %v8263 = vmul.f32 %v8188, %v8197
        %v8264 = vlaneseq
        %v8265 = vshrl.u32 %v8264, 7
        %v8266 = vsub.s32 6, %v8265
        %v8267 = vrot.slane %v436, %v8266
        %v8268 = vadd.f32 %v8267, %v8200
        %v8269 = vadd.f32 %v8267, %v8201
        %v8270 = vadd.f32 %v8267, %v8202
        %v8271 = vadd.f32 %v8267, %v8203
        %v8272 = vadd.f32 %v8267, %v8204
        %v8273 = vadd.f32 %v8267, %v8205
        %v8274 = vadd.f32 %v8267, %v8206
        %v8275 = vadd.f32 %v8267, %v8207
        %v8276 = vadd.f32 %v8267, %v8208
        %v8277 = vadd.f32 %v8267, %v8209
        %v8278 = vadd.f32 %v8267, %v8210
        %v8279 = vadd.f32 %v8267, %v8211
        %v8280 = vadd.f32 %v8267, %v8212
        %v8281 = vadd.f32 %v8267, %v8213
        %v8282 = vadd.f32 %v8267, %v8214
        %v8283 = vadd.f32 %v8267, %v8215
        %v8284 = vadd.f32 %v8267, %v8216
        %v8285 = vadd.f32 %v8267, %v8217
        %v8286 = vadd.f32 %v8267, %v8218
        %v8287 = vadd.f32 %v8267, %v8219
        %v8288 = vadd.f32 %v8267, %v8220
        %v8289 = vadd.f32 %v8267, %v8221
        %v8290 = vadd.f32 %v8267, %v8222
        %v8291 = vadd.f32 %v8267, %v8223
        %v8292 = vadd.f32 %v8267, %v8224
        %v8293 = vadd.f32 %v8267, %v8225
        %v8294 = vadd.f32 %v8267, %v8226
        %v8295 = vadd.f32 %v8267, %v8227
        %v8296 = vadd.f32 %v8267, %v8228
        %v8297 = vadd.f32 %v8267, %v8229
        %v8298 = vadd.f32 %v8267, %v8230
        %v8299 = vadd.f32 %v8267, %v8231
        %v8300 = vadd.f32 %v8267, %v8232
        %v8301 = vadd.f32 %v8267, %v8233
        %v8302 = vadd.f32 %v8267, %v8234
        %v8303 = vadd.f32 %v8267, %v8235
        %v8304 = vadd.f32 %v8267, %v8236
        %v8305 = vadd.f32 %v8267, %v8237
        %v8306 = vadd.f32 %v8267, %v8238
        %v8307 = vadd.f32 %v8267, %v8239
        %v8308 = vadd.f32 %v8267, %v8240
        %v8309 = vadd.f32 %v8267, %v8241
        %v8310 = vadd.f32 %v8267, %v8242
        %v8311 = vadd.f32 %v8267, %v8243
        %v8312 = vadd.f32 %v8267, %v8244
        %v8313 = vadd.f32 %v8267, %v8245
        %v8314 = vadd.f32 %v8267, %v8246
        %v8315 = vadd.f32 %v8267, %v8247
        %v8316 = vadd.f32 %v8267, %v8248
        %v8317 = vadd.f32 %v8267, %v8249
        %v8318 = vadd.f32 %v8267, %v8250
        %v8319 = vadd.f32 %v8267, %v8251
        %v8320 = vadd.f32 %v8267, %v8252
        %v8321 = vadd.f32 %v8267, %v8253
        %v8322 = vadd.f32 %v8267, %v8254
        %v8323 = vadd.f32 %v8267, %v8255
        %v8324 = vadd.f32 %v8267, %v8256
        %v8325 = vadd.f32 %v8267, %v8257
        %v8326 = vadd.f32 %v8267, %v8258
        %v8327 = vadd.f32 %v8267, %v8259
        %v8328 = vadd.f32 %v8267, %v8260
        %v8329 = vadd.f32 %v8267, %v8261
        %v8330 = vadd.f32 %v8267, %v8262
        %v8331 = vadd.f32 %v8267, %v8263
        %8332 = vset.pattern.permute.xlu0 1
        %8333 = vperm.xlu0 %8332, %v7758
        %v8334 = vpop.permute.xlu0 %8333
        %8336 = vset.pattern.permute.xlu0 1
        %8337 = vperm.xlu0 %8336, %v7759
        %v8338 = vpop.permute.xlu0 %8337
        %8340 = vset.pattern.permute.xlu0 1
        %8341 = vperm.xlu0 %8340, %v7760
        %v8342 = vpop.permute.xlu0 %8341
        %8344 = vset.pattern.permute.xlu0 1
        %8345 = vperm.xlu0 %8344, %v7761
        %v8346 = vpop.permute.xlu0 %8345
        %8348 = vset.pattern.permute.xlu0 1
        %8349 = vperm.xlu0 %8348, %v7762
        %v8350 = vpop.permute.xlu0 %8349
        %8352 = vset.pattern.permute.xlu0 1
        %8353 = vperm.xlu0 %8352, %v7763
        %v8354 = vpop.permute.xlu0 %8353
        %8356 = vset.pattern.permute.xlu0 1
        %8357 = vperm.xlu0 %8356, %v7764
        %v8358 = vpop.permute.xlu0 %8357
        %8360 = vset.pattern.permute.xlu0 1
        %8361 = vperm.xlu0 %8360, %v7765
        %v8362 = vpop.permute.xlu0 %8361
        %8364 = vset.pattern.permute.xlu0 1
        %8365 = vperm.xlu0 %8364, %v7766
        %v8366 = vpop.permute.xlu0 %8365
        %8368 = vset.pattern.permute.xlu0 1
        %8369 = vperm.xlu0 %8368, %v7767
        %v8370 = vpop.permute.xlu0 %8369
        %8372 = vset.pattern.permute.xlu0 1
        %8373 = vperm.xlu0 %8372, %v7768
        %v8374 = vpop.permute.xlu0 %8373
        %8376 = vset.pattern.permute.xlu0 1
        %8377 = vperm.xlu0 %8376, %v7769
        %v8378 = vpop.permute.xlu0 %8377
        %8380 = vset.pattern.permute.xlu0 1
        %8381 = vperm.xlu0 %8380, %v7770
        %v8382 = vpop.permute.xlu0 %8381
        %8384 = vset.pattern.permute.xlu0 1
        %8385 = vperm.xlu0 %8384, %v7771
        %v8386 = vpop.permute.xlu0 %8385
        %8388 = vset.pattern.permute.xlu0 1
        %8389 = vperm.xlu0 %8388, %v7772
        %v8390 = vpop.permute.xlu0 %8389
        %8392 = vset.pattern.permute.xlu0 1
        %8393 = vperm.xlu0 %8392, %v7773
        %v8394 = vpop.permute.xlu0 %8393
        %8396 = vset.pattern.permute.xlu0 1
        %8397 = vperm.xlu0 %8396, %v7790
        %v8398 = vpop.permute.xlu0 %8397
        %8400 = vset.pattern.permute.xlu0 1
        %8401 = vperm.xlu0 %8400, %v7791
        %v8402 = vpop.permute.xlu0 %8401
        %8404 = vset.pattern.permute.xlu0 1
        %8405 = vperm.xlu0 %8404, %v7792
        %v8406 = vpop.permute.xlu0 %8405
        %8408 = vset.pattern.permute.xlu0 1
        %8409 = vperm.xlu0 %8408, %v7793
        %v8410 = vpop.permute.xlu0 %8409
        %8412 = vset.pattern.permute.xlu0 1
        %8413 = vperm.xlu0 %8412, %v7794
        %v8414 = vpop.permute.xlu0 %8413
        %8416 = vset.pattern.permute.xlu0 1
        %8417 = vperm.xlu0 %8416, %v7795
        %v8418 = vpop.permute.xlu0 %8417
        %8420 = vset.pattern.permute.xlu0 1
        %8421 = vperm.xlu0 %8420, %v7796
        %v8422 = vpop.permute.xlu0 %8421
        %8424 = vset.pattern.permute.xlu0 1
        %8425 = vperm.xlu0 %8424, %v7797
        %v8426 = vpop.permute.xlu0 %8425
        %8428 = vset.pattern.permute.xlu0 1
        %8429 = vperm.xlu0 %8428, %v7798
        %v8430 = vpop.permute.xlu0 %8429
        %8432 = vset.pattern.permute.xlu0 1
        %8433 = vperm.xlu0 %8432, %v7799
        %v8434 = vpop.permute.xlu0 %8433
        %8436 = vset.pattern.permute.xlu0 1
        %8437 = vperm.xlu0 %8436, %v7800
        %v8438 = vpop.permute.xlu0 %8437
        %8440 = vset.pattern.permute.xlu0 1
        %8441 = vperm.xlu0 %8440, %v7801
        %v8442 = vpop.permute.xlu0 %8441
        %8444 = vset.pattern.permute.xlu0 1
        %8445 = vperm.xlu0 %8444, %v7802
        %v8446 = vpop.permute.xlu0 %8445
        %8448 = vset.pattern.permute.xlu0 1
        %8449 = vperm.xlu0 %8448, %v7803
        %v8450 = vpop.permute.xlu0 %8449
        %8452 = vset.pattern.permute.xlu0 1
        %8453 = vperm.xlu0 %8452, %v7804
        %v8454 = vpop.permute.xlu0 %8453
        %8456 = vset.pattern.permute.xlu0 1
        %8457 = vperm.xlu0 %8456, %v7805
        %v8458 = vpop.permute.xlu0 %8457
        %8460 = vset.pattern.permute.xlu0 1
        %8461 = vperm.xlu0 %8460, %v7822
        %v8462 = vpop.permute.xlu0 %8461
        %8464 = vset.pattern.permute.xlu0 1
        %8465 = vperm.xlu0 %8464, %v7823
        %v8466 = vpop.permute.xlu0 %8465
        %8468 = vset.pattern.permute.xlu0 1
        %8469 = vperm.xlu0 %8468, %v7824
        %v8470 = vpop.permute.xlu0 %8469
        %8472 = vset.pattern.permute.xlu0 1
        %8473 = vperm.xlu0 %8472, %v7825
        %v8474 = vpop.permute.xlu0 %8473
        %8476 = vset.pattern.permute.xlu0 1
        %8477 = vperm.xlu0 %8476, %v7826
        %v8478 = vpop.permute.xlu0 %8477
        %8480 = vset.pattern.permute.xlu0 1
        %8481 = vperm.xlu0 %8480, %v7827
        %v8482 = vpop.permute.xlu0 %8481
        %8484 = vset.pattern.permute.xlu0 1
        %8485 = vperm.xlu0 %8484, %v7828
        %v8486 = vpop.permute.xlu0 %8485
        %8488 = vset.pattern.permute.xlu0 1
        %8489 = vperm.xlu0 %8488, %v7829
        %v8490 = vpop.permute.xlu0 %8489
        %8492 = vset.pattern.permute.xlu0 1
        %8493 = vperm.xlu0 %8492, %v7830
        %v8494 = vpop.permute.xlu0 %8493
        %8496 = vset.pattern.permute.xlu0 1
        %8497 = vperm.xlu0 %8496, %v7831
        %v8498 = vpop.permute.xlu0 %8497
        %8500 = vset.pattern.permute.xlu0 1
        %8501 = vperm.xlu0 %8500, %v7832
        %v8502 = vpop.permute.xlu0 %8501
        %8504 = vset.pattern.permute.xlu0 1
        %8505 = vperm.xlu0 %8504, %v7833
        %v8506 = vpop.permute.xlu0 %8505
        %8508 = vset.pattern.permute.xlu0 1
        %8509 = vperm.xlu0 %8508, %v7834
        %v8510 = vpop.permute.xlu0 %8509
        %8512 = vset.pattern.permute.xlu0 1
        %8513 = vperm.xlu0 %8512, %v7835
        %v8514 = vpop.permute.xlu0 %8513
        %8516 = vset.pattern.permute.xlu0 1
        %8517 = vperm.xlu0 %8516, %v7836
        %v8518 = vpop.permute.xlu0 %8517
        %8520 = vset.pattern.permute.xlu0 1
        %8521 = vperm.xlu0 %8520, %v7837
        %v8522 = vpop.permute.xlu0 %8521
        %8524 = vset.pattern.permute.xlu0 1
        %8525 = vperm.xlu0 %8524, %v7854
        %v8526 = vpop.permute.xlu0 %8525
        %8528 = vset.pattern.permute.xlu0 1
        %8529 = vperm.xlu0 %8528, %v7855
        %v8530 = vpop.permute.xlu0 %8529
        %8532 = vset.pattern.permute.xlu0 1
        %8533 = vperm.xlu0 %8532, %v7856
        %v8534 = vpop.permute.xlu0 %8533
        %8536 = vset.pattern.permute.xlu0 1
        %8537 = vperm.xlu0 %8536, %v7857
        %v8538 = vpop.permute.xlu0 %8537
        %8540 = vset.pattern.permute.xlu0 1
        %8541 = vperm.xlu0 %8540, %v7858
        %v8542 = vpop.permute.xlu0 %8541
        %8544 = vset.pattern.permute.xlu0 1
        %8545 = vperm.xlu0 %8544, %v7859
        %v8546 = vpop.permute.xlu0 %8545
        %8548 = vset.pattern.permute.xlu0 1
        %8549 = vperm.xlu0 %8548, %v7860
        %v8550 = vpop.permute.xlu0 %8549
        %8552 = vset.pattern.permute.xlu0 1
        %8553 = vperm.xlu0 %8552, %v7861
        %v8554 = vpop.permute.xlu0 %8553
        %8556 = vset.pattern.permute.xlu0 1
        %8557 = vperm.xlu0 %8556, %v7862
        %v8558 = vpop.permute.xlu0 %8557
        %8560 = vset.pattern.permute.xlu0 1
        %8561 = vperm.xlu0 %8560, %v7863
        %v8562 = vpop.permute.xlu0 %8561
        %8564 = vset.pattern.permute.xlu0 1
        %8565 = vperm.xlu0 %8564, %v7864
        %v8566 = vpop.permute.xlu0 %8565
        %8568 = vset.pattern.permute.xlu0 1
        %8569 = vperm.xlu0 %8568, %v7865
        %v8570 = vpop.permute.xlu0 %8569
        %8572 = vset.pattern.permute.xlu0 1
        %8573 = vperm.xlu0 %8572, %v7866
        %v8574 = vpop.permute.xlu0 %8573
        %8576 = vset.pattern.permute.xlu0 1
        %8577 = vperm.xlu0 %8576, %v7867
        %v8578 = vpop.permute.xlu0 %8577
        %8580 = vset.pattern.permute.xlu0 1
        %8581 = vperm.xlu0 %8580, %v7868
        %v8582 = vpop.permute.xlu0 %8581
        %8584 = vset.pattern.permute.xlu0 1
        %8585 = vperm.xlu0 %8584, %v7869
        %v8586 = vpop.permute.xlu0 %8585
        %v8588 = vlaneseq
        %v8589 = vshrl.u32 %v8588, 7
        %v8590 = vsub.s32 0, %v8589
        %v8591 = vrot.slane %v7685, %v8590
        %v8592 = vlaneseq
        %v8593 = vshrl.u32 %v8592, 7
        %v8594 = vsub.s32 0, %v8593
        %v8595 = vrot.slane %v7692, %v8594
        %v8598 = vmul.f32 %v8334, %v8591
        %v8599 = vmul.f32 %v8338, %v8591
        %v8600 = vmul.f32 %v8342, %v8591
        %v8601 = vmul.f32 %v8346, %v8591
        %v8602 = vmul.f32 %v8350, %v8591
        %v8603 = vmul.f32 %v8354, %v8591
        %v8604 = vmul.f32 %v8358, %v8591
        %v8605 = vmul.f32 %v8362, %v8591
        %v8606 = vmul.f32 %v8366, %v8591
        %v8607 = vmul.f32 %v8370, %v8591
        %v8608 = vmul.f32 %v8374, %v8591
        %v8609 = vmul.f32 %v8378, %v8591
        %v8610 = vmul.f32 %v8382, %v8591
        %v8611 = vmul.f32 %v8386, %v8591
        %v8612 = vmul.f32 %v8390, %v8591
        %v8613 = vmul.f32 %v8394, %v8591
        %v8614 = vmul.f32 %v8398, %v8591
        %v8615 = vmul.f32 %v8402, %v8591
        %v8616 = vmul.f32 %v8406, %v8591
        %v8617 = vmul.f32 %v8410, %v8591
        %v8618 = vmul.f32 %v8414, %v8591
        %v8619 = vmul.f32 %v8418, %v8591
        %v8620 = vmul.f32 %v8422, %v8591
        %v8621 = vmul.f32 %v8426, %v8591
        %v8622 = vmul.f32 %v8430, %v8591
        %v8623 = vmul.f32 %v8434, %v8591
        %v8624 = vmul.f32 %v8438, %v8591
        %v8625 = vmul.f32 %v8442, %v8591
        %v8626 = vmul.f32 %v8446, %v8591
        %v8627 = vmul.f32 %v8450, %v8591
        %v8628 = vmul.f32 %v8454, %v8591
        %v8629 = vmul.f32 %v8458, %v8591
        %v8630 = vmul.f32 %v8462, %v8595
        %v8631 = vmul.f32 %v8466, %v8595
        %v8632 = vmul.f32 %v8470, %v8595
        %v8633 = vmul.f32 %v8474, %v8595
        %v8634 = vmul.f32 %v8478, %v8595
        %v8635 = vmul.f32 %v8482, %v8595
        %v8636 = vmul.f32 %v8486, %v8595
        %v8637 = vmul.f32 %v8490, %v8595
        %v8638 = vmul.f32 %v8494, %v8595
        %v8639 = vmul.f32 %v8498, %v8595
        %v8640 = vmul.f32 %v8502, %v8595
        %v8641 = vmul.f32 %v8506, %v8595
        %v8642 = vmul.f32 %v8510, %v8595
        %v8643 = vmul.f32 %v8514, %v8595
        %v8644 = vmul.f32 %v8518, %v8595
        %v8645 = vmul.f32 %v8522, %v8595
        %v8646 = vmul.f32 %v8526, %v8595
        %v8647 = vmul.f32 %v8530, %v8595
        %v8648 = vmul.f32 %v8534, %v8595
        %v8649 = vmul.f32 %v8538, %v8595
        %v8650 = vmul.f32 %v8542, %v8595
        %v8651 = vmul.f32 %v8546, %v8595
        %v8652 = vmul.f32 %v8550, %v8595
        %v8653 = vmul.f32 %v8554, %v8595
        %v8654 = vmul.f32 %v8558, %v8595
        %v8655 = vmul.f32 %v8562, %v8595
        %v8656 = vmul.f32 %v8566, %v8595
        %v8657 = vmul.f32 %v8570, %v8595
        %v8658 = vmul.f32 %v8574, %v8595
        %v8659 = vmul.f32 %v8578, %v8595
        %v8660 = vmul.f32 %v8582, %v8595
        %v8661 = vmul.f32 %v8586, %v8595
        %v8662 = vadd.f32 %v8268, %v8598
        %v8663 = vadd.f32 %v8269, %v8599
        %v8664 = vadd.f32 %v8270, %v8600
        %v8665 = vadd.f32 %v8271, %v8601
        %v8666 = vadd.f32 %v8272, %v8602
        %v8667 = vadd.f32 %v8273, %v8603
        %v8668 = vadd.f32 %v8274, %v8604
        %v8669 = vadd.f32 %v8275, %v8605
        %v8670 = vadd.f32 %v8276, %v8606
        %v8671 = vadd.f32 %v8277, %v8607
        %v8672 = vadd.f32 %v8278, %v8608
        %v8673 = vadd.f32 %v8279, %v8609
        %v8674 = vadd.f32 %v8280, %v8610
        %v8675 = vadd.f32 %v8281, %v8611
        %v8676 = vadd.f32 %v8282, %v8612
        %v8677 = vadd.f32 %v8283, %v8613
        %v8678 = vadd.f32 %v8284, %v8614
        %v8679 = vadd.f32 %v8285, %v8615
        %v8680 = vadd.f32 %v8286, %v8616
        %v8681 = vadd.f32 %v8287, %v8617
        %v8682 = vadd.f32 %v8288, %v8618
        %v8683 = vadd.f32 %v8289, %v8619
        %v8684 = vadd.f32 %v8290, %v8620
        %v8685 = vadd.f32 %v8291, %v8621
        %v8686 = vadd.f32 %v8292, %v8622
        %v8687 = vadd.f32 %v8293, %v8623
        %v8688 = vadd.f32 %v8294, %v8624
        %v8689 = vadd.f32 %v8295, %v8625
        %v8690 = vadd.f32 %v8296, %v8626
        %v8691 = vadd.f32 %v8297, %v8627
        %v8692 = vadd.f32 %v8298, %v8628
        %v8693 = vadd.f32 %v8299, %v8629
        %v8694 = vadd.f32 %v8300, %v8630
        %v8695 = vadd.f32 %v8301, %v8631
        %v8696 = vadd.f32 %v8302, %v8632
        %v8697 = vadd.f32 %v8303, %v8633
        %v8698 = vadd.f32 %v8304, %v8634
        %v8699 = vadd.f32 %v8305, %v8635
        %v8700 = vadd.f32 %v8306, %v8636
        %v8701 = vadd.f32 %v8307, %v8637
        %v8702 = vadd.f32 %v8308, %v8638
        %v8703 = vadd.f32 %v8309, %v8639
        %v8704 = vadd.f32 %v8310, %v8640
        %v8705 = vadd.f32 %v8311, %v8641
        %v8706 = vadd.f32 %v8312, %v8642
        %v8707 = vadd.f32 %v8313, %v8643
        %v8708 = vadd.f32 %v8314, %v8644
        %v8709 = vadd.f32 %v8315, %v8645
        %v8710 = vadd.f32 %v8316, %v8646
        %v8711 = vadd.f32 %v8317, %v8647
        %v8712 = vadd.f32 %v8318, %v8648
        %v8713 = vadd.f32 %v8319, %v8649
        %v8714 = vadd.f32 %v8320, %v8650
        %v8715 = vadd.f32 %v8321, %v8651
        %v8716 = vadd.f32 %v8322, %v8652
        %v8717 = vadd.f32 %v8323, %v8653
        %v8718 = vadd.f32 %v8324, %v8654
        %v8719 = vadd.f32 %v8325, %v8655
        %v8720 = vadd.f32 %v8326, %v8656
        %v8721 = vadd.f32 %v8327, %v8657
        %v8722 = vadd.f32 %v8328, %v8658
        %v8723 = vadd.f32 %v8329, %v8659
        %v8724 = vadd.f32 %v8330, %v8660
        %v8725 = vadd.f32 %v8331, %v8661
        %8726 = vset.pattern.permute.xlu0 2
        %8727 = vperm.xlu0 %8726, %v7758
        %v8728 = vpop.permute.xlu0 %8727
        %8730 = vset.pattern.permute.xlu0 2
        %8731 = vperm.xlu0 %8730, %v7759
        %v8732 = vpop.permute.xlu0 %8731
        %8734 = vset.pattern.permute.xlu0 2
        %8735 = vperm.xlu0 %8734, %v7760
        %v8736 = vpop.permute.xlu0 %8735
        %8738 = vset.pattern.permute.xlu0 2
        %8739 = vperm.xlu0 %8738, %v7761
        %v8740 = vpop.permute.xlu0 %8739
        %8742 = vset.pattern.permute.xlu0 2
        %8743 = vperm.xlu0 %8742, %v7762
        %v8744 = vpop.permute.xlu0 %8743
        %8746 = vset.pattern.permute.xlu0 2
        %8747 = vperm.xlu0 %8746, %v7763
        %v8748 = vpop.permute.xlu0 %8747
        %8750 = vset.pattern.permute.xlu0 2
        %8751 = vperm.xlu0 %8750, %v7764
        %v8752 = vpop.permute.xlu0 %8751
        %8754 = vset.pattern.permute.xlu0 2
        %8755 = vperm.xlu0 %8754, %v7765
        %v8756 = vpop.permute.xlu0 %8755
        %8758 = vset.pattern.permute.xlu0 2
        %8759 = vperm.xlu0 %8758, %v7766
        %v8760 = vpop.permute.xlu0 %8759
        %8762 = vset.pattern.permute.xlu0 2
        %8763 = vperm.xlu0 %8762, %v7767
        %v8764 = vpop.permute.xlu0 %8763
        %8766 = vset.pattern.permute.xlu0 2
        %8767 = vperm.xlu0 %8766, %v7768
        %v8768 = vpop.permute.xlu0 %8767
        %8770 = vset.pattern.permute.xlu0 2
        %8771 = vperm.xlu0 %8770, %v7769
        %v8772 = vpop.permute.xlu0 %8771
        %8774 = vset.pattern.permute.xlu0 2
        %8775 = vperm.xlu0 %8774, %v7770
        %v8776 = vpop.permute.xlu0 %8775
        %8778 = vset.pattern.permute.xlu0 2
        %8779 = vperm.xlu0 %8778, %v7771
        %v8780 = vpop.permute.xlu0 %8779
        %8782 = vset.pattern.permute.xlu0 2
        %8783 = vperm.xlu0 %8782, %v7772
        %v8784 = vpop.permute.xlu0 %8783
        %8786 = vset.pattern.permute.xlu0 2
        %8787 = vperm.xlu0 %8786, %v7773
        %v8788 = vpop.permute.xlu0 %8787
        %8790 = vset.pattern.permute.xlu0 2
        %8791 = vperm.xlu0 %8790, %v7790
        %v8792 = vpop.permute.xlu0 %8791
        %8794 = vset.pattern.permute.xlu0 2
        %8795 = vperm.xlu0 %8794, %v7791
        %v8796 = vpop.permute.xlu0 %8795
        %8798 = vset.pattern.permute.xlu0 2
        %8799 = vperm.xlu0 %8798, %v7792
        %v8800 = vpop.permute.xlu0 %8799
        %8802 = vset.pattern.permute.xlu0 2
        %8803 = vperm.xlu0 %8802, %v7793
        %v8804 = vpop.permute.xlu0 %8803
        %8806 = vset.pattern.permute.xlu0 2
        %8807 = vperm.xlu0 %8806, %v7794
        %v8808 = vpop.permute.xlu0 %8807
        %8810 = vset.pattern.permute.xlu0 2
        %8811 = vperm.xlu0 %8810, %v7795
        %v8812 = vpop.permute.xlu0 %8811
        %8814 = vset.pattern.permute.xlu0 2
        %8815 = vperm.xlu0 %8814, %v7796
        %v8816 = vpop.permute.xlu0 %8815
        %8818 = vset.pattern.permute.xlu0 2
        %8819 = vperm.xlu0 %8818, %v7797
        %v8820 = vpop.permute.xlu0 %8819
        %8822 = vset.pattern.permute.xlu0 2
        %8823 = vperm.xlu0 %8822, %v7798
        %v8824 = vpop.permute.xlu0 %8823
        %8826 = vset.pattern.permute.xlu0 2
        %8827 = vperm.xlu0 %8826, %v7799
        %v8828 = vpop.permute.xlu0 %8827
        %8830 = vset.pattern.permute.xlu0 2
        %8831 = vperm.xlu0 %8830, %v7800
        %v8832 = vpop.permute.xlu0 %8831
        %8834 = vset.pattern.permute.xlu0 2
        %8835 = vperm.xlu0 %8834, %v7801
        %v8836 = vpop.permute.xlu0 %8835
        %8838 = vset.pattern.permute.xlu0 2
        %8839 = vperm.xlu0 %8838, %v7802
        %v8840 = vpop.permute.xlu0 %8839
        %8842 = vset.pattern.permute.xlu0 2
        %8843 = vperm.xlu0 %8842, %v7803
        %v8844 = vpop.permute.xlu0 %8843
        %8846 = vset.pattern.permute.xlu0 2
        %8847 = vperm.xlu0 %8846, %v7804
        %v8848 = vpop.permute.xlu0 %8847
        %8850 = vset.pattern.permute.xlu0 2
        %8851 = vperm.xlu0 %8850, %v7805
        %v8852 = vpop.permute.xlu0 %8851
        %8854 = vset.pattern.permute.xlu0 2
        %8855 = vperm.xlu0 %8854, %v7822
        %v8856 = vpop.permute.xlu0 %8855
        %8858 = vset.pattern.permute.xlu0 2
        %8859 = vperm.xlu0 %8858, %v7823
        %v8860 = vpop.permute.xlu0 %8859
        %8862 = vset.pattern.permute.xlu0 2
        %8863 = vperm.xlu0 %8862, %v7824
        %v8864 = vpop.permute.xlu0 %8863
        %8866 = vset.pattern.permute.xlu0 2
        %8867 = vperm.xlu0 %8866, %v7825
        %v8868 = vpop.permute.xlu0 %8867
        %8870 = vset.pattern.permute.xlu0 2
        %8871 = vperm.xlu0 %8870, %v7826
        %v8872 = vpop.permute.xlu0 %8871
        %8874 = vset.pattern.permute.xlu0 2
        %8875 = vperm.xlu0 %8874, %v7827
        %v8876 = vpop.permute.xlu0 %8875
        %8878 = vset.pattern.permute.xlu0 2
        %8879 = vperm.xlu0 %8878, %v7828
        %v8880 = vpop.permute.xlu0 %8879
        %8882 = vset.pattern.permute.xlu0 2
        %8883 = vperm.xlu0 %8882, %v7829
        %v8884 = vpop.permute.xlu0 %8883
        %8886 = vset.pattern.permute.xlu0 2
        %8887 = vperm.xlu0 %8886, %v7830
        %v8888 = vpop.permute.xlu0 %8887
        %8890 = vset.pattern.permute.xlu0 2
        %8891 = vperm.xlu0 %8890, %v7831
        %v8892 = vpop.permute.xlu0 %8891
        %8894 = vset.pattern.permute.xlu0 2
        %8895 = vperm.xlu0 %8894, %v7832
        %v8896 = vpop.permute.xlu0 %8895
        %8898 = vset.pattern.permute.xlu0 2
        %8899 = vperm.xlu0 %8898, %v7833
        %v8900 = vpop.permute.xlu0 %8899
        %8902 = vset.pattern.permute.xlu0 2
        %8903 = vperm.xlu0 %8902, %v7834
        %v8904 = vpop.permute.xlu0 %8903
        %8906 = vset.pattern.permute.xlu0 2
        %8907 = vperm.xlu0 %8906, %v7835
        %v8908 = vpop.permute.xlu0 %8907
        %8910 = vset.pattern.permute.xlu0 2
        %8911 = vperm.xlu0 %8910, %v7836
        %v8912 = vpop.permute.xlu0 %8911
        %8914 = vset.pattern.permute.xlu0 2
        %8915 = vperm.xlu0 %8914, %v7837
        %v8916 = vpop.permute.xlu0 %8915
        %8918 = vset.pattern.permute.xlu0 2
        %8919 = vperm.xlu0 %8918, %v7854
        %v8920 = vpop.permute.xlu0 %8919
        %8922 = vset.pattern.permute.xlu0 2
        %8923 = vperm.xlu0 %8922, %v7855
        %v8924 = vpop.permute.xlu0 %8923
        %8926 = vset.pattern.permute.xlu0 2
        %8927 = vperm.xlu0 %8926, %v7856
        %v8928 = vpop.permute.xlu0 %8927
        %8930 = vset.pattern.permute.xlu0 2
        %8931 = vperm.xlu0 %8930, %v7857
        %v8932 = vpop.permute.xlu0 %8931
        %8934 = vset.pattern.permute.xlu0 2
        %8935 = vperm.xlu0 %8934, %v7858
        %v8936 = vpop.permute.xlu0 %8935
        %8938 = vset.pattern.permute.xlu0 2
        %8939 = vperm.xlu0 %8938, %v7859
        %v8940 = vpop.permute.xlu0 %8939
        %8942 = vset.pattern.permute.xlu0 2
        %8943 = vperm.xlu0 %8942, %v7860
        %v8944 = vpop.permute.xlu0 %8943
        %8946 = vset.pattern.permute.xlu0 2
        %8947 = vperm.xlu0 %8946, %v7861
        %v8948 = vpop.permute.xlu0 %8947
        %8950 = vset.pattern.permute.xlu0 2
        %8951 = vperm.xlu0 %8950, %v7862
        %v8952 = vpop.permute.xlu0 %8951
        %8954 = vset.pattern.permute.xlu0 2
        %8955 = vperm.xlu0 %8954, %v7863
        %v8956 = vpop.permute.xlu0 %8955
        %8958 = vset.pattern.permute.xlu0 2
        %8959 = vperm.xlu0 %8958, %v7864
        %v8960 = vpop.permute.xlu0 %8959
        %8962 = vset.pattern.permute.xlu0 2
        %8963 = vperm.xlu0 %8962, %v7865
        %v8964 = vpop.permute.xlu0 %8963
        %8966 = vset.pattern.permute.xlu0 2
        %8967 = vperm.xlu0 %8966, %v7866
        %v8968 = vpop.permute.xlu0 %8967
        %8970 = vset.pattern.permute.xlu0 2
        %8971 = vperm.xlu0 %8970, %v7867
        %v8972 = vpop.permute.xlu0 %8971
        %8974 = vset.pattern.permute.xlu0 2
        %8975 = vperm.xlu0 %8974, %v7868
        %v8976 = vpop.permute.xlu0 %8975
        %8978 = vset.pattern.permute.xlu0 2
        %8979 = vperm.xlu0 %8978, %v7869
        %v8980 = vpop.permute.xlu0 %8979
        %v8982 = vlaneseq
        %v8983 = vshrl.u32 %v8982, 7
        %v8984 = vsub.s32 0, %v8983
        %v8985 = vrot.slane %v7726, %v8984
        %v8986 = vlaneseq
        %v8987 = vshrl.u32 %v8986, 7
        %v8988 = vsub.s32 0, %v8987
        %v8989 = vrot.slane %v7733, %v8988
        %v8992 = vmul.f32 %v8728, %v8985
        %v8993 = vmul.f32 %v8732, %v8985
        %v8994 = vmul.f32 %v8736, %v8985
        %v8995 = vmul.f32 %v8740, %v8985
        %v8996 = vmul.f32 %v8744, %v8985
        %v8997 = vmul.f32 %v8748, %v8985
        %v8998 = vmul.f32 %v8752, %v8985
        %v8999 = vmul.f32 %v8756, %v8985
        %v9000 = vmul.f32 %v8760, %v8985
        %v9001 = vmul.f32 %v8764, %v8985
        %v9002 = vmul.f32 %v8768, %v8985
        %v9003 = vmul.f32 %v8772, %v8985
        %v9004 = vmul.f32 %v8776, %v8985
        %v9005 = vmul.f32 %v8780, %v8985
        %v9006 = vmul.f32 %v8784, %v8985
        %v9007 = vmul.f32 %v8788, %v8985
        %v9008 = vmul.f32 %v8792, %v8985
        %v9009 = vmul.f32 %v8796, %v8985
        %v9010 = vmul.f32 %v8800, %v8985
        %v9011 = vmul.f32 %v8804, %v8985
        %v9012 = vmul.f32 %v8808, %v8985
        %v9013 = vmul.f32 %v8812, %v8985
        %v9014 = vmul.f32 %v8816, %v8985
        %v9015 = vmul.f32 %v8820, %v8985
        %v9016 = vmul.f32 %v8824, %v8985
        %v9017 = vmul.f32 %v8828, %v8985
        %v9018 = vmul.f32 %v8832, %v8985
        %v9019 = vmul.f32 %v8836, %v8985
        %v9020 = vmul.f32 %v8840, %v8985
        %v9021 = vmul.f32 %v8844, %v8985
        %v9022 = vmul.f32 %v8848, %v8985
        %v9023 = vmul.f32 %v8852, %v8985
        %v9024 = vmul.f32 %v8856, %v8989
        %v9025 = vmul.f32 %v8860, %v8989
        %v9026 = vmul.f32 %v8864, %v8989
        %v9027 = vmul.f32 %v8868, %v8989
        %v9028 = vmul.f32 %v8872, %v8989
        %v9029 = vmul.f32 %v8876, %v8989
        %v9030 = vmul.f32 %v8880, %v8989
        %v9031 = vmul.f32 %v8884, %v8989
        %v9032 = vmul.f32 %v8888, %v8989
        %v9033 = vmul.f32 %v8892, %v8989
        %v9034 = vmul.f32 %v8896, %v8989
        %v9035 = vmul.f32 %v8900, %v8989
        %v9036 = vmul.f32 %v8904, %v8989
        %v9037 = vmul.f32 %v8908, %v8989
        %v9038 = vmul.f32 %v8912, %v8989
        %v9039 = vmul.f32 %v8916, %v8989
        %v9040 = vmul.f32 %v8920, %v8989
        %v9041 = vmul.f32 %v8924, %v8989
        %v9042 = vmul.f32 %v8928, %v8989
        %v9043 = vmul.f32 %v8932, %v8989
        %v9044 = vmul.f32 %v8936, %v8989
        %v9045 = vmul.f32 %v8940, %v8989
        %v9046 = vmul.f32 %v8944, %v8989
        %v9047 = vmul.f32 %v8948, %v8989
        %v9048 = vmul.f32 %v8952, %v8989
        %v9049 = vmul.f32 %v8956, %v8989
        %v9050 = vmul.f32 %v8960, %v8989
        %v9051 = vmul.f32 %v8964, %v8989
        %v9052 = vmul.f32 %v8968, %v8989
        %v9053 = vmul.f32 %v8972, %v8989
        %v9054 = vmul.f32 %v8976, %v8989
        %v9055 = vmul.f32 %v8980, %v8989
        %v9056 = vadd.f32 %v8662, %v8992
        %v9057 = vadd.f32 %v8663, %v8993
        %v9058 = vadd.f32 %v8664, %v8994
        %v9059 = vadd.f32 %v8665, %v8995
        %v9060 = vadd.f32 %v8666, %v8996
        %v9061 = vadd.f32 %v8667, %v8997
        %v9062 = vadd.f32 %v8668, %v8998
        %v9063 = vadd.f32 %v8669, %v8999
        %v9064 = vadd.f32 %v8670, %v9000
        %v9065 = vadd.f32 %v8671, %v9001
        %v9066 = vadd.f32 %v8672, %v9002
        %v9067 = vadd.f32 %v8673, %v9003
        %v9068 = vadd.f32 %v8674, %v9004
        %v9069 = vadd.f32 %v8675, %v9005
        %v9070 = vadd.f32 %v8676, %v9006
        %v9071 = vadd.f32 %v8677, %v9007
        %v9072 = vadd.f32 %v8678, %v9008
        %v9073 = vadd.f32 %v8679, %v9009
        %v9074 = vadd.f32 %v8680, %v9010
        %v9075 = vadd.f32 %v8681, %v9011
        %v9076 = vadd.f32 %v8682, %v9012
        %v9077 = vadd.f32 %v8683, %v9013
        %v9078 = vadd.f32 %v8684, %v9014
        %v9079 = vadd.f32 %v8685, %v9015
        %v9080 = vadd.f32 %v8686, %v9016
        %v9081 = vadd.f32 %v8687, %v9017
        %v9082 = vadd.f32 %v8688, %v9018
        %v9083 = vadd.f32 %v8689, %v9019
        %v9084 = vadd.f32 %v8690, %v9020
        %v9085 = vadd.f32 %v8691, %v9021
        %v9086 = vadd.f32 %v8692, %v9022
        %v9087 = vadd.f32 %v8693, %v9023
        %v9088 = vadd.f32 %v8694, %v9024
        %v9089 = vadd.f32 %v8695, %v9025
        %v9090 = vadd.f32 %v8696, %v9026
        %v9091 = vadd.f32 %v8697, %v9027
        %v9092 = vadd.f32 %v8698, %v9028
        %v9093 = vadd.f32 %v8699, %v9029
        %v9094 = vadd.f32 %v8700, %v9030
        %v9095 = vadd.f32 %v8701, %v9031
        %v9096 = vadd.f32 %v8702, %v9032
        %v9097 = vadd.f32 %v8703, %v9033
        %v9098 = vadd.f32 %v8704, %v9034
        %v9099 = vadd.f32 %v8705, %v9035
        %v9100 = vadd.f32 %v8706, %v9036
        %v9101 = vadd.f32 %v8707, %v9037
        %v9102 = vadd.f32 %v8708, %v9038
        %v9103 = vadd.f32 %v8709, %v9039
        %v9104 = vadd.f32 %v8710, %v9040
        %v9105 = vadd.f32 %v8711, %v9041
        %v9106 = vadd.f32 %v8712, %v9042
        %v9107 = vadd.f32 %v8713, %v9043
        %v9108 = vadd.f32 %v8714, %v9044
        %v9109 = vadd.f32 %v8715, %v9045
        %v9110 = vadd.f32 %v8716, %v9046
        %v9111 = vadd.f32 %v8717, %v9047
        %v9112 = vadd.f32 %v8718, %v9048
        %v9113 = vadd.f32 %v8719, %v9049
        %v9114 = vadd.f32 %v8720, %v9050
        %v9115 = vadd.f32 %v8721, %v9051
        %v9116 = vadd.f32 %v8722, %v9052
        %v9117 = vadd.f32 %v8723, %v9053
        %v9118 = vadd.f32 %v8724, %v9054
        %v9119 = vadd.f32 %v8725, %v9055
        %v9120 = vmax.f32 %v9056, 0.0
        %v9121 = vmax.f32 %v9057, 0.0
        %v9122 = vmax.f32 %v9058, 0.0
        %v9123 = vmax.f32 %v9059, 0.0
        %v9124 = vmax.f32 %v9060, 0.0
        %v9125 = vmax.f32 %v9061, 0.0
        %v9126 = vmax.f32 %v9062, 0.0
        %v9127 = vmax.f32 %v9063, 0.0
        %v9128 = vmax.f32 %v9064, 0.0
        %v9129 = vmax.f32 %v9065, 0.0
        %v9130 = vmax.f32 %v9066, 0.0
        %v9131 = vmax.f32 %v9067, 0.0
        %v9132 = vmax.f32 %v9068, 0.0
        %v9133 = vmax.f32 %v9069, 0.0
        %v9134 = vmax.f32 %v9070, 0.0
        %v9135 = vmax.f32 %v9071, 0.0
        %v9136 = vmax.f32 %v9072, 0.0
        %v9137 = vmax.f32 %v9073, 0.0
        %v9138 = vmax.f32 %v9074, 0.0
        %v9139 = vmax.f32 %v9075, 0.0
        %v9140 = vmax.f32 %v9076, 0.0
        %v9141 = vmax.f32 %v9077, 0.0
        %v9142 = vmax.f32 %v9078, 0.0
        %v9143 = vmax.f32 %v9079, 0.0
        %v9144 = vmax.f32 %v9080, 0.0
        %v9145 = vmax.f32 %v9081, 0.0
        %v9146 = vmax.f32 %v9082, 0.0
        %v9147 = vmax.f32 %v9083, 0.0
        %v9148 = vmax.f32 %v9084, 0.0
        %v9149 = vmax.f32 %v9085, 0.0
        %v9150 = vmax.f32 %v9086, 0.0
        %v9151 = vmax.f32 %v9087, 0.0
        %v9152 = vmax.f32 %v9088, 0.0
        %v9153 = vmax.f32 %v9089, 0.0
        %v9154 = vmax.f32 %v9090, 0.0
        %v9155 = vmax.f32 %v9091, 0.0
        %v9156 = vmax.f32 %v9092, 0.0
        %v9157 = vmax.f32 %v9093, 0.0
        %v9158 = vmax.f32 %v9094, 0.0
        %v9159 = vmax.f32 %v9095, 0.0
        %v9160 = vmax.f32 %v9096, 0.0
        %v9161 = vmax.f32 %v9097, 0.0
        %v9162 = vmax.f32 %v9098, 0.0
        %v9163 = vmax.f32 %v9099, 0.0
        %v9164 = vmax.f32 %v9100, 0.0
        %v9165 = vmax.f32 %v9101, 0.0
        %v9166 = vmax.f32 %v9102, 0.0
        %v9167 = vmax.f32 %v9103, 0.0
        %v9168 = vmax.f32 %v9104, 0.0
        %v9169 = vmax.f32 %v9105, 0.0
        %v9170 = vmax.f32 %v9106, 0.0
        %v9171 = vmax.f32 %v9107, 0.0
        %v9172 = vmax.f32 %v9108, 0.0
        %v9173 = vmax.f32 %v9109, 0.0
        %v9174 = vmax.f32 %v9110, 0.0
        %v9175 = vmax.f32 %v9111, 0.0
        %v9176 = vmax.f32 %v9112, 0.0
        %v9177 = vmax.f32 %v9113, 0.0
        %v9178 = vmax.f32 %v9114, 0.0
        %v9179 = vmax.f32 %v9115, 0.0
        %v9180 = vmax.f32 %v9116, 0.0
        %v9181 = vmax.f32 %v9117, 0.0
        %v9182 = vmax.f32 %v9118, 0.0
        %v9183 = vmax.f32 %v9119, 0.0
        %v9184 = vpack.c.bf16 %v9121, %v9120
        %v9185 = vpack.c.bf16 %v9123, %v9122
        %v9186 = vpack.c.bf16 %v9125, %v9124
        %v9187 = vpack.c.bf16 %v9127, %v9126
        %v9188 = vpack.c.bf16 %v9129, %v9128
        %v9189 = vpack.c.bf16 %v9131, %v9130
        %v9190 = vpack.c.bf16 %v9133, %v9132
        %v9191 = vpack.c.bf16 %v9135, %v9134
        %v9192 = vpack.c.bf16 %v9137, %v9136
        %v9193 = vpack.c.bf16 %v9139, %v9138
        %v9194 = vpack.c.bf16 %v9141, %v9140
        %v9195 = vpack.c.bf16 %v9143, %v9142
        %v9196 = vpack.c.bf16 %v9145, %v9144
        %v9197 = vpack.c.bf16 %v9147, %v9146
        %v9198 = vpack.c.bf16 %v9149, %v9148
        %v9199 = vpack.c.bf16 %v9151, %v9150
        %v9200 = vpack.c.bf16 %v9153, %v9152
        %v9201 = vpack.c.bf16 %v9155, %v9154
        %v9202 = vpack.c.bf16 %v9157, %v9156
        %v9203 = vpack.c.bf16 %v9159, %v9158
        %v9204 = vpack.c.bf16 %v9161, %v9160
        %v9205 = vpack.c.bf16 %v9163, %v9162
        %v9206 = vpack.c.bf16 %v9165, %v9164
        %v9207 = vpack.c.bf16 %v9167, %v9166
        %v9208 = vpack.c.bf16 %v9169, %v9168
        %v9209 = vpack.c.bf16 %v9171, %v9170
        %v9210 = vpack.c.bf16 %v9173, %v9172
        %v9211 = vpack.c.bf16 %v9175, %v9174
        %v9212 = vpack.c.bf16 %v9177, %v9176
        %v9213 = vpack.c.bf16 %v9179, %v9178
        %v9214 = vpack.c.bf16 %v9181, %v9180
        %v9215 = vpack.c.bf16 %v9183, %v9182
        %v9216 = vlaneseq
        %v9217 = vshrl.u32 %v9216, 7
        %v9218 = vsub.s32 7, %v9217
        %v9219 = vrot.slane %v436, %v9218
        %v9228 = vunpack.c.l.b16 %v876
        %v9229 = vunpack.c.l.b16 %v877
        %v9230 = vunpack.c.l.b16 %v878
        %v9231 = vunpack.c.l.b16 %v879
        %v9232 = vunpack.c.l.b16 %v880
        %v9233 = vunpack.c.l.b16 %v881
        %v9234 = vunpack.c.l.b16 %v882
        %v9235 = vunpack.c.l.b16 %v883
        %v9236 = vpack.c.b16 %v9229, %v9228
        %v9237 = vpack.c.b16 %v9231, %v9230
        %v9238 = vpack.c.b16 %v9233, %v9232
        %v9239 = vpack.c.b16 %v9235, %v9234
        %v9245 = vsel %vm2440, %v9184, 0
        %v9248 = vsel %vm2440, %v9185, 0
        %v9251 = vsel %vm2440, %v9186, 0
        %v9254 = vsel %vm2440, %v9187, 0
        %v9257 = vsel %vm2440, %v9188, 0
        %v9260 = vsel %vm2440, %v9189, 0
        %v9263 = vsel %vm2440, %v9190, 0
        %v9266 = vsel %vm2440, %v9191, 0
        %v9269 = vsel %vm2440, %v9192, 0
        %v9272 = vsel %vm2440, %v9193, 0
        %v9275 = vsel %vm2440, %v9194, 0
        %v9278 = vsel %vm2440, %v9195, 0
        %v9281 = vsel %vm2440, %v9196, 0
        %v9284 = vsel %vm2440, %v9197, 0
        %v9287 = vsel %vm2440, %v9198, 0
        %v9290 = vsel %vm2440, %v9199, 0
        %v9293 = vsel %vm2440, %v9200, 0
        %v9296 = vsel %vm2440, %v9201, 0
        %v9299 = vsel %vm2440, %v9202, 0
        %v9302 = vsel %vm2440, %v9203, 0
        %v9305 = vsel %vm2440, %v9204, 0
        %v9308 = vsel %vm2440, %v9205, 0
        %v9311 = vsel %vm2440, %v9206, 0
        %v9314 = vsel %vm2440, %v9207, 0
        %v9317 = vsel %vm2440, %v9208, 0
        %v9320 = vsel %vm2440, %v9209, 0
        %v9323 = vsel %vm2440, %v9210, 0
        %v9326 = vsel %vm2440, %v9211, 0
        %v9329 = vsel %vm2440, %v9212, 0
        %v9332 = vsel %vm2440, %v9213, 0
        %v9335 = vsel %vm2440, %v9214, 0
        %v9338 = vsel %vm2440, %v9215, 0
        %9340 = vmatprep.subr.bf16.mxu0 0
        %9341 = vmatpush1.bf16.msra.mxu0 0
        %9342 = vmatprep.subr.bf16.mxu0 0
        %9343 = vmatpush1.bf16.msra.mxu0 0
        %9344 = vmatprep.subr.bf16.mxu0 0
        %9345 = vmatpush1.bf16.msra.mxu0 0
        %9346 = vmatprep.subr.bf16.mxu0 0
        %9347 = vmatpush1.bf16.msra.mxu0 0
        %9348 = vmatprep.subr.bf16.mxu0 0
        %9349 = vmatpush1.bf16.msra.mxu0 %v9239
        %9350 = vmatprep.subr.bf16.mxu0 0
        %9351 = vmatpush1.bf16.msra.mxu0 %v9238
        %9352 = vmatprep.subr.bf16.mxu0 0
        %9353 = vmatpush1.bf16.msra.mxu0 %v9237
        %9354 = vmatprep.subr.bf16.mxu0 0
        %9355 = vmatpush1.bf16.msra.mxu0 %v9236
        %9356 = vmatprep.subr.bf16.mxu0 0
        %9357 = vmatpush2.bf16.msra.mxu0 0
        %9358 = vmatprep.subr.bf16.mxu0 0
        %9359 = vmatpush2.bf16.msra.mxu0 0
        %9360 = vmatprep.subr.bf16.mxu0 0
        %9361 = vmatpush2.bf16.msra.mxu0 0
        %9362 = vmatprep.subr.bf16.mxu0 0
        %9363 = vmatpush2.bf16.msra.mxu0 0
        %9364 = vmatprep.subr.bf16.mxu0 0
        %9365 = vmatpush2.bf16.msra.mxu0 0
        %9366 = vmatprep.subr.bf16.mxu0 0
        %9367 = vmatpush2.bf16.msra.mxu0 0
        %9368 = vmatprep.subr.bf16.mxu0 0
        %9369 = vmatpush2.bf16.msra.mxu0 0
        %9370 = vmatprep.subr.bf16.mxu0 0
        %9371 = vmatpush2.bf16.msra.mxu0 0
        %9372 = vmatprep.mubr.bf16.mxu0 0
        %9373 = vmatmul.mubr.bf16.gmra.mxu0 %v9245
        %v9374 = vpop.f32.mrf.mxu0
        %v9375 = vadd.f32 %v9219, %v9374
        %v9376 = vpop.f32.mrf.mxu0
        %v9377 = vpop.f32.mrf.mxu0
        %v9378 = vadd.f32 %v9219, %v9377
        %v9379 = vpop.f32.mrf.mxu0
        %9380 = vmatprep.mubr.bf16.mxu0 0
        %9381 = vmatmul.mubr.bf16.gmra.mxu0 %v9248
        %v9382 = vpop.f32.mrf.mxu0
        %v9383 = vadd.f32 %v9219, %v9382
        %v9384 = vpop.f32.mrf.mxu0
        %v9385 = vpop.f32.mrf.mxu0
        %v9386 = vadd.f32 %v9219, %v9385
        %v9387 = vpop.f32.mrf.mxu0
        %9388 = vmatprep.mubr.bf16.mxu0 0
        %9389 = vmatmul.mubr.bf16.gmra.mxu0 %v9251
        %v9390 = vpop.f32.mrf.mxu0
        %v9391 = vadd.f32 %v9219, %v9390
        %v9392 = vpop.f32.mrf.mxu0
        %v9393 = vpop.f32.mrf.mxu0
        %v9394 = vadd.f32 %v9219, %v9393
        %v9395 = vpop.f32.mrf.mxu0
        %9396 = vmatprep.mubr.bf16.mxu0 0
        %9397 = vmatmul.mubr.bf16.gmra.mxu0 %v9254
        %v9398 = vpop.f32.mrf.mxu0
        %v9399 = vadd.f32 %v9219, %v9398
        %v9400 = vpop.f32.mrf.mxu0
        %v9401 = vpop.f32.mrf.mxu0
        %v9402 = vadd.f32 %v9219, %v9401
        %v9403 = vpop.f32.mrf.mxu0
        %9404 = vmatprep.mubr.bf16.mxu0 0
        %9405 = vmatmul.mubr.bf16.gmra.mxu0 %v9257
        %v9406 = vpop.f32.mrf.mxu0
        %v9407 = vadd.f32 %v9219, %v9406
        %v9408 = vpop.f32.mrf.mxu0
        %v9409 = vpop.f32.mrf.mxu0
        %v9410 = vadd.f32 %v9219, %v9409
        %v9411 = vpop.f32.mrf.mxu0
        %9412 = vmatprep.mubr.bf16.mxu0 0
        %9413 = vmatmul.mubr.bf16.gmra.mxu0 %v9260
        %v9414 = vpop.f32.mrf.mxu0
        %v9415 = vadd.f32 %v9219, %v9414
        %v9416 = vpop.f32.mrf.mxu0
        %v9417 = vpop.f32.mrf.mxu0
        %v9418 = vadd.f32 %v9219, %v9417
        %v9419 = vpop.f32.mrf.mxu0
        %9420 = vmatprep.mubr.bf16.mxu0 0
        %9421 = vmatmul.mubr.bf16.gmra.mxu0 %v9263
        %v9422 = vpop.f32.mrf.mxu0
        %v9423 = vadd.f32 %v9219, %v9422
        %v9424 = vpop.f32.mrf.mxu0
        %v9425 = vpop.f32.mrf.mxu0
        %v9426 = vadd.f32 %v9219, %v9425
        %v9427 = vpop.f32.mrf.mxu0
        %9428 = vmatprep.mubr.bf16.mxu0 0
        %9429 = vmatmul.mubr.bf16.gmra.mxu0 %v9266
        %v9430 = vpop.f32.mrf.mxu0
        %v9431 = vadd.f32 %v9219, %v9430
        %v9432 = vpop.f32.mrf.mxu0
        %v9433 = vpop.f32.mrf.mxu0
        %v9434 = vadd.f32 %v9219, %v9433
        %v9435 = vpop.f32.mrf.mxu0
        %9436 = vmatprep.mubr.bf16.mxu0 0
        %9437 = vmatmul.mubr.bf16.gmra.mxu0 %v9269
        %v9438 = vpop.f32.mrf.mxu0
        %v9439 = vadd.f32 %v9219, %v9438
        %v9440 = vpop.f32.mrf.mxu0
        %v9441 = vpop.f32.mrf.mxu0
        %v9442 = vadd.f32 %v9219, %v9441
        %v9443 = vpop.f32.mrf.mxu0
        %9444 = vmatprep.mubr.bf16.mxu0 0
        %9445 = vmatmul.mubr.bf16.gmra.mxu0 %v9272
        %v9446 = vpop.f32.mrf.mxu0
        %v9447 = vadd.f32 %v9219, %v9446
        %v9448 = vpop.f32.mrf.mxu0
        %v9449 = vpop.f32.mrf.mxu0
        %v9450 = vadd.f32 %v9219, %v9449
        %v9451 = vpop.f32.mrf.mxu0
        %9452 = vmatprep.mubr.bf16.mxu0 0
        %9453 = vmatmul.mubr.bf16.gmra.mxu0 %v9275
        %v9454 = vpop.f32.mrf.mxu0
        %v9455 = vadd.f32 %v9219, %v9454
        %v9456 = vpop.f32.mrf.mxu0
        %v9457 = vpop.f32.mrf.mxu0
        %v9458 = vadd.f32 %v9219, %v9457
        %v9459 = vpop.f32.mrf.mxu0
        %9460 = vmatprep.mubr.bf16.mxu0 0
        %9461 = vmatmul.mubr.bf16.gmra.mxu0 %v9278
        %v9462 = vpop.f32.mrf.mxu0
        %v9463 = vadd.f32 %v9219, %v9462
        %v9464 = vpop.f32.mrf.mxu0
        %v9465 = vpop.f32.mrf.mxu0
        %v9466 = vadd.f32 %v9219, %v9465
        %v9467 = vpop.f32.mrf.mxu0
        %9468 = vmatprep.mubr.bf16.mxu0 0
        %9469 = vmatmul.mubr.bf16.gmra.mxu0 %v9281
        %v9470 = vpop.f32.mrf.mxu0
        %v9471 = vadd.f32 %v9219, %v9470
        %v9472 = vpop.f32.mrf.mxu0
        %v9473 = vpop.f32.mrf.mxu0
        %v9474 = vadd.f32 %v9219, %v9473
        %v9475 = vpop.f32.mrf.mxu0
        %9476 = vmatprep.mubr.bf16.mxu0 0
        %9477 = vmatmul.mubr.bf16.gmra.mxu0 %v9284
        %v9478 = vpop.f32.mrf.mxu0
        %v9479 = vadd.f32 %v9219, %v9478
        %v9480 = vpop.f32.mrf.mxu0
        %v9481 = vpop.f32.mrf.mxu0
        %v9482 = vadd.f32 %v9219, %v9481
        %v9483 = vpop.f32.mrf.mxu0
        %9484 = vmatprep.mubr.bf16.mxu0 0
        %9485 = vmatmul.mubr.bf16.gmra.mxu0 %v9287
        %v9486 = vpop.f32.mrf.mxu0
        %v9487 = vadd.f32 %v9219, %v9486
        %v9488 = vpop.f32.mrf.mxu0
        %v9489 = vpop.f32.mrf.mxu0
        %v9490 = vadd.f32 %v9219, %v9489
        %v9491 = vpop.f32.mrf.mxu0
        %9492 = vmatprep.mubr.bf16.mxu0 0
        %9493 = vmatmul.mubr.bf16.gmra.mxu0 %v9290
        %v9494 = vpop.f32.mrf.mxu0
        %v9495 = vadd.f32 %v9219, %v9494
        %v9496 = vpop.f32.mrf.mxu0
        %v9497 = vpop.f32.mrf.mxu0
        %v9498 = vadd.f32 %v9219, %v9497
        %v9499 = vpop.f32.mrf.mxu0
        %9500 = vmatprep.mubr.bf16.mxu0 0
        %9501 = vmatmul.mubr.bf16.gmra.mxu0 %v9293
        %v9502 = vpop.f32.mrf.mxu0
        %v9503 = vadd.f32 %v9219, %v9502
        %v9504 = vpop.f32.mrf.mxu0
        %v9505 = vpop.f32.mrf.mxu0
        %v9506 = vadd.f32 %v9219, %v9505
        %v9507 = vpop.f32.mrf.mxu0
        %9508 = vmatprep.mubr.bf16.mxu0 0
        %9509 = vmatmul.mubr.bf16.gmra.mxu0 %v9296
        %v9510 = vpop.f32.mrf.mxu0
        %v9511 = vadd.f32 %v9219, %v9510
        %v9512 = vpop.f32.mrf.mxu0
        %v9513 = vpop.f32.mrf.mxu0
        %v9514 = vadd.f32 %v9219, %v9513
        %v9515 = vpop.f32.mrf.mxu0
        %9516 = vmatprep.mubr.bf16.mxu0 0
        %9517 = vmatmul.mubr.bf16.gmra.mxu0 %v9299
        %v9518 = vpop.f32.mrf.mxu0
        %v9519 = vadd.f32 %v9219, %v9518
        %v9520 = vpop.f32.mrf.mxu0
        %v9521 = vpop.f32.mrf.mxu0
        %v9522 = vadd.f32 %v9219, %v9521
        %v9523 = vpop.f32.mrf.mxu0
        %9524 = vmatprep.mubr.bf16.mxu0 0
        %9525 = vmatmul.mubr.bf16.gmra.mxu0 %v9302
        %v9526 = vpop.f32.mrf.mxu0
        %v9527 = vadd.f32 %v9219, %v9526
        %v9528 = vpop.f32.mrf.mxu0
        %v9529 = vpop.f32.mrf.mxu0
        %v9530 = vadd.f32 %v9219, %v9529
        %v9531 = vpop.f32.mrf.mxu0
        %9532 = vmatprep.mubr.bf16.mxu0 0
        %9533 = vmatmul.mubr.bf16.gmra.mxu0 %v9305
        %v9534 = vpop.f32.mrf.mxu0
        %v9535 = vadd.f32 %v9219, %v9534
        %v9536 = vpop.f32.mrf.mxu0
        %v9537 = vpop.f32.mrf.mxu0
        %v9538 = vadd.f32 %v9219, %v9537
        %v9539 = vpop.f32.mrf.mxu0
        %9540 = vmatprep.mubr.bf16.mxu0 0
        %9541 = vmatmul.mubr.bf16.gmra.mxu0 %v9308
        %v9542 = vpop.f32.mrf.mxu0
        %v9543 = vadd.f32 %v9219, %v9542
        %v9544 = vpop.f32.mrf.mxu0
        %v9545 = vpop.f32.mrf.mxu0
        %v9546 = vadd.f32 %v9219, %v9545
        %v9547 = vpop.f32.mrf.mxu0
        %9548 = vmatprep.mubr.bf16.mxu0 0
        %9549 = vmatmul.mubr.bf16.gmra.mxu0 %v9311
        %v9550 = vpop.f32.mrf.mxu0
        %v9551 = vadd.f32 %v9219, %v9550
        %v9552 = vpop.f32.mrf.mxu0
        %v9553 = vpop.f32.mrf.mxu0
        %v9554 = vadd.f32 %v9219, %v9553
        %v9555 = vpop.f32.mrf.mxu0
        %9556 = vmatprep.mubr.bf16.mxu0 0
        %9557 = vmatmul.mubr.bf16.gmra.mxu0 %v9314
        %v9558 = vpop.f32.mrf.mxu0
        %v9559 = vadd.f32 %v9219, %v9558
        %v9560 = vpop.f32.mrf.mxu0
        %v9561 = vpop.f32.mrf.mxu0
        %v9562 = vadd.f32 %v9219, %v9561
        %v9563 = vpop.f32.mrf.mxu0
        %9564 = vmatprep.mubr.bf16.mxu0 0
        %9565 = vmatmul.mubr.bf16.gmra.mxu0 %v9317
        %v9566 = vpop.f32.mrf.mxu0
        %v9567 = vadd.f32 %v9219, %v9566
        %v9568 = vpop.f32.mrf.mxu0
        %v9569 = vpop.f32.mrf.mxu0
        %v9570 = vadd.f32 %v9219, %v9569
        %v9571 = vpop.f32.mrf.mxu0
        %9572 = vmatprep.mubr.bf16.mxu0 0
        %9573 = vmatmul.mubr.bf16.gmra.mxu0 %v9320
        %v9574 = vpop.f32.mrf.mxu0
        %v9575 = vadd.f32 %v9219, %v9574
        %v9576 = vpop.f32.mrf.mxu0
        %v9577 = vpop.f32.mrf.mxu0
        %v9578 = vadd.f32 %v9219, %v9577
        %v9579 = vpop.f32.mrf.mxu0
        %9580 = vmatprep.mubr.bf16.mxu0 0
        %9581 = vmatmul.mubr.bf16.gmra.mxu0 %v9323
        %v9582 = vpop.f32.mrf.mxu0
        %v9583 = vadd.f32 %v9219, %v9582
        %v9584 = vpop.f32.mrf.mxu0
        %v9585 = vpop.f32.mrf.mxu0
        %v9586 = vadd.f32 %v9219, %v9585
        %v9587 = vpop.f32.mrf.mxu0
        %9588 = vmatprep.mubr.bf16.mxu0 0
        %9589 = vmatmul.mubr.bf16.gmra.mxu0 %v9326
        %v9590 = vpop.f32.mrf.mxu0
        %v9591 = vadd.f32 %v9219, %v9590
        %v9592 = vpop.f32.mrf.mxu0
        %v9593 = vpop.f32.mrf.mxu0
        %v9594 = vadd.f32 %v9219, %v9593
        %v9595 = vpop.f32.mrf.mxu0
        %9596 = vmatprep.mubr.bf16.mxu0 0
        %9597 = vmatmul.mubr.bf16.gmra.mxu0 %v9329
        %v9598 = vpop.f32.mrf.mxu0
        %v9599 = vadd.f32 %v9219, %v9598
        %v9600 = vpop.f32.mrf.mxu0
        %v9601 = vpop.f32.mrf.mxu0
        %v9602 = vadd.f32 %v9219, %v9601
        %v9603 = vpop.f32.mrf.mxu0
        %9604 = vmatprep.mubr.bf16.mxu0 0
        %9605 = vmatmul.mubr.bf16.gmra.mxu0 %v9332
        %v9606 = vpop.f32.mrf.mxu0
        %v9607 = vadd.f32 %v9219, %v9606
        %v9608 = vpop.f32.mrf.mxu0
        %v9609 = vpop.f32.mrf.mxu0
        %v9610 = vadd.f32 %v9219, %v9609
        %v9611 = vpop.f32.mrf.mxu0
        %9612 = vmatprep.mubr.bf16.mxu0 0
        %9613 = vmatmul.mubr.bf16.gmra.mxu0 %v9335
        %v9614 = vpop.f32.mrf.mxu0
        %v9615 = vadd.f32 %v9219, %v9614
        %v9616 = vpop.f32.mrf.mxu0
        %v9617 = vpop.f32.mrf.mxu0
        %v9618 = vadd.f32 %v9219, %v9617
        %v9619 = vpop.f32.mrf.mxu0
        %9620 = vmatprep.mubr.bf16.mxu0 0
        %9621 = vmatmul.mubr.bf16.gmra.mxu0 %v9338
        %v9622 = vpop.f32.mrf.mxu0
        %v9623 = vadd.f32 %v9219, %v9622
        %v9624 = vpop.f32.mrf.mxu0
        %v9625 = vpop.f32.mrf.mxu0
        %v9626 = vadd.f32 %v9219, %v9625
        %v9627 = vpop.f32.mrf.mxu0
        %9628 = vdwg.mxu0
        %v9629 = vmax.f32 %v9375, 0.0
        %v9630 = vmax.f32 %v9378, 0.0
        %v9631 = vmax.f32 %v9383, 0.0
        %v9632 = vmax.f32 %v9386, 0.0
        %v9633 = vmax.f32 %v9391, 0.0
        %v9634 = vmax.f32 %v9394, 0.0
        %v9635 = vmax.f32 %v9399, 0.0
        %v9636 = vmax.f32 %v9402, 0.0
        %v9637 = vmax.f32 %v9407, 0.0
        %v9638 = vmax.f32 %v9410, 0.0
        %v9639 = vmax.f32 %v9415, 0.0
        %v9640 = vmax.f32 %v9418, 0.0
        %v9641 = vmax.f32 %v9423, 0.0
        %v9642 = vmax.f32 %v9426, 0.0
        %v9643 = vmax.f32 %v9431, 0.0
        %v9644 = vmax.f32 %v9434, 0.0
        %v9645 = vmax.f32 %v9439, 0.0
        %v9646 = vmax.f32 %v9442, 0.0
        %v9647 = vmax.f32 %v9447, 0.0
        %v9648 = vmax.f32 %v9450, 0.0
        %v9649 = vmax.f32 %v9455, 0.0
        %v9650 = vmax.f32 %v9458, 0.0
        %v9651 = vmax.f32 %v9463, 0.0
        %v9652 = vmax.f32 %v9466, 0.0
        %v9653 = vmax.f32 %v9471, 0.0
        %v9654 = vmax.f32 %v9474, 0.0
        %v9655 = vmax.f32 %v9479, 0.0
        %v9656 = vmax.f32 %v9482, 0.0
        %v9657 = vmax.f32 %v9487, 0.0
        %v9658 = vmax.f32 %v9490, 0.0
        %v9659 = vmax.f32 %v9495, 0.0
        %v9660 = vmax.f32 %v9498, 0.0
        %v9661 = vmax.f32 %v9503, 0.0
        %v9662 = vmax.f32 %v9506, 0.0
        %v9663 = vmax.f32 %v9511, 0.0
        %v9664 = vmax.f32 %v9514, 0.0
        %v9665 = vmax.f32 %v9519, 0.0
        %v9666 = vmax.f32 %v9522, 0.0
        %v9667 = vmax.f32 %v9527, 0.0
        %v9668 = vmax.f32 %v9530, 0.0
        %v9669 = vmax.f32 %v9535, 0.0
        %v9670 = vmax.f32 %v9538, 0.0
        %v9671 = vmax.f32 %v9543, 0.0
        %v9672 = vmax.f32 %v9546, 0.0
        %v9673 = vmax.f32 %v9551, 0.0
        %v9674 = vmax.f32 %v9554, 0.0
        %v9675 = vmax.f32 %v9559, 0.0
        %v9676 = vmax.f32 %v9562, 0.0
        %v9677 = vmax.f32 %v9567, 0.0
        %v9678 = vmax.f32 %v9570, 0.0
        %v9679 = vmax.f32 %v9575, 0.0
        %v9680 = vmax.f32 %v9578, 0.0
        %v9681 = vmax.f32 %v9583, 0.0
        %v9682 = vmax.f32 %v9586, 0.0
        %v9683 = vmax.f32 %v9591, 0.0
        %v9684 = vmax.f32 %v9594, 0.0
        %v9685 = vmax.f32 %v9599, 0.0
        %v9686 = vmax.f32 %v9602, 0.0
        %v9687 = vmax.f32 %v9607, 0.0
        %v9688 = vmax.f32 %v9610, 0.0
        %v9689 = vmax.f32 %v9615, 0.0
        %v9690 = vmax.f32 %v9618, 0.0
        %v9691 = vmax.f32 %v9623, 0.0
        %v9692 = vmax.f32 %v9626, 0.0
        %v9693 = vpack.c.bf16 %v9630, %v9629
        %v9694 = vpack.c.bf16 %v9632, %v9631
        %v9695 = vpack.c.bf16 %v9634, %v9633
        %v9696 = vpack.c.bf16 %v9636, %v9635
        %v9697 = vpack.c.bf16 %v9638, %v9637
        %v9698 = vpack.c.bf16 %v9640, %v9639
        %v9699 = vpack.c.bf16 %v9642, %v9641
        %v9700 = vpack.c.bf16 %v9644, %v9643
        %v9701 = vpack.c.bf16 %v9646, %v9645
        %v9702 = vpack.c.bf16 %v9648, %v9647
        %v9703 = vpack.c.bf16 %v9650, %v9649
        %v9704 = vpack.c.bf16 %v9652, %v9651
        %v9705 = vpack.c.bf16 %v9654, %v9653
        %v9706 = vpack.c.bf16 %v9656, %v9655
        %v9707 = vpack.c.bf16 %v9658, %v9657
        %v9708 = vpack.c.bf16 %v9660, %v9659
        %v9709 = vpack.c.bf16 %v9662, %v9661
        %v9710 = vpack.c.bf16 %v9664, %v9663
        %v9711 = vpack.c.bf16 %v9666, %v9665
        %v9712 = vpack.c.bf16 %v9668, %v9667
        %v9713 = vpack.c.bf16 %v9670, %v9669
        %v9714 = vpack.c.bf16 %v9672, %v9671
        %v9715 = vpack.c.bf16 %v9674, %v9673
        %v9716 = vpack.c.bf16 %v9676, %v9675
        %v9717 = vpack.c.bf16 %v9678, %v9677
        %v9718 = vpack.c.bf16 %v9680, %v9679
        %v9719 = vpack.c.bf16 %v9682, %v9681
        %v9720 = vpack.c.bf16 %v9684, %v9683
        %v9721 = vpack.c.bf16 %v9686, %v9685
        %v9722 = vpack.c.bf16 %v9688, %v9687
        %v9723 = vpack.c.bf16 %v9690, %v9689
        %v9724 = vpack.c.bf16 %v9692, %v9691
        %v9725 = vlaneseq
        %v9726 = vshrl.u32 %v9725, 7
        %v9727 = vsub.s32 0, %v9726
        %v9728 = vrot.slane %v444, %v9727
        %v9729 = vlaneseq
        %v9730 = vshrl.u32 %v9729, 7
        %v9731 = vsub.s32 0, %v9730
        %v9732 = vrot.slane %v445, %v9731
        %v9733 = vlaneseq
        %v9734 = vshrl.u32 %v9733, 7
        %v9735 = vsub.s32 0, %v9734
        %v9736 = vrot.slane %v446, %v9735
        %v9737 = vlaneseq
        %v9738 = vshrl.u32 %v9737, 7
        %v9739 = vsub.s32 0, %v9738
        %v9740 = vrot.slane %v447, %v9739
        %v9741 = vlaneseq
        %v9742 = vshrl.u32 %v9741, 7
        %v9743 = vsub.s32 0, %v9742
        %v9744 = vrot.slane %v448, %v9743
        %v9745 = vlaneseq
        %v9746 = vshrl.u32 %v9745, 7
        %v9747 = vsub.s32 0, %v9746
        %v9748 = vrot.slane %v449, %v9747
        %v9749 = vlaneseq
        %v9750 = vshrl.u32 %v9749, 7
        %v9751 = vsub.s32 0, %v9750
        %v9752 = vrot.slane %v450, %v9751
        %v9753 = vlaneseq
        %v9754 = vshrl.u32 %v9753, 7
        %v9755 = vsub.s32 0, %v9754
        %v9756 = vrot.slane %v451, %v9755
        %v9821 = vunpack.c.l.b16 %v884
        %v9822 = vunpack.c.h.b16 %v884
        %v9823 = vunpack.c.l.b16 %v885
        %v9824 = vunpack.c.h.b16 %v885
        %v9825 = vunpack.c.l.b16 %v886
        %v9826 = vunpack.c.h.b16 %v886
        %v9827 = vunpack.c.l.b16 %v887
        %v9828 = vunpack.c.h.b16 %v887
        %v9829 = vunpack.c.l.b16 %v888
        %v9830 = vunpack.c.h.b16 %v888
        %v9831 = vunpack.c.l.b16 %v889
        %v9832 = vunpack.c.h.b16 %v889
        %v9833 = vunpack.c.l.b16 %v890
        %v9834 = vunpack.c.h.b16 %v890
        %v9835 = vunpack.c.l.b16 %v891
        %v9836 = vunpack.c.h.b16 %v891
        %v9837 = vunpack.c.l.b16 %v892
        %v9838 = vunpack.c.h.b16 %v892
        %v9839 = vunpack.c.l.b16 %v893
        %v9840 = vunpack.c.h.b16 %v893
        %v9841 = vunpack.c.l.b16 %v894
        %v9842 = vunpack.c.h.b16 %v894
        %v9843 = vunpack.c.l.b16 %v895
        %v9844 = vunpack.c.h.b16 %v895
        %v9845 = vunpack.c.l.b16 %v896
        %v9846 = vunpack.c.h.b16 %v896
        %v9847 = vunpack.c.l.b16 %v897
        %v9848 = vunpack.c.h.b16 %v897
        %v9849 = vunpack.c.l.b16 %v898
        %v9850 = vunpack.c.h.b16 %v898
        %v9851 = vunpack.c.l.b16 %v899
        %v9852 = vunpack.c.h.b16 %v899
        %v9853 = vunpack.c.l.b16 %v900
        %v9854 = vunpack.c.h.b16 %v900
        %v9855 = vunpack.c.l.b16 %v901
        %v9856 = vunpack.c.h.b16 %v901
        %v9857 = vunpack.c.l.b16 %v902
        %v9858 = vunpack.c.h.b16 %v902
        %v9859 = vunpack.c.l.b16 %v903
        %v9860 = vunpack.c.h.b16 %v903
        %v9861 = vunpack.c.l.b16 %v904
        %v9862 = vunpack.c.h.b16 %v904
        %v9863 = vunpack.c.l.b16 %v905
        %v9864 = vunpack.c.h.b16 %v905
        %v9865 = vunpack.c.l.b16 %v906
        %v9866 = vunpack.c.h.b16 %v906
        %v9867 = vunpack.c.l.b16 %v907
        %v9868 = vunpack.c.h.b16 %v907
        %v9869 = vunpack.c.l.b16 %v908
        %v9870 = vunpack.c.h.b16 %v908
        %v9871 = vunpack.c.l.b16 %v909
        %v9872 = vunpack.c.h.b16 %v909
        %v9873 = vunpack.c.l.b16 %v910
        %v9874 = vunpack.c.h.b16 %v910
        %v9875 = vunpack.c.l.b16 %v911
        %v9876 = vunpack.c.h.b16 %v911
        %v9877 = vunpack.c.l.b16 %v912
        %v9878 = vunpack.c.h.b16 %v912
        %v9879 = vunpack.c.l.b16 %v913
        %v9880 = vunpack.c.h.b16 %v913
        %v9881 = vunpack.c.l.b16 %v914
        %v9882 = vunpack.c.h.b16 %v914
        %v9883 = vunpack.c.l.b16 %v915
        %v9884 = vunpack.c.h.b16 %v915
        %v9885 = vunpack.c.l.b16 %v916
        %v9886 = vunpack.c.h.b16 %v916
        %v9887 = vunpack.c.l.b16 %v917
        %v9888 = vunpack.c.h.b16 %v917
        %v9889 = vunpack.c.l.b16 %v918
        %v9890 = vunpack.c.h.b16 %v918
        %v9891 = vunpack.c.l.b16 %v919
        %v9892 = vunpack.c.h.b16 %v919
        %v9893 = vunpack.c.l.b16 %v920
        %v9894 = vunpack.c.h.b16 %v920
        %v9895 = vunpack.c.l.b16 %v921
        %v9896 = vunpack.c.h.b16 %v921
        %v9897 = vunpack.c.l.b16 %v922
        %v9898 = vunpack.c.h.b16 %v922
        %v9899 = vunpack.c.l.b16 %v923
        %v9900 = vunpack.c.h.b16 %v923
        %v9901 = vunpack.c.l.b16 %v924
        %v9902 = vunpack.c.h.b16 %v924
        %v9903 = vunpack.c.l.b16 %v925
        %v9904 = vunpack.c.h.b16 %v925
        %v9905 = vunpack.c.l.b16 %v926
        %v9906 = vunpack.c.h.b16 %v926
        %v9907 = vunpack.c.l.b16 %v927
        %v9908 = vunpack.c.h.b16 %v927
        %v9909 = vunpack.c.l.b16 %v928
        %v9910 = vunpack.c.h.b16 %v928
        %v9911 = vunpack.c.l.b16 %v929
        %v9912 = vunpack.c.h.b16 %v929
        %v9913 = vunpack.c.l.b16 %v930
        %v9914 = vunpack.c.h.b16 %v930
        %v9915 = vunpack.c.l.b16 %v931
        %v9916 = vunpack.c.h.b16 %v931
        %v9917 = vunpack.c.l.b16 %v932
        %v9918 = vunpack.c.h.b16 %v932
        %v9919 = vunpack.c.l.b16 %v933
        %v9920 = vunpack.c.h.b16 %v933
        %v9921 = vunpack.c.l.b16 %v934
        %v9922 = vunpack.c.h.b16 %v934
        %v9923 = vunpack.c.l.b16 %v935
        %v9924 = vunpack.c.h.b16 %v935
        %v9925 = vunpack.c.l.b16 %v936
        %v9926 = vunpack.c.h.b16 %v936
        %v9927 = vunpack.c.l.b16 %v937
        %v9928 = vunpack.c.h.b16 %v937
        %v9929 = vunpack.c.l.b16 %v938
        %v9930 = vunpack.c.h.b16 %v938
        %v9931 = vunpack.c.l.b16 %v939
        %v9932 = vunpack.c.h.b16 %v939
        %v9933 = vunpack.c.l.b16 %v940
        %v9934 = vunpack.c.h.b16 %v940
        %v9935 = vunpack.c.l.b16 %v941
        %v9936 = vunpack.c.h.b16 %v941
        %v9937 = vunpack.c.l.b16 %v942
        %v9938 = vunpack.c.h.b16 %v942
        %v9939 = vunpack.c.l.b16 %v943
        %v9940 = vunpack.c.h.b16 %v943
        %v9941 = vunpack.c.l.b16 %v944
        %v9942 = vunpack.c.h.b16 %v944
        %v9943 = vunpack.c.l.b16 %v945
        %v9944 = vunpack.c.h.b16 %v945
        %v9945 = vunpack.c.l.b16 %v946
        %v9946 = vunpack.c.h.b16 %v946
        %v9947 = vunpack.c.l.b16 %v947
        %v9948 = vunpack.c.h.b16 %v947
        %v9949 = vpack.c.b16 %v9829, %v9821
        %v9950 = vpack.c.b16 %v9830, %v9822
        %v9951 = vpack.c.b16 %v9831, %v9823
        %v9952 = vpack.c.b16 %v9832, %v9824
        %v9953 = vpack.c.b16 %v9833, %v9825
        %v9954 = vpack.c.b16 %v9834, %v9826
        %v9955 = vpack.c.b16 %v9835, %v9827
        %v9956 = vpack.c.b16 %v9836, %v9828
        %v9957 = vpack.c.b16 %v9845, %v9837
        %v9958 = vpack.c.b16 %v9846, %v9838
        %v9959 = vpack.c.b16 %v9847, %v9839
        %v9960 = vpack.c.b16 %v9848, %v9840
        %v9961 = vpack.c.b16 %v9849, %v9841
        %v9962 = vpack.c.b16 %v9850, %v9842
        %v9963 = vpack.c.b16 %v9851, %v9843
        %v9964 = vpack.c.b16 %v9852, %v9844
        %v9965 = vpack.c.b16 %v9861, %v9853
        %v9966 = vpack.c.b16 %v9862, %v9854
        %v9967 = vpack.c.b16 %v9863, %v9855
        %v9968 = vpack.c.b16 %v9864, %v9856
        %v9969 = vpack.c.b16 %v9865, %v9857
        %v9970 = vpack.c.b16 %v9866, %v9858
        %v9971 = vpack.c.b16 %v9867, %v9859
        %v9972 = vpack.c.b16 %v9868, %v9860
        %v9973 = vpack.c.b16 %v9877, %v9869
        %v9974 = vpack.c.b16 %v9878, %v9870
        %v9975 = vpack.c.b16 %v9879, %v9871
        %v9976 = vpack.c.b16 %v9880, %v9872
        %v9977 = vpack.c.b16 %v9881, %v9873
        %v9978 = vpack.c.b16 %v9882, %v9874
        %v9979 = vpack.c.b16 %v9883, %v9875
        %v9980 = vpack.c.b16 %v9884, %v9876
        %v9981 = vpack.c.b16 %v9893, %v9885
        %v9982 = vpack.c.b16 %v9894, %v9886
        %v9983 = vpack.c.b16 %v9895, %v9887
        %v9984 = vpack.c.b16 %v9896, %v9888
        %v9985 = vpack.c.b16 %v9897, %v9889
        %v9986 = vpack.c.b16 %v9898, %v9890
        %v9987 = vpack.c.b16 %v9899, %v9891
        %v9988 = vpack.c.b16 %v9900, %v9892
        %v9989 = vpack.c.b16 %v9909, %v9901
        %v9990 = vpack.c.b16 %v9910, %v9902
        %v9991 = vpack.c.b16 %v9911, %v9903
        %v9992 = vpack.c.b16 %v9912, %v9904
        %v9993 = vpack.c.b16 %v9913, %v9905
        %v9994 = vpack.c.b16 %v9914, %v9906
        %v9995 = vpack.c.b16 %v9915, %v9907
        %v9996 = vpack.c.b16 %v9916, %v9908
        %v9997 = vpack.c.b16 %v9925, %v9917
        %v9998 = vpack.c.b16 %v9926, %v9918
        %v9999 = vpack.c.b16 %v9927, %v9919
        %v10000 = vpack.c.b16 %v9928, %v9920
        %v10001 = vpack.c.b16 %v9929, %v9921
        %v10002 = vpack.c.b16 %v9930, %v9922
        %v10003 = vpack.c.b16 %v9931, %v9923
        %v10004 = vpack.c.b16 %v9932, %v9924
        %v10005 = vpack.c.b16 %v9941, %v9933
        %v10006 = vpack.c.b16 %v9942, %v9934
        %v10007 = vpack.c.b16 %v9943, %v9935
        %v10008 = vpack.c.b16 %v9944, %v9936
        %v10009 = vpack.c.b16 %v9945, %v9937
        %v10010 = vpack.c.b16 %v9946, %v9938
        %v10011 = vpack.c.b16 %v9947, %v9939
        %v10012 = vpack.c.b16 %v9948, %v9940
        %10077 = vmatprep.subr.bf16.mxu0 %v10006
        %10078 = vmatpush1.bf16.msra.mxu0 %v10005
        %10079 = vmatprep.subr.bf16.mxu0 %v9998
        %10080 = vmatpush1.bf16.msra.mxu0 %v9997
        %10081 = vmatprep.subr.bf16.mxu0 %v9990
        %10082 = vmatpush1.bf16.msra.mxu0 %v9989
        %10083 = vmatprep.subr.bf16.mxu0 %v9982
        %10084 = vmatpush1.bf16.msra.mxu0 %v9981
        %10085 = vmatprep.subr.bf16.mxu0 %v9974
        %10086 = vmatpush1.bf16.msra.mxu0 %v9973
        %10087 = vmatprep.subr.bf16.mxu0 %v9966
        %10088 = vmatpush1.bf16.msra.mxu0 %v9965
        %10089 = vmatprep.subr.bf16.mxu0 %v9958
        %10090 = vmatpush1.bf16.msra.mxu0 %v9957
        %10091 = vmatprep.subr.bf16.mxu0 %v9950
        %10092 = vmatpush1.bf16.msra.mxu0 %v9949
        %10093 = vmatprep.subr.bf16.mxu0 0
        %10094 = vmatpush2.bf16.msra.mxu0 0
        %10095 = vmatprep.subr.bf16.mxu0 0
        %10096 = vmatpush2.bf16.msra.mxu0 0
        %10097 = vmatprep.subr.bf16.mxu0 0
        %10098 = vmatpush2.bf16.msra.mxu0 0
        %10099 = vmatprep.subr.bf16.mxu0 0
        %10100 = vmatpush2.bf16.msra.mxu0 0
        %10101 = vmatprep.subr.bf16.mxu0 0
        %10102 = vmatpush2.bf16.msra.mxu0 0
        %10103 = vmatprep.subr.bf16.mxu0 0
        %10104 = vmatpush2.bf16.msra.mxu0 0
        %10105 = vmatprep.subr.bf16.mxu0 0
        %10106 = vmatpush2.bf16.msra.mxu0 0
        %10107 = vmatprep.subr.bf16.mxu0 0
        %10108 = vmatpush2.bf16.msra.mxu0 0
        %10109 = vmatprep.mubr.bf16.mxu0 0
        %10110 = vmatmul.mubr.bf16.gmra.mxu0 %v9693
        %v10111 = vpop.f32.mrf.mxu0
        %v10112 = vadd.f32 %v9728, %v10111
        %v10113 = vpop.f32.mrf.mxu0
        %v10114 = vadd.f32 %v9732, %v10113
        %v10115 = vpop.f32.mrf.mxu0
        %v10116 = vadd.f32 %v9728, %v10115
        %v10117 = vpop.f32.mrf.mxu0
        %v10118 = vadd.f32 %v9732, %v10117
        %10119 = vmatprep.mubr.bf16.mxu0 0
        %10120 = vmatmul.mubr.bf16.gmra.mxu0 %v9694
        %v10121 = vpop.f32.mrf.mxu0
        %v10122 = vadd.f32 %v9728, %v10121
        %v10123 = vpop.f32.mrf.mxu0
        %v10124 = vadd.f32 %v9732, %v10123
        %v10125 = vpop.f32.mrf.mxu0
        %v10126 = vadd.f32 %v9728, %v10125
        %v10127 = vpop.f32.mrf.mxu0
        %v10128 = vadd.f32 %v9732, %v10127
        %10129 = vmatprep.mubr.bf16.mxu0 0
        %10130 = vmatmul.mubr.bf16.gmra.mxu0 %v9695
        %v10131 = vpop.f32.mrf.mxu0
        %v10132 = vadd.f32 %v9728, %v10131
        %v10133 = vpop.f32.mrf.mxu0
        %v10134 = vadd.f32 %v9732, %v10133
        %v10135 = vpop.f32.mrf.mxu0
        %v10136 = vadd.f32 %v9728, %v10135
        %v10137 = vpop.f32.mrf.mxu0
        %v10138 = vadd.f32 %v9732, %v10137
        %10139 = vmatprep.mubr.bf16.mxu0 0
        %10140 = vmatmul.mubr.bf16.gmra.mxu0 %v9696
        %v10141 = vpop.f32.mrf.mxu0
        %v10142 = vadd.f32 %v9728, %v10141
        %v10143 = vpop.f32.mrf.mxu0
        %v10144 = vadd.f32 %v9732, %v10143
        %v10145 = vpop.f32.mrf.mxu0
        %v10146 = vadd.f32 %v9728, %v10145
        %v10147 = vpop.f32.mrf.mxu0
        %v10148 = vadd.f32 %v9732, %v10147
        %10149 = vmatprep.mubr.bf16.mxu0 0
        %10150 = vmatmul.mubr.bf16.gmra.mxu0 %v9697
        %v10151 = vpop.f32.mrf.mxu0
        %v10152 = vadd.f32 %v9728, %v10151
        %v10153 = vpop.f32.mrf.mxu0
        %v10154 = vadd.f32 %v9732, %v10153
        %v10155 = vpop.f32.mrf.mxu0
        %v10156 = vadd.f32 %v9728, %v10155
        %v10157 = vpop.f32.mrf.mxu0
        %v10158 = vadd.f32 %v9732, %v10157
        %10159 = vmatprep.mubr.bf16.mxu0 0
        %10160 = vmatmul.mubr.bf16.gmra.mxu0 %v9698
        %v10161 = vpop.f32.mrf.mxu0
        %v10162 = vadd.f32 %v9728, %v10161
        %v10163 = vpop.f32.mrf.mxu0
        %v10164 = vadd.f32 %v9732, %v10163
        %v10165 = vpop.f32.mrf.mxu0
        %v10166 = vadd.f32 %v9728, %v10165
        %v10167 = vpop.f32.mrf.mxu0
        %v10168 = vadd.f32 %v9732, %v10167
        %10169 = vmatprep.mubr.bf16.mxu0 0
        %10170 = vmatmul.mubr.bf16.gmra.mxu0 %v9699
        %v10171 = vpop.f32.mrf.mxu0
        %v10172 = vadd.f32 %v9728, %v10171
        %v10173 = vpop.f32.mrf.mxu0
        %v10174 = vadd.f32 %v9732, %v10173
        %v10175 = vpop.f32.mrf.mxu0
        %v10176 = vadd.f32 %v9728, %v10175
        %v10177 = vpop.f32.mrf.mxu0
        %v10178 = vadd.f32 %v9732, %v10177
        %10179 = vmatprep.mubr.bf16.mxu0 0
        %10180 = vmatmul.mubr.bf16.gmra.mxu0 %v9700
        %v10181 = vpop.f32.mrf.mxu0
        %v10182 = vadd.f32 %v9728, %v10181
        %v10183 = vpop.f32.mrf.mxu0
        %v10184 = vadd.f32 %v9732, %v10183
        %v10185 = vpop.f32.mrf.mxu0
        %v10186 = vadd.f32 %v9728, %v10185
        %v10187 = vpop.f32.mrf.mxu0
        %v10188 = vadd.f32 %v9732, %v10187
        %10189 = vmatprep.mubr.bf16.mxu0 0
        %10190 = vmatmul.mubr.bf16.gmra.mxu0 %v9701
        %v10191 = vpop.f32.mrf.mxu0
        %v10192 = vadd.f32 %v9728, %v10191
        %v10193 = vpop.f32.mrf.mxu0
        %v10194 = vadd.f32 %v9732, %v10193
        %v10195 = vpop.f32.mrf.mxu0
        %v10196 = vadd.f32 %v9728, %v10195
        %v10197 = vpop.f32.mrf.mxu0
        %v10198 = vadd.f32 %v9732, %v10197
        %10199 = vmatprep.mubr.bf16.mxu0 0
        %10200 = vmatmul.mubr.bf16.gmra.mxu0 %v9702
        %v10201 = vpop.f32.mrf.mxu0
        %v10202 = vadd.f32 %v9728, %v10201
        %v10203 = vpop.f32.mrf.mxu0
        %v10204 = vadd.f32 %v9732, %v10203
        %v10205 = vpop.f32.mrf.mxu0
        %v10206 = vadd.f32 %v9728, %v10205
        %v10207 = vpop.f32.mrf.mxu0
        %v10208 = vadd.f32 %v9732, %v10207
        %10209 = vmatprep.mubr.bf16.mxu0 0
        %10210 = vmatmul.mubr.bf16.gmra.mxu0 %v9703
        %v10211 = vpop.f32.mrf.mxu0
        %v10212 = vadd.f32 %v9728, %v10211
        %v10213 = vpop.f32.mrf.mxu0
        %v10214 = vadd.f32 %v9732, %v10213
        %v10215 = vpop.f32.mrf.mxu0
        %v10216 = vadd.f32 %v9728, %v10215
        %v10217 = vpop.f32.mrf.mxu0
        %v10218 = vadd.f32 %v9732, %v10217
        %10219 = vmatprep.mubr.bf16.mxu0 0
        %10220 = vmatmul.mubr.bf16.gmra.mxu0 %v9704
        %v10221 = vpop.f32.mrf.mxu0
        %v10222 = vadd.f32 %v9728, %v10221
        %v10223 = vpop.f32.mrf.mxu0
        %v10224 = vadd.f32 %v9732, %v10223
        %v10225 = vpop.f32.mrf.mxu0
        %v10226 = vadd.f32 %v9728, %v10225
        %v10227 = vpop.f32.mrf.mxu0
        %v10228 = vadd.f32 %v9732, %v10227
        %10229 = vmatprep.mubr.bf16.mxu0 0
        %10230 = vmatmul.mubr.bf16.gmra.mxu0 %v9705
        %v10231 = vpop.f32.mrf.mxu0
        %v10232 = vadd.f32 %v9728, %v10231
        %v10233 = vpop.f32.mrf.mxu0
        %v10234 = vadd.f32 %v9732, %v10233
        %v10235 = vpop.f32.mrf.mxu0
        %v10236 = vadd.f32 %v9728, %v10235
        %v10237 = vpop.f32.mrf.mxu0
        %v10238 = vadd.f32 %v9732, %v10237
        %10239 = vmatprep.mubr.bf16.mxu0 0
        %10240 = vmatmul.mubr.bf16.gmra.mxu0 %v9706
        %v10241 = vpop.f32.mrf.mxu0
        %v10242 = vadd.f32 %v9728, %v10241
        %v10243 = vpop.f32.mrf.mxu0
        %v10244 = vadd.f32 %v9732, %v10243
        %v10245 = vpop.f32.mrf.mxu0
        %v10246 = vadd.f32 %v9728, %v10245
        %v10247 = vpop.f32.mrf.mxu0
        %v10248 = vadd.f32 %v9732, %v10247
        %10249 = vmatprep.mubr.bf16.mxu0 0
        %10250 = vmatmul.mubr.bf16.gmra.mxu0 %v9707
        %v10251 = vpop.f32.mrf.mxu0
        %v10252 = vadd.f32 %v9728, %v10251
        %v10253 = vpop.f32.mrf.mxu0
        %v10254 = vadd.f32 %v9732, %v10253
        %v10255 = vpop.f32.mrf.mxu0
        %v10256 = vadd.f32 %v9728, %v10255
        %v10257 = vpop.f32.mrf.mxu0
        %v10258 = vadd.f32 %v9732, %v10257
        %10259 = vmatprep.mubr.bf16.mxu0 0
        %10260 = vmatmul.mubr.bf16.gmra.mxu0 %v9708
        %v10261 = vpop.f32.mrf.mxu0
        %v10262 = vadd.f32 %v9728, %v10261
        %v10263 = vpop.f32.mrf.mxu0
        %v10264 = vadd.f32 %v9732, %v10263
        %v10265 = vpop.f32.mrf.mxu0
        %v10266 = vadd.f32 %v9728, %v10265
        %v10267 = vpop.f32.mrf.mxu0
        %v10268 = vadd.f32 %v9732, %v10267
        %10269 = vmatprep.mubr.bf16.mxu0 0
        %10270 = vmatmul.mubr.bf16.gmra.mxu0 %v9709
        %v10271 = vpop.f32.mrf.mxu0
        %v10272 = vadd.f32 %v9728, %v10271
        %v10273 = vpop.f32.mrf.mxu0
        %v10274 = vadd.f32 %v9732, %v10273
        %v10275 = vpop.f32.mrf.mxu0
        %v10276 = vadd.f32 %v9728, %v10275
        %v10277 = vpop.f32.mrf.mxu0
        %v10278 = vadd.f32 %v9732, %v10277
        %10279 = vmatprep.mubr.bf16.mxu0 0
        %10280 = vmatmul.mubr.bf16.gmra.mxu0 %v9710
        %v10281 = vpop.f32.mrf.mxu0
        %v10282 = vadd.f32 %v9728, %v10281
        %v10283 = vpop.f32.mrf.mxu0
        %v10284 = vadd.f32 %v9732, %v10283
        %v10285 = vpop.f32.mrf.mxu0
        %v10286 = vadd.f32 %v9728, %v10285
        %v10287 = vpop.f32.mrf.mxu0
        %v10288 = vadd.f32 %v9732, %v10287
        %10289 = vmatprep.mubr.bf16.mxu0 0
        %10290 = vmatmul.mubr.bf16.gmra.mxu0 %v9711
        %v10291 = vpop.f32.mrf.mxu0
        %v10292 = vadd.f32 %v9728, %v10291
        %v10293 = vpop.f32.mrf.mxu0
        %v10294 = vadd.f32 %v9732, %v10293
        %v10295 = vpop.f32.mrf.mxu0
        %v10296 = vadd.f32 %v9728, %v10295
        %v10297 = vpop.f32.mrf.mxu0
        %v10298 = vadd.f32 %v9732, %v10297
        %10299 = vmatprep.mubr.bf16.mxu0 0
        %10300 = vmatmul.mubr.bf16.gmra.mxu0 %v9712
        %v10301 = vpop.f32.mrf.mxu0
        %v10302 = vadd.f32 %v9728, %v10301
        %v10303 = vpop.f32.mrf.mxu0
        %v10304 = vadd.f32 %v9732, %v10303
        %v10305 = vpop.f32.mrf.mxu0
        %v10306 = vadd.f32 %v9728, %v10305
        %v10307 = vpop.f32.mrf.mxu0
        %v10308 = vadd.f32 %v9732, %v10307
        %10309 = vmatprep.mubr.bf16.mxu0 0
        %10310 = vmatmul.mubr.bf16.gmra.mxu0 %v9713
        %v10311 = vpop.f32.mrf.mxu0
        %v10312 = vadd.f32 %v9728, %v10311
        %v10313 = vpop.f32.mrf.mxu0
        %v10314 = vadd.f32 %v9732, %v10313
        %v10315 = vpop.f32.mrf.mxu0
        %v10316 = vadd.f32 %v9728, %v10315
        %v10317 = vpop.f32.mrf.mxu0
        %v10318 = vadd.f32 %v9732, %v10317
        %10319 = vmatprep.mubr.bf16.mxu0 0
        %10320 = vmatmul.mubr.bf16.gmra.mxu0 %v9714
        %v10321 = vpop.f32.mrf.mxu0
        %v10322 = vadd.f32 %v9728, %v10321
        %v10323 = vpop.f32.mrf.mxu0
        %v10324 = vadd.f32 %v9732, %v10323
        %v10325 = vpop.f32.mrf.mxu0
        %v10326 = vadd.f32 %v9728, %v10325
        %v10327 = vpop.f32.mrf.mxu0
        %v10328 = vadd.f32 %v9732, %v10327
        %10329 = vmatprep.mubr.bf16.mxu0 0
        %10330 = vmatmul.mubr.bf16.gmra.mxu0 %v9715
        %v10331 = vpop.f32.mrf.mxu0
        %v10332 = vadd.f32 %v9728, %v10331
        %v10333 = vpop.f32.mrf.mxu0
        %v10334 = vadd.f32 %v9732, %v10333
        %v10335 = vpop.f32.mrf.mxu0
        %v10336 = vadd.f32 %v9728, %v10335
        %v10337 = vpop.f32.mrf.mxu0
        %v10338 = vadd.f32 %v9732, %v10337
        %10339 = vmatprep.mubr.bf16.mxu0 0
        %10340 = vmatmul.mubr.bf16.gmra.mxu0 %v9716
        %v10341 = vpop.f32.mrf.mxu0
        %v10342 = vadd.f32 %v9728, %v10341
        %v10343 = vpop.f32.mrf.mxu0
        %v10344 = vadd.f32 %v9732, %v10343
        %v10345 = vpop.f32.mrf.mxu0
        %v10346 = vadd.f32 %v9728, %v10345
        %v10347 = vpop.f32.mrf.mxu0
        %v10348 = vadd.f32 %v9732, %v10347
        %10349 = vmatprep.mubr.bf16.mxu0 0
        %10350 = vmatmul.mubr.bf16.gmra.mxu0 %v9717
        %v10351 = vpop.f32.mrf.mxu0
        %v10352 = vadd.f32 %v9728, %v10351
        %v10353 = vpop.f32.mrf.mxu0
        %v10354 = vadd.f32 %v9732, %v10353
        %v10355 = vpop.f32.mrf.mxu0
        %v10356 = vadd.f32 %v9728, %v10355
        %v10357 = vpop.f32.mrf.mxu0
        %v10358 = vadd.f32 %v9732, %v10357
        %10359 = vmatprep.mubr.bf16.mxu0 0
        %10360 = vmatmul.mubr.bf16.gmra.mxu0 %v9718
        %v10361 = vpop.f32.mrf.mxu0
        %v10362 = vadd.f32 %v9728, %v10361
        %v10363 = vpop.f32.mrf.mxu0
        %v10364 = vadd.f32 %v9732, %v10363
        %v10365 = vpop.f32.mrf.mxu0
        %v10366 = vadd.f32 %v9728, %v10365
        %v10367 = vpop.f32.mrf.mxu0
        %v10368 = vadd.f32 %v9732, %v10367
        %10369 = vmatprep.mubr.bf16.mxu0 0
        %10370 = vmatmul.mubr.bf16.gmra.mxu0 %v9719
        %v10371 = vpop.f32.mrf.mxu0
        %v10372 = vadd.f32 %v9728, %v10371
        %v10373 = vpop.f32.mrf.mxu0
        %v10374 = vadd.f32 %v9732, %v10373
        %v10375 = vpop.f32.mrf.mxu0
        %v10376 = vadd.f32 %v9728, %v10375
        %v10377 = vpop.f32.mrf.mxu0
        %v10378 = vadd.f32 %v9732, %v10377
        %10379 = vmatprep.mubr.bf16.mxu0 0
        %10380 = vmatmul.mubr.bf16.gmra.mxu0 %v9720
        %v10381 = vpop.f32.mrf.mxu0
        %v10382 = vadd.f32 %v9728, %v10381
        %v10383 = vpop.f32.mrf.mxu0
        %v10384 = vadd.f32 %v9732, %v10383
        %v10385 = vpop.f32.mrf.mxu0
        %v10386 = vadd.f32 %v9728, %v10385
        %v10387 = vpop.f32.mrf.mxu0
        %v10388 = vadd.f32 %v9732, %v10387
        %10389 = vmatprep.mubr.bf16.mxu0 0
        %10390 = vmatmul.mubr.bf16.gmra.mxu0 %v9721
        %v10391 = vpop.f32.mrf.mxu0
        %v10392 = vadd.f32 %v9728, %v10391
        %v10393 = vpop.f32.mrf.mxu0
        %v10394 = vadd.f32 %v9732, %v10393
        %v10395 = vpop.f32.mrf.mxu0
        %v10396 = vadd.f32 %v9728, %v10395
        %v10397 = vpop.f32.mrf.mxu0
        %v10398 = vadd.f32 %v9732, %v10397
        %10399 = vmatprep.mubr.bf16.mxu0 0
        %10400 = vmatmul.mubr.bf16.gmra.mxu0 %v9722
        %v10401 = vpop.f32.mrf.mxu0
        %v10402 = vadd.f32 %v9728, %v10401
        %v10403 = vpop.f32.mrf.mxu0
        %v10404 = vadd.f32 %v9732, %v10403
        %v10405 = vpop.f32.mrf.mxu0
        %v10406 = vadd.f32 %v9728, %v10405
        %v10407 = vpop.f32.mrf.mxu0
        %v10408 = vadd.f32 %v9732, %v10407
        %10409 = vmatprep.mubr.bf16.mxu0 0
        %10410 = vmatmul.mubr.bf16.gmra.mxu0 %v9723
        %v10411 = vpop.f32.mrf.mxu0
        %v10412 = vadd.f32 %v9728, %v10411
        %v10413 = vpop.f32.mrf.mxu0
        %v10414 = vadd.f32 %v9732, %v10413
        %v10415 = vpop.f32.mrf.mxu0
        %v10416 = vadd.f32 %v9728, %v10415
        %v10417 = vpop.f32.mrf.mxu0
        %v10418 = vadd.f32 %v9732, %v10417
        %10419 = vmatprep.mubr.bf16.mxu0 0
        %10420 = vmatmul.mubr.bf16.gmra.mxu0 %v9724
        %v10421 = vpop.f32.mrf.mxu0
        %v10422 = vadd.f32 %v9728, %v10421
        %v10423 = vpop.f32.mrf.mxu0
        %v10424 = vadd.f32 %v9732, %v10423
        %v10425 = vpop.f32.mrf.mxu0
        %v10426 = vadd.f32 %v9728, %v10425
        %v10427 = vpop.f32.mrf.mxu0
        %v10428 = vadd.f32 %v9732, %v10427
        %10429 = vdwg.mxu0
        %10430 = vmatprep.subr.bf16.mxu0 %v10008
        %10431 = vmatpush1.bf16.msra.mxu0 %v10007
        %10432 = vmatprep.subr.bf16.mxu0 %v10000
        %10433 = vmatpush1.bf16.msra.mxu0 %v9999
        %10434 = vmatprep.subr.bf16.mxu0 %v9992
        %10435 = vmatpush1.bf16.msra.mxu0 %v9991
        %10436 = vmatprep.subr.bf16.mxu0 %v9984
        %10437 = vmatpush1.bf16.msra.mxu0 %v9983
        %10438 = vmatprep.subr.bf16.mxu0 %v9976
        %10439 = vmatpush1.bf16.msra.mxu0 %v9975
        %10440 = vmatprep.subr.bf16.mxu0 %v9968
        %10441 = vmatpush1.bf16.msra.mxu0 %v9967
        %10442 = vmatprep.subr.bf16.mxu0 %v9960
        %10443 = vmatpush1.bf16.msra.mxu0 %v9959
        %10444 = vmatprep.subr.bf16.mxu0 %v9952
        %10445 = vmatpush1.bf16.msra.mxu0 %v9951
        %10446 = vmatprep.subr.bf16.mxu0 0
        %10447 = vmatpush2.bf16.msra.mxu0 0
        %10448 = vmatprep.subr.bf16.mxu0 0
        %10449 = vmatpush2.bf16.msra.mxu0 0
        %10450 = vmatprep.subr.bf16.mxu0 0
        %10451 = vmatpush2.bf16.msra.mxu0 0
        %10452 = vmatprep.subr.bf16.mxu0 0
        %10453 = vmatpush2.bf16.msra.mxu0 0
        %10454 = vmatprep.subr.bf16.mxu0 0
        %10455 = vmatpush2.bf16.msra.mxu0 0
        %10456 = vmatprep.subr.bf16.mxu0 0
        %10457 = vmatpush2.bf16.msra.mxu0 0
        %10458 = vmatprep.subr.bf16.mxu0 0
        %10459 = vmatpush2.bf16.msra.mxu0 0
        %10460 = vmatprep.subr.bf16.mxu0 0
        %10461 = vmatpush2.bf16.msra.mxu0 0
        %10462 = vmatprep.mubr.bf16.mxu0 0
        %10463 = vmatmul.mubr.bf16.gmra.mxu0 %v9693
        %v10464 = vpop.f32.mrf.mxu0
        %v10465 = vadd.f32 %v9736, %v10464
        %v10466 = vpop.f32.mrf.mxu0
        %v10467 = vadd.f32 %v9740, %v10466
        %v10468 = vpop.f32.mrf.mxu0
        %v10469 = vadd.f32 %v9736, %v10468
        %v10470 = vpop.f32.mrf.mxu0
        %v10471 = vadd.f32 %v9740, %v10470
        %10472 = vmatprep.mubr.bf16.mxu0 0
        %10473 = vmatmul.mubr.bf16.gmra.mxu0 %v9694
        %v10474 = vpop.f32.mrf.mxu0
        %v10475 = vadd.f32 %v9736, %v10474
        %v10476 = vpop.f32.mrf.mxu0
        %v10477 = vadd.f32 %v9740, %v10476
        %v10478 = vpop.f32.mrf.mxu0
        %v10479 = vadd.f32 %v9736, %v10478
        %v10480 = vpop.f32.mrf.mxu0
        %v10481 = vadd.f32 %v9740, %v10480
        %10482 = vmatprep.mubr.bf16.mxu0 0
        %10483 = vmatmul.mubr.bf16.gmra.mxu0 %v9695
        %v10484 = vpop.f32.mrf.mxu0
        %v10485 = vadd.f32 %v9736, %v10484
        %v10486 = vpop.f32.mrf.mxu0
        %v10487 = vadd.f32 %v9740, %v10486
        %v10488 = vpop.f32.mrf.mxu0
        %v10489 = vadd.f32 %v9736, %v10488
        %v10490 = vpop.f32.mrf.mxu0
        %v10491 = vadd.f32 %v9740, %v10490
        %10492 = vmatprep.mubr.bf16.mxu0 0
        %10493 = vmatmul.mubr.bf16.gmra.mxu0 %v9696
        %v10494 = vpop.f32.mrf.mxu0
        %v10495 = vadd.f32 %v9736, %v10494
        %v10496 = vpop.f32.mrf.mxu0
        %v10497 = vadd.f32 %v9740, %v10496
        %v10498 = vpop.f32.mrf.mxu0
        %v10499 = vadd.f32 %v9736, %v10498
        %v10500 = vpop.f32.mrf.mxu0
        %v10501 = vadd.f32 %v9740, %v10500
        %10502 = vmatprep.mubr.bf16.mxu0 0
        %10503 = vmatmul.mubr.bf16.gmra.mxu0 %v9697
        %v10504 = vpop.f32.mrf.mxu0
        %v10505 = vadd.f32 %v9736, %v10504
        %v10506 = vpop.f32.mrf.mxu0
        %v10507 = vadd.f32 %v9740, %v10506
        %v10508 = vpop.f32.mrf.mxu0
        %v10509 = vadd.f32 %v9736, %v10508
        %v10510 = vpop.f32.mrf.mxu0
        %v10511 = vadd.f32 %v9740, %v10510
        %10512 = vmatprep.mubr.bf16.mxu0 0
        %10513 = vmatmul.mubr.bf16.gmra.mxu0 %v9698
        %v10514 = vpop.f32.mrf.mxu0
        %v10515 = vadd.f32 %v9736, %v10514
        %v10516 = vpop.f32.mrf.mxu0
        %v10517 = vadd.f32 %v9740, %v10516
        %v10518 = vpop.f32.mrf.mxu0
        %v10519 = vadd.f32 %v9736, %v10518
        %v10520 = vpop.f32.mrf.mxu0
        %v10521 = vadd.f32 %v9740, %v10520
        %10522 = vmatprep.mubr.bf16.mxu0 0
        %10523 = vmatmul.mubr.bf16.gmra.mxu0 %v9699
        %v10524 = vpop.f32.mrf.mxu0
        %v10525 = vadd.f32 %v9736, %v10524
        %v10526 = vpop.f32.mrf.mxu0
        %v10527 = vadd.f32 %v9740, %v10526
        %v10528 = vpop.f32.mrf.mxu0
        %v10529 = vadd.f32 %v9736, %v10528
        %v10530 = vpop.f32.mrf.mxu0
        %v10531 = vadd.f32 %v9740, %v10530
        %10532 = vmatprep.mubr.bf16.mxu0 0
        %10533 = vmatmul.mubr.bf16.gmra.mxu0 %v9700
        %v10534 = vpop.f32.mrf.mxu0
        %v10535 = vadd.f32 %v9736, %v10534
        %v10536 = vpop.f32.mrf.mxu0
        %v10537 = vadd.f32 %v9740, %v10536
        %v10538 = vpop.f32.mrf.mxu0
        %v10539 = vadd.f32 %v9736, %v10538
        %v10540 = vpop.f32.mrf.mxu0
        %v10541 = vadd.f32 %v9740, %v10540
        %10542 = vmatprep.mubr.bf16.mxu0 0
        %10543 = vmatmul.mubr.bf16.gmra.mxu0 %v9701
        %v10544 = vpop.f32.mrf.mxu0
        %v10545 = vadd.f32 %v9736, %v10544
        %v10546 = vpop.f32.mrf.mxu0
        %v10547 = vadd.f32 %v9740, %v10546
        %v10548 = vpop.f32.mrf.mxu0
        %v10549 = vadd.f32 %v9736, %v10548
        %v10550 = vpop.f32.mrf.mxu0
        %v10551 = vadd.f32 %v9740, %v10550
        %10552 = vmatprep.mubr.bf16.mxu0 0
        %10553 = vmatmul.mubr.bf16.gmra.mxu0 %v9702
        %v10554 = vpop.f32.mrf.mxu0
        %v10555 = vadd.f32 %v9736, %v10554
        %v10556 = vpop.f32.mrf.mxu0
        %v10557 = vadd.f32 %v9740, %v10556
        %v10558 = vpop.f32.mrf.mxu0
        %v10559 = vadd.f32 %v9736, %v10558
        %v10560 = vpop.f32.mrf.mxu0
        %v10561 = vadd.f32 %v9740, %v10560
        %10562 = vmatprep.mubr.bf16.mxu0 0
        %10563 = vmatmul.mubr.bf16.gmra.mxu0 %v9703
        %v10564 = vpop.f32.mrf.mxu0
        %v10565 = vadd.f32 %v9736, %v10564
        %v10566 = vpop.f32.mrf.mxu0
        %v10567 = vadd.f32 %v9740, %v10566
        %v10568 = vpop.f32.mrf.mxu0
        %v10569 = vadd.f32 %v9736, %v10568
        %v10570 = vpop.f32.mrf.mxu0
        %v10571 = vadd.f32 %v9740, %v10570
        %10572 = vmatprep.mubr.bf16.mxu0 0
        %10573 = vmatmul.mubr.bf16.gmra.mxu0 %v9704
        %v10574 = vpop.f32.mrf.mxu0
        %v10575 = vadd.f32 %v9736, %v10574
        %v10576 = vpop.f32.mrf.mxu0
        %v10577 = vadd.f32 %v9740, %v10576
        %v10578 = vpop.f32.mrf.mxu0
        %v10579 = vadd.f32 %v9736, %v10578
        %v10580 = vpop.f32.mrf.mxu0
        %v10581 = vadd.f32 %v9740, %v10580
        %10582 = vmatprep.mubr.bf16.mxu0 0
        %10583 = vmatmul.mubr.bf16.gmra.mxu0 %v9705
        %v10584 = vpop.f32.mrf.mxu0
        %v10585 = vadd.f32 %v9736, %v10584
        %v10586 = vpop.f32.mrf.mxu0
        %v10587 = vadd.f32 %v9740, %v10586
        %v10588 = vpop.f32.mrf.mxu0
        %v10589 = vadd.f32 %v9736, %v10588
        %v10590 = vpop.f32.mrf.mxu0
        %v10591 = vadd.f32 %v9740, %v10590
        %10592 = vmatprep.mubr.bf16.mxu0 0
        %10593 = vmatmul.mubr.bf16.gmra.mxu0 %v9706
        %v10594 = vpop.f32.mrf.mxu0
        %v10595 = vadd.f32 %v9736, %v10594
        %v10596 = vpop.f32.mrf.mxu0
        %v10597 = vadd.f32 %v9740, %v10596
        %v10598 = vpop.f32.mrf.mxu0
        %v10599 = vadd.f32 %v9736, %v10598
        %v10600 = vpop.f32.mrf.mxu0
        %v10601 = vadd.f32 %v9740, %v10600
        %10602 = vmatprep.mubr.bf16.mxu0 0
        %10603 = vmatmul.mubr.bf16.gmra.mxu0 %v9707
        %v10604 = vpop.f32.mrf.mxu0
        %v10605 = vadd.f32 %v9736, %v10604
        %v10606 = vpop.f32.mrf.mxu0
        %v10607 = vadd.f32 %v9740, %v10606
        %v10608 = vpop.f32.mrf.mxu0
        %v10609 = vadd.f32 %v9736, %v10608
        %v10610 = vpop.f32.mrf.mxu0
        %v10611 = vadd.f32 %v9740, %v10610
        %10612 = vmatprep.mubr.bf16.mxu0 0
        %10613 = vmatmul.mubr.bf16.gmra.mxu0 %v9708
        %v10614 = vpop.f32.mrf.mxu0
        %v10615 = vadd.f32 %v9736, %v10614
        %v10616 = vpop.f32.mrf.mxu0
        %v10617 = vadd.f32 %v9740, %v10616
        %v10618 = vpop.f32.mrf.mxu0
        %v10619 = vadd.f32 %v9736, %v10618
        %v10620 = vpop.f32.mrf.mxu0
        %v10621 = vadd.f32 %v9740, %v10620
        %10622 = vmatprep.mubr.bf16.mxu0 0
        %10623 = vmatmul.mubr.bf16.gmra.mxu0 %v9709
        %v10624 = vpop.f32.mrf.mxu0
        %v10625 = vadd.f32 %v9736, %v10624
        %v10626 = vpop.f32.mrf.mxu0
        %v10627 = vadd.f32 %v9740, %v10626
        %v10628 = vpop.f32.mrf.mxu0
        %v10629 = vadd.f32 %v9736, %v10628
        %v10630 = vpop.f32.mrf.mxu0
        %v10631 = vadd.f32 %v9740, %v10630
        %10632 = vmatprep.mubr.bf16.mxu0 0
        %10633 = vmatmul.mubr.bf16.gmra.mxu0 %v9710
        %v10634 = vpop.f32.mrf.mxu0
        %v10635 = vadd.f32 %v9736, %v10634
        %v10636 = vpop.f32.mrf.mxu0
        %v10637 = vadd.f32 %v9740, %v10636
        %v10638 = vpop.f32.mrf.mxu0
        %v10639 = vadd.f32 %v9736, %v10638
        %v10640 = vpop.f32.mrf.mxu0
        %v10641 = vadd.f32 %v9740, %v10640
        %10642 = vmatprep.mubr.bf16.mxu0 0
        %10643 = vmatmul.mubr.bf16.gmra.mxu0 %v9711
        %v10644 = vpop.f32.mrf.mxu0
        %v10645 = vadd.f32 %v9736, %v10644
        %v10646 = vpop.f32.mrf.mxu0
        %v10647 = vadd.f32 %v9740, %v10646
        %v10648 = vpop.f32.mrf.mxu0
        %v10649 = vadd.f32 %v9736, %v10648
        %v10650 = vpop.f32.mrf.mxu0
        %v10651 = vadd.f32 %v9740, %v10650
        %10652 = vmatprep.mubr.bf16.mxu0 0
        %10653 = vmatmul.mubr.bf16.gmra.mxu0 %v9712
        %v10654 = vpop.f32.mrf.mxu0
        %v10655 = vadd.f32 %v9736, %v10654
        %v10656 = vpop.f32.mrf.mxu0
        %v10657 = vadd.f32 %v9740, %v10656
        %v10658 = vpop.f32.mrf.mxu0
        %v10659 = vadd.f32 %v9736, %v10658
        %v10660 = vpop.f32.mrf.mxu0
        %v10661 = vadd.f32 %v9740, %v10660
        %10662 = vmatprep.mubr.bf16.mxu0 0
        %10663 = vmatmul.mubr.bf16.gmra.mxu0 %v9713
        %v10664 = vpop.f32.mrf.mxu0
        %v10665 = vadd.f32 %v9736, %v10664
        %v10666 = vpop.f32.mrf.mxu0
        %v10667 = vadd.f32 %v9740, %v10666
        %v10668 = vpop.f32.mrf.mxu0
        %v10669 = vadd.f32 %v9736, %v10668
        %v10670 = vpop.f32.mrf.mxu0
        %v10671 = vadd.f32 %v9740, %v10670
        %10672 = vmatprep.mubr.bf16.mxu0 0
        %10673 = vmatmul.mubr.bf16.gmra.mxu0 %v9714
        %v10674 = vpop.f32.mrf.mxu0
        %v10675 = vadd.f32 %v9736, %v10674
        %v10676 = vpop.f32.mrf.mxu0
        %v10677 = vadd.f32 %v9740, %v10676
        %v10678 = vpop.f32.mrf.mxu0
        %v10679 = vadd.f32 %v9736, %v10678
        %v10680 = vpop.f32.mrf.mxu0
        %v10681 = vadd.f32 %v9740, %v10680
        %10682 = vmatprep.mubr.bf16.mxu0 0
        %10683 = vmatmul.mubr.bf16.gmra.mxu0 %v9715
        %v10684 = vpop.f32.mrf.mxu0
        %v10685 = vadd.f32 %v9736, %v10684
        %v10686 = vpop.f32.mrf.mxu0
        %v10687 = vadd.f32 %v9740, %v10686
        %v10688 = vpop.f32.mrf.mxu0
        %v10689 = vadd.f32 %v9736, %v10688
        %v10690 = vpop.f32.mrf.mxu0
        %v10691 = vadd.f32 %v9740, %v10690
        %10692 = vmatprep.mubr.bf16.mxu0 0
        %10693 = vmatmul.mubr.bf16.gmra.mxu0 %v9716
        %v10694 = vpop.f32.mrf.mxu0
        %v10695 = vadd.f32 %v9736, %v10694
        %v10696 = vpop.f32.mrf.mxu0
        %v10697 = vadd.f32 %v9740, %v10696
        %v10698 = vpop.f32.mrf.mxu0
        %v10699 = vadd.f32 %v9736, %v10698
        %v10700 = vpop.f32.mrf.mxu0
        %v10701 = vadd.f32 %v9740, %v10700
        %10702 = vmatprep.mubr.bf16.mxu0 0
        %10703 = vmatmul.mubr.bf16.gmra.mxu0 %v9717
        %v10704 = vpop.f32.mrf.mxu0
        %v10705 = vadd.f32 %v9736, %v10704
        %v10706 = vpop.f32.mrf.mxu0
        %v10707 = vadd.f32 %v9740, %v10706
        %v10708 = vpop.f32.mrf.mxu0
        %v10709 = vadd.f32 %v9736, %v10708
        %v10710 = vpop.f32.mrf.mxu0
        %v10711 = vadd.f32 %v9740, %v10710
        %10712 = vmatprep.mubr.bf16.mxu0 0
        %10713 = vmatmul.mubr.bf16.gmra.mxu0 %v9718
        %v10714 = vpop.f32.mrf.mxu0
        %v10715 = vadd.f32 %v9736, %v10714
        %v10716 = vpop.f32.mrf.mxu0
        %v10717 = vadd.f32 %v9740, %v10716
        %v10718 = vpop.f32.mrf.mxu0
        %v10719 = vadd.f32 %v9736, %v10718
        %v10720 = vpop.f32.mrf.mxu0
        %v10721 = vadd.f32 %v9740, %v10720
        %10722 = vmatprep.mubr.bf16.mxu0 0
        %10723 = vmatmul.mubr.bf16.gmra.mxu0 %v9719
        %v10724 = vpop.f32.mrf.mxu0
        %v10725 = vadd.f32 %v9736, %v10724
        %v10726 = vpop.f32.mrf.mxu0
        %v10727 = vadd.f32 %v9740, %v10726
        %v10728 = vpop.f32.mrf.mxu0
        %v10729 = vadd.f32 %v9736, %v10728
        %v10730 = vpop.f32.mrf.mxu0
        %v10731 = vadd.f32 %v9740, %v10730
        %10732 = vmatprep.mubr.bf16.mxu0 0
        %10733 = vmatmul.mubr.bf16.gmra.mxu0 %v9720
        %v10734 = vpop.f32.mrf.mxu0
        %v10735 = vadd.f32 %v9736, %v10734
        %v10736 = vpop.f32.mrf.mxu0
        %v10737 = vadd.f32 %v9740, %v10736
        %v10738 = vpop.f32.mrf.mxu0
        %v10739 = vadd.f32 %v9736, %v10738
        %v10740 = vpop.f32.mrf.mxu0
        %v10741 = vadd.f32 %v9740, %v10740
        %10742 = vmatprep.mubr.bf16.mxu0 0
        %10743 = vmatmul.mubr.bf16.gmra.mxu0 %v9721
        %v10744 = vpop.f32.mrf.mxu0
        %v10745 = vadd.f32 %v9736, %v10744
        %v10746 = vpop.f32.mrf.mxu0
        %v10747 = vadd.f32 %v9740, %v10746
        %v10748 = vpop.f32.mrf.mxu0
        %v10749 = vadd.f32 %v9736, %v10748
        %v10750 = vpop.f32.mrf.mxu0
        %v10751 = vadd.f32 %v9740, %v10750
        %10752 = vmatprep.mubr.bf16.mxu0 0
        %10753 = vmatmul.mubr.bf16.gmra.mxu0 %v9722
        %v10754 = vpop.f32.mrf.mxu0
        %v10755 = vadd.f32 %v9736, %v10754
        %v10756 = vpop.f32.mrf.mxu0
        %v10757 = vadd.f32 %v9740, %v10756
        %v10758 = vpop.f32.mrf.mxu0
        %v10759 = vadd.f32 %v9736, %v10758
        %v10760 = vpop.f32.mrf.mxu0
        %v10761 = vadd.f32 %v9740, %v10760
        %10762 = vmatprep.mubr.bf16.mxu0 0
        %10763 = vmatmul.mubr.bf16.gmra.mxu0 %v9723
        %v10764 = vpop.f32.mrf.mxu0
        %v10765 = vadd.f32 %v9736, %v10764
        %v10766 = vpop.f32.mrf.mxu0
        %v10767 = vadd.f32 %v9740, %v10766
        %v10768 = vpop.f32.mrf.mxu0
        %v10769 = vadd.f32 %v9736, %v10768
        %v10770 = vpop.f32.mrf.mxu0
        %v10771 = vadd.f32 %v9740, %v10770
        %10772 = vmatprep.mubr.bf16.mxu0 0
        %10773 = vmatmul.mubr.bf16.gmra.mxu0 %v9724
        %v10774 = vpop.f32.mrf.mxu0
        %v10775 = vadd.f32 %v9736, %v10774
        %v10776 = vpop.f32.mrf.mxu0
        %v10777 = vadd.f32 %v9740, %v10776
        %v10778 = vpop.f32.mrf.mxu0
        %v10779 = vadd.f32 %v9736, %v10778
        %v10780 = vpop.f32.mrf.mxu0
        %v10781 = vadd.f32 %v9740, %v10780
        %10782 = vdwg.mxu0
        %10783 = vmatprep.subr.bf16.mxu0 %v10010
        %10784 = vmatpush1.bf16.msra.mxu0 %v10009
        %10785 = vmatprep.subr.bf16.mxu0 %v10002
        %10786 = vmatpush1.bf16.msra.mxu0 %v10001
        %10787 = vmatprep.subr.bf16.mxu0 %v9994
        %10788 = vmatpush1.bf16.msra.mxu0 %v9993
        %10789 = vmatprep.subr.bf16.mxu0 %v9986
        %10790 = vmatpush1.bf16.msra.mxu0 %v9985
        %10791 = vmatprep.subr.bf16.mxu0 %v9978
        %10792 = vmatpush1.bf16.msra.mxu0 %v9977
        %10793 = vmatprep.subr.bf16.mxu0 %v9970
        %10794 = vmatpush1.bf16.msra.mxu0 %v9969
        %10795 = vmatprep.subr.bf16.mxu0 %v9962
        %10796 = vmatpush1.bf16.msra.mxu0 %v9961
        %10797 = vmatprep.subr.bf16.mxu0 %v9954
        %10798 = vmatpush1.bf16.msra.mxu0 %v9953
        %10799 = vmatprep.subr.bf16.mxu0 0
        %10800 = vmatpush2.bf16.msra.mxu0 0
        %10801 = vmatprep.subr.bf16.mxu0 0
        %10802 = vmatpush2.bf16.msra.mxu0 0
        %10803 = vmatprep.subr.bf16.mxu0 0
        %10804 = vmatpush2.bf16.msra.mxu0 0
        %10805 = vmatprep.subr.bf16.mxu0 0
        %10806 = vmatpush2.bf16.msra.mxu0 0
        %10807 = vmatprep.subr.bf16.mxu0 0
        %10808 = vmatpush2.bf16.msra.mxu0 0
        %10809 = vmatprep.subr.bf16.mxu0 0
        %10810 = vmatpush2.bf16.msra.mxu0 0
        %10811 = vmatprep.subr.bf16.mxu0 0
        %10812 = vmatpush2.bf16.msra.mxu0 0
        %10813 = vmatprep.subr.bf16.mxu0 0
        %10814 = vmatpush2.bf16.msra.mxu0 0
        %10815 = vmatprep.mubr.bf16.mxu0 0
        %10816 = vmatmul.mubr.bf16.gmra.mxu0 %v9693
        %v10817 = vpop.f32.mrf.mxu0
        %v10818 = vadd.f32 %v9744, %v10817
        %v10819 = vpop.f32.mrf.mxu0
        %v10820 = vadd.f32 %v9748, %v10819
        %v10821 = vpop.f32.mrf.mxu0
        %v10822 = vadd.f32 %v9744, %v10821
        %v10823 = vpop.f32.mrf.mxu0
        %v10824 = vadd.f32 %v9748, %v10823
        %10825 = vmatprep.mubr.bf16.mxu0 0
        %10826 = vmatmul.mubr.bf16.gmra.mxu0 %v9694
        %v10827 = vpop.f32.mrf.mxu0
        %v10828 = vadd.f32 %v9744, %v10827
        %v10829 = vpop.f32.mrf.mxu0
        %v10830 = vadd.f32 %v9748, %v10829
        %v10831 = vpop.f32.mrf.mxu0
        %v10832 = vadd.f32 %v9744, %v10831
        %v10833 = vpop.f32.mrf.mxu0
        %v10834 = vadd.f32 %v9748, %v10833
        %10835 = vmatprep.mubr.bf16.mxu0 0
        %10836 = vmatmul.mubr.bf16.gmra.mxu0 %v9695
        %v10837 = vpop.f32.mrf.mxu0
        %v10838 = vadd.f32 %v9744, %v10837
        %v10839 = vpop.f32.mrf.mxu0
        %v10840 = vadd.f32 %v9748, %v10839
        %v10841 = vpop.f32.mrf.mxu0
        %v10842 = vadd.f32 %v9744, %v10841
        %v10843 = vpop.f32.mrf.mxu0
        %v10844 = vadd.f32 %v9748, %v10843
        %10845 = vmatprep.mubr.bf16.mxu0 0
        %10846 = vmatmul.mubr.bf16.gmra.mxu0 %v9696
        %v10847 = vpop.f32.mrf.mxu0
        %v10848 = vadd.f32 %v9744, %v10847
        %v10849 = vpop.f32.mrf.mxu0
        %v10850 = vadd.f32 %v9748, %v10849
        %v10851 = vpop.f32.mrf.mxu0
        %v10852 = vadd.f32 %v9744, %v10851
        %v10853 = vpop.f32.mrf.mxu0
        %v10854 = vadd.f32 %v9748, %v10853
        %10855 = vmatprep.mubr.bf16.mxu0 0
        %10856 = vmatmul.mubr.bf16.gmra.mxu0 %v9697
        %v10857 = vpop.f32.mrf.mxu0
        %v10858 = vadd.f32 %v9744, %v10857
        %v10859 = vpop.f32.mrf.mxu0
        %v10860 = vadd.f32 %v9748, %v10859
        %v10861 = vpop.f32.mrf.mxu0
        %v10862 = vadd.f32 %v9744, %v10861
        %v10863 = vpop.f32.mrf.mxu0
        %v10864 = vadd.f32 %v9748, %v10863
        %10865 = vmatprep.mubr.bf16.mxu0 0
        %10866 = vmatmul.mubr.bf16.gmra.mxu0 %v9698
        %v10867 = vpop.f32.mrf.mxu0
        %v10868 = vadd.f32 %v9744, %v10867
        %v10869 = vpop.f32.mrf.mxu0
        %v10870 = vadd.f32 %v9748, %v10869
        %v10871 = vpop.f32.mrf.mxu0
        %v10872 = vadd.f32 %v9744, %v10871
        %v10873 = vpop.f32.mrf.mxu0
        %v10874 = vadd.f32 %v9748, %v10873
        %10875 = vmatprep.mubr.bf16.mxu0 0
        %10876 = vmatmul.mubr.bf16.gmra.mxu0 %v9699
        %v10877 = vpop.f32.mrf.mxu0
        %v10878 = vadd.f32 %v9744, %v10877
        %v10879 = vpop.f32.mrf.mxu0
        %v10880 = vadd.f32 %v9748, %v10879
        %v10881 = vpop.f32.mrf.mxu0
        %v10882 = vadd.f32 %v9744, %v10881
        %v10883 = vpop.f32.mrf.mxu0
        %v10884 = vadd.f32 %v9748, %v10883
        %10885 = vmatprep.mubr.bf16.mxu0 0
        %10886 = vmatmul.mubr.bf16.gmra.mxu0 %v9700
        %v10887 = vpop.f32.mrf.mxu0
        %v10888 = vadd.f32 %v9744, %v10887
        %v10889 = vpop.f32.mrf.mxu0
        %v10890 = vadd.f32 %v9748, %v10889
        %v10891 = vpop.f32.mrf.mxu0
        %v10892 = vadd.f32 %v9744, %v10891
        %v10893 = vpop.f32.mrf.mxu0
        %v10894 = vadd.f32 %v9748, %v10893
        %10895 = vmatprep.mubr.bf16.mxu0 0
        %10896 = vmatmul.mubr.bf16.gmra.mxu0 %v9701
        %v10897 = vpop.f32.mrf.mxu0
        %v10898 = vadd.f32 %v9744, %v10897
        %v10899 = vpop.f32.mrf.mxu0
        %v10900 = vadd.f32 %v9748, %v10899
        %v10901 = vpop.f32.mrf.mxu0
        %v10902 = vadd.f32 %v9744, %v10901
        %v10903 = vpop.f32.mrf.mxu0
        %v10904 = vadd.f32 %v9748, %v10903
        %10905 = vmatprep.mubr.bf16.mxu0 0
        %10906 = vmatmul.mubr.bf16.gmra.mxu0 %v9702
        %v10907 = vpop.f32.mrf.mxu0
        %v10908 = vadd.f32 %v9744, %v10907
        %v10909 = vpop.f32.mrf.mxu0
        %v10910 = vadd.f32 %v9748, %v10909
        %v10911 = vpop.f32.mrf.mxu0
        %v10912 = vadd.f32 %v9744, %v10911
        %v10913 = vpop.f32.mrf.mxu0
        %v10914 = vadd.f32 %v9748, %v10913
        %10915 = vmatprep.mubr.bf16.mxu0 0
        %10916 = vmatmul.mubr.bf16.gmra.mxu0 %v9703
        %v10917 = vpop.f32.mrf.mxu0
        %v10918 = vadd.f32 %v9744, %v10917
        %v10919 = vpop.f32.mrf.mxu0
        %v10920 = vadd.f32 %v9748, %v10919
        %v10921 = vpop.f32.mrf.mxu0
        %v10922 = vadd.f32 %v9744, %v10921
        %v10923 = vpop.f32.mrf.mxu0
        %v10924 = vadd.f32 %v9748, %v10923
        %10925 = vmatprep.mubr.bf16.mxu0 0
        %10926 = vmatmul.mubr.bf16.gmra.mxu0 %v9704
        %v10927 = vpop.f32.mrf.mxu0
        %v10928 = vadd.f32 %v9744, %v10927
        %v10929 = vpop.f32.mrf.mxu0
        %v10930 = vadd.f32 %v9748, %v10929
        %v10931 = vpop.f32.mrf.mxu0
        %v10932 = vadd.f32 %v9744, %v10931
        %v10933 = vpop.f32.mrf.mxu0
        %v10934 = vadd.f32 %v9748, %v10933
        %10935 = vmatprep.mubr.bf16.mxu0 0
        %10936 = vmatmul.mubr.bf16.gmra.mxu0 %v9705
        %v10937 = vpop.f32.mrf.mxu0
        %v10938 = vadd.f32 %v9744, %v10937
        %v10939 = vpop.f32.mrf.mxu0
        %v10940 = vadd.f32 %v9748, %v10939
        %v10941 = vpop.f32.mrf.mxu0
        %v10942 = vadd.f32 %v9744, %v10941
        %v10943 = vpop.f32.mrf.mxu0
        %v10944 = vadd.f32 %v9748, %v10943
        %10945 = vmatprep.mubr.bf16.mxu0 0
        %10946 = vmatmul.mubr.bf16.gmra.mxu0 %v9706
        %v10947 = vpop.f32.mrf.mxu0
        %v10948 = vadd.f32 %v9744, %v10947
        %v10949 = vpop.f32.mrf.mxu0
        %v10950 = vadd.f32 %v9748, %v10949
        %v10951 = vpop.f32.mrf.mxu0
        %v10952 = vadd.f32 %v9744, %v10951
        %v10953 = vpop.f32.mrf.mxu0
        %v10954 = vadd.f32 %v9748, %v10953
        %10955 = vmatprep.mubr.bf16.mxu0 0
        %10956 = vmatmul.mubr.bf16.gmra.mxu0 %v9707
        %v10957 = vpop.f32.mrf.mxu0
        %v10958 = vadd.f32 %v9744, %v10957
        %v10959 = vpop.f32.mrf.mxu0
        %v10960 = vadd.f32 %v9748, %v10959
        %v10961 = vpop.f32.mrf.mxu0
        %v10962 = vadd.f32 %v9744, %v10961
        %v10963 = vpop.f32.mrf.mxu0
        %v10964 = vadd.f32 %v9748, %v10963
        %10965 = vmatprep.mubr.bf16.mxu0 0
        %10966 = vmatmul.mubr.bf16.gmra.mxu0 %v9708
        %v10967 = vpop.f32.mrf.mxu0
        %v10968 = vadd.f32 %v9744, %v10967
        %v10969 = vpop.f32.mrf.mxu0
        %v10970 = vadd.f32 %v9748, %v10969
        %v10971 = vpop.f32.mrf.mxu0
        %v10972 = vadd.f32 %v9744, %v10971
        %v10973 = vpop.f32.mrf.mxu0
        %v10974 = vadd.f32 %v9748, %v10973
        %10975 = vmatprep.mubr.bf16.mxu0 0
        %10976 = vmatmul.mubr.bf16.gmra.mxu0 %v9709
        %v10977 = vpop.f32.mrf.mxu0
        %v10978 = vadd.f32 %v9744, %v10977
        %v10979 = vpop.f32.mrf.mxu0
        %v10980 = vadd.f32 %v9748, %v10979
        %v10981 = vpop.f32.mrf.mxu0
        %v10982 = vadd.f32 %v9744, %v10981
        %v10983 = vpop.f32.mrf.mxu0
        %v10984 = vadd.f32 %v9748, %v10983
        %10985 = vmatprep.mubr.bf16.mxu0 0
        %10986 = vmatmul.mubr.bf16.gmra.mxu0 %v9710
        %v10987 = vpop.f32.mrf.mxu0
        %v10988 = vadd.f32 %v9744, %v10987
        %v10989 = vpop.f32.mrf.mxu0
        %v10990 = vadd.f32 %v9748, %v10989
        %v10991 = vpop.f32.mrf.mxu0
        %v10992 = vadd.f32 %v9744, %v10991
        %v10993 = vpop.f32.mrf.mxu0
        %v10994 = vadd.f32 %v9748, %v10993
        %10995 = vmatprep.mubr.bf16.mxu0 0
        %10996 = vmatmul.mubr.bf16.gmra.mxu0 %v9711
        %v10997 = vpop.f32.mrf.mxu0
        %v10998 = vadd.f32 %v9744, %v10997
        %v10999 = vpop.f32.mrf.mxu0
        %v11000 = vadd.f32 %v9748, %v10999
        %v11001 = vpop.f32.mrf.mxu0
        %v11002 = vadd.f32 %v9744, %v11001
        %v11003 = vpop.f32.mrf.mxu0
        %v11004 = vadd.f32 %v9748, %v11003
        %11005 = vmatprep.mubr.bf16.mxu0 0
        %11006 = vmatmul.mubr.bf16.gmra.mxu0 %v9712
        %v11007 = vpop.f32.mrf.mxu0
        %v11008 = vadd.f32 %v9744, %v11007
        %v11009 = vpop.f32.mrf.mxu0
        %v11010 = vadd.f32 %v9748, %v11009
        %v11011 = vpop.f32.mrf.mxu0
        %v11012 = vadd.f32 %v9744, %v11011
        %v11013 = vpop.f32.mrf.mxu0
        %v11014 = vadd.f32 %v9748, %v11013
        %11015 = vmatprep.mubr.bf16.mxu0 0
        %11016 = vmatmul.mubr.bf16.gmra.mxu0 %v9713
        %v11017 = vpop.f32.mrf.mxu0
        %v11018 = vadd.f32 %v9744, %v11017
        %v11019 = vpop.f32.mrf.mxu0
        %v11020 = vadd.f32 %v9748, %v11019
        %v11021 = vpop.f32.mrf.mxu0
        %v11022 = vadd.f32 %v9744, %v11021
        %v11023 = vpop.f32.mrf.mxu0
        %v11024 = vadd.f32 %v9748, %v11023
        %11025 = vmatprep.mubr.bf16.mxu0 0
        %11026 = vmatmul.mubr.bf16.gmra.mxu0 %v9714
        %v11027 = vpop.f32.mrf.mxu0
        %v11028 = vadd.f32 %v9744, %v11027
        %v11029 = vpop.f32.mrf.mxu0
        %v11030 = vadd.f32 %v9748, %v11029
        %v11031 = vpop.f32.mrf.mxu0
        %v11032 = vadd.f32 %v9744, %v11031
        %v11033 = vpop.f32.mrf.mxu0
        %v11034 = vadd.f32 %v9748, %v11033
        %11035 = vmatprep.mubr.bf16.mxu0 0
        %11036 = vmatmul.mubr.bf16.gmra.mxu0 %v9715
        %v11037 = vpop.f32.mrf.mxu0
        %v11038 = vadd.f32 %v9744, %v11037
        %v11039 = vpop.f32.mrf.mxu0
        %v11040 = vadd.f32 %v9748, %v11039
        %v11041 = vpop.f32.mrf.mxu0
        %v11042 = vadd.f32 %v9744, %v11041
        %v11043 = vpop.f32.mrf.mxu0
        %v11044 = vadd.f32 %v9748, %v11043
        %11045 = vmatprep.mubr.bf16.mxu0 0
        %11046 = vmatmul.mubr.bf16.gmra.mxu0 %v9716
        %v11047 = vpop.f32.mrf.mxu0
        %v11048 = vadd.f32 %v9744, %v11047
        %v11049 = vpop.f32.mrf.mxu0
        %v11050 = vadd.f32 %v9748, %v11049
        %v11051 = vpop.f32.mrf.mxu0
        %v11052 = vadd.f32 %v9744, %v11051
        %v11053 = vpop.f32.mrf.mxu0
        %v11054 = vadd.f32 %v9748, %v11053
        %11055 = vmatprep.mubr.bf16.mxu0 0
        %11056 = vmatmul.mubr.bf16.gmra.mxu0 %v9717
        %v11057 = vpop.f32.mrf.mxu0
        %v11058 = vadd.f32 %v9744, %v11057
        %v11059 = vpop.f32.mrf.mxu0
        %v11060 = vadd.f32 %v9748, %v11059
        %v11061 = vpop.f32.mrf.mxu0
        %v11062 = vadd.f32 %v9744, %v11061
        %v11063 = vpop.f32.mrf.mxu0
        %v11064 = vadd.f32 %v9748, %v11063
        %11065 = vmatprep.mubr.bf16.mxu0 0
        %11066 = vmatmul.mubr.bf16.gmra.mxu0 %v9718
        %v11067 = vpop.f32.mrf.mxu0
        %v11068 = vadd.f32 %v9744, %v11067
        %v11069 = vpop.f32.mrf.mxu0
        %v11070 = vadd.f32 %v9748, %v11069
        %v11071 = vpop.f32.mrf.mxu0
        %v11072 = vadd.f32 %v9744, %v11071
        %v11073 = vpop.f32.mrf.mxu0
        %v11074 = vadd.f32 %v9748, %v11073
        %11075 = vmatprep.mubr.bf16.mxu0 0
        %11076 = vmatmul.mubr.bf16.gmra.mxu0 %v9719
        %v11077 = vpop.f32.mrf.mxu0
        %v11078 = vadd.f32 %v9744, %v11077
        %v11079 = vpop.f32.mrf.mxu0
        %v11080 = vadd.f32 %v9748, %v11079
        %v11081 = vpop.f32.mrf.mxu0
        %v11082 = vadd.f32 %v9744, %v11081
        %v11083 = vpop.f32.mrf.mxu0
        %v11084 = vadd.f32 %v9748, %v11083
        %11085 = vmatprep.mubr.bf16.mxu0 0
        %11086 = vmatmul.mubr.bf16.gmra.mxu0 %v9720
        %v11087 = vpop.f32.mrf.mxu0
        %v11088 = vadd.f32 %v9744, %v11087
        %v11089 = vpop.f32.mrf.mxu0
        %v11090 = vadd.f32 %v9748, %v11089
        %v11091 = vpop.f32.mrf.mxu0
        %v11092 = vadd.f32 %v9744, %v11091
        %v11093 = vpop.f32.mrf.mxu0
        %v11094 = vadd.f32 %v9748, %v11093
        %11095 = vmatprep.mubr.bf16.mxu0 0
        %11096 = vmatmul.mubr.bf16.gmra.mxu0 %v9721
        %v11097 = vpop.f32.mrf.mxu0
        %v11098 = vadd.f32 %v9744, %v11097
        %v11099 = vpop.f32.mrf.mxu0
        %v11100 = vadd.f32 %v9748, %v11099
        %v11101 = vpop.f32.mrf.mxu0
        %v11102 = vadd.f32 %v9744, %v11101
        %v11103 = vpop.f32.mrf.mxu0
        %v11104 = vadd.f32 %v9748, %v11103
        %11105 = vmatprep.mubr.bf16.mxu0 0
        %11106 = vmatmul.mubr.bf16.gmra.mxu0 %v9722
        %v11107 = vpop.f32.mrf.mxu0
        %v11108 = vadd.f32 %v9744, %v11107
        %v11109 = vpop.f32.mrf.mxu0
        %v11110 = vadd.f32 %v9748, %v11109
        %v11111 = vpop.f32.mrf.mxu0
        %v11112 = vadd.f32 %v9744, %v11111
        %v11113 = vpop.f32.mrf.mxu0
        %v11114 = vadd.f32 %v9748, %v11113
        %11115 = vmatprep.mubr.bf16.mxu0 0
        %11116 = vmatmul.mubr.bf16.gmra.mxu0 %v9723
        %v11117 = vpop.f32.mrf.mxu0
        %v11118 = vadd.f32 %v9744, %v11117
        %v11119 = vpop.f32.mrf.mxu0
        %v11120 = vadd.f32 %v9748, %v11119
        %v11121 = vpop.f32.mrf.mxu0
        %v11122 = vadd.f32 %v9744, %v11121
        %v11123 = vpop.f32.mrf.mxu0
        %v11124 = vadd.f32 %v9748, %v11123
        %11125 = vmatprep.mubr.bf16.mxu0 0
        %11126 = vmatmul.mubr.bf16.gmra.mxu0 %v9724
        %v11127 = vpop.f32.mrf.mxu0
        %v11128 = vadd.f32 %v9744, %v11127
        %v11129 = vpop.f32.mrf.mxu0
        %v11130 = vadd.f32 %v9748, %v11129
        %v11131 = vpop.f32.mrf.mxu0
        %v11132 = vadd.f32 %v9744, %v11131
        %v11133 = vpop.f32.mrf.mxu0
        %v11134 = vadd.f32 %v9748, %v11133
        %11135 = vdwg.mxu0
        %11136 = vmatprep.subr.bf16.mxu0 %v10012
        %11137 = vmatpush1.bf16.msra.mxu0 %v10011
        %11138 = vmatprep.subr.bf16.mxu0 %v10004
        %11139 = vmatpush1.bf16.msra.mxu0 %v10003
        %11140 = vmatprep.subr.bf16.mxu0 %v9996
        %11141 = vmatpush1.bf16.msra.mxu0 %v9995
        %11142 = vmatprep.subr.bf16.mxu0 %v9988
        %11143 = vmatpush1.bf16.msra.mxu0 %v9987
        %11144 = vmatprep.subr.bf16.mxu0 %v9980
        %11145 = vmatpush1.bf16.msra.mxu0 %v9979
        %11146 = vmatprep.subr.bf16.mxu0 %v9972
        %11147 = vmatpush1.bf16.msra.mxu0 %v9971
        %11148 = vmatprep.subr.bf16.mxu0 %v9964
        %11149 = vmatpush1.bf16.msra.mxu0 %v9963
        %11150 = vmatprep.subr.bf16.mxu0 %v9956
        %11151 = vmatpush1.bf16.msra.mxu0 %v9955
        %11152 = vmatprep.subr.bf16.mxu0 0
        %11153 = vmatpush2.bf16.msra.mxu0 0
        %11154 = vmatprep.subr.bf16.mxu0 0
        %11155 = vmatpush2.bf16.msra.mxu0 0
        %11156 = vmatprep.subr.bf16.mxu0 0
        %11157 = vmatpush2.bf16.msra.mxu0 0
        %11158 = vmatprep.subr.bf16.mxu0 0
        %11159 = vmatpush2.bf16.msra.mxu0 0
        %11160 = vmatprep.subr.bf16.mxu0 0
        %11161 = vmatpush2.bf16.msra.mxu0 0
        %11162 = vmatprep.subr.bf16.mxu0 0
        %11163 = vmatpush2.bf16.msra.mxu0 0
        %11164 = vmatprep.subr.bf16.mxu0 0
        %11165 = vmatpush2.bf16.msra.mxu0 0
        %11166 = vmatprep.subr.bf16.mxu0 0
        %11167 = vmatpush2.bf16.msra.mxu0 0
        %11168 = vmatprep.mubr.bf16.mxu0 0
        %11169 = vmatmul.mubr.bf16.gmra.mxu0 %v9693
        %v11170 = vpop.f32.mrf.mxu0
        %v11171 = vadd.f32 %v9752, %v11170
        %v11172 = vpop.f32.mrf.mxu0
        %v11173 = vadd.f32 %v9756, %v11172
        %v11174 = vpop.f32.mrf.mxu0
        %v11175 = vadd.f32 %v9752, %v11174
        %v11176 = vpop.f32.mrf.mxu0
        %v11177 = vadd.f32 %v9756, %v11176
        %11178 = vmatprep.mubr.bf16.mxu0 0
        %11179 = vmatmul.mubr.bf16.gmra.mxu0 %v9694
        %v11180 = vpop.f32.mrf.mxu0
        %v11181 = vadd.f32 %v9752, %v11180
        %v11182 = vpop.f32.mrf.mxu0
        %v11183 = vadd.f32 %v9756, %v11182
        %v11184 = vpop.f32.mrf.mxu0
        %v11185 = vadd.f32 %v9752, %v11184
        %v11186 = vpop.f32.mrf.mxu0
        %v11187 = vadd.f32 %v9756, %v11186
        %11188 = vmatprep.mubr.bf16.mxu0 0
        %11189 = vmatmul.mubr.bf16.gmra.mxu0 %v9695
        %v11190 = vpop.f32.mrf.mxu0
        %v11191 = vadd.f32 %v9752, %v11190
        %v11192 = vpop.f32.mrf.mxu0
        %v11193 = vadd.f32 %v9756, %v11192
        %v11194 = vpop.f32.mrf.mxu0
        %v11195 = vadd.f32 %v9752, %v11194
        %v11196 = vpop.f32.mrf.mxu0
        %v11197 = vadd.f32 %v9756, %v11196
        %11198 = vmatprep.mubr.bf16.mxu0 0
        %11199 = vmatmul.mubr.bf16.gmra.mxu0 %v9696
        %v11200 = vpop.f32.mrf.mxu0
        %v11201 = vadd.f32 %v9752, %v11200
        %v11202 = vpop.f32.mrf.mxu0
        %v11203 = vadd.f32 %v9756, %v11202
        %v11204 = vpop.f32.mrf.mxu0
        %v11205 = vadd.f32 %v9752, %v11204
        %v11206 = vpop.f32.mrf.mxu0
        %v11207 = vadd.f32 %v9756, %v11206
        %11208 = vmatprep.mubr.bf16.mxu0 0
        %11209 = vmatmul.mubr.bf16.gmra.mxu0 %v9697
        %v11210 = vpop.f32.mrf.mxu0
        %v11211 = vadd.f32 %v9752, %v11210
        %v11212 = vpop.f32.mrf.mxu0
        %v11213 = vadd.f32 %v9756, %v11212
        %v11214 = vpop.f32.mrf.mxu0
        %v11215 = vadd.f32 %v9752, %v11214
        %v11216 = vpop.f32.mrf.mxu0
        %v11217 = vadd.f32 %v9756, %v11216
        %11218 = vmatprep.mubr.bf16.mxu0 0
        %11219 = vmatmul.mubr.bf16.gmra.mxu0 %v9698
        %v11220 = vpop.f32.mrf.mxu0
        %v11221 = vadd.f32 %v9752, %v11220
        %v11222 = vpop.f32.mrf.mxu0
        %v11223 = vadd.f32 %v9756, %v11222
        %v11224 = vpop.f32.mrf.mxu0
        %v11225 = vadd.f32 %v9752, %v11224
        %v11226 = vpop.f32.mrf.mxu0
        %v11227 = vadd.f32 %v9756, %v11226
        %11228 = vmatprep.mubr.bf16.mxu0 0
        %11229 = vmatmul.mubr.bf16.gmra.mxu0 %v9699
        %v11230 = vpop.f32.mrf.mxu0
        %v11231 = vadd.f32 %v9752, %v11230
        %v11232 = vpop.f32.mrf.mxu0
        %v11233 = vadd.f32 %v9756, %v11232
        %v11234 = vpop.f32.mrf.mxu0
        %v11235 = vadd.f32 %v9752, %v11234
        %v11236 = vpop.f32.mrf.mxu0
        %v11237 = vadd.f32 %v9756, %v11236
        %11238 = vmatprep.mubr.bf16.mxu0 0
        %11239 = vmatmul.mubr.bf16.gmra.mxu0 %v9700
        %v11240 = vpop.f32.mrf.mxu0
        %v11241 = vadd.f32 %v9752, %v11240
        %v11242 = vpop.f32.mrf.mxu0
        %v11243 = vadd.f32 %v9756, %v11242
        %v11244 = vpop.f32.mrf.mxu0
        %v11245 = vadd.f32 %v9752, %v11244
        %v11246 = vpop.f32.mrf.mxu0
        %v11247 = vadd.f32 %v9756, %v11246
        %11248 = vmatprep.mubr.bf16.mxu0 0
        %11249 = vmatmul.mubr.bf16.gmra.mxu0 %v9701
        %v11250 = vpop.f32.mrf.mxu0
        %v11251 = vadd.f32 %v9752, %v11250
        %v11252 = vpop.f32.mrf.mxu0
        %v11253 = vadd.f32 %v9756, %v11252
        %v11254 = vpop.f32.mrf.mxu0
        %v11255 = vadd.f32 %v9752, %v11254
        %v11256 = vpop.f32.mrf.mxu0
        %v11257 = vadd.f32 %v9756, %v11256
        %11258 = vmatprep.mubr.bf16.mxu0 0
        %11259 = vmatmul.mubr.bf16.gmra.mxu0 %v9702
        %v11260 = vpop.f32.mrf.mxu0
        %v11261 = vadd.f32 %v9752, %v11260
        %v11262 = vpop.f32.mrf.mxu0
        %v11263 = vadd.f32 %v9756, %v11262
        %v11264 = vpop.f32.mrf.mxu0
        %v11265 = vadd.f32 %v9752, %v11264
        %v11266 = vpop.f32.mrf.mxu0
        %v11267 = vadd.f32 %v9756, %v11266
        %11268 = vmatprep.mubr.bf16.mxu0 0
        %11269 = vmatmul.mubr.bf16.gmra.mxu0 %v9703
        %v11270 = vpop.f32.mrf.mxu0
        %v11271 = vadd.f32 %v9752, %v11270
        %v11272 = vpop.f32.mrf.mxu0
        %v11273 = vadd.f32 %v9756, %v11272
        %v11274 = vpop.f32.mrf.mxu0
        %v11275 = vadd.f32 %v9752, %v11274
        %v11276 = vpop.f32.mrf.mxu0
        %v11277 = vadd.f32 %v9756, %v11276
        %11278 = vmatprep.mubr.bf16.mxu0 0
        %11279 = vmatmul.mubr.bf16.gmra.mxu0 %v9704
        %v11280 = vpop.f32.mrf.mxu0
        %v11281 = vadd.f32 %v9752, %v11280
        %v11282 = vpop.f32.mrf.mxu0
        %v11283 = vadd.f32 %v9756, %v11282
        %v11284 = vpop.f32.mrf.mxu0
        %v11285 = vadd.f32 %v9752, %v11284
        %v11286 = vpop.f32.mrf.mxu0
        %v11287 = vadd.f32 %v9756, %v11286
        %11288 = vmatprep.mubr.bf16.mxu0 0
        %11289 = vmatmul.mubr.bf16.gmra.mxu0 %v9705
        %v11290 = vpop.f32.mrf.mxu0
        %v11291 = vadd.f32 %v9752, %v11290
        %v11292 = vpop.f32.mrf.mxu0
        %v11293 = vadd.f32 %v9756, %v11292
        %v11294 = vpop.f32.mrf.mxu0
        %v11295 = vadd.f32 %v9752, %v11294
        %v11296 = vpop.f32.mrf.mxu0
        %v11297 = vadd.f32 %v9756, %v11296
        %11298 = vmatprep.mubr.bf16.mxu0 0
        %11299 = vmatmul.mubr.bf16.gmra.mxu0 %v9706
        %v11300 = vpop.f32.mrf.mxu0
        %v11301 = vadd.f32 %v9752, %v11300
        %v11302 = vpop.f32.mrf.mxu0
        %v11303 = vadd.f32 %v9756, %v11302
        %v11304 = vpop.f32.mrf.mxu0
        %v11305 = vadd.f32 %v9752, %v11304
        %v11306 = vpop.f32.mrf.mxu0
        %v11307 = vadd.f32 %v9756, %v11306
        %11308 = vmatprep.mubr.bf16.mxu0 0
        %11309 = vmatmul.mubr.bf16.gmra.mxu0 %v9707
        %v11310 = vpop.f32.mrf.mxu0
        %v11311 = vadd.f32 %v9752, %v11310
        %v11312 = vpop.f32.mrf.mxu0
        %v11313 = vadd.f32 %v9756, %v11312
        %v11314 = vpop.f32.mrf.mxu0
        %v11315 = vadd.f32 %v9752, %v11314
        %v11316 = vpop.f32.mrf.mxu0
        %v11317 = vadd.f32 %v9756, %v11316
        %11318 = vmatprep.mubr.bf16.mxu0 0
        %11319 = vmatmul.mubr.bf16.gmra.mxu0 %v9708
        %v11320 = vpop.f32.mrf.mxu0
        %v11321 = vadd.f32 %v9752, %v11320
        %v11322 = vpop.f32.mrf.mxu0
        %v11323 = vadd.f32 %v9756, %v11322
        %v11324 = vpop.f32.mrf.mxu0
        %v11325 = vadd.f32 %v9752, %v11324
        %v11326 = vpop.f32.mrf.mxu0
        %v11327 = vadd.f32 %v9756, %v11326
        %11328 = vmatprep.mubr.bf16.mxu0 0
        %11329 = vmatmul.mubr.bf16.gmra.mxu0 %v9709
        %v11330 = vpop.f32.mrf.mxu0
        %v11331 = vadd.f32 %v9752, %v11330
        %v11332 = vpop.f32.mrf.mxu0
        %v11333 = vadd.f32 %v9756, %v11332
        %v11334 = vpop.f32.mrf.mxu0
        %v11335 = vadd.f32 %v9752, %v11334
        %v11336 = vpop.f32.mrf.mxu0
        %v11337 = vadd.f32 %v9756, %v11336
        %11338 = vmatprep.mubr.bf16.mxu0 0
        %11339 = vmatmul.mubr.bf16.gmra.mxu0 %v9710
        %v11340 = vpop.f32.mrf.mxu0
        %v11341 = vadd.f32 %v9752, %v11340
        %v11342 = vpop.f32.mrf.mxu0
        %v11343 = vadd.f32 %v9756, %v11342
        %v11344 = vpop.f32.mrf.mxu0
        %v11345 = vadd.f32 %v9752, %v11344
        %v11346 = vpop.f32.mrf.mxu0
        %v11347 = vadd.f32 %v9756, %v11346
        %11348 = vmatprep.mubr.bf16.mxu0 0
        %11349 = vmatmul.mubr.bf16.gmra.mxu0 %v9711
        %v11350 = vpop.f32.mrf.mxu0
        %v11351 = vadd.f32 %v9752, %v11350
        %v11352 = vpop.f32.mrf.mxu0
        %v11353 = vadd.f32 %v9756, %v11352
        %v11354 = vpop.f32.mrf.mxu0
        %v11355 = vadd.f32 %v9752, %v11354
        %v11356 = vpop.f32.mrf.mxu0
        %v11357 = vadd.f32 %v9756, %v11356
        %11358 = vmatprep.mubr.bf16.mxu0 0
        %11359 = vmatmul.mubr.bf16.gmra.mxu0 %v9712
        %v11360 = vpop.f32.mrf.mxu0
        %v11361 = vadd.f32 %v9752, %v11360
        %v11362 = vpop.f32.mrf.mxu0
        %v11363 = vadd.f32 %v9756, %v11362
        %v11364 = vpop.f32.mrf.mxu0
        %v11365 = vadd.f32 %v9752, %v11364
        %v11366 = vpop.f32.mrf.mxu0
        %v11367 = vadd.f32 %v9756, %v11366
        %11368 = vmatprep.mubr.bf16.mxu0 0
        %11369 = vmatmul.mubr.bf16.gmra.mxu0 %v9713
        %v11370 = vpop.f32.mrf.mxu0
        %v11371 = vadd.f32 %v9752, %v11370
        %v11372 = vpop.f32.mrf.mxu0
        %v11373 = vadd.f32 %v9756, %v11372
        %v11374 = vpop.f32.mrf.mxu0
        %v11375 = vadd.f32 %v9752, %v11374
        %v11376 = vpop.f32.mrf.mxu0
        %v11377 = vadd.f32 %v9756, %v11376
        %11378 = vmatprep.mubr.bf16.mxu0 0
        %11379 = vmatmul.mubr.bf16.gmra.mxu0 %v9714
        %v11380 = vpop.f32.mrf.mxu0
        %v11381 = vadd.f32 %v9752, %v11380
        %v11382 = vpop.f32.mrf.mxu0
        %v11383 = vadd.f32 %v9756, %v11382
        %v11384 = vpop.f32.mrf.mxu0
        %v11385 = vadd.f32 %v9752, %v11384
        %v11386 = vpop.f32.mrf.mxu0
        %v11387 = vadd.f32 %v9756, %v11386
        %11388 = vmatprep.mubr.bf16.mxu0 0
        %11389 = vmatmul.mubr.bf16.gmra.mxu0 %v9715
        %v11390 = vpop.f32.mrf.mxu0
        %v11391 = vadd.f32 %v9752, %v11390
        %v11392 = vpop.f32.mrf.mxu0
        %v11393 = vadd.f32 %v9756, %v11392
        %v11394 = vpop.f32.mrf.mxu0
        %v11395 = vadd.f32 %v9752, %v11394
        %v11396 = vpop.f32.mrf.mxu0
        %v11397 = vadd.f32 %v9756, %v11396
        %11398 = vmatprep.mubr.bf16.mxu0 0
        %11399 = vmatmul.mubr.bf16.gmra.mxu0 %v9716
        %v11400 = vpop.f32.mrf.mxu0
        %v11401 = vadd.f32 %v9752, %v11400
        %v11402 = vpop.f32.mrf.mxu0
        %v11403 = vadd.f32 %v9756, %v11402
        %v11404 = vpop.f32.mrf.mxu0
        %v11405 = vadd.f32 %v9752, %v11404
        %v11406 = vpop.f32.mrf.mxu0
        %v11407 = vadd.f32 %v9756, %v11406
        %11408 = vmatprep.mubr.bf16.mxu0 0
        %11409 = vmatmul.mubr.bf16.gmra.mxu0 %v9717
        %v11410 = vpop.f32.mrf.mxu0
        %v11411 = vadd.f32 %v9752, %v11410
        %v11412 = vpop.f32.mrf.mxu0
        %v11413 = vadd.f32 %v9756, %v11412
        %v11414 = vpop.f32.mrf.mxu0
        %v11415 = vadd.f32 %v9752, %v11414
        %v11416 = vpop.f32.mrf.mxu0
        %v11417 = vadd.f32 %v9756, %v11416
        %11418 = vmatprep.mubr.bf16.mxu0 0
        %11419 = vmatmul.mubr.bf16.gmra.mxu0 %v9718
        %v11420 = vpop.f32.mrf.mxu0
        %v11421 = vadd.f32 %v9752, %v11420
        %v11422 = vpop.f32.mrf.mxu0
        %v11423 = vadd.f32 %v9756, %v11422
        %v11424 = vpop.f32.mrf.mxu0
        %v11425 = vadd.f32 %v9752, %v11424
        %v11426 = vpop.f32.mrf.mxu0
        %v11427 = vadd.f32 %v9756, %v11426
        %11428 = vmatprep.mubr.bf16.mxu0 0
        %11429 = vmatmul.mubr.bf16.gmra.mxu0 %v9719
        %v11430 = vpop.f32.mrf.mxu0
        %v11431 = vadd.f32 %v9752, %v11430
        %v11432 = vpop.f32.mrf.mxu0
        %v11433 = vadd.f32 %v9756, %v11432
        %v11434 = vpop.f32.mrf.mxu0
        %v11435 = vadd.f32 %v9752, %v11434
        %v11436 = vpop.f32.mrf.mxu0
        %v11437 = vadd.f32 %v9756, %v11436
        %11438 = vmatprep.mubr.bf16.mxu0 0
        %11439 = vmatmul.mubr.bf16.gmra.mxu0 %v9720
        %v11440 = vpop.f32.mrf.mxu0
        %v11441 = vadd.f32 %v9752, %v11440
        %v11442 = vpop.f32.mrf.mxu0
        %v11443 = vadd.f32 %v9756, %v11442
        %v11444 = vpop.f32.mrf.mxu0
        %v11445 = vadd.f32 %v9752, %v11444
        %v11446 = vpop.f32.mrf.mxu0
        %v11447 = vadd.f32 %v9756, %v11446
        %11448 = vmatprep.mubr.bf16.mxu0 0
        %11449 = vmatmul.mubr.bf16.gmra.mxu0 %v9721
        %v11450 = vpop.f32.mrf.mxu0
        %v11451 = vadd.f32 %v9752, %v11450
        %v11452 = vpop.f32.mrf.mxu0
        %v11453 = vadd.f32 %v9756, %v11452
        %v11454 = vpop.f32.mrf.mxu0
        %v11455 = vadd.f32 %v9752, %v11454
        %v11456 = vpop.f32.mrf.mxu0
        %v11457 = vadd.f32 %v9756, %v11456
        %11458 = vmatprep.mubr.bf16.mxu0 0
        %11459 = vmatmul.mubr.bf16.gmra.mxu0 %v9722
        %v11460 = vpop.f32.mrf.mxu0
        %v11461 = vadd.f32 %v9752, %v11460
        %v11462 = vpop.f32.mrf.mxu0
        %v11463 = vadd.f32 %v9756, %v11462
        %v11464 = vpop.f32.mrf.mxu0
        %v11465 = vadd.f32 %v9752, %v11464
        %v11466 = vpop.f32.mrf.mxu0
        %v11467 = vadd.f32 %v9756, %v11466
        %11468 = vmatprep.mubr.bf16.mxu0 0
        %11469 = vmatmul.mubr.bf16.gmra.mxu0 %v9723
        %v11470 = vpop.f32.mrf.mxu0
        %v11471 = vadd.f32 %v9752, %v11470
        %v11472 = vpop.f32.mrf.mxu0
        %v11473 = vadd.f32 %v9756, %v11472
        %v11474 = vpop.f32.mrf.mxu0
        %v11475 = vadd.f32 %v9752, %v11474
        %v11476 = vpop.f32.mrf.mxu0
        %v11477 = vadd.f32 %v9756, %v11476
        %11478 = vmatprep.mubr.bf16.mxu0 0
        %11479 = vmatmul.mubr.bf16.gmra.mxu0 %v9724
        %v11480 = vpop.f32.mrf.mxu0
        %v11481 = vadd.f32 %v9752, %v11480
        %v11482 = vpop.f32.mrf.mxu0
        %v11483 = vadd.f32 %v9756, %v11482
        %v11484 = vpop.f32.mrf.mxu0
        %v11485 = vadd.f32 %v9752, %v11484
        %v11486 = vpop.f32.mrf.mxu0
        %v11487 = vadd.f32 %v9756, %v11486
        %11488 = vdwg.mxu0
        %v11489 = vmax.f32 %v10112, %v10116
        %v11490 = vmax.f32 %v11489, %v10122
        %v11491 = vmax.f32 %v11490, %v10126
        %v11492 = vmax.f32 %v11491, %v10132
        %v11493 = vmax.f32 %v11492, %v10136
        %v11494 = vmax.f32 %v11493, %v10142
        %v11495 = vmax.f32 %v11494, %v10146
        %v11496 = vmax.f32 %v11495, %v10152
        %v11497 = vmax.f32 %v11496, %v10156
        %v11498 = vmax.f32 %v11497, %v10162
        %v11499 = vmax.f32 %v11498, %v10166
        %v11500 = vmax.f32 %v11499, %v10172
        %v11501 = vmax.f32 %v11500, %v10176
        %v11502 = vmax.f32 %v11501, %v10182
        %v11503 = vmax.f32 %v11502, %v10186
        %v11504 = vmax.f32 %v11503, %v10192
        %v11505 = vmax.f32 %v11504, %v10196
        %v11506 = vmax.f32 %v11505, %v10202
        %v11507 = vmax.f32 %v11506, %v10206
        %v11508 = vmax.f32 %v11507, %v10212
        %v11509 = vmax.f32 %v11508, %v10216
        %v11510 = vmax.f32 %v11509, %v10222
        %v11511 = vmax.f32 %v11510, %v10226
        %v11512 = vmax.f32 %v11511, %v10232
        %v11513 = vmax.f32 %v11512, %v10236
        %v11514 = vmax.f32 %v11513, %v10242
        %v11515 = vmax.f32 %v11514, %v10246
        %v11516 = vmax.f32 %v11515, %v10252
        %v11517 = vmax.f32 %v11516, %v10256
        %v11518 = vmax.f32 %v11517, %v10262
        %v11519 = vmax.f32 %v11518, %v10266
        %v11520 = vrot.slane %v11519, 4
        %v11521 = vmax.f32 %v11519, %v11520
        %v11522 = vrot.slane %v11521, 2
        %v11523 = vmax.f32 %v11521, %v11522
        %v11524 = vrot.slane %v11523, 1
        %v11525 = vmax.f32 %v11523, %v11524
        %v11526 = vmax.f32 %v10114, %v10118
        %v11527 = vmax.f32 %v11526, %v10124
        %v11528 = vmax.f32 %v11527, %v10128
        %v11529 = vmax.f32 %v11528, %v10134
        %v11530 = vmax.f32 %v11529, %v10138
        %v11531 = vmax.f32 %v11530, %v10144
        %v11532 = vmax.f32 %v11531, %v10148
        %v11533 = vmax.f32 %v11532, %v10154
        %v11534 = vmax.f32 %v11533, %v10158
        %v11535 = vmax.f32 %v11534, %v10164
        %v11536 = vmax.f32 %v11535, %v10168
        %v11537 = vmax.f32 %v11536, %v10174
        %v11538 = vmax.f32 %v11537, %v10178
        %v11539 = vmax.f32 %v11538, %v10184
        %v11540 = vmax.f32 %v11539, %v10188
        %v11541 = vmax.f32 %v11540, %v10194
        %v11542 = vmax.f32 %v11541, %v10198
        %v11543 = vmax.f32 %v11542, %v10204
        %v11544 = vmax.f32 %v11543, %v10208
        %v11545 = vmax.f32 %v11544, %v10214
        %v11546 = vmax.f32 %v11545, %v10218
        %v11547 = vmax.f32 %v11546, %v10224
        %v11548 = vmax.f32 %v11547, %v10228
        %v11549 = vmax.f32 %v11548, %v10234
        %v11550 = vmax.f32 %v11549, %v10238
        %v11551 = vmax.f32 %v11550, %v10244
        %v11552 = vmax.f32 %v11551, %v10248
        %v11553 = vmax.f32 %v11552, %v10254
        %v11554 = vmax.f32 %v11553, %v10258
        %v11555 = vmax.f32 %v11554, %v10264
        %v11556 = vmax.f32 %v11555, %v10268
        %v11557 = vrot.slane %v11556, 4
        %v11558 = vmax.f32 %v11556, %v11557
        %v11559 = vrot.slane %v11558, 2
        %v11560 = vmax.f32 %v11558, %v11559
        %v11561 = vrot.slane %v11560, 1
        %v11562 = vmax.f32 %v11560, %v11561
        %v11563 = vmax.f32 %v10465, %v10469
        %v11564 = vmax.f32 %v11563, %v10475
        %v11565 = vmax.f32 %v11564, %v10479
        %v11566 = vmax.f32 %v11565, %v10485
        %v11567 = vmax.f32 %v11566, %v10489
        %v11568 = vmax.f32 %v11567, %v10495
        %v11569 = vmax.f32 %v11568, %v10499
        %v11570 = vmax.f32 %v11569, %v10505
        %v11571 = vmax.f32 %v11570, %v10509
        %v11572 = vmax.f32 %v11571, %v10515
        %v11573 = vmax.f32 %v11572, %v10519
        %v11574 = vmax.f32 %v11573, %v10525
        %v11575 = vmax.f32 %v11574, %v10529
        %v11576 = vmax.f32 %v11575, %v10535
        %v11577 = vmax.f32 %v11576, %v10539
        %v11578 = vmax.f32 %v11577, %v10545
        %v11579 = vmax.f32 %v11578, %v10549
        %v11580 = vmax.f32 %v11579, %v10555
        %v11581 = vmax.f32 %v11580, %v10559
        %v11582 = vmax.f32 %v11581, %v10565
        %v11583 = vmax.f32 %v11582, %v10569
        %v11584 = vmax.f32 %v11583, %v10575
        %v11585 = vmax.f32 %v11584, %v10579
        %v11586 = vmax.f32 %v11585, %v10585
        %v11587 = vmax.f32 %v11586, %v10589
        %v11588 = vmax.f32 %v11587, %v10595
        %v11589 = vmax.f32 %v11588, %v10599
        %v11590 = vmax.f32 %v11589, %v10605
        %v11591 = vmax.f32 %v11590, %v10609
        %v11592 = vmax.f32 %v11591, %v10615
        %v11593 = vmax.f32 %v11592, %v10619
        %v11594 = vrot.slane %v11593, 4
        %v11595 = vmax.f32 %v11593, %v11594
        %v11596 = vrot.slane %v11595, 2
        %v11597 = vmax.f32 %v11595, %v11596
        %v11598 = vrot.slane %v11597, 1
        %v11599 = vmax.f32 %v11597, %v11598
        %v11600 = vmax.f32 %v10467, %v10471
        %v11601 = vmax.f32 %v11600, %v10477
        %v11602 = vmax.f32 %v11601, %v10481
        %v11603 = vmax.f32 %v11602, %v10487
        %v11604 = vmax.f32 %v11603, %v10491
        %v11605 = vmax.f32 %v11604, %v10497
        %v11606 = vmax.f32 %v11605, %v10501
        %v11607 = vmax.f32 %v11606, %v10507
        %v11608 = vmax.f32 %v11607, %v10511
        %v11609 = vmax.f32 %v11608, %v10517
        %v11610 = vmax.f32 %v11609, %v10521
        %v11611 = vmax.f32 %v11610, %v10527
        %v11612 = vmax.f32 %v11611, %v10531
        %v11613 = vmax.f32 %v11612, %v10537
        %v11614 = vmax.f32 %v11613, %v10541
        %v11615 = vmax.f32 %v11614, %v10547
        %v11616 = vmax.f32 %v11615, %v10551
        %v11617 = vmax.f32 %v11616, %v10557
        %v11618 = vmax.f32 %v11617, %v10561
        %v11619 = vmax.f32 %v11618, %v10567
        %v11620 = vmax.f32 %v11619, %v10571
        %v11621 = vmax.f32 %v11620, %v10577
        %v11622 = vmax.f32 %v11621, %v10581
        %v11623 = vmax.f32 %v11622, %v10587
        %v11624 = vmax.f32 %v11623, %v10591
        %v11625 = vmax.f32 %v11624, %v10597
        %v11626 = vmax.f32 %v11625, %v10601
        %v11627 = vmax.f32 %v11626, %v10607
        %v11628 = vmax.f32 %v11627, %v10611
        %v11629 = vmax.f32 %v11628, %v10617
        %v11630 = vmax.f32 %v11629, %v10621
        %v11631 = vrot.slane %v11630, 4
        %v11632 = vmax.f32 %v11630, %v11631
        %v11633 = vrot.slane %v11632, 2
        %v11634 = vmax.f32 %v11632, %v11633
        %v11635 = vrot.slane %v11634, 1
        %v11636 = vmax.f32 %v11634, %v11635
        %v11637 = vmax.f32 %v10818, %v10822
        %v11638 = vmax.f32 %v11637, %v10828
        %v11639 = vmax.f32 %v11638, %v10832
        %v11640 = vmax.f32 %v11639, %v10838
        %v11641 = vmax.f32 %v11640, %v10842
        %v11642 = vmax.f32 %v11641, %v10848
        %v11643 = vmax.f32 %v11642, %v10852
        %v11644 = vmax.f32 %v11643, %v10858
        %v11645 = vmax.f32 %v11644, %v10862
        %v11646 = vmax.f32 %v11645, %v10868
        %v11647 = vmax.f32 %v11646, %v10872
        %v11648 = vmax.f32 %v11647, %v10878
        %v11649 = vmax.f32 %v11648, %v10882
        %v11650 = vmax.f32 %v11649, %v10888
        %v11651 = vmax.f32 %v11650, %v10892
        %v11652 = vmax.f32 %v11651, %v10898
        %v11653 = vmax.f32 %v11652, %v10902
        %v11654 = vmax.f32 %v11653, %v10908
        %v11655 = vmax.f32 %v11654, %v10912
        %v11656 = vmax.f32 %v11655, %v10918
        %v11657 = vmax.f32 %v11656, %v10922
        %v11658 = vmax.f32 %v11657, %v10928
        %v11659 = vmax.f32 %v11658, %v10932
        %v11660 = vmax.f32 %v11659, %v10938
        %v11661 = vmax.f32 %v11660, %v10942
        %v11662 = vmax.f32 %v11661, %v10948
        %v11663 = vmax.f32 %v11662, %v10952
        %v11664 = vmax.f32 %v11663, %v10958
        %v11665 = vmax.f32 %v11664, %v10962
        %v11666 = vmax.f32 %v11665, %v10968
        %v11667 = vmax.f32 %v11666, %v10972
        %v11668 = vrot.slane %v11667, 4
        %v11669 = vmax.f32 %v11667, %v11668
        %v11670 = vrot.slane %v11669, 2
        %v11671 = vmax.f32 %v11669, %v11670
        %v11672 = vrot.slane %v11671, 1
        %v11673 = vmax.f32 %v11671, %v11672
        %v11674 = vmax.f32 %v10820, %v10824
        %v11675 = vmax.f32 %v11674, %v10830
        %v11676 = vmax.f32 %v11675, %v10834
        %v11677 = vmax.f32 %v11676, %v10840
        %v11678 = vmax.f32 %v11677, %v10844
        %v11679 = vmax.f32 %v11678, %v10850
        %v11680 = vmax.f32 %v11679, %v10854
        %v11681 = vmax.f32 %v11680, %v10860
        %v11682 = vmax.f32 %v11681, %v10864
        %v11683 = vmax.f32 %v11682, %v10870
        %v11684 = vmax.f32 %v11683, %v10874
        %v11685 = vmax.f32 %v11684, %v10880
        %v11686 = vmax.f32 %v11685, %v10884
        %v11687 = vmax.f32 %v11686, %v10890
        %v11688 = vmax.f32 %v11687, %v10894
        %v11689 = vmax.f32 %v11688, %v10900
        %v11690 = vmax.f32 %v11689, %v10904
        %v11691 = vmax.f32 %v11690, %v10910
        %v11692 = vmax.f32 %v11691, %v10914
        %v11693 = vmax.f32 %v11692, %v10920
        %v11694 = vmax.f32 %v11693, %v10924
        %v11695 = vmax.f32 %v11694, %v10930
        %v11696 = vmax.f32 %v11695, %v10934
        %v11697 = vmax.f32 %v11696, %v10940
        %v11698 = vmax.f32 %v11697, %v10944
        %v11699 = vmax.f32 %v11698, %v10950
        %v11700 = vmax.f32 %v11699, %v10954
        %v11701 = vmax.f32 %v11700, %v10960
        %v11702 = vmax.f32 %v11701, %v10964
        %v11703 = vmax.f32 %v11702, %v10970
        %v11704 = vmax.f32 %v11703, %v10974
        %v11705 = vrot.slane %v11704, 4
        %v11706 = vmax.f32 %v11704, %v11705
        %v11707 = vrot.slane %v11706, 2
        %v11708 = vmax.f32 %v11706, %v11707
        %v11709 = vrot.slane %v11708, 1
        %v11710 = vmax.f32 %v11708, %v11709
        %v11711 = vmax.f32 %v11171, %v11175
        %v11712 = vmax.f32 %v11711, %v11181
        %v11713 = vmax.f32 %v11712, %v11185
        %v11714 = vmax.f32 %v11713, %v11191
        %v11715 = vmax.f32 %v11714, %v11195
        %v11716 = vmax.f32 %v11715, %v11201
        %v11717 = vmax.f32 %v11716, %v11205
        %v11718 = vmax.f32 %v11717, %v11211
        %v11719 = vmax.f32 %v11718, %v11215
        %v11720 = vmax.f32 %v11719, %v11221
        %v11721 = vmax.f32 %v11720, %v11225
        %v11722 = vmax.f32 %v11721, %v11231
        %v11723 = vmax.f32 %v11722, %v11235
        %v11724 = vmax.f32 %v11723, %v11241
        %v11725 = vmax.f32 %v11724, %v11245
        %v11726 = vmax.f32 %v11725, %v11251
        %v11727 = vmax.f32 %v11726, %v11255
        %v11728 = vmax.f32 %v11727, %v11261
        %v11729 = vmax.f32 %v11728, %v11265
        %v11730 = vmax.f32 %v11729, %v11271
        %v11731 = vmax.f32 %v11730, %v11275
        %v11732 = vmax.f32 %v11731, %v11281
        %v11733 = vmax.f32 %v11732, %v11285
        %v11734 = vmax.f32 %v11733, %v11291
        %v11735 = vmax.f32 %v11734, %v11295
        %v11736 = vmax.f32 %v11735, %v11301
        %v11737 = vmax.f32 %v11736, %v11305
        %v11738 = vmax.f32 %v11737, %v11311
        %v11739 = vmax.f32 %v11738, %v11315
        %v11740 = vmax.f32 %v11739, %v11321
        %v11741 = vmax.f32 %v11740, %v11325
        %v11742 = vrot.slane %v11741, 4
        %v11743 = vmax.f32 %v11741, %v11742
        %v11744 = vrot.slane %v11743, 2
        %v11745 = vmax.f32 %v11743, %v11744
        %v11746 = vrot.slane %v11745, 1
        %v11747 = vmax.f32 %v11745, %v11746
        %v11748 = vmax.f32 %v11173, %v11177
        %v11749 = vmax.f32 %v11748, %v11183
        %v11750 = vmax.f32 %v11749, %v11187
        %v11751 = vmax.f32 %v11750, %v11193
        %v11752 = vmax.f32 %v11751, %v11197
        %v11753 = vmax.f32 %v11752, %v11203
        %v11754 = vmax.f32 %v11753, %v11207
        %v11755 = vmax.f32 %v11754, %v11213
        %v11756 = vmax.f32 %v11755, %v11217
        %v11757 = vmax.f32 %v11756, %v11223
        %v11758 = vmax.f32 %v11757, %v11227
        %v11759 = vmax.f32 %v11758, %v11233
        %v11760 = vmax.f32 %v11759, %v11237
        %v11761 = vmax.f32 %v11760, %v11243
        %v11762 = vmax.f32 %v11761, %v11247
        %v11763 = vmax.f32 %v11762, %v11253
        %v11764 = vmax.f32 %v11763, %v11257
        %v11765 = vmax.f32 %v11764, %v11263
        %v11766 = vmax.f32 %v11765, %v11267
        %v11767 = vmax.f32 %v11766, %v11273
        %v11768 = vmax.f32 %v11767, %v11277
        %v11769 = vmax.f32 %v11768, %v11283
        %v11770 = vmax.f32 %v11769, %v11287
        %v11771 = vmax.f32 %v11770, %v11293
        %v11772 = vmax.f32 %v11771, %v11297
        %v11773 = vmax.f32 %v11772, %v11303
        %v11774 = vmax.f32 %v11773, %v11307
        %v11775 = vmax.f32 %v11774, %v11313
        %v11776 = vmax.f32 %v11775, %v11317
        %v11777 = vmax.f32 %v11776, %v11323
        %v11778 = vmax.f32 %v11777, %v11327
        %v11779 = vrot.slane %v11778, 4
        %v11780 = vmax.f32 %v11778, %v11779
        %v11781 = vrot.slane %v11780, 2
        %v11782 = vmax.f32 %v11780, %v11781
        %v11783 = vrot.slane %v11782, 1
        %v11784 = vmax.f32 %v11782, %v11783
        %v11785 = vmax.f32 %v10272, %v10276
        %v11786 = vmax.f32 %v11785, %v10282
        %v11787 = vmax.f32 %v11786, %v10286
        %v11788 = vmax.f32 %v11787, %v10292
        %v11789 = vmax.f32 %v11788, %v10296
        %v11790 = vmax.f32 %v11789, %v10302
        %v11791 = vmax.f32 %v11790, %v10306
        %v11792 = vmax.f32 %v11791, %v10312
        %v11793 = vmax.f32 %v11792, %v10316
        %v11794 = vmax.f32 %v11793, %v10322
        %v11795 = vmax.f32 %v11794, %v10326
        %v11796 = vmax.f32 %v11795, %v10332
        %v11797 = vmax.f32 %v11796, %v10336
        %v11798 = vmax.f32 %v11797, %v10342
        %v11799 = vmax.f32 %v11798, %v10346
        %v11800 = vmax.f32 %v11799, %v10352
        %v11801 = vmax.f32 %v11800, %v10356
        %v11802 = vmax.f32 %v11801, %v10362
        %v11803 = vmax.f32 %v11802, %v10366
        %v11804 = vmax.f32 %v11803, %v10372
        %v11805 = vmax.f32 %v11804, %v10376
        %v11806 = vmax.f32 %v11805, %v10382
        %v11807 = vmax.f32 %v11806, %v10386
        %v11808 = vmax.f32 %v11807, %v10392
        %v11809 = vmax.f32 %v11808, %v10396
        %v11810 = vmax.f32 %v11809, %v10402
        %v11811 = vmax.f32 %v11810, %v10406
        %v11812 = vmax.f32 %v11811, %v10412
        %v11813 = vmax.f32 %v11812, %v10416
        %v11814 = vmax.f32 %v11813, %v10422
        %v11815 = vmax.f32 %v11814, %v10426
        %v11816 = vrot.slane %v11815, 4
        %v11817 = vmax.f32 %v11815, %v11816
        %v11818 = vrot.slane %v11817, 2
        %v11819 = vmax.f32 %v11817, %v11818
        %v11820 = vrot.slane %v11819, 1
        %v11821 = vmax.f32 %v11819, %v11820
        %v11822 = vmax.f32 %v10274, %v10278
        %v11823 = vmax.f32 %v11822, %v10284
        %v11824 = vmax.f32 %v11823, %v10288
        %v11825 = vmax.f32 %v11824, %v10294
        %v11826 = vmax.f32 %v11825, %v10298
        %v11827 = vmax.f32 %v11826, %v10304
        %v11828 = vmax.f32 %v11827, %v10308
        %v11829 = vmax.f32 %v11828, %v10314
        %v11830 = vmax.f32 %v11829, %v10318
        %v11831 = vmax.f32 %v11830, %v10324
        %v11832 = vmax.f32 %v11831, %v10328
        %v11833 = vmax.f32 %v11832, %v10334
        %v11834 = vmax.f32 %v11833, %v10338
        %v11835 = vmax.f32 %v11834, %v10344
        %v11836 = vmax.f32 %v11835, %v10348
        %v11837 = vmax.f32 %v11836, %v10354
        %v11838 = vmax.f32 %v11837, %v10358
        %v11839 = vmax.f32 %v11838, %v10364
        %v11840 = vmax.f32 %v11839, %v10368
        %v11841 = vmax.f32 %v11840, %v10374
        %v11842 = vmax.f32 %v11841, %v10378
        %v11843 = vmax.f32 %v11842, %v10384
        %v11844 = vmax.f32 %v11843, %v10388
        %v11845 = vmax.f32 %v11844, %v10394
        %v11846 = vmax.f32 %v11845, %v10398
        %v11847 = vmax.f32 %v11846, %v10404
        %v11848 = vmax.f32 %v11847, %v10408
        %v11849 = vmax.f32 %v11848, %v10414
        %v11850 = vmax.f32 %v11849, %v10418
        %v11851 = vmax.f32 %v11850, %v10424
        %v11852 = vmax.f32 %v11851, %v10428
        %v11853 = vrot.slane %v11852, 4
        %v11854 = vmax.f32 %v11852, %v11853
        %v11855 = vrot.slane %v11854, 2
        %v11856 = vmax.f32 %v11854, %v11855
        %v11857 = vrot.slane %v11856, 1
        %v11858 = vmax.f32 %v11856, %v11857
        %v11859 = vmax.f32 %v10625, %v10629
        %v11860 = vmax.f32 %v11859, %v10635
        %v11861 = vmax.f32 %v11860, %v10639
        %v11862 = vmax.f32 %v11861, %v10645
        %v11863 = vmax.f32 %v11862, %v10649
        %v11864 = vmax.f32 %v11863, %v10655
        %v11865 = vmax.f32 %v11864, %v10659
        %v11866 = vmax.f32 %v11865, %v10665
        %v11867 = vmax.f32 %v11866, %v10669
        %v11868 = vmax.f32 %v11867, %v10675
        %v11869 = vmax.f32 %v11868, %v10679
        %v11870 = vmax.f32 %v11869, %v10685
        %v11871 = vmax.f32 %v11870, %v10689
        %v11872 = vmax.f32 %v11871, %v10695
        %v11873 = vmax.f32 %v11872, %v10699
        %v11874 = vmax.f32 %v11873, %v10705
        %v11875 = vmax.f32 %v11874, %v10709
        %v11876 = vmax.f32 %v11875, %v10715
        %v11877 = vmax.f32 %v11876, %v10719
        %v11878 = vmax.f32 %v11877, %v10725
        %v11879 = vmax.f32 %v11878, %v10729
        %v11880 = vmax.f32 %v11879, %v10735
        %v11881 = vmax.f32 %v11880, %v10739
        %v11882 = vmax.f32 %v11881, %v10745
        %v11883 = vmax.f32 %v11882, %v10749
        %v11884 = vmax.f32 %v11883, %v10755
        %v11885 = vmax.f32 %v11884, %v10759
        %v11886 = vmax.f32 %v11885, %v10765
        %v11887 = vmax.f32 %v11886, %v10769
        %v11888 = vmax.f32 %v11887, %v10775
        %v11889 = vmax.f32 %v11888, %v10779
        %v11890 = vrot.slane %v11889, 4
        %v11891 = vmax.f32 %v11889, %v11890
        %v11892 = vrot.slane %v11891, 2
        %v11893 = vmax.f32 %v11891, %v11892
        %v11894 = vrot.slane %v11893, 1
        %v11895 = vmax.f32 %v11893, %v11894
        %v11896 = vmax.f32 %v10627, %v10631
        %v11897 = vmax.f32 %v11896, %v10637
        %v11898 = vmax.f32 %v11897, %v10641
        %v11899 = vmax.f32 %v11898, %v10647
        %v11900 = vmax.f32 %v11899, %v10651
        %v11901 = vmax.f32 %v11900, %v10657
        %v11902 = vmax.f32 %v11901, %v10661
        %v11903 = vmax.f32 %v11902, %v10667
        %v11904 = vmax.f32 %v11903, %v10671
        %v11905 = vmax.f32 %v11904, %v10677
        %v11906 = vmax.f32 %v11905, %v10681
        %v11907 = vmax.f32 %v11906, %v10687
        %v11908 = vmax.f32 %v11907, %v10691
        %v11909 = vmax.f32 %v11908, %v10697
        %v11910 = vmax.f32 %v11909, %v10701
        %v11911 = vmax.f32 %v11910, %v10707
        %v11912 = vmax.f32 %v11911, %v10711
        %v11913 = vmax.f32 %v11912, %v10717
        %v11914 = vmax.f32 %v11913, %v10721
        %v11915 = vmax.f32 %v11914, %v10727
        %v11916 = vmax.f32 %v11915, %v10731
        %v11917 = vmax.f32 %v11916, %v10737
        %v11918 = vmax.f32 %v11917, %v10741
        %v11919 = vmax.f32 %v11918, %v10747
        %v11920 = vmax.f32 %v11919, %v10751
        %v11921 = vmax.f32 %v11920, %v10757
        %v11922 = vmax.f32 %v11921, %v10761
        %v11923 = vmax.f32 %v11922, %v10767
        %v11924 = vmax.f32 %v11923, %v10771
        %v11925 = vmax.f32 %v11924, %v10777
        %v11926 = vmax.f32 %v11925, %v10781
        %v11927 = vrot.slane %v11926, 4
        %v11928 = vmax.f32 %v11926, %v11927
        %v11929 = vrot.slane %v11928, 2
        %v11930 = vmax.f32 %v11928, %v11929
        %v11931 = vrot.slane %v11930, 1
        %v11932 = vmax.f32 %v11930, %v11931
        %v11933 = vmax.f32 %v10978, %v10982
        %v11934 = vmax.f32 %v11933, %v10988
        %v11935 = vmax.f32 %v11934, %v10992
        %v11936 = vmax.f32 %v11935, %v10998
        %v11937 = vmax.f32 %v11936, %v11002
        %v11938 = vmax.f32 %v11937, %v11008
        %v11939 = vmax.f32 %v11938, %v11012
        %v11940 = vmax.f32 %v11939, %v11018
        %v11941 = vmax.f32 %v11940, %v11022
        %v11942 = vmax.f32 %v11941, %v11028
        %v11943 = vmax.f32 %v11942, %v11032
        %v11944 = vmax.f32 %v11943, %v11038
        %v11945 = vmax.f32 %v11944, %v11042
        %v11946 = vmax.f32 %v11945, %v11048
        %v11947 = vmax.f32 %v11946, %v11052
        %v11948 = vmax.f32 %v11947, %v11058
        %v11949 = vmax.f32 %v11948, %v11062
        %v11950 = vmax.f32 %v11949, %v11068
        %v11951 = vmax.f32 %v11950, %v11072
        %v11952 = vmax.f32 %v11951, %v11078
        %v11953 = vmax.f32 %v11952, %v11082
        %v11954 = vmax.f32 %v11953, %v11088
        %v11955 = vmax.f32 %v11954, %v11092
        %v11956 = vmax.f32 %v11955, %v11098
        %v11957 = vmax.f32 %v11956, %v11102
        %v11958 = vmax.f32 %v11957, %v11108
        %v11959 = vmax.f32 %v11958, %v11112
        %v11960 = vmax.f32 %v11959, %v11118
        %v11961 = vmax.f32 %v11960, %v11122
        %v11962 = vmax.f32 %v11961, %v11128
        %v11963 = vmax.f32 %v11962, %v11132
        %v11964 = vrot.slane %v11963, 4
        %v11965 = vmax.f32 %v11963, %v11964
        %v11966 = vrot.slane %v11965, 2
        %v11967 = vmax.f32 %v11965, %v11966
        %v11968 = vrot.slane %v11967, 1
        %v11969 = vmax.f32 %v11967, %v11968
        %v11970 = vmax.f32 %v10980, %v10984
        %v11971 = vmax.f32 %v11970, %v10990
        %v11972 = vmax.f32 %v11971, %v10994
        %v11973 = vmax.f32 %v11972, %v11000
        %v11974 = vmax.f32 %v11973, %v11004
        %v11975 = vmax.f32 %v11974, %v11010
        %v11976 = vmax.f32 %v11975, %v11014
        %v11977 = vmax.f32 %v11976, %v11020
        %v11978 = vmax.f32 %v11977, %v11024
        %v11979 = vmax.f32 %v11978, %v11030
        %v11980 = vmax.f32 %v11979, %v11034
        %v11981 = vmax.f32 %v11980, %v11040
        %v11982 = vmax.f32 %v11981, %v11044
        %v11983 = vmax.f32 %v11982, %v11050
        %v11984 = vmax.f32 %v11983, %v11054
        %v11985 = vmax.f32 %v11984, %v11060
        %v11986 = vmax.f32 %v11985, %v11064
        %v11987 = vmax.f32 %v11986, %v11070
        %v11988 = vmax.f32 %v11987, %v11074
        %v11989 = vmax.f32 %v11988, %v11080
        %v11990 = vmax.f32 %v11989, %v11084
        %v11991 = vmax.f32 %v11990, %v11090
        %v11992 = vmax.f32 %v11991, %v11094
        %v11993 = vmax.f32 %v11992, %v11100
        %v11994 = vmax.f32 %v11993, %v11104
        %v11995 = vmax.f32 %v11994, %v11110
        %v11996 = vmax.f32 %v11995, %v11114
        %v11997 = vmax.f32 %v11996, %v11120
        %v11998 = vmax.f32 %v11997, %v11124
        %v11999 = vmax.f32 %v11998, %v11130
        %v12000 = vmax.f32 %v11999, %v11134
        %v12001 = vrot.slane %v12000, 4
        %v12002 = vmax.f32 %v12000, %v12001
        %v12003 = vrot.slane %v12002, 2
        %v12004 = vmax.f32 %v12002, %v12003
        %v12005 = vrot.slane %v12004, 1
        %v12006 = vmax.f32 %v12004, %v12005
        %v12007 = vmax.f32 %v11331, %v11335
        %v12008 = vmax.f32 %v12007, %v11341
        %v12009 = vmax.f32 %v12008, %v11345
        %v12010 = vmax.f32 %v12009, %v11351
        %v12011 = vmax.f32 %v12010, %v11355
        %v12012 = vmax.f32 %v12011, %v11361
        %v12013 = vmax.f32 %v12012, %v11365
        %v12014 = vmax.f32 %v12013, %v11371
        %v12015 = vmax.f32 %v12014, %v11375
        %v12016 = vmax.f32 %v12015, %v11381
        %v12017 = vmax.f32 %v12016, %v11385
        %v12018 = vmax.f32 %v12017, %v11391
        %v12019 = vmax.f32 %v12018, %v11395
        %v12020 = vmax.f32 %v12019, %v11401
        %v12021 = vmax.f32 %v12020, %v11405
        %v12022 = vmax.f32 %v12021, %v11411
        %v12023 = vmax.f32 %v12022, %v11415
        %v12024 = vmax.f32 %v12023, %v11421
        %v12025 = vmax.f32 %v12024, %v11425
        %v12026 = vmax.f32 %v12025, %v11431
        %v12027 = vmax.f32 %v12026, %v11435
        %v12028 = vmax.f32 %v12027, %v11441
        %v12029 = vmax.f32 %v12028, %v11445
        %v12030 = vmax.f32 %v12029, %v11451
        %v12031 = vmax.f32 %v12030, %v11455
        %v12032 = vmax.f32 %v12031, %v11461
        %v12033 = vmax.f32 %v12032, %v11465
        %v12034 = vmax.f32 %v12033, %v11471
        %v12035 = vmax.f32 %v12034, %v11475
        %v12036 = vmax.f32 %v12035, %v11481
        %v12037 = vmax.f32 %v12036, %v11485
        %v12038 = vrot.slane %v12037, 4
        %v12039 = vmax.f32 %v12037, %v12038
        %v12040 = vrot.slane %v12039, 2
        %v12041 = vmax.f32 %v12039, %v12040
        %v12042 = vrot.slane %v12041, 1
        %v12043 = vmax.f32 %v12041, %v12042
        %v12044 = vmax.f32 %v11333, %v11337
        %v12045 = vmax.f32 %v12044, %v11343
        %v12046 = vmax.f32 %v12045, %v11347
        %v12047 = vmax.f32 %v12046, %v11353
        %v12048 = vmax.f32 %v12047, %v11357
        %v12049 = vmax.f32 %v12048, %v11363
        %v12050 = vmax.f32 %v12049, %v11367
        %v12051 = vmax.f32 %v12050, %v11373
        %v12052 = vmax.f32 %v12051, %v11377
        %v12053 = vmax.f32 %v12052, %v11383
        %v12054 = vmax.f32 %v12053, %v11387
        %v12055 = vmax.f32 %v12054, %v11393
        %v12056 = vmax.f32 %v12055, %v11397
        %v12057 = vmax.f32 %v12056, %v11403
        %v12058 = vmax.f32 %v12057, %v11407
        %v12059 = vmax.f32 %v12058, %v11413
        %v12060 = vmax.f32 %v12059, %v11417
        %v12061 = vmax.f32 %v12060, %v11423
        %v12062 = vmax.f32 %v12061, %v11427
        %v12063 = vmax.f32 %v12062, %v11433
        %v12064 = vmax.f32 %v12063, %v11437
        %v12065 = vmax.f32 %v12064, %v11443
        %v12066 = vmax.f32 %v12065, %v11447
        %v12067 = vmax.f32 %v12066, %v11453
        %v12068 = vmax.f32 %v12067, %v11457
        %v12069 = vmax.f32 %v12068, %v11463
        %v12070 = vmax.f32 %v12069, %v11467
        %v12071 = vmax.f32 %v12070, %v11473
        %v12072 = vmax.f32 %v12071, %v11477
        %v12073 = vmax.f32 %v12072, %v11483
        %v12074 = vmax.f32 %v12073, %v11487
        %v12075 = vrot.slane %v12074, 4
        %v12076 = vmax.f32 %v12074, %v12075
        %v12077 = vrot.slane %v12076, 2
        %v12078 = vmax.f32 %v12076, %v12077
        %v12079 = vrot.slane %v12078, 1
        %v12080 = vmax.f32 %v12078, %v12079
        %v12097 = vcombine.low %v11525, %v11562
        %v12098 = vcombine.low %v11599, %v11636
        %v12099 = vcombine.low %v11673, %v11710
        %v12100 = vcombine.low %v11747, %v11784
        %v12102 = vunpack.c.l.s4 1966171168
        %v12103 = vunpack.c.0.s8 %v12102
        %v12104 = vlaneseq
        %v12105 = vshrl.u32 %v12104, 7
        %v12106 = vsub.s32 %v12103, %v12105
        %v12107 = vrot.slane %v12097, %v12106
        %v12109 = vunpack.c.l.s4 1966171168
        %v12110 = vunpack.c.0.s8 %v12109
        %v12111 = vlaneseq
        %v12112 = vshrl.u32 %v12111, 7
        %v12113 = vsub.s32 %v12110, %v12112
        %v12114 = vrot.slane %v12098, %v12113
        %v12116 = vunpack.c.l.s4 1966171168
        %v12117 = vunpack.c.0.s8 %v12116
        %v12118 = vlaneseq
        %v12119 = vshrl.u32 %v12118, 7
        %v12120 = vsub.s32 %v12117, %v12119
        %v12121 = vrot.slane %v12099, %v12120
        %v12123 = vunpack.c.l.s4 1966171168
        %v12124 = vunpack.c.0.s8 %v12123
        %v12125 = vlaneseq
        %v12126 = vshrl.u32 %v12125, 7
        %v12127 = vsub.s32 %v12124, %v12126
        %v12128 = vrot.slane %v12100, %v12127
        %v12129 = vcombine.low %v12107, %v12114
        %v12130 = vcombine.low %v12121, %v12128
        %v12132 = vunpack.c.l.s4 1966171168
        %v12133 = vunpack.c.0.s8 %v12132
        %v12134 = vlaneseq
        %v12135 = vshrl.u32 %v12134, 7
        %v12136 = vsub.s32 %v12133, %v12135
        %v12137 = vrot.slane %v12129, %v12136
        %v12139 = vunpack.c.l.s4 1966171168
        %v12140 = vunpack.c.0.s8 %v12139
        %v12141 = vlaneseq
        %v12142 = vshrl.u32 %v12141, 7
        %v12143 = vsub.s32 %v12140, %v12142
        %v12144 = vrot.slane %v12130, %v12143
        %v12145 = vcombine.low %v12137, %v12144
        %v12146 = vcombine.low %v11821, %v11858
        %v12147 = vcombine.low %v11895, %v11932
        %v12148 = vcombine.low %v11969, %v12006
        %v12149 = vcombine.low %v12043, %v12080
        %v12151 = vunpack.c.l.s4 1966171168
        %v12152 = vunpack.c.0.s8 %v12151
        %v12153 = vlaneseq
        %v12154 = vshrl.u32 %v12153, 7
        %v12155 = vsub.s32 %v12152, %v12154
        %v12156 = vrot.slane %v12146, %v12155
        %v12158 = vunpack.c.l.s4 1966171168
        %v12159 = vunpack.c.0.s8 %v12158
        %v12160 = vlaneseq
        %v12161 = vshrl.u32 %v12160, 7
        %v12162 = vsub.s32 %v12159, %v12161
        %v12163 = vrot.slane %v12147, %v12162
        %v12165 = vunpack.c.l.s4 1966171168
        %v12166 = vunpack.c.0.s8 %v12165
        %v12167 = vlaneseq
        %v12168 = vshrl.u32 %v12167, 7
        %v12169 = vsub.s32 %v12166, %v12168
        %v12170 = vrot.slane %v12148, %v12169
        %v12172 = vunpack.c.l.s4 1966171168
        %v12173 = vunpack.c.0.s8 %v12172
        %v12174 = vlaneseq
        %v12175 = vshrl.u32 %v12174, 7
        %v12176 = vsub.s32 %v12173, %v12175
        %v12177 = vrot.slane %v12149, %v12176
        %v12178 = vcombine.low %v12156, %v12163
        %v12179 = vcombine.low %v12170, %v12177
        %v12181 = vunpack.c.l.s4 1966171168
        %v12182 = vunpack.c.0.s8 %v12181
        %v12183 = vlaneseq
        %v12184 = vshrl.u32 %v12183, 7
        %v12185 = vsub.s32 %v12182, %v12184
        %v12186 = vrot.slane %v12178, %v12185
        %v12188 = vunpack.c.l.s4 1966171168
        %v12189 = vunpack.c.0.s8 %v12188
        %v12190 = vlaneseq
        %v12191 = vshrl.u32 %v12190, 7
        %v12192 = vsub.s32 %v12189, %v12191
        %v12193 = vrot.slane %v12179, %v12192
        %v12194 = vcombine.low %v12186, %v12193
        %12197 = vst [vmem:[%s418] sm:$0xff] %v12145
        %12198 = vst [vmem:[%s418 + $0x8] sm:$0xff] %v12194
        %s12199 = sand.u32 %s233, 1
        %s12200 = scalar_lea.sflag [#allocation4], %s12199
        %s12201 = sand.u32 %s233, 1
        %s12202 = smul.addr %s12201, 16
        %s12203 = scalar_lea.vmem [#allocation10], %s12202
        %s12204 = sand.u32 %s259, 1
        %s12205 = scalar_lea.sflag [#allocation12], %s12204
        %s12206 = sand.u32 %s259, 1
        %s12207 = smul.addr %s12206, 2
        %s12208 = scalar_lea.vmem [#allocation11], %s12207
        // Predicated region
        $region73: #{tpu_custom_call.1} parent=55 // pred_check
          %p12209 = pneg %p243
        $region74: #{tpu_custom_call.1} parent=55 // pred_check_branch
          %12211 = sbr.rel (%p12209) target = $region76
        $region75: #{tpu_custom_call.1} parent=55 // pred_region
          %s12212 = smul.u32 2, %s31
          %s12214 = ssub.s32 256, 256
          %12215 = vsyncadd %s12200, %s12214
          %s12216 = smul.addr %s12212, 8
          %s12217 = smul.addr %s12216, 16
          %s12218 = scalar_lea.hbm %s9, %s12217
          %s12219 = sshll.u32 %s12203, 4
          %s12220 = int_to_ptr.vmem [resolvable:$true] %s12219
          %12225 = dma.vmem_to_hbm [thread:$0]  %s12220, 256, %s12218, %s12200, 128, 128, 8
        $region76: #{tpu_custom_call.1} parent=55 // pred_fallthru
          _
        // Predicated region
        $region77: #{tpu_custom_call.1} parent=55 // pred_check
          %p12226 = pneg %p269
        $region78: #{tpu_custom_call.1} parent=55 // pred_check_branch
          %12228 = sbr.rel (%p12226) target = $region80
        $region79: #{tpu_custom_call.1} parent=55 // pred_region
          %s12229 = smul.u32 2, %s31
          %s12231 = ssub.s32 32, 32
          %12232 = vsyncadd %s12205, %s12231
          %s12233 = smul.addr %s12229, 16
          %s12234 = scalar_lea.hbm %s10, %s12233
          %s12235 = sshll.u32 %s12208, 4
          %s12236 = int_to_ptr.vmem [resolvable:$true] %s12235
          %12241 = dma.vmem_to_hbm [thread:$0]  %s12236, 32, %s12234, %s12205, 16, 16, 1
        $region80: #{tpu_custom_call.1} parent=55 // pred_fallthru
          _
      $region56: #{tpu_custom_call.1} parent=5 // pred_fallthru
        _
      %p12242 = scmp.le.s32.totalorder 2, %s26
      // Predicated region
      $region81: #{tpu_custom_call.1} parent=5 // pred_check
        %p12243 = pneg %p12242
      $region82: #{tpu_custom_call.1} parent=5 // pred_check_branch
        %12245 = sbr.rel (%p12243) target = $region84
      $region83: #{tpu_custom_call.1} parent=5 // pred_region
        %s12246 = ssub.s32 %s26, 2
        // Predicated region
        $region85: #{tpu_custom_call.1} parent=83 // pred_check
          %p12247 = pneg %p249
        $region86: #{tpu_custom_call.1} parent=83 // pred_check_branch
          %12249 = sbr.rel (%p12247) target = $region88
        $region87: #{tpu_custom_call.1} parent=83 // pred_region
          %s12250 = sand.u32 %s234, 1
          %s12251 = scalar_lea.sflag [#allocation4], %s12250
          %s12252 = sand.u32 %s234, 1
          %s12253 = smul.addr %s12252, 16
          %s12254 = scalar_lea.vmem [#allocation10], %s12253
          %12255 = dma.done %s12251, 256
        $region88: #{tpu_custom_call.1} parent=83 // pred_fallthru
          _
        // Predicated region
        $region89: #{tpu_custom_call.1} parent=83 // pred_check
          %p12256 = pneg %p275
        $region90: #{tpu_custom_call.1} parent=83 // pred_check_branch
          %12258 = sbr.rel (%p12256) target = $region92
        $region91: #{tpu_custom_call.1} parent=83 // pred_region
          %s12259 = sand.u32 %s260, 1
          %s12260 = scalar_lea.sflag [#allocation12], %s12259
          %s12261 = sand.u32 %s260, 1
          %s12262 = smul.addr %s12261, 2
          %s12263 = scalar_lea.vmem [#allocation11], %s12262
          %12264 = dma.done %s12260, 32
        $region92: #{tpu_custom_call.1} parent=83 // pred_fallthru
          _
      $region84: #{tpu_custom_call.1} parent=5 // pred_fallthru
        _
    $region6: #{tpu_custom_call.1} parent=1 // loop_footer
      %s30 = sadd.s32 1, %s26
    $region7: #{tpu_custom_call.1} parent=1 // loop_footer_branch
      %25 = sbr.rel target = $region3
    $region8: #{tpu_custom_call.1} parent=1 // loop_exit
      _
    %12265 = vsyncpa [#allocation3], 1
    %s12266 = scalar_lea.sflag [#allocation3], 1
    %12267 = vsyncpa %s12266, 1
    %12268 = vsyncpa [#allocation6], 1
    %12269 = vsyncpa [#allocation9], 1
    %12270 = vsyncpa [#allocation4], 1
    %s12271 = scalar_lea.sflag [#allocation4], 1
    %12272 = vsyncpa %s12271, 1
    %12273 = vsyncpa [#allocation12], 1
    %s12274 = scalar_lea.sflag [#allocation12], 1
    %12275 = vsyncpa %s12274, 1

</llo_original>
